<compile_context>
chip_gen: v5e
topology: v5e:2x2
jax: 0.10.0
libtpu: 0.0.40
codegen_flags: <defaults>
</compile_context>

<pallas_src>
import math
from functools import partial

import jax
import jax.numpy as jnp
import numpy as np
from jax import lax
from jax.experimental import pallas as pl
from jax.experimental.pallas import tpu as pltpu


def _default_use_bf16_exp():
    """bf16 exp only where the EUP has a bf16 path (v6e / v7x)."""
    try:
        kind = jax.devices()[0].device_kind.lower()
    except Exception:
        return False
    return any(t in kind for t in ("v6", "v7", "tpu7"))


# ---------------------------------------------------------------------------
# Flash-attention kernel (causal, GQA group stacked along the MXU M dimension)
# ---------------------------------------------------------------------------
def _flash_attn_kernel(qi_map_ref, ki_map_ref,          # scalar prefetch (SMEM)
                       q_ref, k_ref, v_ref,             # VMEM input blocks
                       o_ref,                           # VMEM output block
                       m_sc, l_sc, acc_sc, q_sc,        # VMEM scratch
                       *, scale, group, head_size, tq, use_bf16_exp):
    """One (kv-head, triangular-step) grid step.

    q_ref : (tq, group * head_size)  -- `group` query heads, lane-concatenated
    k_ref : (tk, head_size)          -- the single KV head shared by the group
    v_ref : (tk, head_size)
    o_ref : (tq, group * head_size)
    q_sc  : (group*tq, head_size)    -- scaled Q, group stacked along sublanes
    m_sc / l_sc / acc_sc : (group*tq, ...) online-softmax state.
    """
    step = pl.program_id(1)
    qi = qi_map_ref[step]        # query-tile index for this step
    ki = ki_map_ref[step]        # kv-tile index  (0 .. qi, diagonal last)
    D = head_size
    tk = k_ref.shape[0]
    rows = group * tq

    @pl.when(ki == 0)
    def _init():
        m_sc[...] = jnp.full(m_sc.shape, -jnp.inf, dtype=m_sc.dtype)
        l_sc[...] = jnp.zeros(l_sc.shape, dtype=l_sc.dtype)
        acc_sc[...] = jnp.zeros(acc_sc.shape, dtype=acc_sc.dtype)
        # Stack the GQA group along the MXU M dimension; fold the softmax
        # scale into this once-per-q-tile copy (amortized over all ki steps).
        q = q_ref[...]                                   # (tq, group*D)
        for j in range(group):
            q_sc[j * tq:(j + 1) * tq, :] = (
                q[:, j * D:(j + 1) * D].astype(jnp.float32) * scale
            ).astype(q_sc.dtype)

    def _attend(on_diagonal):
        k = k_ref[...]                                   # (tk, D)
        v = v_ref[...]                                   # (tk, D)
        # One QK^T for the whole group: (group*tq, D) x (tk, D)^T.
        s = lax.dot_general(q_sc[...], k, (((1,), (1,)), ((), ())),
                            preferred_element_type=jnp.float32)
        if on_diagonal:
            # tq == tk: local row (mod tq, since the group is stacked) vs col.
            r = lax.broadcasted_iota(jnp.int32, (rows, tk), 0) % tq
            c = lax.broadcasted_iota(jnp.int32, (rows, tk), 1)
            s = jnp.where(r >= c, s, -jnp.inf)

        m_prev = m_sc[...]                               # (group*tq, 1)
        m_new = jnp.maximum(m_prev, s.max(axis=-1, keepdims=True))
        alpha = jnp.exp(m_prev - m_new)                  # f32, tiny
        if use_bf16_exp:
            # bf16 EUP path (v6e/v7x): halves exp time; p feeds the bf16 MXU
            # anyway, and l is accumulated in f32.
            p = jnp.exp((s - m_new).astype(jnp.bfloat16))
            p_sum = p.astype(jnp.float32).sum(axis=-1, keepdims=True)
            p_mx = p
        else:
            p = jnp.exp(s - m_new)
            p_sum = p.sum(axis=-1, keepdims=True)
            p_mx = p.astype(v.dtype)
        l_sc[...] = alpha * l_sc[...] + p_sum
        # One PV matmul for the whole group: (group*tq, tk) x (tk, D).
        acc_sc[...] = alpha * acc_sc[...] + jnp.dot(
            p_mx, v, preferred_element_type=jnp.float32)
        m_sc[...] = m_new

        if on_diagonal:
            # The diagonal step is the last step of this q-tile: finalize with
            # direct per-head, 128-aligned, lane-dense stores (no concat temp).
            inv_l = pl.reciprocal(l_sc[...], approx=True)    # EUP slot
            for j in range(group):
                o_ref[:, j * D:(j + 1) * D] = (
                    acc_sc[j * tq:(j + 1) * tq, :]
                    * inv_l[j * tq:(j + 1) * tq, :]
                ).astype(o_ref.dtype)

    # Triangular step enumeration guarantees ki <= qi; only the diagonal tile
    # builds/applies the causal mask (and finalizes).
    @pl.when(ki < qi)
    def _interior():
        _attend(False)

    @pl.when(ki == qi)
    def _diagonal():
        _attend(True)


def flash_attention(q, k, v, *, scale, num_heads, num_kv_heads, head_size,
                    out_dtype=None, tq=256, tk=256, use_bf16_exp=None):
    """Causal grouped-query flash attention on flat token-major tensors.

    q: [T, num_heads * head_size]; k, v: [T, num_kv_heads * head_size]
    returns o: [T, num_heads * head_size]
    """
    T = q.shape[0]
    H, Hkv, D = num_heads, num_kv_heads, head_size
    assert q.shape == (T, H * D)
    assert k.shape == (T, Hkv * D) and v.shape == (T, Hkv * D)
    assert H % Hkv == 0
    group = H // Hkv
    tq = min(tq, T)
    tk = min(tk, T)
    # TODO(synk): pad / mask ragged & packed-sequence prompt lengths; real
    # vLLM prefill packs multiple prompts into one token axis and lengths are
    # not guaranteed to be tile multiples (needs per-sequence masking).
    assert tq == tk and T % tq == 0, (T, tq, tk)
    out_dtype = q.dtype if out_dtype is None else out_dtype
    if use_bf16_exp is None:
        use_bf16_exp = _default_use_bf16_exp()

    # Flatten the causal (qi, ki) pair into ONE triangular grid axis so no
    # grid step is ever empty.  ki runs 0..qi for each qi (diagonal last).
    nq = T // tq
    qi_host, ki_host = [], []
    for qi in range(nq):
        for ki in range(qi + 1):
            qi_host.append(qi)
            ki_host.append(ki)
    n_steps = len(qi_host)                       # nq*(nq+1)/2
    qi_map = jnp.asarray(np.asarray(qi_host, dtype=np.int32))
    ki_map = jnp.asarray(np.asarray(ki_host, dtype=np.int32))

    kernel = partial(_flash_attn_kernel, scale=scale, group=group,
                     head_size=D, tq=tq, use_bf16_exp=use_bf16_exp)

    return pl.pallas_call(
        kernel,
        out_shape=jax.ShapeDtypeStruct((T, H * D), out_dtype),
        grid_spec=pltpu.PrefetchScalarGridSpec(
            num_scalar_prefetch=2,
            # (kv head, triangular step); step axis carries the reduction.
            grid=(Hkv, n_steps),
            in_specs=[
                # Q: query tile qi_map[step], all `group` heads of kv head g.
                pl.BlockSpec((tq, group * D),
                             lambda g, s, qi_m, ki_m: (qi_m[s], g)),
                # K / V: kv tile ki_map[step] of kv head g.
                pl.BlockSpec((tk, D), lambda g, s, qi_m, ki_m: (ki_m[s], g)),
                pl.BlockSpec((tk, D), lambda g, s, qi_m, ki_m: (ki_m[s], g)),
            ],
            out_specs=pl.BlockSpec((tq, group * D),
                                   lambda g, s, qi_m, ki_m: (qi_m[s], g)),
            scratch_shapes=[
                pltpu.VMEM((group * tq, 1), jnp.float32),    # running max
                pltpu.VMEM((group * tq, 1), jnp.float32),    # running sum
                pltpu.VMEM((group * tq, D), jnp.float32),    # output accum
                pltpu.VMEM((group * tq, D), q.dtype),        # scaled Q (stacked)
            ],
        ),
        compiler_params=pltpu.CompilerParams(
            # Only the kv-head axis is parallel (megacore split lands on Hkv,
            # which is load-balanced; the triangular axis is the reduction).
            dimension_semantics=("parallel", "arbitrary")),
    )(qi_map, ki_map, q, k, v)


# ---------------------------------------------------------------------------
# Attention "module": KV-cache write (glue) + Pallas attention
# ---------------------------------------------------------------------------
class Attention:
    """JAX/Pallas port of vLLM's Attention layer (decoder prefill path)."""

    def __init__(self, num_heads, head_size, scale, num_kv_heads=None,
                 block_size=16):
        if num_kv_heads is None:
            num_kv_heads = num_heads
        assert num_heads % num_kv_heads == 0
        self.num_heads = num_heads
        self.head_size = head_size
        self.scale = float(scale)
        self.num_kv_heads = num_kv_heads
        self.block_size = block_size
        self._kv_scale = 1.0  # 'auto' kv-cache dtype -> no quantization
        # TODO(synk): fp8 KV-cache quantization (Fp8KVCacheMethod) not implemented.
        # TODO(synk): decode-time paged-attention path not implemented (prefill only).

    def forward(self, query, key, value, kv_cache, slot_mapping):
        """query: [T, H*D]; key/value: [T, Hkv*D];
        kv_cache: [2, num_blocks, block_size, Hkv, D] or None."""
        T = query.shape[0]
        H, Hkv, D = self.num_heads, self.num_kv_heads, self.head_size

        # (1) Store key/value tensors in the KV cache (pure data movement).
        if kv_cache is not None:
            bs = kv_cache.shape[2]
            k_tokens = key.reshape(T, Hkv, D)
            v_tokens = value.reshape(T, Hkv, D)
            if self._kv_scale != 1.0:
                k_tokens = k_tokens * self._kv_scale
                v_tokens = v_tokens * self._kv_scale
            k_tokens = k_tokens.astype(kv_cache.dtype)
            v_tokens = v_tokens.astype(kv_cache.dtype)

            try:
                sm_host = np.asarray(slot_mapping)   # concrete (eager) path
            except Exception:
                sm_host = None                       # traced: use fused scatter

            if (sm_host is not None and T % bs == 0
                    and int(sm_host[0]) % bs == 0
                    and np.array_equal(sm_host, sm_host[0] + np.arange(T))):
                # Contiguous prefill slots: dense streaming slice update
                # instead of a serialized XLA scatter.
                update = jnp.stack(
                    [k_tokens.reshape(T // bs, bs, Hkv, D),
                     v_tokens.reshape(T // bs, bs, Hkv, D)], axis=0)
                kv_cache = lax.dynamic_update_slice(
                    kv_cache, update, (0, int(sm_host[0]) // bs, 0, 0, 0))
            else:
                # One fused scatter for K and V (stacked along the leading dim).
                # TODO(synk): donate kv_cache under jit so XLA updates in place.
                bid = slot_mapping // bs
                off = slot_mapping % bs
                updates = jnp.stack([k_tokens, v_tokens], axis=0)  # (2,T,Hkv,D)
                kv_cache = kv_cache.at[:, bid, off].set(updates)

        # (2) (multi/grouped-query) causal attention -- Pallas kernel.
        # bf16 inputs: 2-4x MXU throughput, half the HBM/DMA traffic; softmax
        # stats / accumulation stay in f32 inside the kernel.
        out = flash_attention(
            query.astype(jnp.bfloat16),
            key.astype(jnp.bfloat16),
            value.astype(jnp.bfloat16),
            scale=self.scale, num_heads=H, num_kv_heads=Hkv, head_size=D,
            out_dtype=query.dtype)

        # (3) Already [T, H*D] -- no transpose needed.
        return out, kv_cache


# ---------------------------------------------------------------------------
# Pure-JAX reference for verification (bf16-rounded inputs, f32 math)
# ---------------------------------------------------------------------------
def attention_ref(query, key, value, num_heads, num_kv_heads, head_size, scale):
    T = query.shape[0]
    to_f32 = lambda x: x.astype(jnp.bfloat16).astype(jnp.float32)
    q = to_f32(query).reshape(T, num_heads, head_size).transpose(1, 0, 2)
    k = to_f32(key).reshape(T, num_kv_heads, head_size).transpose(1, 0, 2)
    v = to_f32(value).reshape(T, num_kv_heads, head_size).transpose(1, 0, 2)
    group = num_heads // num_kv_heads
    k = jnp.repeat(k, group, axis=0)
    v = jnp.repeat(v, group, axis=0)
    s = jnp.einsum("hqd,hkd->hqk", q, k,
                   precision=jax.lax.Precision.HIGHEST) * scale
    mask = jnp.tril(jnp.ones((T, T), dtype=bool))
    s = jnp.where(mask[None], s, -jnp.inf)
    p = jax.nn.softmax(s, axis=-1)
    o = jnp.einsum("hqk,hkd->hqd", p, v,
                   precision=jax.lax.Precision.HIGHEST)
    return o.transpose(1, 0, 2).reshape(T, num_heads * head_size)


if __name__ == "__main__":
    # Small prefill-shaped problem (2 query tiles x 2 kv tiles at tq=tk=256,
    # triangular grid of 3 steps per kv head).
    T = 512            # num prompt tokens
    H = 4              # num query heads
    Hkv = 2            # num kv heads (grouped-query attention, group = 2)
    D = 128            # head size
    BLOCK_SIZE = 16
    scale = 1.0 / math.sqrt(D)

    key0 = jax.random.PRNGKey(0)
    kq, kk, kv = jax.random.split(key0, 3)
    query = jax.random.normal(kq, (T, H * D), dtype=jnp.float32)
    key_t = jax.random.normal(kk, (T, Hkv * D), dtype=jnp.float32)
    value = jax.random.normal(kv, (T, Hkv * D), dtype=jnp.float32)

    num_blocks = T // BLOCK_SIZE
    kv_cache = jnp.zeros((2, num_blocks, BLOCK_SIZE, Hkv, D), dtype=jnp.float32)
    slot_mapping = jnp.arange(T, dtype=jnp.int32)

    attn = Attention(num_heads=H, head_size=D, scale=scale,
                     num_kv_heads=Hkv, block_size=BLOCK_SIZE)

    out, kv_cache = attn.forward(query, key_t, value, kv_cache, slot_mapping)
    out = jax.block_until_ready(out)
    kv_cache = jax.block_until_ready(kv_cache)

    # Correctness checks (bf16-pipeline tolerance: bf16 MXU, bf16 exp on
    # v6e/v7x, scale folded into the bf16 Q copy, approx reciprocal).
    ref = attention_ref(query, key_t, value, H, Hkv, D, scale)
    diff = jnp.abs(out.astype(jnp.float32) - ref)
    max_err = float(jnp.max(diff))
    mean_err = float(jnp.mean(diff))
    assert max_err < 6e-2, max_err
    assert mean_err < 1e-2, mean_err
    assert jnp.allclose(
        kv_cache[0].reshape(T, Hkv, D), key_t.reshape(T, Hkv, D))
    assert jnp.allclose(
        kv_cache[1].reshape(T, Hkv, D), value.reshape(T, Hkv, D))

    print("KERNEL_OK")
</pallas_src>

<mosaic_0001>
module attributes {stable_mosaic.version = 11 : i64} {
  func.func @_flash_attn_kernel(%arg0: i32, %arg1: i32, %arg2: memref<3xi32, #tpu.memory_space<smem>>, %arg3: memref<3xi32, #tpu.memory_space<smem>>, %arg4: memref<256x256xbf16, #tpu.memory_space<vmem>>, %arg5: memref<256x128xbf16, #tpu.memory_space<vmem>>, %arg6: memref<256x128xbf16, #tpu.memory_space<vmem>>, %arg7: memref<256x256xf32, #tpu.memory_space<vmem>>, %arg8: memref<512x1xf32, #tpu.memory_space<vmem>>, %arg9: memref<512x1xf32, #tpu.memory_space<vmem>>, %arg10: memref<512x128xf32, #tpu.memory_space<vmem>>, %arg11: memref<512x128xbf16, #tpu.memory_space<vmem>>) attributes {dimension_semantics = [#tpu.dimension_semantics<parallel>, #tpu.dimension_semantics<arbitrary>], iteration_bounds = array<i64: 2, 3>, scalar_prefetch = 2 : i64, scratch_operands = 4 : i64, tpu.core_type = #tpu.core_type<tc>, window_params = [{transform_indices = @transform_0, window_bounds = array<i64: 256, 256>}, {transform_indices = @transform_1, window_bounds = array<i64: 256, 128>}, {transform_indices = @transform_2, window_bounds = array<i64: 256, 128>}, {transform_indices = @transform_3, window_bounds = array<i64: 256, 256>}]} {
    %0 = arith.index_cast %arg1 : i32 to index
    %1 = memref.load %arg2[%0] : memref<3xi32, #tpu.memory_space<smem>>
    %2 = arith.index_cast %arg1 : i32 to index
    %3 = memref.load %arg3[%2] : memref<3xi32, #tpu.memory_space<smem>>
    %c0_i32 = arith.constant 0 : i32
    %4 = arith.cmpi eq, %3, %c0_i32 : i32
    %5 = arith.extui %4 : i1 to i32
    %c0_i32_0 = arith.constant 0 : i32
    %6 = arith.cmpi ne, %5, %c0_i32_0 : i32
    scf.if %6 {
      %cst = arith.constant 0xFF800000 : f32
      %13 = vector.broadcast %cst : f32 to vector<512x1xf32>
      %c0 = arith.constant 0 : index
      %c0_3 = arith.constant 0 : index
      %14 = vector.load %arg8[%c0, %c0_3] : memref<512x1xf32, #tpu.memory_space<vmem>>, vector<512x1xf32>
      tpu.vector_store %arg8[%c0, %c0_3], %13 {strides = array<i32>} : memref<512x1xf32, #tpu.memory_space<vmem>>, vector<512x1xf32>,
      %cst_4 = arith.constant 0.000000e+00 : f32
      %15 = vector.broadcast %cst_4 : f32 to vector<512x1xf32>
      %c0_5 = arith.constant 0 : index
      %c0_6 = arith.constant 0 : index
      %16 = vector.load %arg9[%c0_5, %c0_6] : memref<512x1xf32, #tpu.memory_space<vmem>>, vector<512x1xf32>
      tpu.vector_store %arg9[%c0_5, %c0_6], %15 {strides = array<i32>} : memref<512x1xf32, #tpu.memory_space<vmem>>, vector<512x1xf32>,
      %cst_7 = arith.constant 0.000000e+00 : f32
      %17 = vector.broadcast %cst_7 : f32 to vector<512x128xf32>
      %c0_8 = arith.constant 0 : index
      %c0_9 = arith.constant 0 : index
      %18 = vector.load %arg10[%c0_8, %c0_9] : memref<512x128xf32, #tpu.memory_space<vmem>>, vector<512x128xf32>
      tpu.vector_store %arg10[%c0_8, %c0_9], %17 {strides = array<i32>} : memref<512x128xf32, #tpu.memory_space<vmem>>, vector<512x128xf32>,
      %c0_10 = arith.constant 0 : index
      %c0_11 = arith.constant 0 : index
      %19 = vector.load %arg4[%c0_10, %c0_11] : memref<256x256xbf16, #tpu.memory_space<vmem>>, vector<256x256xbf16>
      %20 = vector.extract_strided_slice %19 {offsets = [0, 0], sizes = [256, 128], strides = [1, 1]} : vector<256x256xbf16> to vector<256x128xbf16>
      %21 = arith.extf %20 : vector<256x128xbf16> to vector<256x128xf32>
      %cst_12 = arith.constant 0.0883883461 : f32
      %22 = vector.broadcast %cst_12 : f32 to vector<256x128xf32>
      %23 = arith.mulf %21, %22 : vector<256x128xf32>
      %24 = arith.truncf %23 : vector<256x128xf32> to vector<256x128xbf16>
      %c0_13 = arith.constant 0 : index
      %c0_14 = arith.constant 0 : index
      %25 = vector.load %arg11[%c0_13, %c0_14] : memref<512x128xbf16, #tpu.memory_space<vmem>>, vector<256x128xbf16>
      tpu.vector_store %arg11[%c0_13, %c0_14], %24 {strides = array<i32>} : memref<512x128xbf16, #tpu.memory_space<vmem>>, vector<256x128xbf16>,
      %26 = vector.extract_strided_slice %19 {offsets = [0, 128], sizes = [256, 128], strides = [1, 1]} : vector<256x256xbf16> to vector<256x128xbf16>
      %27 = arith.extf %26 : vector<256x128xbf16> to vector<256x128xf32>
      %cst_15 = arith.constant 0.0883883461 : f32
      %28 = vector.broadcast %cst_15 : f32 to vector<256x128xf32>
      %29 = arith.mulf %27, %28 : vector<256x128xf32>
      %30 = arith.truncf %29 : vector<256x128xf32> to vector<256x128xbf16>
      %c256 = arith.constant 256 : index
      %c0_16 = arith.constant 0 : index
      %31 = vector.load %arg11[%c256, %c0_16] : memref<512x128xbf16, #tpu.memory_space<vmem>>, vector<256x128xbf16>
      tpu.vector_store %arg11[%c256, %c0_16], %30 {strides = array<i32>} : memref<512x128xbf16, #tpu.memory_space<vmem>>, vector<256x128xbf16>,
    } else {
    }
    %7 = arith.cmpi slt, %3, %1 : i32
    %8 = arith.extui %7 : i1 to i32
    %c0_i32_1 = arith.constant 0 : i32
    %9 = arith.cmpi ne, %8, %c0_i32_1 : i32
    scf.if %9 {
      %c0 = arith.constant 0 : index
      %c0_3 = arith.constant 0 : index
      %13 = vector.load %arg5[%c0, %c0_3] : memref<256x128xbf16, #tpu.memory_space<vmem>>, vector<256x128xbf16>
      %c0_4 = arith.constant 0 : index
      %c0_5 = arith.constant 0 : index
      %14 = vector.load %arg6[%c0_4, %c0_5] : memref<256x128xbf16, #tpu.memory_space<vmem>>, vector<256x128xbf16>
      %c0_6 = arith.constant 0 : index
      %c0_7 = arith.constant 0 : index
      %15 = vector.load %arg11[%c0_6, %c0_7] : memref<512x128xbf16, #tpu.memory_space<vmem>>, vector<512x128xbf16>
      %cst = arith.constant dense<0.000000e+00> : vector<512x256xf32>
      %16 = tpu.matmul %15, %13, %cst {dimension_numbers = #tpu.dot_dimension_numbers<[1], [1], [0], [0], [0, 0, 1, 0], [], []>} : vector<512x128xbf16>, vector<256x128xbf16>, vector<512x256xf32> -> vector<512x256xf32>
      %c0_8 = arith.constant 0 : index
      %c0_9 = arith.constant 0 : index
      %17 = vector.load %arg8[%c0_8, %c0_9] : memref<512x1xf32, #tpu.memory_space<vmem>>, vector<512x1xf32>
      %cst_10 = arith.constant dense<0xFF800000> : vector<512xf32>
      %18 = vector.multi_reduction <maximumf>, %16, %cst_10 [1] : vector<512x256xf32> to vector<512xf32>
      %19 = vector.shape_cast %18 : vector<512xf32> to vector<512x1xf32>
      %20 = arith.maximumf %17, %19 : vector<512x1xf32>
      %21 = arith.subf %17, %20 : vector<512x1xf32>
      %22 = math.exp %21 : vector<512x1xf32>
      %23 = vector.broadcast %20 : vector<512x1xf32> to vector<512x256xf32>
      %24 = arith.subf %16, %23 : vector<512x256xf32>
      %25 = math.exp %24 : vector<512x256xf32>
      %cst_11 = arith.constant dense<0.000000e+00> : vector<512xf32>
      %26 = vector.multi_reduction <add>, %25, %cst_11 [1] : vector<512x256xf32> to vector<512xf32>
      %27 = vector.shape_cast %26 : vector<512xf32> to vector<512x1xf32>
      %28 = arith.truncf %25 : vector<512x256xf32> to vector<512x256xbf16>
      %c0_12 = arith.constant 0 : index
      %c0_13 = arith.constant 0 : index
      %29 = vector.load %arg9[%c0_12, %c0_13] : memref<512x1xf32, #tpu.memory_space<vmem>>, vector<512x1xf32>
      %30 = arith.mulf %22, %29 : vector<512x1xf32>
      %31 = arith.addf %30, %27 : vector<512x1xf32>
      %c0_14 = arith.constant 0 : index
      %c0_15 = arith.constant 0 : index
      %32 = vector.load %arg9[%c0_14, %c0_15] : memref<512x1xf32, #tpu.memory_space<vmem>>, vector<512x1xf32>
      tpu.vector_store %arg9[%c0_14, %c0_15], %31 {strides = array<i32>} : memref<512x1xf32, #tpu.memory_space<vmem>>, vector<512x1xf32>,
      %c0_16 = arith.constant 0 : index
      %c0_17 = arith.constant 0 : index
      %33 = vector.load %arg10[%c0_16, %c0_17] : memref<512x128xf32, #tpu.memory_space<vmem>>, vector<512x128xf32>
      %34 = vector.broadcast %22 : vector<512x1xf32> to vector<512x128xf32>
      %35 = arith.mulf %34, %33 : vector<512x128xf32>
      %cst_18 = arith.constant dense<0.000000e+00> : vector<512x128xf32>
      %36 = tpu.matmul %28, %14, %cst_18 {dimension_numbers = #tpu.dot_dimension_numbers<[1], [0], [0], [1], [0, 0, 1, 1], [], []>} : vector<512x256xbf16>, vector<256x128xbf16>, vector<512x128xf32> -> vector<512x128xf32>
      %37 = arith.addf %35, %36 : vector<512x128xf32>
      %c0_19 = arith.constant 0 : index
      %c0_20 = arith.constant 0 : index
      %38 = vector.load %arg10[%c0_19, %c0_20] : memref<512x128xf32, #tpu.memory_space<vmem>>, vector<512x128xf32>
      tpu.vector_store %arg10[%c0_19, %c0_20], %37 {strides = array<i32>} : memref<512x128xf32, #tpu.memory_space<vmem>>, vector<512x128xf32>,
      %c0_21 = arith.constant 0 : index
      %c0_22 = arith.constant 0 : index
      %39 = vector.load %arg8[%c0_21, %c0_22] : memref<512x1xf32, #tpu.memory_space<vmem>>, vector<512x1xf32>
      tpu.vector_store %arg8[%c0_21, %c0_22], %20 {strides = array<i32>} : memref<512x1xf32, #tpu.memory_space<vmem>>, vector<512x1xf32>,
    } else {
    }
    %10 = arith.cmpi eq, %3, %1 : i32
    %11 = arith.extui %10 : i1 to i32
    %c0_i32_2 = arith.constant 0 : i32
    %12 = arith.cmpi ne, %11, %c0_i32_2 : i32
    scf.if %12 {
      %c0 = arith.constant 0 : index
      %c0_3 = arith.constant 0 : index
      %13 = vector.load %arg5[%c0, %c0_3] : memref<256x128xbf16, #tpu.memory_space<vmem>>, vector<256x128xbf16>
      %c0_4 = arith.constant 0 : index
      %c0_5 = arith.constant 0 : index
      %14 = vector.load %arg6[%c0_4, %c0_5] : memref<256x128xbf16, #tpu.memory_space<vmem>>, vector<256x128xbf16>
      %c0_6 = arith.constant 0 : index
      %c0_7 = arith.constant 0 : index
      %15 = vector.load %arg11[%c0_6, %c0_7] : memref<512x128xbf16, #tpu.memory_space<vmem>>, vector<512x128xbf16>
      %cst = arith.constant dense<0.000000e+00> : vector<512x256xf32>
      %16 = tpu.matmul %15, %13, %cst {dimension_numbers = #tpu.dot_dimension_numbers<[1], [1], [0], [0], [0, 0, 1, 0], [], []>} : vector<512x128xbf16>, vector<256x128xbf16>, vector<512x256xf32> -> vector<512x256xf32>
      %17 = tpu.iota {dimensions = array<i32: 0>} : vector<512x256xi32>
      %c256_i32 = arith.constant 256 : i32
      %c0_i32_8 = arith.constant 0 : i32
      %18 = arith.cmpi eq, %c256_i32, %c0_i32_8 : i32
      %c1_i32 = arith.constant 1 : i32
      %19 = arith.select %18, %c1_i32, %c256_i32 : i32
      %20 = vector.broadcast %19 : i32 to vector<512x256xi32>
      %21 = arith.remsi %17, %20 : vector<512x256xi32>
      %c0_i32_9 = arith.constant 0 : i32
      %22 = vector.broadcast %c0_i32_9 : i32 to vector<512x256xi32>
      %23 = arith.cmpi ne, %21, %22 : vector<512x256xi32>
      %c0_i32_10 = arith.constant 0 : i32
      %24 = vector.broadcast %c0_i32_10 : i32 to vector<512x256xi32>
      %25 = arith.cmpi slt, %21, %24 : vector<512x256xi32>
      %c0_i32_11 = arith.constant 0 : i32
      %26 = arith.cmpi slt, %19, %c0_i32_11 : i32
      %27 = vector.broadcast %26 : i1 to vector<512x256xi1>
      %28 = vector.broadcast %27 : vector<512x256xi1> to vector<512x256xi1>
      %29 = arith.xori %25, %28 : vector<512x256xi1>
      %30 = arith.andi %29, %23 : vector<512x256xi1>
      %31 = vector.broadcast %19 : i32 to vector<512x256xi32>
      %32 = arith.addi %21, %31 : vector<512x256xi32>
      %33 = arith.select %30, %32, %21 : vector<512x256xi1>, vector<512x256xi32>
      %34 = tpu.iota {dimensions = array<i32: 1>} : vector<512x256xi32>
      %35 = arith.cmpi sge, %33, %34 : vector<512x256xi32>
      %cst_12 = arith.constant 0xFF800000 : f32
      %36 = vector.broadcast %cst_12 : f32 to vector<512x256xf32>
      %37 = arith.select %35, %16, %36 : vector<512x256xi1>, vector<512x256xf32>
      %c0_13 = arith.constant 0 : index
      %c0_14 = arith.constant 0 : index
      %38 = vector.load %arg8[%c0_13, %c0_14] : memref<512x1xf32, #tpu.memory_space<vmem>>, vector<512x1xf32>
      %cst_15 = arith.constant dense<0xFF800000> : vector<512xf32>
      %39 = vector.multi_reduction <maximumf>, %37, %cst_15 [1] : vector<512x256xf32> to vector<512xf32>
      %40 = vector.shape_cast %39 : vector<512xf32> to vector<512x1xf32>
      %41 = arith.maximumf %38, %40 : vector<512x1xf32>
      %42 = arith.subf %38, %41 : vector<512x1xf32>
      %43 = math.exp %42 : vector<512x1xf32>
      %44 = vector.broadcast %41 : vector<512x1xf32> to vector<512x256xf32>
      %45 = arith.subf %37, %44 : vector<512x256xf32>
      %46 = math.exp %45 : vector<512x256xf32>
      %cst_16 = arith.constant dense<0.000000e+00> : vector<512xf32>
      %47 = vector.multi_reduction <add>, %46, %cst_16 [1] : vector<512x256xf32> to vector<512xf32>
      %48 = vector.shape_cast %47 : vector<512xf32> to vector<512x1xf32>
      %49 = arith.truncf %46 : vector<512x256xf32> to vector<512x256xbf16>
      %c0_17 = arith.constant 0 : index
      %c0_18 = arith.constant 0 : index
      %50 = vector.load %arg9[%c0_17, %c0_18] : memref<512x1xf32, #tpu.memory_space<vmem>>, vector<512x1xf32>
      %51 = arith.mulf %43, %50 : vector<512x1xf32>
      %52 = arith.addf %51, %48 : vector<512x1xf32>
      %c0_19 = arith.constant 0 : index
      %c0_20 = arith.constant 0 : index
      %53 = vector.load %arg9[%c0_19, %c0_20] : memref<512x1xf32, #tpu.memory_space<vmem>>, vector<512x1xf32>
      tpu.vector_store %arg9[%c0_19, %c0_20], %52 {strides = array<i32>} : memref<512x1xf32, #tpu.memory_space<vmem>>, vector<512x1xf32>,
      %c0_21 = arith.constant 0 : index
      %c0_22 = arith.constant 0 : index
      %54 = vector.load %arg10[%c0_21, %c0_22] : memref<512x128xf32, #tpu.memory_space<vmem>>, vector<512x128xf32>
      %55 = vector.broadcast %43 : vector<512x1xf32> to vector<512x128xf32>
      %56 = arith.mulf %55, %54 : vector<512x128xf32>
      %cst_23 = arith.constant dense<0.000000e+00> : vector<512x128xf32>
      %57 = tpu.matmul %49, %14, %cst_23 {dimension_numbers = #tpu.dot_dimension_numbers<[1], [0], [0], [1], [0, 0, 1, 1], [], []>} : vector<512x256xbf16>, vector<256x128xbf16>, vector<512x128xf32> -> vector<512x128xf32>
      %58 = arith.addf %56, %57 : vector<512x128xf32>
      %c0_24 = arith.constant 0 : index
      %c0_25 = arith.constant 0 : index
      %59 = vector.load %arg10[%c0_24, %c0_25] : memref<512x128xf32, #tpu.memory_space<vmem>>, vector<512x128xf32>
      tpu.vector_store %arg10[%c0_24, %c0_25], %58 {strides = array<i32>} : memref<512x128xf32, #tpu.memory_space<vmem>>, vector<512x128xf32>,
      %c0_26 = arith.constant 0 : index
      %c0_27 = arith.constant 0 : index
      %60 = vector.load %arg8[%c0_26, %c0_27] : memref<512x1xf32, #tpu.memory_space<vmem>>, vector<512x1xf32>
      tpu.vector_store %arg8[%c0_26, %c0_27], %41 {strides = array<i32>} : memref<512x1xf32, #tpu.memory_space<vmem>>, vector<512x1xf32>,
      %c0_28 = arith.constant 0 : index
      %c0_29 = arith.constant 0 : index
      %61 = vector.load %arg9[%c0_28, %c0_29] : memref<512x1xf32, #tpu.memory_space<vmem>>, vector<512x1xf32>
      %62 = tpu.reciprocal %61 {approx = true} : vector<512x1xf32> -> vector<512x1xf32>
      %c0_30 = arith.constant 0 : index
      %c0_31 = arith.constant 0 : index
      %63 = vector.load %arg10[%c0_30, %c0_31] : memref<512x128xf32, #tpu.memory_space<vmem>>, vector<256x128xf32>
      %64 = vector.extract_strided_slice %62 {offsets = [0, 0], sizes = [256, 1], strides = [1, 1]} : vector<512x1xf32> to vector<256x1xf32>
      %65 = vector.broadcast %64 : vector<256x1xf32> to vector<256x128xf32>
      %66 = arith.mulf %63, %65 : vector<256x128xf32>
      %c0_32 = arith.constant 0 : index
      %c0_33 = arith.constant 0 : index
      %67 = vector.load %arg7[%c0_32, %c0_33] : memref<256x256xf32, #tpu.memory_space<vmem>>, vector<256x128xf32>
      tpu.vector_store %arg7[%c0_32, %c0_33], %66 {strides = array<i32>} : memref<256x256xf32, #tpu.memory_space<vmem>>, vector<256x128xf32>,
      %c256 = arith.constant 256 : index
      %c0_34 = arith.constant 0 : index
      %68 = vector.load %arg10[%c256, %c0_34] : memref<512x128xf32, #tpu.memory_space<vmem>>, vector<256x128xf32>
      %69 = vector.extract_strided_slice %62 {offsets = [256, 0], sizes = [256, 1], strides = [1, 1]} : vector<512x1xf32> to vector<256x1xf32>
      %70 = vector.broadcast %69 : vector<256x1xf32> to vector<256x128xf32>
      %71 = arith.mulf %68, %70 : vector<256x128xf32>
      %c0_35 = arith.constant 0 : index
      %c128 = arith.constant 128 : index
      %72 = vector.load %arg7[%c0_35, %c128] : memref<256x256xf32, #tpu.memory_space<vmem>>, vector<256x128xf32>
      tpu.vector_store %arg7[%c0_35, %c128], %71 {strides = array<i32>} : memref<256x256xf32, #tpu.memory_space<vmem>>, vector<256x128xf32>,
    } else {
    }
    return
  }
  func.func @transform_0(%arg0: i32, %arg1: i32, %arg2: memref<3xi32, #tpu.memory_space<smem>>, %arg3: memref<3xi32, #tpu.memory_space<smem>>) -> (i32, i32) {
    %0 = arith.index_cast %arg1 : i32 to index
    %1 = memref.load %arg2[%0] : memref<3xi32, #tpu.memory_space<smem>>
    %c0_i32 = arith.constant 0 : i32
    return %1, %arg0 : i32, i32
  }
  func.func @transform_1(%arg0: i32, %arg1: i32, %arg2: memref<3xi32, #tpu.memory_space<smem>>, %arg3: memref<3xi32, #tpu.memory_space<smem>>) -> (i32, i32) {
    %0 = arith.index_cast %arg1 : i32 to index
    %1 = memref.load %arg3[%0] : memref<3xi32, #tpu.memory_space<smem>>
    %c0_i32 = arith.constant 0 : i32
    return %1, %arg0 : i32, i32
  }
  func.func @transform_2(%arg0: i32, %arg1: i32, %arg2: memref<3xi32, #tpu.memory_space<smem>>, %arg3: memref<3xi32, #tpu.memory_space<smem>>) -> (i32, i32) {
    %0 = arith.index_cast %arg1 : i32 to index
    %1 = memref.load %arg3[%0] : memref<3xi32, #tpu.memory_space<smem>>
    %c0_i32 = arith.constant 0 : i32
    return %1, %arg0 : i32, i32
  }
  func.func @transform_3(%arg0: i32, %arg1: i32, %arg2: memref<3xi32, #tpu.memory_space<smem>>, %arg3: memref<3xi32, #tpu.memory_space<smem>>) -> (i32, i32) {
    %0 = arith.index_cast %arg1 : i32 to index
    %1 = memref.load %arg2[%0] : memref<3xi32, #tpu.memory_space<smem>>
    %c0_i32 = arith.constant 0 : i32
    return %1, %arg0 : i32, i32
  }
}

</mosaic_0001>

<llo_original>
// kernel: tpu_custom_call.1
$region0: #{tpu_custom_call.1}
  #allocation0 [shape = 'u32[]', space=smem, size = 0x4, offset = 0x4, fixed_abs, tag = 'smem constant byte address 0x4 - core index']
  #allocation1 [shape = 'u32[72,128]{1,0:T(1,128)}', space=vmem, size = 0x9000, scoped, tag = 'internal scratch']
  #allocation2 [shape = 'f32[512,1]{1,0:T(8,128)}', space=vmem, size = 0x40000, scoped, tag = 'scratch operand']
  #allocation3 [shape = 'f32[512,1]{1,0:T(8,128)}', space=vmem, size = 0x40000, scoped, tag = 'scratch operand']
  #allocation4 [shape = 'f32[512,128]{1,0:T(8,128)}', space=vmem, size = 0x40000, scoped, tag = 'scratch operand']
  #allocation5 [shape = 'bf16[512,128]{1,0:T(8,128)(2,1)}', space=vmem, size = 0x20000, scoped, tag = 'scratch operand']
  #allocation6 [shape = 's32[1]{0}', space=sflag, size = 0x4, scoped, tag = 'scoped memory for tpu_custom_call.1']
  #allocation7 [shape = 'u8[512]{0}', space=smem, size = 0x200, scoped, tag = 'prefetched SMEM operand 0']
  #allocation8 [shape = 'u8[512]{0}', space=smem, size = 0x200, scoped, tag = 'prefetched SMEM operand 1']
  %s0 = inlined_call_operand.hbm [shape: s32[3], index: 0, kind: input, shape index: {}]
  %s1 = inlined_call_operand.hbm [shape: s32[3], index: 1, kind: input, shape index: {}]
  %s2 = inlined_call_operand.hbm [shape: bf16[512,512], index: 2, kind: input, shape index: {}]
  %s3 = inlined_call_operand.hbm [shape: bf16[512,256], index: 3, kind: input, shape index: {}]
  %s4 = inlined_call_operand.hbm [shape: bf16[512,256], index: 4, kind: input, shape index: {}]
  %s5 = inlined_call_operand.hbm [shape: f32[512,512], index: 5, kind: output, shape index: {}]
  %s6 = sld [smem:[#allocation0]]
  $region69: #{tpu_custom_call.1} parent=0
    _
  %s8 = ssub.s32 1, %s6
  %s9 = scalar_select 0, %s8, %s6
  %s11 = sshll.u32 %s0, 4
  %s12 = int_to_ptr.hbm [resolvable:$true] %s11
  %14 = dma.hbm_to_smem %s12, 16, [#allocation7], [#allocation6]
  %s16 = sshll.u32 %s1, 4
  %s17 = int_to_ptr.hbm [resolvable:$true] %s16
  %19 = dma.hbm_to_smem %s17, 16, [#allocation8], [#allocation6]
  %21 = dma.done [#allocation6], 32
  %22 = sfence
  $region1: #{tpu_custom_call.1} parent=0
    #allocation9 [shape = 'u8[262144]{0}', space=vmem, size = 0x40000, scoped, tag = 'input window, operand 2']
    #allocation10 [shape = 's32[2]{0}', space=sflag, size = 0x8, scoped, tag = 'scoped memory for tpu_custom_call.1']
    #allocation11 [shape = 's32[2]{0}', space=sflag, size = 0x8, scoped, tag = 'scoped memory for tpu_custom_call.1']
    #allocation12 [shape = 'u8[131072]{0}', space=vmem, size = 0x20000, scoped, tag = 'input window, operand 3']
    #allocation13 [shape = 's32[2]{0}', space=sflag, size = 0x8, scoped, tag = 'scoped memory for tpu_custom_call.1']
    #allocation14 [shape = 'u8[131072]{0}', space=vmem, size = 0x20000, scoped, tag = 'input window, operand 4']
    #allocation15 [shape = 'u8[524288]{0}', space=vmem, size = 0x80000, scoped, tag = 'output window, operand 0']
    %23 = vsyncpa [#allocation10], 0
    %s24 = scalar_lea.sflag [#allocation10], 1
    %25 = vsyncpa %s24, 0
    %26 = vsyncpa [#allocation13], 0
    %s27 = scalar_lea.sflag [#allocation13], 1
    %28 = vsyncpa %s27, 0
    %29 = vsyncpa [#allocation11], 0
    %s30 = scalar_lea.sflag [#allocation11], 1
    %31 = vsyncpa %s30, 0
    loop: start=0, step=1, limit=8
    $region2: #{tpu_custom_call.1} parent=1 // loop_pre_header
      _
    $region3: #{tpu_custom_call.1} parent=1 // loop_header
      %s33 = sphi 0, %s37
      %p34 = scmp.ge.s32.totalorder %s33, 8
      %s40 = sphi 0, %s52
      %s41 = sphi 0, %s48
      %s42 = sphi 0, %s40
      %s43 = sphi 0, %s41
      %s44 = sphi 0, %s42
      %s45 = sphi 0, %s43
      %s59 = sphi 0, %s61
      %s62 = sphi 0, %s59
      %s63 = sphi 0, %s62
      %s79 = sphi 0, %s63
      %s89 = sphi 0, %s91
      %s92 = sphi 0, %s89
      %s93 = sphi 0, %s92
      %s109 = sphi 0, %s93
      %s119 = sphi 0, %s121
      %s122 = sphi 0, %s119
      %s123 = sphi 0, %s122
      %s139 = sphi 0, %s123
      %s149 = sphi 0, %s151
      %s152 = sphi 0, %s149
      %s153 = sphi 0, %s152
      %s169 = sphi 0, %s153
    $region4: #{tpu_custom_call.1} parent=1 // loop_header_branch
      %36 = sbr.rel (%p34) target = $region8
    $region5: #{tpu_custom_call.1} parent=1 // loop_body
      %s38 = ssub.s32 %s33, 1
      %s39 = ssub.s32 %s33, 2
      %s46 = sadd.s32 1, %s41
      %p47 = scmp.ge.s32.totalorder %s46, 3
      %s48 = scalar_select %p47, 0, %s46
      %s49 = sadd.s32 1, %s40
      %s50 = scalar_select %p47, %s49, %s40
      %p51 = scmp.ge.s32.totalorder %s50, 2
      %s52 = scalar_select %p51, 0, %s50
      %s53 = sld [smem:[#allocation7 + %s41]]
      %s54 = sld [smem:[#allocation7 + %s48]]
      %s55 = ssub.s32 %s53, %s54
      %s56 = ssub.s32 %s40, %s52
      %s57 = sor.u32 %s55, %s56
      %p58 = scmp.eq.s32.totalorder %s57, 0
      %s60 = sadd.s32 %s59, 1
      %s61 = scalar_select %p58, %s59, %s60
      %p64 = pneg %p58
      %p65 = scmp.eq.s32.totalorder %s33, 5
      %p66 = por %p64, %p65
      %p67 = scmp.ne.s32.totalorder %s59, %s62
      %p68 = scmp.eq.s32.totalorder %s33, 0
      %p69 = por %p67, %p68
      %p70 = scmp.ne.s32.totalorder %s59, %s62
      %p71 = scmp.eq.s32.totalorder %s38, 5
      %p72 = por %p70, %p71
      %p73 = scmp.ne.s32.totalorder %s62, %s63
      %p74 = scmp.eq.s32.totalorder %s38, 0
      %p75 = por %p73, %p74
      %p76 = scmp.ne.s32.totalorder %s62, %s63
      %p77 = scmp.eq.s32.totalorder %s39, 5
      %p78 = por %p76, %p77
      %p80 = scmp.ne.s32.totalorder %s63, %s79
      %p81 = scmp.eq.s32.totalorder %s39, 0
      %p82 = por %p80, %p81
      %s83 = sld [smem:[#allocation8 + %s41]]
      %s84 = sld [smem:[#allocation8 + %s48]]
      %s85 = ssub.s32 %s83, %s84
      %s86 = ssub.s32 %s40, %s52
      %s87 = sor.u32 %s85, %s86
      %p88 = scmp.eq.s32.totalorder %s87, 0
      %s90 = sadd.s32 %s89, 1
      %s91 = scalar_select %p88, %s89, %s90
      %p94 = pneg %p88
      %p95 = scmp.eq.s32.totalorder %s33, 5
      %p96 = por %p94, %p95
      %p97 = scmp.ne.s32.totalorder %s89, %s92
      %p98 = scmp.eq.s32.totalorder %s33, 0
      %p99 = por %p97, %p98
      %p100 = scmp.ne.s32.totalorder %s89, %s92
      %p101 = scmp.eq.s32.totalorder %s38, 5
      %p102 = por %p100, %p101
      %p103 = scmp.ne.s32.totalorder %s92, %s93
      %p104 = scmp.eq.s32.totalorder %s38, 0
      %p105 = por %p103, %p104
      %p106 = scmp.ne.s32.totalorder %s92, %s93
      %p107 = scmp.eq.s32.totalorder %s39, 5
      %p108 = por %p106, %p107
      %p110 = scmp.ne.s32.totalorder %s93, %s109
      %p111 = scmp.eq.s32.totalorder %s39, 0
      %p112 = por %p110, %p111
      %s113 = sld [smem:[#allocation8 + %s41]]
      %s114 = sld [smem:[#allocation8 + %s48]]
      %s115 = ssub.s32 %s113, %s114
      %s116 = ssub.s32 %s40, %s52
      %s117 = sor.u32 %s115, %s116
      %p118 = scmp.eq.s32.totalorder %s117, 0
      %s120 = sadd.s32 %s119, 1
      %s121 = scalar_select %p118, %s119, %s120
      %p124 = pneg %p118
      %p125 = scmp.eq.s32.totalorder %s33, 5
      %p126 = por %p124, %p125
      %p127 = scmp.ne.s32.totalorder %s119, %s122
      %p128 = scmp.eq.s32.totalorder %s33, 0
      %p129 = por %p127, %p128
      %p130 = scmp.ne.s32.totalorder %s119, %s122
      %p131 = scmp.eq.s32.totalorder %s38, 5
      %p132 = por %p130, %p131
      %p133 = scmp.ne.s32.totalorder %s122, %s123
      %p134 = scmp.eq.s32.totalorder %s38, 0
      %p135 = por %p133, %p134
      %p136 = scmp.ne.s32.totalorder %s122, %s123
      %p137 = scmp.eq.s32.totalorder %s39, 5
      %p138 = por %p136, %p137
      %p140 = scmp.ne.s32.totalorder %s123, %s139
      %p141 = scmp.eq.s32.totalorder %s39, 0
      %p142 = por %p140, %p141
      %s143 = sld [smem:[#allocation7 + %s41]]
      %s144 = sld [smem:[#allocation7 + %s48]]
      %s145 = ssub.s32 %s143, %s144
      %s146 = ssub.s32 %s40, %s52
      %s147 = sor.u32 %s145, %s146
      %p148 = scmp.eq.s32.totalorder %s147, 0
      %s150 = sadd.s32 %s149, 1
      %s151 = scalar_select %p148, %s149, %s150
      %p154 = pneg %p148
      %p155 = scmp.eq.s32.totalorder %s33, 5
      %p156 = por %p154, %p155
      %p157 = scmp.ne.s32.totalorder %s149, %s152
      %p158 = scmp.eq.s32.totalorder %s33, 0
      %p159 = por %p157, %p158
      %p160 = scmp.ne.s32.totalorder %s149, %s152
      %p161 = scmp.eq.s32.totalorder %s38, 5
      %p162 = por %p160, %p161
      %p163 = scmp.ne.s32.totalorder %s152, %s153
      %p164 = scmp.eq.s32.totalorder %s38, 0
      %p165 = por %p163, %p164
      %p166 = scmp.ne.s32.totalorder %s152, %s153
      %p167 = scmp.eq.s32.totalorder %s39, 5
      %p168 = por %p166, %p167
      %p170 = scmp.ne.s32.totalorder %s153, %s169
      %p171 = scmp.eq.s32.totalorder %s39, 0
      %p172 = por %p170, %p171
      %p173 = scmp.le.s32.totalorder 1, %s33
      %p174 = scmp.lt.s32.totalorder %s33, 7
      %p175 = pnand %p173, %p174
      %p176 = pneg %p175
      // Predicated region
      $region9: #{tpu_custom_call.1} parent=5 // pred_check
        _
      $region10: #{tpu_custom_call.1} parent=5 // pred_check_branch
        %178 = sbr.rel (%p175) target = $region12
      $region11: #{tpu_custom_call.1} parent=5 // pred_region
        %s179 = ssub.s32 %s33, 1
      $region12: #{tpu_custom_call.1} parent=5 // pred_fallthru
        _
      %p180 = scmp.lt.s32.totalorder %s33, 6
      // Predicated region
      $region13: #{tpu_custom_call.1} parent=5 // pred_check
        %p181 = pneg %p180
      $region14: #{tpu_custom_call.1} parent=5 // pred_check_branch
        %183 = sbr.rel (%p181) target = $region16
      $region15: #{tpu_custom_call.1} parent=5 // pred_region
        // Predicated region
        $region17: #{tpu_custom_call.1} parent=15 // pred_check
          %p184 = pneg %p69
        $region18: #{tpu_custom_call.1} parent=15 // pred_check_branch
          %186 = sbr.rel (%p184) target = $region20
        $region19: #{tpu_custom_call.1} parent=15 // pred_region
          %s187 = sand.u32 %s59, 1
          %s188 = scalar_lea.sflag [#allocation10], %s187
          %s189 = sand.u32 %s59, 1
          %s190 = smul.addr %s189, 256
          %s191 = scalar_lea.vmem [#allocation9], %s190
          %s192 = sld [smem:[#allocation7 + %s41]]
          %s193 = smul.u32 32, %s192
          %s194 = smul.u32 2, %s40
          %196 = vsyncadd %s188, 0
          %s197 = smul.addr %s193, 4
          %s198 = sadd.s32 %s194, %s197
          %s199 = smul.addr %s198, 4
          %s200 = scalar_lea.hbm %s2, %s199
          %s201 = sshll.u32 %s200, 4
          %s202 = int_to_ptr.hbm [resolvable:$true] %s201
          %s203 = sshll.u32 %s191, 4
          %s204 = int_to_ptr.vmem [resolvable:$true] %s203
          %209 = dma.hbm_to_vmem [thread:$0]  %s202, 4096, %s204, %s188, 256, 128, 8
        $region20: #{tpu_custom_call.1} parent=15 // pred_fallthru
          _
        // Predicated region
        $region21: #{tpu_custom_call.1} parent=15 // pred_check
          %p210 = pneg %p99
        $region22: #{tpu_custom_call.1} parent=15 // pred_check_branch
          %212 = sbr.rel (%p210) target = $region24
        $region23: #{tpu_custom_call.1} parent=15 // pred_region
          %s213 = sand.u32 %s33, 1
          %s214 = scalar_lea.sflag [#allocation13], %s213
          %s215 = sand.u32 %s89, 1
          %s216 = smul.addr %s215, 128
          %s217 = scalar_lea.vmem [#allocation12], %s216
          %s218 = sld [smem:[#allocation8 + %s41]]
          %s219 = smul.u32 32, %s218
          %221 = vsyncadd %s214, 0
          %s222 = smul.addr %s219, 2
          %s223 = sadd.s32 %s40, %s222
          %s224 = smul.addr %s223, 4
          %s225 = scalar_lea.hbm %s3, %s224
          %s226 = sshll.u32 %s225, 4
          %s227 = int_to_ptr.hbm [resolvable:$true] %s226
          %s228 = sshll.u32 %s217, 4
          %s229 = int_to_ptr.vmem [resolvable:$true] %s228
          %234 = dma.hbm_to_vmem [thread:$0]  %s227, 2048, %s229, %s214, 128, 64, 4
        $region24: #{tpu_custom_call.1} parent=15 // pred_fallthru
          _
        // Predicated region
        $region25: #{tpu_custom_call.1} parent=15 // pred_check
          %p235 = pneg %p129
        $region26: #{tpu_custom_call.1} parent=15 // pred_check_branch
          %237 = sbr.rel (%p235) target = $region28
        $region27: #{tpu_custom_call.1} parent=15 // pred_region
          %s238 = sand.u32 %s33, 1
          %s239 = scalar_lea.sflag [#allocation13], %s238
          %s240 = sand.u32 %s119, 1
          %s241 = smul.addr %s240, 128
          %s242 = scalar_lea.vmem [#allocation14], %s241
          %s243 = sld [smem:[#allocation8 + %s41]]
          %s244 = smul.u32 32, %s243
          %246 = vsyncadd %s239, 0
          %s247 = smul.addr %s244, 2
          %s248 = sadd.s32 %s40, %s247
          %s249 = smul.addr %s248, 4
          %s250 = scalar_lea.hbm %s4, %s249
          %s251 = sshll.u32 %s250, 4
          %s252 = int_to_ptr.hbm [resolvable:$true] %s251
          %s253 = sshll.u32 %s242, 4
          %s254 = int_to_ptr.vmem [resolvable:$true] %s253
          %259 = dma.hbm_to_vmem [thread:$0]  %s252, 2048, %s254, %s239, 128, 64, 4
        $region28: #{tpu_custom_call.1} parent=15 // pred_fallthru
          _
      $region16: #{tpu_custom_call.1} parent=5 // pred_fallthru
        _
      %p260 = scmp.le.s32.totalorder 1, %s33
      %p261 = scmp.lt.s32.totalorder %s33, 7
      %p262 = pnand %p260, %p261
      %p263 = pneg %p262
      // Predicated region
      $region29: #{tpu_custom_call.1} parent=5 // pred_check
        _
      $region30: #{tpu_custom_call.1} parent=5 // pred_check_branch
        %265 = sbr.rel (%p262) target = $region32
      $region31: #{tpu_custom_call.1} parent=5 // pred_region
        %s266 = ssub.s32 %s33, 1
        %s267 = sand.u32 %s62, 1
        %s268 = scalar_lea.sflag [#allocation10], %s267
        %s269 = sand.u32 %s62, 1
        %s270 = smul.addr %s269, 256
        %s271 = scalar_lea.vmem [#allocation9], %s270
        // Predicated region
        $region33: #{tpu_custom_call.1} parent=31 // pred_check
          %p272 = pneg %p75
        $region34: #{tpu_custom_call.1} parent=31 // pred_check_branch
          %274 = sbr.rel (%p272) target = $region36
        $region35: #{tpu_custom_call.1} parent=31 // pred_region
          %276 = dma.done %s268, 4096
        $region36: #{tpu_custom_call.1} parent=31 // pred_fallthru
          _
        %s277 = sand.u32 %s38, 1
        %s278 = scalar_lea.sflag [#allocation13], %s277
        %s279 = sand.u32 %s92, 1
        %s280 = smul.addr %s279, 128
        %s281 = scalar_lea.vmem [#allocation12], %s280
        // Predicated region
        $region37: #{tpu_custom_call.1} parent=31 // pred_check
          %p282 = pneg %p105
        $region38: #{tpu_custom_call.1} parent=31 // pred_check_branch
          %284 = sbr.rel (%p282) target = $region40
        $region39: #{tpu_custom_call.1} parent=31 // pred_region
          %286 = dma.done %s278, 2048
        $region40: #{tpu_custom_call.1} parent=31 // pred_fallthru
          _
        %s287 = sand.u32 %s38, 1
        %s288 = scalar_lea.sflag [#allocation13], %s287
        %s289 = sand.u32 %s122, 1
        %s290 = smul.addr %s289, 128
        %s291 = scalar_lea.vmem [#allocation14], %s290
        // Predicated region
        $region41: #{tpu_custom_call.1} parent=31 // pred_check
          %p292 = pneg %p135
        $region42: #{tpu_custom_call.1} parent=31 // pred_check_branch
          %294 = sbr.rel (%p292) target = $region44
        $region43: #{tpu_custom_call.1} parent=31 // pred_region
          %296 = dma.done %s288, 2048
        $region44: #{tpu_custom_call.1} parent=31 // pred_fallthru
          _
        %s297 = sand.u32 %s62, 1
        %s298 = scalar_lea.sflag [#allocation10], %s297
        %s299 = sand.u32 %s62, 1
        %s300 = smul.addr %s299, 256
        %s301 = scalar_lea.vmem [#allocation9], %s300
        %p302 = pneg %p75
        %p303 = pneg %p72
        %s304 = sand.u32 %s38, 1
        %s305 = scalar_lea.sflag [#allocation13], %s304
        %s306 = sand.u32 %s92, 1
        %s307 = smul.addr %s306, 128
        %s308 = scalar_lea.vmem [#allocation12], %s307
        %p309 = pneg %p105
        %p310 = pneg %p102
        %s311 = sand.u32 %s38, 1
        %s312 = scalar_lea.sflag [#allocation13], %s311
        %s313 = sand.u32 %s122, 1
        %s314 = smul.addr %s313, 128
        %s315 = scalar_lea.vmem [#allocation14], %s314
        %p316 = pneg %p135
        %p317 = pneg %p132
        %p318 = pneg %p165
        %p319 = pneg %p162
        %s320 = sand.u32 %s152, 1
        %s321 = scalar_lea.sflag [#allocation11], %s320
        %s322 = sand.u32 %s152, 1
        %s323 = smul.addr %s322, 512
        %s324 = scalar_lea.vmem [#allocation15], %s323
        %s325 = sld [smem:[#allocation7 + %s43]]
        %s326 = smul.u32 32, %s325
        %s327 = smul.u32 2, %s42
        %s328 = sld [smem:[#allocation8 + %s43]]
        %s329 = smul.u32 32, %s328
        %s330 = sld [smem:[#allocation8 + %s43]]
        %s331 = smul.u32 32, %s330
        %s332 = sld [smem:[#allocation7 + %s43]]
        %s333 = smul.u32 32, %s332
        %s334 = smul.u32 2, %s42
        %s335 = sld [smem:[#allocation7 + %s43]]
        %s336 = sld [smem:[#allocation8 + %s43]]
        %p337 = scmp.eq.s32.totalorder %s336, 0
        // Predicated region
        $region45: #{tpu_custom_call.1} parent=31 // pred_check
          %p338 = pneg %p337
        $region46: #{tpu_custom_call.1} parent=31 // pred_check_branch
          %340 = sbr.rel (%p338) target = $region48
        $region47: #{tpu_custom_call.1} parent=31 // pred_region
          %vm341 = vcmask 7168
          %342 = vst.msk [vmem:[#allocation2] sm:$0xff] %vm341, -inf
          %343 = vst.msk [vmem:[#allocation2 + $0x8] sm:$0xff] %vm341, -inf
          %344 = vst.msk [vmem:[#allocation2 + $0x10] sm:$0xff] %vm341, -inf
          %345 = vst.msk [vmem:[#allocation2 + $0x18] sm:$0xff] %vm341, -inf
          %346 = vst.msk [vmem:[#allocation2 + $0x20] sm:$0xff] %vm341, -inf
          %347 = vst.msk [vmem:[#allocation2 + $0x28] sm:$0xff] %vm341, -inf
          %348 = vst.msk [vmem:[#allocation2 + $0x30] sm:$0xff] %vm341, -inf
          %349 = vst.msk [vmem:[#allocation2 + $0x38] sm:$0xff] %vm341, -inf
          %350 = vst.msk [vmem:[#allocation2 + $0x40] sm:$0xff] %vm341, -inf
          %351 = vst.msk [vmem:[#allocation2 + $0x48] sm:$0xff] %vm341, -inf
          %352 = vst.msk [vmem:[#allocation2 + $0x50] sm:$0xff] %vm341, -inf
          %353 = vst.msk [vmem:[#allocation2 + $0x58] sm:$0xff] %vm341, -inf
          %354 = vst.msk [vmem:[#allocation2 + $0x60] sm:$0xff] %vm341, -inf
          %355 = vst.msk [vmem:[#allocation2 + $0x68] sm:$0xff] %vm341, -inf
          %356 = vst.msk [vmem:[#allocation2 + $0x70] sm:$0xff] %vm341, -inf
          %357 = vst.msk [vmem:[#allocation2 + $0x78] sm:$0xff] %vm341, -inf
          %358 = vst.msk [vmem:[#allocation2 + $0x80] sm:$0xff] %vm341, -inf
          %359 = vst.msk [vmem:[#allocation2 + $0x88] sm:$0xff] %vm341, -inf
          %360 = vst.msk [vmem:[#allocation2 + $0x90] sm:$0xff] %vm341, -inf
          %361 = vst.msk [vmem:[#allocation2 + $0x98] sm:$0xff] %vm341, -inf
          %362 = vst.msk [vmem:[#allocation2 + $0xa0] sm:$0xff] %vm341, -inf
          %363 = vst.msk [vmem:[#allocation2 + $0xa8] sm:$0xff] %vm341, -inf
          %364 = vst.msk [vmem:[#allocation2 + $0xb0] sm:$0xff] %vm341, -inf
          %365 = vst.msk [vmem:[#allocation2 + $0xb8] sm:$0xff] %vm341, -inf
          %366 = vst.msk [vmem:[#allocation2 + $0xc0] sm:$0xff] %vm341, -inf
          %367 = vst.msk [vmem:[#allocation2 + $0xc8] sm:$0xff] %vm341, -inf
          %368 = vst.msk [vmem:[#allocation2 + $0xd0] sm:$0xff] %vm341, -inf
          %369 = vst.msk [vmem:[#allocation2 + $0xd8] sm:$0xff] %vm341, -inf
          %370 = vst.msk [vmem:[#allocation2 + $0xe0] sm:$0xff] %vm341, -inf
          %371 = vst.msk [vmem:[#allocation2 + $0xe8] sm:$0xff] %vm341, -inf
          %372 = vst.msk [vmem:[#allocation2 + $0xf0] sm:$0xff] %vm341, -inf
          %373 = vst.msk [vmem:[#allocation2 + $0xf8] sm:$0xff] %vm341, -inf
          %374 = vst.msk [vmem:[#allocation2 + $0x100] sm:$0xff] %vm341, -inf
          %375 = vst.msk [vmem:[#allocation2 + $0x108] sm:$0xff] %vm341, -inf
          %376 = vst.msk [vmem:[#allocation2 + $0x110] sm:$0xff] %vm341, -inf
          %377 = vst.msk [vmem:[#allocation2 + $0x118] sm:$0xff] %vm341, -inf
          %378 = vst.msk [vmem:[#allocation2 + $0x120] sm:$0xff] %vm341, -inf
          %379 = vst.msk [vmem:[#allocation2 + $0x128] sm:$0xff] %vm341, -inf
          %380 = vst.msk [vmem:[#allocation2 + $0x130] sm:$0xff] %vm341, -inf
          %381 = vst.msk [vmem:[#allocation2 + $0x138] sm:$0xff] %vm341, -inf
          %382 = vst.msk [vmem:[#allocation2 + $0x140] sm:$0xff] %vm341, -inf
          %383 = vst.msk [vmem:[#allocation2 + $0x148] sm:$0xff] %vm341, -inf
          %384 = vst.msk [vmem:[#allocation2 + $0x150] sm:$0xff] %vm341, -inf
          %385 = vst.msk [vmem:[#allocation2 + $0x158] sm:$0xff] %vm341, -inf
          %386 = vst.msk [vmem:[#allocation2 + $0x160] sm:$0xff] %vm341, -inf
          %387 = vst.msk [vmem:[#allocation2 + $0x168] sm:$0xff] %vm341, -inf
          %388 = vst.msk [vmem:[#allocation2 + $0x170] sm:$0xff] %vm341, -inf
          %389 = vst.msk [vmem:[#allocation2 + $0x178] sm:$0xff] %vm341, -inf
          %390 = vst.msk [vmem:[#allocation2 + $0x180] sm:$0xff] %vm341, -inf
          %391 = vst.msk [vmem:[#allocation2 + $0x188] sm:$0xff] %vm341, -inf
          %392 = vst.msk [vmem:[#allocation2 + $0x190] sm:$0xff] %vm341, -inf
          %393 = vst.msk [vmem:[#allocation2 + $0x198] sm:$0xff] %vm341, -inf
          %394 = vst.msk [vmem:[#allocation2 + $0x1a0] sm:$0xff] %vm341, -inf
          %395 = vst.msk [vmem:[#allocation2 + $0x1a8] sm:$0xff] %vm341, -inf
          %396 = vst.msk [vmem:[#allocation2 + $0x1b0] sm:$0xff] %vm341, -inf
          %397 = vst.msk [vmem:[#allocation2 + $0x1b8] sm:$0xff] %vm341, -inf
          %398 = vst.msk [vmem:[#allocation2 + $0x1c0] sm:$0xff] %vm341, -inf
          %399 = vst.msk [vmem:[#allocation2 + $0x1c8] sm:$0xff] %vm341, -inf
          %400 = vst.msk [vmem:[#allocation2 + $0x1d0] sm:$0xff] %vm341, -inf
          %401 = vst.msk [vmem:[#allocation2 + $0x1d8] sm:$0xff] %vm341, -inf
          %402 = vst.msk [vmem:[#allocation2 + $0x1e0] sm:$0xff] %vm341, -inf
          %403 = vst.msk [vmem:[#allocation2 + $0x1e8] sm:$0xff] %vm341, -inf
          %404 = vst.msk [vmem:[#allocation2 + $0x1f0] sm:$0xff] %vm341, -inf
          %405 = vst.msk [vmem:[#allocation2 + $0x1f8] sm:$0xff] %vm341, -inf
          %406 = vst.msk [vmem:[#allocation3] sm:$0xff] %vm341, 0.0
          %407 = vst.msk [vmem:[#allocation3 + $0x8] sm:$0xff] %vm341, 0.0
          %408 = vst.msk [vmem:[#allocation3 + $0x10] sm:$0xff] %vm341, 0.0
          %409 = vst.msk [vmem:[#allocation3 + $0x18] sm:$0xff] %vm341, 0.0
          %410 = vst.msk [vmem:[#allocation3 + $0x20] sm:$0xff] %vm341, 0.0
          %411 = vst.msk [vmem:[#allocation3 + $0x28] sm:$0xff] %vm341, 0.0
          %412 = vst.msk [vmem:[#allocation3 + $0x30] sm:$0xff] %vm341, 0.0
          %413 = vst.msk [vmem:[#allocation3 + $0x38] sm:$0xff] %vm341, 0.0
          %414 = vst.msk [vmem:[#allocation3 + $0x40] sm:$0xff] %vm341, 0.0
          %415 = vst.msk [vmem:[#allocation3 + $0x48] sm:$0xff] %vm341, 0.0
          %416 = vst.msk [vmem:[#allocation3 + $0x50] sm:$0xff] %vm341, 0.0
          %417 = vst.msk [vmem:[#allocation3 + $0x58] sm:$0xff] %vm341, 0.0
          %418 = vst.msk [vmem:[#allocation3 + $0x60] sm:$0xff] %vm341, 0.0
          %419 = vst.msk [vmem:[#allocation3 + $0x68] sm:$0xff] %vm341, 0.0
          %420 = vst.msk [vmem:[#allocation3 + $0x70] sm:$0xff] %vm341, 0.0
          %421 = vst.msk [vmem:[#allocation3 + $0x78] sm:$0xff] %vm341, 0.0
          %422 = vst.msk [vmem:[#allocation3 + $0x80] sm:$0xff] %vm341, 0.0
          %423 = vst.msk [vmem:[#allocation3 + $0x88] sm:$0xff] %vm341, 0.0
          %424 = vst.msk [vmem:[#allocation3 + $0x90] sm:$0xff] %vm341, 0.0
          %425 = vst.msk [vmem:[#allocation3 + $0x98] sm:$0xff] %vm341, 0.0
          %426 = vst.msk [vmem:[#allocation3 + $0xa0] sm:$0xff] %vm341, 0.0
          %427 = vst.msk [vmem:[#allocation3 + $0xa8] sm:$0xff] %vm341, 0.0
          %428 = vst.msk [vmem:[#allocation3 + $0xb0] sm:$0xff] %vm341, 0.0
          %429 = vst.msk [vmem:[#allocation3 + $0xb8] sm:$0xff] %vm341, 0.0
          %430 = vst.msk [vmem:[#allocation3 + $0xc0] sm:$0xff] %vm341, 0.0
          %431 = vst.msk [vmem:[#allocation3 + $0xc8] sm:$0xff] %vm341, 0.0
          %432 = vst.msk [vmem:[#allocation3 + $0xd0] sm:$0xff] %vm341, 0.0
          %433 = vst.msk [vmem:[#allocation3 + $0xd8] sm:$0xff] %vm341, 0.0
          %434 = vst.msk [vmem:[#allocation3 + $0xe0] sm:$0xff] %vm341, 0.0
          %435 = vst.msk [vmem:[#allocation3 + $0xe8] sm:$0xff] %vm341, 0.0
          %436 = vst.msk [vmem:[#allocation3 + $0xf0] sm:$0xff] %vm341, 0.0
          %437 = vst.msk [vmem:[#allocation3 + $0xf8] sm:$0xff] %vm341, 0.0
          %438 = vst.msk [vmem:[#allocation3 + $0x100] sm:$0xff] %vm341, 0.0
          %439 = vst.msk [vmem:[#allocation3 + $0x108] sm:$0xff] %vm341, 0.0
          %440 = vst.msk [vmem:[#allocation3 + $0x110] sm:$0xff] %vm341, 0.0
          %441 = vst.msk [vmem:[#allocation3 + $0x118] sm:$0xff] %vm341, 0.0
          %442 = vst.msk [vmem:[#allocation3 + $0x120] sm:$0xff] %vm341, 0.0
          %443 = vst.msk [vmem:[#allocation3 + $0x128] sm:$0xff] %vm341, 0.0
          %444 = vst.msk [vmem:[#allocation3 + $0x130] sm:$0xff] %vm341, 0.0
          %445 = vst.msk [vmem:[#allocation3 + $0x138] sm:$0xff] %vm341, 0.0
          %446 = vst.msk [vmem:[#allocation3 + $0x140] sm:$0xff] %vm341, 0.0
          %447 = vst.msk [vmem:[#allocation3 + $0x148] sm:$0xff] %vm341, 0.0
          %448 = vst.msk [vmem:[#allocation3 + $0x150] sm:$0xff] %vm341, 0.0
          %449 = vst.msk [vmem:[#allocation3 + $0x158] sm:$0xff] %vm341, 0.0
          %450 = vst.msk [vmem:[#allocation3 + $0x160] sm:$0xff] %vm341, 0.0
          %451 = vst.msk [vmem:[#allocation3 + $0x168] sm:$0xff] %vm341, 0.0
          %452 = vst.msk [vmem:[#allocation3 + $0x170] sm:$0xff] %vm341, 0.0
          %453 = vst.msk [vmem:[#allocation3 + $0x178] sm:$0xff] %vm341, 0.0
          %454 = vst.msk [vmem:[#allocation3 + $0x180] sm:$0xff] %vm341, 0.0
          %455 = vst.msk [vmem:[#allocation3 + $0x188] sm:$0xff] %vm341, 0.0
          %456 = vst.msk [vmem:[#allocation3 + $0x190] sm:$0xff] %vm341, 0.0
          %457 = vst.msk [vmem:[#allocation3 + $0x198] sm:$0xff] %vm341, 0.0
          %458 = vst.msk [vmem:[#allocation3 + $0x1a0] sm:$0xff] %vm341, 0.0
          %459 = vst.msk [vmem:[#allocation3 + $0x1a8] sm:$0xff] %vm341, 0.0
          %460 = vst.msk [vmem:[#allocation3 + $0x1b0] sm:$0xff] %vm341, 0.0
          %461 = vst.msk [vmem:[#allocation3 + $0x1b8] sm:$0xff] %vm341, 0.0
          %462 = vst.msk [vmem:[#allocation3 + $0x1c0] sm:$0xff] %vm341, 0.0
          %463 = vst.msk [vmem:[#allocation3 + $0x1c8] sm:$0xff] %vm341, 0.0
          %464 = vst.msk [vmem:[#allocation3 + $0x1d0] sm:$0xff] %vm341, 0.0
          %465 = vst.msk [vmem:[#allocation3 + $0x1d8] sm:$0xff] %vm341, 0.0
          %466 = vst.msk [vmem:[#allocation3 + $0x1e0] sm:$0xff] %vm341, 0.0
          %467 = vst.msk [vmem:[#allocation3 + $0x1e8] sm:$0xff] %vm341, 0.0
          %468 = vst.msk [vmem:[#allocation3 + $0x1f0] sm:$0xff] %vm341, 0.0
          %469 = vst.msk [vmem:[#allocation3 + $0x1f8] sm:$0xff] %vm341, 0.0
          %470 = vst [vmem:[#allocation4] sm:$0xff] 0.0
          %471 = vst [vmem:[#allocation4 + $0x8] sm:$0xff] 0.0
          %472 = vst [vmem:[#allocation4 + $0x10] sm:$0xff] 0.0
          %473 = vst [vmem:[#allocation4 + $0x18] sm:$0xff] 0.0
          %474 = vst [vmem:[#allocation4 + $0x20] sm:$0xff] 0.0
          %475 = vst [vmem:[#allocation4 + $0x28] sm:$0xff] 0.0
          %476 = vst [vmem:[#allocation4 + $0x30] sm:$0xff] 0.0
          %477 = vst [vmem:[#allocation4 + $0x38] sm:$0xff] 0.0
          %478 = vst [vmem:[#allocation4 + $0x40] sm:$0xff] 0.0
          %479 = vst [vmem:[#allocation4 + $0x48] sm:$0xff] 0.0
          %480 = vst [vmem:[#allocation4 + $0x50] sm:$0xff] 0.0
          %481 = vst [vmem:[#allocation4 + $0x58] sm:$0xff] 0.0
          %482 = vst [vmem:[#allocation4 + $0x60] sm:$0xff] 0.0
          %483 = vst [vmem:[#allocation4 + $0x68] sm:$0xff] 0.0
          %484 = vst [vmem:[#allocation4 + $0x70] sm:$0xff] 0.0
          %485 = vst [vmem:[#allocation4 + $0x78] sm:$0xff] 0.0
          %486 = vst [vmem:[#allocation4 + $0x80] sm:$0xff] 0.0
          %487 = vst [vmem:[#allocation4 + $0x88] sm:$0xff] 0.0
          %488 = vst [vmem:[#allocation4 + $0x90] sm:$0xff] 0.0
          %489 = vst [vmem:[#allocation4 + $0x98] sm:$0xff] 0.0
          %490 = vst [vmem:[#allocation4 + $0xa0] sm:$0xff] 0.0
          %491 = vst [vmem:[#allocation4 + $0xa8] sm:$0xff] 0.0
          %492 = vst [vmem:[#allocation4 + $0xb0] sm:$0xff] 0.0
          %493 = vst [vmem:[#allocation4 + $0xb8] sm:$0xff] 0.0
          %494 = vst [vmem:[#allocation4 + $0xc0] sm:$0xff] 0.0
          %495 = vst [vmem:[#allocation4 + $0xc8] sm:$0xff] 0.0
          %496 = vst [vmem:[#allocation4 + $0xd0] sm:$0xff] 0.0
          %497 = vst [vmem:[#allocation4 + $0xd8] sm:$0xff] 0.0
          %498 = vst [vmem:[#allocation4 + $0xe0] sm:$0xff] 0.0
          %499 = vst [vmem:[#allocation4 + $0xe8] sm:$0xff] 0.0
          %500 = vst [vmem:[#allocation4 + $0xf0] sm:$0xff] 0.0
          %501 = vst [vmem:[#allocation4 + $0xf8] sm:$0xff] 0.0
          %502 = vst [vmem:[#allocation4 + $0x100] sm:$0xff] 0.0
          %503 = vst [vmem:[#allocation4 + $0x108] sm:$0xff] 0.0
          %504 = vst [vmem:[#allocation4 + $0x110] sm:$0xff] 0.0
          %505 = vst [vmem:[#allocation4 + $0x118] sm:$0xff] 0.0
          %506 = vst [vmem:[#allocation4 + $0x120] sm:$0xff] 0.0
          %507 = vst [vmem:[#allocation4 + $0x128] sm:$0xff] 0.0
          %508 = vst [vmem:[#allocation4 + $0x130] sm:$0xff] 0.0
          %509 = vst [vmem:[#allocation4 + $0x138] sm:$0xff] 0.0
          %510 = vst [vmem:[#allocation4 + $0x140] sm:$0xff] 0.0
          %511 = vst [vmem:[#allocation4 + $0x148] sm:$0xff] 0.0
          %512 = vst [vmem:[#allocation4 + $0x150] sm:$0xff] 0.0
          %513 = vst [vmem:[#allocation4 + $0x158] sm:$0xff] 0.0
          %514 = vst [vmem:[#allocation4 + $0x160] sm:$0xff] 0.0
          %515 = vst [vmem:[#allocation4 + $0x168] sm:$0xff] 0.0
          %516 = vst [vmem:[#allocation4 + $0x170] sm:$0xff] 0.0
          %517 = vst [vmem:[#allocation4 + $0x178] sm:$0xff] 0.0
          %518 = vst [vmem:[#allocation4 + $0x180] sm:$0xff] 0.0
          %519 = vst [vmem:[#allocation4 + $0x188] sm:$0xff] 0.0
          %520 = vst [vmem:[#allocation4 + $0x190] sm:$0xff] 0.0
          %521 = vst [vmem:[#allocation4 + $0x198] sm:$0xff] 0.0
          %522 = vst [vmem:[#allocation4 + $0x1a0] sm:$0xff] 0.0
          %523 = vst [vmem:[#allocation4 + $0x1a8] sm:$0xff] 0.0
          %524 = vst [vmem:[#allocation4 + $0x1b0] sm:$0xff] 0.0
          %525 = vst [vmem:[#allocation4 + $0x1b8] sm:$0xff] 0.0
          %526 = vst [vmem:[#allocation4 + $0x1c0] sm:$0xff] 0.0
          %527 = vst [vmem:[#allocation4 + $0x1c8] sm:$0xff] 0.0
          %528 = vst [vmem:[#allocation4 + $0x1d0] sm:$0xff] 0.0
          %529 = vst [vmem:[#allocation4 + $0x1d8] sm:$0xff] 0.0
          %530 = vst [vmem:[#allocation4 + $0x1e0] sm:$0xff] 0.0
          %531 = vst [vmem:[#allocation4 + $0x1e8] sm:$0xff] 0.0
          %532 = vst [vmem:[#allocation4 + $0x1f0] sm:$0xff] 0.0
          %533 = vst [vmem:[#allocation4 + $0x1f8] sm:$0xff] 0.0
          %v534 = vld [vmem:[%s271] sm:$0xff]
          %v535 = vld [vmem:[%s271 + $0x8] sm:$0xff]
          %v536 = vld [vmem:[%s271 + $0x10] sm:$0xff]
          %v537 = vld [vmem:[%s271 + $0x18] sm:$0xff]
          %v538 = vld [vmem:[%s271 + $0x20] sm:$0xff]
          %v539 = vld [vmem:[%s271 + $0x28] sm:$0xff]
          %v540 = vld [vmem:[%s271 + $0x30] sm:$0xff]
          %v541 = vld [vmem:[%s271 + $0x38] sm:$0xff]
          %v542 = vld [vmem:[%s271 + $0x40] sm:$0xff]
          %v543 = vld [vmem:[%s271 + $0x48] sm:$0xff]
          %v544 = vld [vmem:[%s271 + $0x50] sm:$0xff]
          %v545 = vld [vmem:[%s271 + $0x58] sm:$0xff]
          %v546 = vld [vmem:[%s271 + $0x60] sm:$0xff]
          %v547 = vld [vmem:[%s271 + $0x68] sm:$0xff]
          %v548 = vld [vmem:[%s271 + $0x70] sm:$0xff]
          %v549 = vld [vmem:[%s271 + $0x78] sm:$0xff]
          %v550 = vld [vmem:[%s271 + $0x80] sm:$0xff]
          %v551 = vld [vmem:[%s271 + $0x88] sm:$0xff]
          %v552 = vld [vmem:[%s271 + $0x90] sm:$0xff]
          %v553 = vld [vmem:[%s271 + $0x98] sm:$0xff]
          %v554 = vld [vmem:[%s271 + $0xa0] sm:$0xff]
          %v555 = vld [vmem:[%s271 + $0xa8] sm:$0xff]
          %v556 = vld [vmem:[%s271 + $0xb0] sm:$0xff]
          %v557 = vld [vmem:[%s271 + $0xb8] sm:$0xff]
          %v558 = vld [vmem:[%s271 + $0xc0] sm:$0xff]
          %v559 = vld [vmem:[%s271 + $0xc8] sm:$0xff]
          %v560 = vld [vmem:[%s271 + $0xd0] sm:$0xff]
          %v561 = vld [vmem:[%s271 + $0xd8] sm:$0xff]
          %v562 = vld [vmem:[%s271 + $0xe0] sm:$0xff]
          %v563 = vld [vmem:[%s271 + $0xe8] sm:$0xff]
          %v564 = vld [vmem:[%s271 + $0xf0] sm:$0xff]
          %v565 = vld [vmem:[%s271 + $0xf8] sm:$0xff]
          %v566 = vunpack.c.l.bf16 %v534
          %v567 = vunpack.c.l.bf16 %v535
          %v568 = vunpack.c.l.bf16 %v536
          %v569 = vunpack.c.l.bf16 %v537
          %v570 = vunpack.c.l.bf16 %v538
          %v571 = vunpack.c.l.bf16 %v539
          %v572 = vunpack.c.l.bf16 %v540
          %v573 = vunpack.c.l.bf16 %v541
          %v574 = vunpack.c.l.bf16 %v542
          %v575 = vunpack.c.l.bf16 %v543
          %v576 = vunpack.c.l.bf16 %v544
          %v577 = vunpack.c.l.bf16 %v545
          %v578 = vunpack.c.l.bf16 %v546
          %v579 = vunpack.c.l.bf16 %v547
          %v580 = vunpack.c.l.bf16 %v548
          %v581 = vunpack.c.l.bf16 %v549
          %v582 = vunpack.c.l.bf16 %v550
          %v583 = vunpack.c.l.bf16 %v551
          %v584 = vunpack.c.l.bf16 %v552
          %v585 = vunpack.c.l.bf16 %v553
          %v586 = vunpack.c.l.bf16 %v554
          %v587 = vunpack.c.l.bf16 %v555
          %v588 = vunpack.c.l.bf16 %v556
          %v589 = vunpack.c.l.bf16 %v557
          %v590 = vunpack.c.l.bf16 %v558
          %v591 = vunpack.c.l.bf16 %v559
          %v592 = vunpack.c.l.bf16 %v560
          %v593 = vunpack.c.l.bf16 %v561
          %v594 = vunpack.c.l.bf16 %v562
          %v595 = vunpack.c.l.bf16 %v563
          %v596 = vunpack.c.l.bf16 %v564
          %v597 = vunpack.c.l.bf16 %v565
          %v598 = vmul.f32 %v566, 0.088388346
          %v599 = vmul.f32 %v567, 0.088388346
          %v600 = vmul.f32 %v568, 0.088388346
          %v601 = vmul.f32 %v569, 0.088388346
          %v602 = vmul.f32 %v570, 0.088388346
          %v603 = vmul.f32 %v571, 0.088388346
          %v604 = vmul.f32 %v572, 0.088388346
          %v605 = vmul.f32 %v573, 0.088388346
          %v606 = vmul.f32 %v574, 0.088388346
          %v607 = vmul.f32 %v575, 0.088388346
          %v608 = vmul.f32 %v576, 0.088388346
          %v609 = vmul.f32 %v577, 0.088388346
          %v610 = vmul.f32 %v578, 0.088388346
          %v611 = vmul.f32 %v579, 0.088388346
          %v612 = vmul.f32 %v580, 0.088388346
          %v613 = vmul.f32 %v581, 0.088388346
          %v614 = vmul.f32 %v582, 0.088388346
          %v615 = vmul.f32 %v583, 0.088388346
          %v616 = vmul.f32 %v584, 0.088388346
          %v617 = vmul.f32 %v585, 0.088388346
          %v618 = vmul.f32 %v586, 0.088388346
          %v619 = vmul.f32 %v587, 0.088388346
          %v620 = vmul.f32 %v588, 0.088388346
          %v621 = vmul.f32 %v589, 0.088388346
          %v622 = vmul.f32 %v590, 0.088388346
          %v623 = vmul.f32 %v591, 0.088388346
          %v624 = vmul.f32 %v592, 0.088388346
          %v625 = vmul.f32 %v593, 0.088388346
          %v626 = vmul.f32 %v594, 0.088388346
          %v627 = vmul.f32 %v595, 0.088388346
          %v628 = vmul.f32 %v596, 0.088388346
          %v629 = vmul.f32 %v597, 0.088388346
          %v630 = vpack.c.bf16 %v598, %v598
          %v631 = vpack.c.bf16 %v599, %v599
          %v632 = vpack.c.bf16 %v600, %v600
          %v633 = vpack.c.bf16 %v601, %v601
          %v634 = vpack.c.bf16 %v602, %v602
          %v635 = vpack.c.bf16 %v603, %v603
          %v636 = vpack.c.bf16 %v604, %v604
          %v637 = vpack.c.bf16 %v605, %v605
          %v638 = vpack.c.bf16 %v606, %v606
          %v639 = vpack.c.bf16 %v607, %v607
          %v640 = vpack.c.bf16 %v608, %v608
          %v641 = vpack.c.bf16 %v609, %v609
          %v642 = vpack.c.bf16 %v610, %v610
          %v643 = vpack.c.bf16 %v611, %v611
          %v644 = vpack.c.bf16 %v612, %v612
          %v645 = vpack.c.bf16 %v613, %v613
          %v646 = vpack.c.bf16 %v614, %v614
          %v647 = vpack.c.bf16 %v615, %v615
          %v648 = vpack.c.bf16 %v616, %v616
          %v649 = vpack.c.bf16 %v617, %v617
          %v650 = vpack.c.bf16 %v618, %v618
          %v651 = vpack.c.bf16 %v619, %v619
          %v652 = vpack.c.bf16 %v620, %v620
          %v653 = vpack.c.bf16 %v621, %v621
          %v654 = vpack.c.bf16 %v622, %v622
          %v655 = vpack.c.bf16 %v623, %v623
          %v656 = vpack.c.bf16 %v624, %v624
          %v657 = vpack.c.bf16 %v625, %v625
          %v658 = vpack.c.bf16 %v626, %v626
          %v659 = vpack.c.bf16 %v627, %v627
          %v660 = vpack.c.bf16 %v628, %v628
          %v661 = vpack.c.bf16 %v629, %v629
          %662 = vst [vmem:[#allocation5] sm:$0xf] %v630
          %663 = vst [vmem:[#allocation5 + $0x4] sm:$0xf] %v631
          %664 = vst [vmem:[#allocation5 + $0x8] sm:$0xf] %v632
          %665 = vst [vmem:[#allocation5 + $0xc] sm:$0xf] %v633
          %666 = vst [vmem:[#allocation5 + $0x10] sm:$0xf] %v634
          %667 = vst [vmem:[#allocation5 + $0x14] sm:$0xf] %v635
          %668 = vst [vmem:[#allocation5 + $0x18] sm:$0xf] %v636
          %669 = vst [vmem:[#allocation5 + $0x1c] sm:$0xf] %v637
          %670 = vst [vmem:[#allocation5 + $0x20] sm:$0xf] %v638
          %671 = vst [vmem:[#allocation5 + $0x24] sm:$0xf] %v639
          %672 = vst [vmem:[#allocation5 + $0x28] sm:$0xf] %v640
          %673 = vst [vmem:[#allocation5 + $0x2c] sm:$0xf] %v641
          %674 = vst [vmem:[#allocation5 + $0x30] sm:$0xf] %v642
          %675 = vst [vmem:[#allocation5 + $0x34] sm:$0xf] %v643
          %676 = vst [vmem:[#allocation5 + $0x38] sm:$0xf] %v644
          %677 = vst [vmem:[#allocation5 + $0x3c] sm:$0xf] %v645
          %678 = vst [vmem:[#allocation5 + $0x40] sm:$0xf] %v646
          %679 = vst [vmem:[#allocation5 + $0x44] sm:$0xf] %v647
          %680 = vst [vmem:[#allocation5 + $0x48] sm:$0xf] %v648
          %681 = vst [vmem:[#allocation5 + $0x4c] sm:$0xf] %v649
          %682 = vst [vmem:[#allocation5 + $0x50] sm:$0xf] %v650
          %683 = vst [vmem:[#allocation5 + $0x54] sm:$0xf] %v651
          %684 = vst [vmem:[#allocation5 + $0x58] sm:$0xf] %v652
          %685 = vst [vmem:[#allocation5 + $0x5c] sm:$0xf] %v653
          %686 = vst [vmem:[#allocation5 + $0x60] sm:$0xf] %v654
          %687 = vst [vmem:[#allocation5 + $0x64] sm:$0xf] %v655
          %688 = vst [vmem:[#allocation5 + $0x68] sm:$0xf] %v656
          %689 = vst [vmem:[#allocation5 + $0x6c] sm:$0xf] %v657
          %690 = vst [vmem:[#allocation5 + $0x70] sm:$0xf] %v658
          %691 = vst [vmem:[#allocation5 + $0x74] sm:$0xf] %v659
          %692 = vst [vmem:[#allocation5 + $0x78] sm:$0xf] %v660
          %693 = vst [vmem:[#allocation5 + $0x7c] sm:$0xf] %v661
          %v726 = vrot.slane %v534, 4
          %v727 = vrot.slane %v535, 4
          %v728 = vrot.slane %v536, 4
          %v729 = vrot.slane %v537, 4
          %v730 = vrot.slane %v538, 4
          %v731 = vrot.slane %v539, 4
          %v732 = vrot.slane %v540, 4
          %v733 = vrot.slane %v541, 4
          %v734 = vrot.slane %v542, 4
          %v735 = vrot.slane %v543, 4
          %v736 = vrot.slane %v544, 4
          %v737 = vrot.slane %v545, 4
          %v738 = vrot.slane %v546, 4
          %v739 = vrot.slane %v547, 4
          %v740 = vrot.slane %v548, 4
          %v741 = vrot.slane %v549, 4
          %v742 = vrot.slane %v550, 4
          %v743 = vrot.slane %v551, 4
          %v744 = vrot.slane %v552, 4
          %v745 = vrot.slane %v553, 4
          %v746 = vrot.slane %v554, 4
          %v747 = vrot.slane %v555, 4
          %v748 = vrot.slane %v556, 4
          %v749 = vrot.slane %v557, 4
          %v750 = vrot.slane %v558, 4
          %v751 = vrot.slane %v559, 4
          %v752 = vrot.slane %v560, 4
          %v753 = vrot.slane %v561, 4
          %v754 = vrot.slane %v562, 4
          %v755 = vrot.slane %v563, 4
          %v756 = vrot.slane %v564, 4
          %v757 = vrot.slane %v565, 4
          %v790 = vunpack.c.l.bf16 %v726
          %v791 = vunpack.c.l.bf16 %v727
          %v792 = vunpack.c.l.bf16 %v728
          %v793 = vunpack.c.l.bf16 %v729
          %v794 = vunpack.c.l.bf16 %v730
          %v795 = vunpack.c.l.bf16 %v731
          %v796 = vunpack.c.l.bf16 %v732
          %v797 = vunpack.c.l.bf16 %v733
          %v798 = vunpack.c.l.bf16 %v734
          %v799 = vunpack.c.l.bf16 %v735
          %v800 = vunpack.c.l.bf16 %v736
          %v801 = vunpack.c.l.bf16 %v737
          %v802 = vunpack.c.l.bf16 %v738
          %v803 = vunpack.c.l.bf16 %v739
          %v804 = vunpack.c.l.bf16 %v740
          %v805 = vunpack.c.l.bf16 %v741
          %v806 = vunpack.c.l.bf16 %v742
          %v807 = vunpack.c.l.bf16 %v743
          %v808 = vunpack.c.l.bf16 %v744
          %v809 = vunpack.c.l.bf16 %v745
          %v810 = vunpack.c.l.bf16 %v746
          %v811 = vunpack.c.l.bf16 %v747
          %v812 = vunpack.c.l.bf16 %v748
          %v813 = vunpack.c.l.bf16 %v749
          %v814 = vunpack.c.l.bf16 %v750
          %v815 = vunpack.c.l.bf16 %v751
          %v816 = vunpack.c.l.bf16 %v752
          %v817 = vunpack.c.l.bf16 %v753
          %v818 = vunpack.c.l.bf16 %v754
          %v819 = vunpack.c.l.bf16 %v755
          %v820 = vunpack.c.l.bf16 %v756
          %v821 = vunpack.c.l.bf16 %v757
          %v822 = vmul.f32 %v790, 0.088388346
          %v823 = vmul.f32 %v791, 0.088388346
          %v824 = vmul.f32 %v792, 0.088388346
          %v825 = vmul.f32 %v793, 0.088388346
          %v826 = vmul.f32 %v794, 0.088388346
          %v827 = vmul.f32 %v795, 0.088388346
          %v828 = vmul.f32 %v796, 0.088388346
          %v829 = vmul.f32 %v797, 0.088388346
          %v830 = vmul.f32 %v798, 0.088388346
          %v831 = vmul.f32 %v799, 0.088388346
          %v832 = vmul.f32 %v800, 0.088388346
          %v833 = vmul.f32 %v801, 0.088388346
          %v834 = vmul.f32 %v802, 0.088388346
          %v835 = vmul.f32 %v803, 0.088388346
          %v836 = vmul.f32 %v804, 0.088388346
          %v837 = vmul.f32 %v805, 0.088388346
          %v838 = vmul.f32 %v806, 0.088388346
          %v839 = vmul.f32 %v807, 0.088388346
          %v840 = vmul.f32 %v808, 0.088388346
          %v841 = vmul.f32 %v809, 0.088388346
          %v842 = vmul.f32 %v810, 0.088388346
          %v843 = vmul.f32 %v811, 0.088388346
          %v844 = vmul.f32 %v812, 0.088388346
          %v845 = vmul.f32 %v813, 0.088388346
          %v846 = vmul.f32 %v814, 0.088388346
          %v847 = vmul.f32 %v815, 0.088388346
          %v848 = vmul.f32 %v816, 0.088388346
          %v849 = vmul.f32 %v817, 0.088388346
          %v850 = vmul.f32 %v818, 0.088388346
          %v851 = vmul.f32 %v819, 0.088388346
          %v852 = vmul.f32 %v820, 0.088388346
          %v853 = vmul.f32 %v821, 0.088388346
          %v854 = vpack.c.bf16 %v822, %v822
          %v855 = vpack.c.bf16 %v823, %v823
          %v856 = vpack.c.bf16 %v824, %v824
          %v857 = vpack.c.bf16 %v825, %v825
          %v858 = vpack.c.bf16 %v826, %v826
          %v859 = vpack.c.bf16 %v827, %v827
          %v860 = vpack.c.bf16 %v828, %v828
          %v861 = vpack.c.bf16 %v829, %v829
          %v862 = vpack.c.bf16 %v830, %v830
          %v863 = vpack.c.bf16 %v831, %v831
          %v864 = vpack.c.bf16 %v832, %v832
          %v865 = vpack.c.bf16 %v833, %v833
          %v866 = vpack.c.bf16 %v834, %v834
          %v867 = vpack.c.bf16 %v835, %v835
          %v868 = vpack.c.bf16 %v836, %v836
          %v869 = vpack.c.bf16 %v837, %v837
          %v870 = vpack.c.bf16 %v838, %v838
          %v871 = vpack.c.bf16 %v839, %v839
          %v872 = vpack.c.bf16 %v840, %v840
          %v873 = vpack.c.bf16 %v841, %v841
          %v874 = vpack.c.bf16 %v842, %v842
          %v875 = vpack.c.bf16 %v843, %v843
          %v876 = vpack.c.bf16 %v844, %v844
          %v877 = vpack.c.bf16 %v845, %v845
          %v878 = vpack.c.bf16 %v846, %v846
          %v879 = vpack.c.bf16 %v847, %v847
          %v880 = vpack.c.bf16 %v848, %v848
          %v881 = vpack.c.bf16 %v849, %v849
          %v882 = vpack.c.bf16 %v850, %v850
          %v883 = vpack.c.bf16 %v851, %v851
          %v884 = vpack.c.bf16 %v852, %v852
          %v885 = vpack.c.bf16 %v853, %v853
          %886 = vst [vmem:[#allocation5 + $0x80] sm:$0xf] %v854
          %887 = vst [vmem:[#allocation5 + $0x84] sm:$0xf] %v855
          %888 = vst [vmem:[#allocation5 + $0x88] sm:$0xf] %v856
          %889 = vst [vmem:[#allocation5 + $0x8c] sm:$0xf] %v857
          %890 = vst [vmem:[#allocation5 + $0x90] sm:$0xf] %v858
          %891 = vst [vmem:[#allocation5 + $0x94] sm:$0xf] %v859
          %892 = vst [vmem:[#allocation5 + $0x98] sm:$0xf] %v860
          %893 = vst [vmem:[#allocation5 + $0x9c] sm:$0xf] %v861
          %894 = vst [vmem:[#allocation5 + $0xa0] sm:$0xf] %v862
          %895 = vst [vmem:[#allocation5 + $0xa4] sm:$0xf] %v863
          %896 = vst [vmem:[#allocation5 + $0xa8] sm:$0xf] %v864
          %897 = vst [vmem:[#allocation5 + $0xac] sm:$0xf] %v865
          %898 = vst [vmem:[#allocation5 + $0xb0] sm:$0xf] %v866
          %899 = vst [vmem:[#allocation5 + $0xb4] sm:$0xf] %v867
          %900 = vst [vmem:[#allocation5 + $0xb8] sm:$0xf] %v868
          %901 = vst [vmem:[#allocation5 + $0xbc] sm:$0xf] %v869
          %902 = vst [vmem:[#allocation5 + $0xc0] sm:$0xf] %v870
          %903 = vst [vmem:[#allocation5 + $0xc4] sm:$0xf] %v871
          %904 = vst [vmem:[#allocation5 + $0xc8] sm:$0xf] %v872
          %905 = vst [vmem:[#allocation5 + $0xcc] sm:$0xf] %v873
          %906 = vst [vmem:[#allocation5 + $0xd0] sm:$0xf] %v874
          %907 = vst [vmem:[#allocation5 + $0xd4] sm:$0xf] %v875
          %908 = vst [vmem:[#allocation5 + $0xd8] sm:$0xf] %v876
          %909 = vst [vmem:[#allocation5 + $0xdc] sm:$0xf] %v877
          %910 = vst [vmem:[#allocation5 + $0xe0] sm:$0xf] %v878
          %911 = vst [vmem:[#allocation5 + $0xe4] sm:$0xf] %v879
          %912 = vst [vmem:[#allocation5 + $0xe8] sm:$0xf] %v880
          %913 = vst [vmem:[#allocation5 + $0xec] sm:$0xf] %v881
          %914 = vst [vmem:[#allocation5 + $0xf0] sm:$0xf] %v882
          %915 = vst [vmem:[#allocation5 + $0xf4] sm:$0xf] %v883
          %916 = vst [vmem:[#allocation5 + $0xf8] sm:$0xf] %v884
          %917 = vst [vmem:[#allocation5 + $0xfc] sm:$0xf] %v885
        $region48: #{tpu_custom_call.1} parent=31 // pred_fallthru
          _
        %p918 = scmp.lt.s32.totalorder %s336, %s335
        // Predicated region
        $region49: #{tpu_custom_call.1} parent=31 // pred_check
          %p919 = pneg %p918
        $region50: #{tpu_custom_call.1} parent=31 // pred_check_branch
          %921 = sbr.rel (%p919) target = $region52
        $region51: #{tpu_custom_call.1} parent=31 // pred_region
          %v922 = vld [vmem:[%s281] sm:$0xf]
          %v923 = vld [vmem:[%s281 + $0x4] sm:$0xf]
          %v924 = vld [vmem:[%s281 + $0x8] sm:$0xf]
          %v925 = vld [vmem:[%s281 + $0xc] sm:$0xf]
          %v926 = vld [vmem:[%s281 + $0x10] sm:$0xf]
          %v927 = vld [vmem:[%s281 + $0x14] sm:$0xf]
          %v928 = vld [vmem:[%s281 + $0x18] sm:$0xf]
          %v929 = vld [vmem:[%s281 + $0x1c] sm:$0xf]
          %v930 = vld [vmem:[%s281 + $0x20] sm:$0xf]
          %v931 = vld [vmem:[%s281 + $0x24] sm:$0xf]
          %v932 = vld [vmem:[%s281 + $0x28] sm:$0xf]
          %v933 = vld [vmem:[%s281 + $0x2c] sm:$0xf]
          %v934 = vld [vmem:[%s281 + $0x30] sm:$0xf]
          %v935 = vld [vmem:[%s281 + $0x34] sm:$0xf]
          %v936 = vld [vmem:[%s281 + $0x38] sm:$0xf]
          %v937 = vld [vmem:[%s281 + $0x3c] sm:$0xf]
          %v938 = vld [vmem:[%s281 + $0x40] sm:$0xf]
          %v939 = vld [vmem:[%s281 + $0x44] sm:$0xf]
          %v940 = vld [vmem:[%s281 + $0x48] sm:$0xf]
          %v941 = vld [vmem:[%s281 + $0x4c] sm:$0xf]
          %v942 = vld [vmem:[%s281 + $0x50] sm:$0xf]
          %v943 = vld [vmem:[%s281 + $0x54] sm:$0xf]
          %v944 = vld [vmem:[%s281 + $0x58] sm:$0xf]
          %v945 = vld [vmem:[%s281 + $0x5c] sm:$0xf]
          %v946 = vld [vmem:[%s281 + $0x60] sm:$0xf]
          %v947 = vld [vmem:[%s281 + $0x64] sm:$0xf]
          %v948 = vld [vmem:[%s281 + $0x68] sm:$0xf]
          %v949 = vld [vmem:[%s281 + $0x6c] sm:$0xf]
          %v950 = vld [vmem:[%s281 + $0x70] sm:$0xf]
          %v951 = vld [vmem:[%s281 + $0x74] sm:$0xf]
          %v952 = vld [vmem:[%s281 + $0x78] sm:$0xf]
          %v953 = vld [vmem:[%s281 + $0x7c] sm:$0xf]
          %v954 = vld [vmem:[%s291] sm:$0xf]
          %v955 = vld [vmem:[%s291 + $0x4] sm:$0xf]
          %v956 = vld [vmem:[%s291 + $0x8] sm:$0xf]
          %v957 = vld [vmem:[%s291 + $0xc] sm:$0xf]
          %v958 = vld [vmem:[%s291 + $0x10] sm:$0xf]
          %v959 = vld [vmem:[%s291 + $0x14] sm:$0xf]
          %v960 = vld [vmem:[%s291 + $0x18] sm:$0xf]
          %v961 = vld [vmem:[%s291 + $0x1c] sm:$0xf]
          %v962 = vld [vmem:[%s291 + $0x20] sm:$0xf]
          %v963 = vld [vmem:[%s291 + $0x24] sm:$0xf]
          %v964 = vld [vmem:[%s291 + $0x28] sm:$0xf]
          %v965 = vld [vmem:[%s291 + $0x2c] sm:$0xf]
          %v966 = vld [vmem:[%s291 + $0x30] sm:$0xf]
          %v967 = vld [vmem:[%s291 + $0x34] sm:$0xf]
          %v968 = vld [vmem:[%s291 + $0x38] sm:$0xf]
          %v969 = vld [vmem:[%s291 + $0x3c] sm:$0xf]
          %v970 = vld [vmem:[%s291 + $0x40] sm:$0xf]
          %v971 = vld [vmem:[%s291 + $0x44] sm:$0xf]
          %v972 = vld [vmem:[%s291 + $0x48] sm:$0xf]
          %v973 = vld [vmem:[%s291 + $0x4c] sm:$0xf]
          %v974 = vld [vmem:[%s291 + $0x50] sm:$0xf]
          %v975 = vld [vmem:[%s291 + $0x54] sm:$0xf]
          %v976 = vld [vmem:[%s291 + $0x58] sm:$0xf]
          %v977 = vld [vmem:[%s291 + $0x5c] sm:$0xf]
          %v978 = vld [vmem:[%s291 + $0x60] sm:$0xf]
          %v979 = vld [vmem:[%s291 + $0x64] sm:$0xf]
          %v980 = vld [vmem:[%s291 + $0x68] sm:$0xf]
          %v981 = vld [vmem:[%s291 + $0x6c] sm:$0xf]
          %v982 = vld [vmem:[%s291 + $0x70] sm:$0xf]
          %v983 = vld [vmem:[%s291 + $0x74] sm:$0xf]
          %v984 = vld [vmem:[%s291 + $0x78] sm:$0xf]
          %v985 = vld [vmem:[%s291 + $0x7c] sm:$0xf]
          %v986 = vld [vmem:[#allocation5] sm:$0xf]
          %v987 = vld [vmem:[#allocation5 + $0x4] sm:$0xf]
          %v988 = vld [vmem:[#allocation5 + $0x8] sm:$0xf]
          %v989 = vld [vmem:[#allocation5 + $0xc] sm:$0xf]
          %v990 = vld [vmem:[#allocation5 + $0x10] sm:$0xf]
          %v991 = vld [vmem:[#allocation5 + $0x14] sm:$0xf]
          %v992 = vld [vmem:[#allocation5 + $0x18] sm:$0xf]
          %v993 = vld [vmem:[#allocation5 + $0x1c] sm:$0xf]
          %v994 = vld [vmem:[#allocation5 + $0x20] sm:$0xf]
          %v995 = vld [vmem:[#allocation5 + $0x24] sm:$0xf]
          %v996 = vld [vmem:[#allocation5 + $0x28] sm:$0xf]
          %v997 = vld [vmem:[#allocation5 + $0x2c] sm:$0xf]
          %v998 = vld [vmem:[#allocation5 + $0x30] sm:$0xf]
          %v999 = vld [vmem:[#allocation5 + $0x34] sm:$0xf]
          %v1000 = vld [vmem:[#allocation5 + $0x38] sm:$0xf]
          %v1001 = vld [vmem:[#allocation5 + $0x3c] sm:$0xf]
          %v1002 = vld [vmem:[#allocation5 + $0x40] sm:$0xf]
          %v1003 = vld [vmem:[#allocation5 + $0x44] sm:$0xf]
          %v1004 = vld [vmem:[#allocation5 + $0x48] sm:$0xf]
          %v1005 = vld [vmem:[#allocation5 + $0x4c] sm:$0xf]
          %v1006 = vld [vmem:[#allocation5 + $0x50] sm:$0xf]
          %v1007 = vld [vmem:[#allocation5 + $0x54] sm:$0xf]
          %v1008 = vld [vmem:[#allocation5 + $0x58] sm:$0xf]
          %v1009 = vld [vmem:[#allocation5 + $0x5c] sm:$0xf]
          %v1010 = vld [vmem:[#allocation5 + $0x60] sm:$0xf]
          %v1011 = vld [vmem:[#allocation5 + $0x64] sm:$0xf]
          %v1012 = vld [vmem:[#allocation5 + $0x68] sm:$0xf]
          %v1013 = vld [vmem:[#allocation5 + $0x6c] sm:$0xf]
          %v1014 = vld [vmem:[#allocation5 + $0x70] sm:$0xf]
          %v1015 = vld [vmem:[#allocation5 + $0x74] sm:$0xf]
          %v1016 = vld [vmem:[#allocation5 + $0x78] sm:$0xf]
          %v1017 = vld [vmem:[#allocation5 + $0x7c] sm:$0xf]
          %v1018 = vld [vmem:[#allocation5 + $0x80] sm:$0xf]
          %v1019 = vld [vmem:[#allocation5 + $0x84] sm:$0xf]
          %v1020 = vld [vmem:[#allocation5 + $0x88] sm:$0xf]
          %v1021 = vld [vmem:[#allocation5 + $0x8c] sm:$0xf]
          %v1022 = vld [vmem:[#allocation5 + $0x90] sm:$0xf]
          %v1023 = vld [vmem:[#allocation5 + $0x94] sm:$0xf]
          %v1024 = vld [vmem:[#allocation5 + $0x98] sm:$0xf]
          %v1025 = vld [vmem:[#allocation5 + $0x9c] sm:$0xf]
          %v1026 = vld [vmem:[#allocation5 + $0xa0] sm:$0xf]
          %v1027 = vld [vmem:[#allocation5 + $0xa4] sm:$0xf]
          %v1028 = vld [vmem:[#allocation5 + $0xa8] sm:$0xf]
          %v1029 = vld [vmem:[#allocation5 + $0xac] sm:$0xf]
          %v1030 = vld [vmem:[#allocation5 + $0xb0] sm:$0xf]
          %v1031 = vld [vmem:[#allocation5 + $0xb4] sm:$0xf]
          %v1032 = vld [vmem:[#allocation5 + $0xb8] sm:$0xf]
          %v1033 = vld [vmem:[#allocation5 + $0xbc] sm:$0xf]
          %v1034 = vld [vmem:[#allocation5 + $0xc0] sm:$0xf]
          %v1035 = vld [vmem:[#allocation5 + $0xc4] sm:$0xf]
          %v1036 = vld [vmem:[#allocation5 + $0xc8] sm:$0xf]
          %v1037 = vld [vmem:[#allocation5 + $0xcc] sm:$0xf]
          %v1038 = vld [vmem:[#allocation5 + $0xd0] sm:$0xf]
          %v1039 = vld [vmem:[#allocation5 + $0xd4] sm:$0xf]
          %v1040 = vld [vmem:[#allocation5 + $0xd8] sm:$0xf]
          %v1041 = vld [vmem:[#allocation5 + $0xdc] sm:$0xf]
          %v1042 = vld [vmem:[#allocation5 + $0xe0] sm:$0xf]
          %v1043 = vld [vmem:[#allocation5 + $0xe4] sm:$0xf]
          %v1044 = vld [vmem:[#allocation5 + $0xe8] sm:$0xf]
          %v1045 = vld [vmem:[#allocation5 + $0xec] sm:$0xf]
          %v1046 = vld [vmem:[#allocation5 + $0xf0] sm:$0xf]
          %v1047 = vld [vmem:[#allocation5 + $0xf4] sm:$0xf]
          %v1048 = vld [vmem:[#allocation5 + $0xf8] sm:$0xf]
          %v1049 = vld [vmem:[#allocation5 + $0xfc] sm:$0xf]
          %v1114 = vunpack.c.l.b16 %v986
          %v1115 = vunpack.c.l.b16 %v987
          %v1116 = vunpack.c.l.b16 %v988
          %v1117 = vunpack.c.l.b16 %v989
          %v1118 = vunpack.c.l.b16 %v990
          %v1119 = vunpack.c.l.b16 %v991
          %v1120 = vunpack.c.l.b16 %v992
          %v1121 = vunpack.c.l.b16 %v993
          %v1122 = vunpack.c.l.b16 %v994
          %v1123 = vunpack.c.l.b16 %v995
          %v1124 = vunpack.c.l.b16 %v996
          %v1125 = vunpack.c.l.b16 %v997
          %v1126 = vunpack.c.l.b16 %v998
          %v1127 = vunpack.c.l.b16 %v999
          %v1128 = vunpack.c.l.b16 %v1000
          %v1129 = vunpack.c.l.b16 %v1001
          %v1130 = vunpack.c.l.b16 %v1002
          %v1131 = vunpack.c.l.b16 %v1003
          %v1132 = vunpack.c.l.b16 %v1004
          %v1133 = vunpack.c.l.b16 %v1005
          %v1134 = vunpack.c.l.b16 %v1006
          %v1135 = vunpack.c.l.b16 %v1007
          %v1136 = vunpack.c.l.b16 %v1008
          %v1137 = vunpack.c.l.b16 %v1009
          %v1138 = vunpack.c.l.b16 %v1010
          %v1139 = vunpack.c.l.b16 %v1011
          %v1140 = vunpack.c.l.b16 %v1012
          %v1141 = vunpack.c.l.b16 %v1013
          %v1142 = vunpack.c.l.b16 %v1014
          %v1143 = vunpack.c.l.b16 %v1015
          %v1144 = vunpack.c.l.b16 %v1016
          %v1145 = vunpack.c.l.b16 %v1017
          %v1146 = vunpack.c.l.b16 %v1018
          %v1147 = vunpack.c.l.b16 %v1019
          %v1148 = vunpack.c.l.b16 %v1020
          %v1149 = vunpack.c.l.b16 %v1021
          %v1150 = vunpack.c.l.b16 %v1022
          %v1151 = vunpack.c.l.b16 %v1023
          %v1152 = vunpack.c.l.b16 %v1024
          %v1153 = vunpack.c.l.b16 %v1025
          %v1154 = vunpack.c.l.b16 %v1026
          %v1155 = vunpack.c.l.b16 %v1027
          %v1156 = vunpack.c.l.b16 %v1028
          %v1157 = vunpack.c.l.b16 %v1029
          %v1158 = vunpack.c.l.b16 %v1030
          %v1159 = vunpack.c.l.b16 %v1031
          %v1160 = vunpack.c.l.b16 %v1032
          %v1161 = vunpack.c.l.b16 %v1033
          %v1162 = vunpack.c.l.b16 %v1034
          %v1163 = vunpack.c.l.b16 %v1035
          %v1164 = vunpack.c.l.b16 %v1036
          %v1165 = vunpack.c.l.b16 %v1037
          %v1166 = vunpack.c.l.b16 %v1038
          %v1167 = vunpack.c.l.b16 %v1039
          %v1168 = vunpack.c.l.b16 %v1040
          %v1169 = vunpack.c.l.b16 %v1041
          %v1170 = vunpack.c.l.b16 %v1042
          %v1171 = vunpack.c.l.b16 %v1043
          %v1172 = vunpack.c.l.b16 %v1044
          %v1173 = vunpack.c.l.b16 %v1045
          %v1174 = vunpack.c.l.b16 %v1046
          %v1175 = vunpack.c.l.b16 %v1047
          %v1176 = vunpack.c.l.b16 %v1048
          %v1177 = vunpack.c.l.b16 %v1049
          %v1178 = vpack.c.b16 %v1115, %v1114
          %v1179 = vpack.c.b16 %v1117, %v1116
          %v1180 = vpack.c.b16 %v1119, %v1118
          %v1181 = vpack.c.b16 %v1121, %v1120
          %v1182 = vpack.c.b16 %v1123, %v1122
          %v1183 = vpack.c.b16 %v1125, %v1124
          %v1184 = vpack.c.b16 %v1127, %v1126
          %v1185 = vpack.c.b16 %v1129, %v1128
          %v1186 = vpack.c.b16 %v1131, %v1130
          %v1187 = vpack.c.b16 %v1133, %v1132
          %v1188 = vpack.c.b16 %v1135, %v1134
          %v1189 = vpack.c.b16 %v1137, %v1136
          %v1190 = vpack.c.b16 %v1139, %v1138
          %v1191 = vpack.c.b16 %v1141, %v1140
          %v1192 = vpack.c.b16 %v1143, %v1142
          %v1193 = vpack.c.b16 %v1145, %v1144
          %v1194 = vpack.c.b16 %v1147, %v1146
          %v1195 = vpack.c.b16 %v1149, %v1148
          %v1196 = vpack.c.b16 %v1151, %v1150
          %v1197 = vpack.c.b16 %v1153, %v1152
          %v1198 = vpack.c.b16 %v1155, %v1154
          %v1199 = vpack.c.b16 %v1157, %v1156
          %v1200 = vpack.c.b16 %v1159, %v1158
          %v1201 = vpack.c.b16 %v1161, %v1160
          %v1202 = vpack.c.b16 %v1163, %v1162
          %v1203 = vpack.c.b16 %v1165, %v1164
          %v1204 = vpack.c.b16 %v1167, %v1166
          %v1205 = vpack.c.b16 %v1169, %v1168
          %v1206 = vpack.c.b16 %v1171, %v1170
          %v1207 = vpack.c.b16 %v1173, %v1172
          %v1208 = vpack.c.b16 %v1175, %v1174
          %v1209 = vpack.c.b16 %v1177, %v1176
          %v1274 = vunpack.c.l.b16 %v922
          %v1275 = vunpack.c.l.b16 %v923
          %v1276 = vunpack.c.l.b16 %v924
          %v1277 = vunpack.c.l.b16 %v925
          %v1278 = vunpack.c.l.b16 %v926
          %v1279 = vunpack.c.l.b16 %v927
          %v1280 = vunpack.c.l.b16 %v928
          %v1281 = vunpack.c.l.b16 %v929
          %v1282 = vunpack.c.l.b16 %v930
          %v1283 = vunpack.c.l.b16 %v931
          %v1284 = vunpack.c.l.b16 %v932
          %v1285 = vunpack.c.l.b16 %v933
          %v1286 = vunpack.c.l.b16 %v934
          %v1287 = vunpack.c.l.b16 %v935
          %v1288 = vunpack.c.l.b16 %v936
          %v1289 = vunpack.c.l.b16 %v937
          %v1290 = vunpack.c.l.b16 %v938
          %v1291 = vunpack.c.l.b16 %v939
          %v1292 = vunpack.c.l.b16 %v940
          %v1293 = vunpack.c.l.b16 %v941
          %v1294 = vunpack.c.l.b16 %v942
          %v1295 = vunpack.c.l.b16 %v943
          %v1296 = vunpack.c.l.b16 %v944
          %v1297 = vunpack.c.l.b16 %v945
          %v1298 = vunpack.c.l.b16 %v946
          %v1299 = vunpack.c.l.b16 %v947
          %v1300 = vunpack.c.l.b16 %v948
          %v1301 = vunpack.c.l.b16 %v949
          %v1302 = vunpack.c.l.b16 %v950
          %v1303 = vunpack.c.l.b16 %v951
          %v1304 = vunpack.c.l.b16 %v952
          %v1305 = vunpack.c.l.b16 %v953
          %v1306 = vpack.c.b16 %v1275, %v1274
          %v1307 = vpack.c.b16 %v1277, %v1276
          %v1308 = vpack.c.b16 %v1279, %v1278
          %v1309 = vpack.c.b16 %v1281, %v1280
          %v1310 = vpack.c.b16 %v1283, %v1282
          %v1311 = vpack.c.b16 %v1285, %v1284
          %v1312 = vpack.c.b16 %v1287, %v1286
          %v1313 = vpack.c.b16 %v1289, %v1288
          %v1314 = vpack.c.b16 %v1291, %v1290
          %v1315 = vpack.c.b16 %v1293, %v1292
          %v1316 = vpack.c.b16 %v1295, %v1294
          %v1317 = vpack.c.b16 %v1297, %v1296
          %v1318 = vpack.c.b16 %v1299, %v1298
          %v1319 = vpack.c.b16 %v1301, %v1300
          %v1320 = vpack.c.b16 %v1303, %v1302
          %v1321 = vpack.c.b16 %v1305, %v1304
          %1338 = vmatpush.bf16.xpose.msra.mxu0 %v1313
          %1339 = vmatpush.bf16.xpose.msra.mxu0 %v1312
          %1340 = vmatpush.bf16.xpose.msra.mxu0 %v1311
          %1341 = vmatpush.bf16.xpose.msra.mxu0 %v1310
          %1342 = vmatpush.bf16.xpose.msra.mxu0 %v1309
          %1343 = vmatpush.bf16.xpose.msra.mxu0 %v1308
          %1344 = vmatpush.bf16.xpose.msra.mxu0 %v1307
          %1345 = vmatpush.bf16.xpose.msra.mxu0 %v1306
          %1346 = vmatmul.bf16.gmra.mxu0 %v1178
          %v1347 = vpop.f32.mrf.mxu0
          %v1348 = vadd.f32 0.0, %v1347
          %v1349 = vpop.f32.mrf.mxu0
          %v1350 = vadd.f32 0.0, %v1349
          %1351 = vmatmul.bf16.gmra.mxu0 %v1179
          %v1352 = vpop.f32.mrf.mxu0
          %v1353 = vadd.f32 0.0, %v1352
          %v1354 = vpop.f32.mrf.mxu0
          %v1355 = vadd.f32 0.0, %v1354
          %1356 = vmatmul.bf16.gmra.mxu0 %v1180
          %v1357 = vpop.f32.mrf.mxu0
          %v1358 = vadd.f32 0.0, %v1357
          %v1359 = vpop.f32.mrf.mxu0
          %v1360 = vadd.f32 0.0, %v1359
          %1361 = vmatmul.bf16.gmra.mxu0 %v1181
          %v1362 = vpop.f32.mrf.mxu0
          %v1363 = vadd.f32 0.0, %v1362
          %v1364 = vpop.f32.mrf.mxu0
          %v1365 = vadd.f32 0.0, %v1364
          %1366 = vmatmul.bf16.gmra.mxu0 %v1182
          %v1367 = vpop.f32.mrf.mxu0
          %v1368 = vadd.f32 0.0, %v1367
          %v1369 = vpop.f32.mrf.mxu0
          %v1370 = vadd.f32 0.0, %v1369
          %1371 = vmatmul.bf16.gmra.mxu0 %v1183
          %v1372 = vpop.f32.mrf.mxu0
          %v1373 = vadd.f32 0.0, %v1372
          %v1374 = vpop.f32.mrf.mxu0
          %v1375 = vadd.f32 0.0, %v1374
          %1376 = vmatmul.bf16.gmra.mxu0 %v1184
          %v1377 = vpop.f32.mrf.mxu0
          %v1378 = vadd.f32 0.0, %v1377
          %v1379 = vpop.f32.mrf.mxu0
          %v1380 = vadd.f32 0.0, %v1379
          %1381 = vmatmul.bf16.gmra.mxu0 %v1185
          %v1382 = vpop.f32.mrf.mxu0
          %v1383 = vadd.f32 0.0, %v1382
          %v1384 = vpop.f32.mrf.mxu0
          %v1385 = vadd.f32 0.0, %v1384
          %1386 = vmatmul.bf16.gmra.mxu0 %v1186
          %v1387 = vpop.f32.mrf.mxu0
          %v1388 = vadd.f32 0.0, %v1387
          %v1389 = vpop.f32.mrf.mxu0
          %v1390 = vadd.f32 0.0, %v1389
          %1391 = vmatmul.bf16.gmra.mxu0 %v1187
          %v1392 = vpop.f32.mrf.mxu0
          %v1393 = vadd.f32 0.0, %v1392
          %v1394 = vpop.f32.mrf.mxu0
          %v1395 = vadd.f32 0.0, %v1394
          %1396 = vmatmul.bf16.gmra.mxu0 %v1188
          %v1397 = vpop.f32.mrf.mxu0
          %v1398 = vadd.f32 0.0, %v1397
          %v1399 = vpop.f32.mrf.mxu0
          %v1400 = vadd.f32 0.0, %v1399
          %1401 = vmatmul.bf16.gmra.mxu0 %v1189
          %v1402 = vpop.f32.mrf.mxu0
          %v1403 = vadd.f32 0.0, %v1402
          %v1404 = vpop.f32.mrf.mxu0
          %v1405 = vadd.f32 0.0, %v1404
          %1406 = vmatmul.bf16.gmra.mxu0 %v1190
          %v1407 = vpop.f32.mrf.mxu0
          %v1408 = vadd.f32 0.0, %v1407
          %v1409 = vpop.f32.mrf.mxu0
          %v1410 = vadd.f32 0.0, %v1409
          %1411 = vmatmul.bf16.gmra.mxu0 %v1191
          %v1412 = vpop.f32.mrf.mxu0
          %v1413 = vadd.f32 0.0, %v1412
          %v1414 = vpop.f32.mrf.mxu0
          %v1415 = vadd.f32 0.0, %v1414
          %1416 = vmatmul.bf16.gmra.mxu0 %v1192
          %v1417 = vpop.f32.mrf.mxu0
          %v1418 = vadd.f32 0.0, %v1417
          %v1419 = vpop.f32.mrf.mxu0
          %v1420 = vadd.f32 0.0, %v1419
          %1421 = vmatmul.bf16.gmra.mxu0 %v1193
          %v1422 = vpop.f32.mrf.mxu0
          %v1423 = vadd.f32 0.0, %v1422
          %v1424 = vpop.f32.mrf.mxu0
          %v1425 = vadd.f32 0.0, %v1424
          %1426 = vmatmul.bf16.gmra.mxu0 %v1194
          %v1427 = vpop.f32.mrf.mxu0
          %v1428 = vadd.f32 0.0, %v1427
          %v1429 = vpop.f32.mrf.mxu0
          %v1430 = vadd.f32 0.0, %v1429
          %1431 = vmatmul.bf16.gmra.mxu0 %v1195
          %v1432 = vpop.f32.mrf.mxu0
          %v1433 = vadd.f32 0.0, %v1432
          %v1434 = vpop.f32.mrf.mxu0
          %v1435 = vadd.f32 0.0, %v1434
          %1436 = vmatmul.bf16.gmra.mxu0 %v1196
          %v1437 = vpop.f32.mrf.mxu0
          %v1438 = vadd.f32 0.0, %v1437
          %v1439 = vpop.f32.mrf.mxu0
          %v1440 = vadd.f32 0.0, %v1439
          %1441 = vmatmul.bf16.gmra.mxu0 %v1197
          %v1442 = vpop.f32.mrf.mxu0
          %v1443 = vadd.f32 0.0, %v1442
          %v1444 = vpop.f32.mrf.mxu0
          %v1445 = vadd.f32 0.0, %v1444
          %1446 = vmatmul.bf16.gmra.mxu0 %v1198
          %v1447 = vpop.f32.mrf.mxu0
          %v1448 = vadd.f32 0.0, %v1447
          %v1449 = vpop.f32.mrf.mxu0
          %v1450 = vadd.f32 0.0, %v1449
          %1451 = vmatmul.bf16.gmra.mxu0 %v1199
          %v1452 = vpop.f32.mrf.mxu0
          %v1453 = vadd.f32 0.0, %v1452
          %v1454 = vpop.f32.mrf.mxu0
          %v1455 = vadd.f32 0.0, %v1454
          %1456 = vmatmul.bf16.gmra.mxu0 %v1200
          %v1457 = vpop.f32.mrf.mxu0
          %v1458 = vadd.f32 0.0, %v1457
          %v1459 = vpop.f32.mrf.mxu0
          %v1460 = vadd.f32 0.0, %v1459
          %1461 = vmatmul.bf16.gmra.mxu0 %v1201
          %v1462 = vpop.f32.mrf.mxu0
          %v1463 = vadd.f32 0.0, %v1462
          %v1464 = vpop.f32.mrf.mxu0
          %v1465 = vadd.f32 0.0, %v1464
          %1466 = vmatmul.bf16.gmra.mxu0 %v1202
          %v1467 = vpop.f32.mrf.mxu0
          %v1468 = vadd.f32 0.0, %v1467
          %v1469 = vpop.f32.mrf.mxu0
          %v1470 = vadd.f32 0.0, %v1469
          %1471 = vmatmul.bf16.gmra.mxu0 %v1203
          %v1472 = vpop.f32.mrf.mxu0
          %v1473 = vadd.f32 0.0, %v1472
          %v1474 = vpop.f32.mrf.mxu0
          %v1475 = vadd.f32 0.0, %v1474
          %1476 = vmatmul.bf16.gmra.mxu0 %v1204
          %v1477 = vpop.f32.mrf.mxu0
          %v1478 = vadd.f32 0.0, %v1477
          %v1479 = vpop.f32.mrf.mxu0
          %v1480 = vadd.f32 0.0, %v1479
          %1481 = vmatmul.bf16.gmra.mxu0 %v1205
          %v1482 = vpop.f32.mrf.mxu0
          %v1483 = vadd.f32 0.0, %v1482
          %v1484 = vpop.f32.mrf.mxu0
          %v1485 = vadd.f32 0.0, %v1484
          %1486 = vmatmul.bf16.gmra.mxu0 %v1206
          %v1487 = vpop.f32.mrf.mxu0
          %v1488 = vadd.f32 0.0, %v1487
          %v1489 = vpop.f32.mrf.mxu0
          %v1490 = vadd.f32 0.0, %v1489
          %1491 = vmatmul.bf16.gmra.mxu0 %v1207
          %v1492 = vpop.f32.mrf.mxu0
          %v1493 = vadd.f32 0.0, %v1492
          %v1494 = vpop.f32.mrf.mxu0
          %v1495 = vadd.f32 0.0, %v1494
          %1496 = vmatmul.bf16.gmra.mxu0 %v1208
          %v1497 = vpop.f32.mrf.mxu0
          %v1498 = vadd.f32 0.0, %v1497
          %v1499 = vpop.f32.mrf.mxu0
          %v1500 = vadd.f32 0.0, %v1499
          %1501 = vmatmul.bf16.gmra.mxu0 %v1209
          %v1502 = vpop.f32.mrf.mxu0
          %v1503 = vadd.f32 0.0, %v1502
          %v1504 = vpop.f32.mrf.mxu0
          %v1505 = vadd.f32 0.0, %v1504
          %1506 = vdwg.mxu0
          %1507 = vmatpush.bf16.xpose.msra.mxu0 %v1321
          %1508 = vmatpush.bf16.xpose.msra.mxu0 %v1320
          %1509 = vmatpush.bf16.xpose.msra.mxu0 %v1319
          %1510 = vmatpush.bf16.xpose.msra.mxu0 %v1318
          %1511 = vmatpush.bf16.xpose.msra.mxu0 %v1317
          %1512 = vmatpush.bf16.xpose.msra.mxu0 %v1316
          %1513 = vmatpush.bf16.xpose.msra.mxu0 %v1315
          %1514 = vmatpush.bf16.xpose.msra.mxu0 %v1314
          %1515 = vmatmul.bf16.gmra.mxu0 %v1178
          %v1516 = vpop.f32.mrf.mxu0
          %v1517 = vadd.f32 0.0, %v1516
          %v1518 = vpop.f32.mrf.mxu0
          %v1519 = vadd.f32 0.0, %v1518
          %1520 = vmatmul.bf16.gmra.mxu0 %v1179
          %v1521 = vpop.f32.mrf.mxu0
          %v1522 = vadd.f32 0.0, %v1521
          %v1523 = vpop.f32.mrf.mxu0
          %v1524 = vadd.f32 0.0, %v1523
          %1525 = vmatmul.bf16.gmra.mxu0 %v1180
          %v1526 = vpop.f32.mrf.mxu0
          %v1527 = vadd.f32 0.0, %v1526
          %v1528 = vpop.f32.mrf.mxu0
          %v1529 = vadd.f32 0.0, %v1528
          %1530 = vmatmul.bf16.gmra.mxu0 %v1181
          %v1531 = vpop.f32.mrf.mxu0
          %v1532 = vadd.f32 0.0, %v1531
          %v1533 = vpop.f32.mrf.mxu0
          %v1534 = vadd.f32 0.0, %v1533
          %1535 = vmatmul.bf16.gmra.mxu0 %v1182
          %v1536 = vpop.f32.mrf.mxu0
          %v1537 = vadd.f32 0.0, %v1536
          %v1538 = vpop.f32.mrf.mxu0
          %v1539 = vadd.f32 0.0, %v1538
          %1540 = vmatmul.bf16.gmra.mxu0 %v1183
          %v1541 = vpop.f32.mrf.mxu0
          %v1542 = vadd.f32 0.0, %v1541
          %v1543 = vpop.f32.mrf.mxu0
          %v1544 = vadd.f32 0.0, %v1543
          %1545 = vmatmul.bf16.gmra.mxu0 %v1184
          %v1546 = vpop.f32.mrf.mxu0
          %v1547 = vadd.f32 0.0, %v1546
          %v1548 = vpop.f32.mrf.mxu0
          %v1549 = vadd.f32 0.0, %v1548
          %1550 = vmatmul.bf16.gmra.mxu0 %v1185
          %v1551 = vpop.f32.mrf.mxu0
          %v1552 = vadd.f32 0.0, %v1551
          %v1553 = vpop.f32.mrf.mxu0
          %v1554 = vadd.f32 0.0, %v1553
          %1555 = vmatmul.bf16.gmra.mxu0 %v1186
          %v1556 = vpop.f32.mrf.mxu0
          %v1557 = vadd.f32 0.0, %v1556
          %v1558 = vpop.f32.mrf.mxu0
          %v1559 = vadd.f32 0.0, %v1558
          %1560 = vmatmul.bf16.gmra.mxu0 %v1187
          %v1561 = vpop.f32.mrf.mxu0
          %v1562 = vadd.f32 0.0, %v1561
          %v1563 = vpop.f32.mrf.mxu0
          %v1564 = vadd.f32 0.0, %v1563
          %1565 = vmatmul.bf16.gmra.mxu0 %v1188
          %v1566 = vpop.f32.mrf.mxu0
          %v1567 = vadd.f32 0.0, %v1566
          %v1568 = vpop.f32.mrf.mxu0
          %v1569 = vadd.f32 0.0, %v1568
          %1570 = vmatmul.bf16.gmra.mxu0 %v1189
          %v1571 = vpop.f32.mrf.mxu0
          %v1572 = vadd.f32 0.0, %v1571
          %v1573 = vpop.f32.mrf.mxu0
          %v1574 = vadd.f32 0.0, %v1573
          %1575 = vmatmul.bf16.gmra.mxu0 %v1190
          %v1576 = vpop.f32.mrf.mxu0
          %v1577 = vadd.f32 0.0, %v1576
          %v1578 = vpop.f32.mrf.mxu0
          %v1579 = vadd.f32 0.0, %v1578
          %1580 = vmatmul.bf16.gmra.mxu0 %v1191
          %v1581 = vpop.f32.mrf.mxu0
          %v1582 = vadd.f32 0.0, %v1581
          %v1583 = vpop.f32.mrf.mxu0
          %v1584 = vadd.f32 0.0, %v1583
          %1585 = vmatmul.bf16.gmra.mxu0 %v1192
          %v1586 = vpop.f32.mrf.mxu0
          %v1587 = vadd.f32 0.0, %v1586
          %v1588 = vpop.f32.mrf.mxu0
          %v1589 = vadd.f32 0.0, %v1588
          %1590 = vmatmul.bf16.gmra.mxu0 %v1193
          %v1591 = vpop.f32.mrf.mxu0
          %v1592 = vadd.f32 0.0, %v1591
          %v1593 = vpop.f32.mrf.mxu0
          %v1594 = vadd.f32 0.0, %v1593
          %1595 = vmatmul.bf16.gmra.mxu0 %v1194
          %v1596 = vpop.f32.mrf.mxu0
          %v1597 = vadd.f32 0.0, %v1596
          %v1598 = vpop.f32.mrf.mxu0
          %v1599 = vadd.f32 0.0, %v1598
          %1600 = vmatmul.bf16.gmra.mxu0 %v1195
          %v1601 = vpop.f32.mrf.mxu0
          %v1602 = vadd.f32 0.0, %v1601
          %v1603 = vpop.f32.mrf.mxu0
          %v1604 = vadd.f32 0.0, %v1603
          %1605 = vmatmul.bf16.gmra.mxu0 %v1196
          %v1606 = vpop.f32.mrf.mxu0
          %v1607 = vadd.f32 0.0, %v1606
          %v1608 = vpop.f32.mrf.mxu0
          %v1609 = vadd.f32 0.0, %v1608
          %1610 = vmatmul.bf16.gmra.mxu0 %v1197
          %v1611 = vpop.f32.mrf.mxu0
          %v1612 = vadd.f32 0.0, %v1611
          %v1613 = vpop.f32.mrf.mxu0
          %v1614 = vadd.f32 0.0, %v1613
          %1615 = vmatmul.bf16.gmra.mxu0 %v1198
          %v1616 = vpop.f32.mrf.mxu0
          %v1617 = vadd.f32 0.0, %v1616
          %v1618 = vpop.f32.mrf.mxu0
          %v1619 = vadd.f32 0.0, %v1618
          %1620 = vmatmul.bf16.gmra.mxu0 %v1199
          %v1621 = vpop.f32.mrf.mxu0
          %v1622 = vadd.f32 0.0, %v1621
          %v1623 = vpop.f32.mrf.mxu0
          %v1624 = vadd.f32 0.0, %v1623
          %1625 = vmatmul.bf16.gmra.mxu0 %v1200
          %v1626 = vpop.f32.mrf.mxu0
          %v1627 = vadd.f32 0.0, %v1626
          %v1628 = vpop.f32.mrf.mxu0
          %v1629 = vadd.f32 0.0, %v1628
          %1630 = vmatmul.bf16.gmra.mxu0 %v1201
          %v1631 = vpop.f32.mrf.mxu0
          %v1632 = vadd.f32 0.0, %v1631
          %v1633 = vpop.f32.mrf.mxu0
          %v1634 = vadd.f32 0.0, %v1633
          %1635 = vmatmul.bf16.gmra.mxu0 %v1202
          %v1636 = vpop.f32.mrf.mxu0
          %v1637 = vadd.f32 0.0, %v1636
          %v1638 = vpop.f32.mrf.mxu0
          %v1639 = vadd.f32 0.0, %v1638
          %1640 = vmatmul.bf16.gmra.mxu0 %v1203
          %v1641 = vpop.f32.mrf.mxu0
          %v1642 = vadd.f32 0.0, %v1641
          %v1643 = vpop.f32.mrf.mxu0
          %v1644 = vadd.f32 0.0, %v1643
          %1645 = vmatmul.bf16.gmra.mxu0 %v1204
          %v1646 = vpop.f32.mrf.mxu0
          %v1647 = vadd.f32 0.0, %v1646
          %v1648 = vpop.f32.mrf.mxu0
          %v1649 = vadd.f32 0.0, %v1648
          %1650 = vmatmul.bf16.gmra.mxu0 %v1205
          %v1651 = vpop.f32.mrf.mxu0
          %v1652 = vadd.f32 0.0, %v1651
          %v1653 = vpop.f32.mrf.mxu0
          %v1654 = vadd.f32 0.0, %v1653
          %1655 = vmatmul.bf16.gmra.mxu0 %v1206
          %v1656 = vpop.f32.mrf.mxu0
          %v1657 = vadd.f32 0.0, %v1656
          %v1658 = vpop.f32.mrf.mxu0
          %v1659 = vadd.f32 0.0, %v1658
          %1660 = vmatmul.bf16.gmra.mxu0 %v1207
          %v1661 = vpop.f32.mrf.mxu0
          %v1662 = vadd.f32 0.0, %v1661
          %v1663 = vpop.f32.mrf.mxu0
          %v1664 = vadd.f32 0.0, %v1663
          %1665 = vmatmul.bf16.gmra.mxu0 %v1208
          %v1666 = vpop.f32.mrf.mxu0
          %v1667 = vadd.f32 0.0, %v1666
          %v1668 = vpop.f32.mrf.mxu0
          %v1669 = vadd.f32 0.0, %v1668
          %1670 = vmatmul.bf16.gmra.mxu0 %v1209
          %v1671 = vpop.f32.mrf.mxu0
          %v1672 = vadd.f32 0.0, %v1671
          %v1673 = vpop.f32.mrf.mxu0
          %v1674 = vadd.f32 0.0, %v1673
          %1675 = vdwg.mxu0
          %v1676 = vld [vmem:[#allocation2] sm:$0xff]
          %v1677 = vld [vmem:[#allocation2 + $0x8] sm:$0xff]
          %v1678 = vld [vmem:[#allocation2 + $0x10] sm:$0xff]
          %v1679 = vld [vmem:[#allocation2 + $0x18] sm:$0xff]
          %v1680 = vld [vmem:[#allocation2 + $0x20] sm:$0xff]
          %v1681 = vld [vmem:[#allocation2 + $0x28] sm:$0xff]
          %v1682 = vld [vmem:[#allocation2 + $0x30] sm:$0xff]
          %v1683 = vld [vmem:[#allocation2 + $0x38] sm:$0xff]
          %v1684 = vld [vmem:[#allocation2 + $0x40] sm:$0xff]
          %v1685 = vld [vmem:[#allocation2 + $0x48] sm:$0xff]
          %v1686 = vld [vmem:[#allocation2 + $0x50] sm:$0xff]
          %v1687 = vld [vmem:[#allocation2 + $0x58] sm:$0xff]
          %v1688 = vld [vmem:[#allocation2 + $0x60] sm:$0xff]
          %v1689 = vld [vmem:[#allocation2 + $0x68] sm:$0xff]
          %v1690 = vld [vmem:[#allocation2 + $0x70] sm:$0xff]
          %v1691 = vld [vmem:[#allocation2 + $0x78] sm:$0xff]
          %v1692 = vld [vmem:[#allocation2 + $0x80] sm:$0xff]
          %v1693 = vld [vmem:[#allocation2 + $0x88] sm:$0xff]
          %v1694 = vld [vmem:[#allocation2 + $0x90] sm:$0xff]
          %v1695 = vld [vmem:[#allocation2 + $0x98] sm:$0xff]
          %v1696 = vld [vmem:[#allocation2 + $0xa0] sm:$0xff]
          %v1697 = vld [vmem:[#allocation2 + $0xa8] sm:$0xff]
          %v1698 = vld [vmem:[#allocation2 + $0xb0] sm:$0xff]
          %v1699 = vld [vmem:[#allocation2 + $0xb8] sm:$0xff]
          %v1700 = vld [vmem:[#allocation2 + $0xc0] sm:$0xff]
          %v1701 = vld [vmem:[#allocation2 + $0xc8] sm:$0xff]
          %v1702 = vld [vmem:[#allocation2 + $0xd0] sm:$0xff]
          %v1703 = vld [vmem:[#allocation2 + $0xd8] sm:$0xff]
          %v1704 = vld [vmem:[#allocation2 + $0xe0] sm:$0xff]
          %v1705 = vld [vmem:[#allocation2 + $0xe8] sm:$0xff]
          %v1706 = vld [vmem:[#allocation2 + $0xf0] sm:$0xff]
          %v1707 = vld [vmem:[#allocation2 + $0xf8] sm:$0xff]
          %v1708 = vld [vmem:[#allocation2 + $0x100] sm:$0xff]
          %v1709 = vld [vmem:[#allocation2 + $0x108] sm:$0xff]
          %v1710 = vld [vmem:[#allocation2 + $0x110] sm:$0xff]
          %v1711 = vld [vmem:[#allocation2 + $0x118] sm:$0xff]
          %v1712 = vld [vmem:[#allocation2 + $0x120] sm:$0xff]
          %v1713 = vld [vmem:[#allocation2 + $0x128] sm:$0xff]
          %v1714 = vld [vmem:[#allocation2 + $0x130] sm:$0xff]
          %v1715 = vld [vmem:[#allocation2 + $0x138] sm:$0xff]
          %v1716 = vld [vmem:[#allocation2 + $0x140] sm:$0xff]
          %v1717 = vld [vmem:[#allocation2 + $0x148] sm:$0xff]
          %v1718 = vld [vmem:[#allocation2 + $0x150] sm:$0xff]
          %v1719 = vld [vmem:[#allocation2 + $0x158] sm:$0xff]
          %v1720 = vld [vmem:[#allocation2 + $0x160] sm:$0xff]
          %v1721 = vld [vmem:[#allocation2 + $0x168] sm:$0xff]
          %v1722 = vld [vmem:[#allocation2 + $0x170] sm:$0xff]
          %v1723 = vld [vmem:[#allocation2 + $0x178] sm:$0xff]
          %v1724 = vld [vmem:[#allocation2 + $0x180] sm:$0xff]
          %v1725 = vld [vmem:[#allocation2 + $0x188] sm:$0xff]
          %v1726 = vld [vmem:[#allocation2 + $0x190] sm:$0xff]
          %v1727 = vld [vmem:[#allocation2 + $0x198] sm:$0xff]
          %v1728 = vld [vmem:[#allocation2 + $0x1a0] sm:$0xff]
          %v1729 = vld [vmem:[#allocation2 + $0x1a8] sm:$0xff]
          %v1730 = vld [vmem:[#allocation2 + $0x1b0] sm:$0xff]
          %v1731 = vld [vmem:[#allocation2 + $0x1b8] sm:$0xff]
          %v1732 = vld [vmem:[#allocation2 + $0x1c0] sm:$0xff]
          %v1733 = vld [vmem:[#allocation2 + $0x1c8] sm:$0xff]
          %v1734 = vld [vmem:[#allocation2 + $0x1d0] sm:$0xff]
          %v1735 = vld [vmem:[#allocation2 + $0x1d8] sm:$0xff]
          %v1736 = vld [vmem:[#allocation2 + $0x1e0] sm:$0xff]
          %v1737 = vld [vmem:[#allocation2 + $0x1e8] sm:$0xff]
          %v1738 = vld [vmem:[#allocation2 + $0x1f0] sm:$0xff]
          %v1739 = vld [vmem:[#allocation2 + $0x1f8] sm:$0xff]
          %v1740 = vmax.f32 %v1348, %v1517
          %1741 = vmax.xlane.f32.xlu0 %v1740
          %v1742 = vpop.xlane.xlu0 %1741
          %v1743 = vmax.f32 %v1350, %v1519
          %1744 = vmax.xlane.f32.xlu0 %v1743
          %v1745 = vpop.xlane.xlu0 %1744
          %v1746 = vmax.f32 %v1353, %v1522
          %1747 = vmax.xlane.f32.xlu0 %v1746
          %v1748 = vpop.xlane.xlu0 %1747
          %v1749 = vmax.f32 %v1355, %v1524
          %1750 = vmax.xlane.f32.xlu0 %v1749
          %v1751 = vpop.xlane.xlu0 %1750
          %v1752 = vmax.f32 %v1358, %v1527
          %1753 = vmax.xlane.f32.xlu0 %v1752
          %v1754 = vpop.xlane.xlu0 %1753
          %v1755 = vmax.f32 %v1360, %v1529
          %1756 = vmax.xlane.f32.xlu0 %v1755
          %v1757 = vpop.xlane.xlu0 %1756
          %v1758 = vmax.f32 %v1363, %v1532
          %1759 = vmax.xlane.f32.xlu0 %v1758
          %v1760 = vpop.xlane.xlu0 %1759
          %v1761 = vmax.f32 %v1365, %v1534
          %1762 = vmax.xlane.f32.xlu0 %v1761
          %v1763 = vpop.xlane.xlu0 %1762
          %v1764 = vmax.f32 %v1368, %v1537
          %1765 = vmax.xlane.f32.xlu0 %v1764
          %v1766 = vpop.xlane.xlu0 %1765
          %v1767 = vmax.f32 %v1370, %v1539
          %1768 = vmax.xlane.f32.xlu0 %v1767
          %v1769 = vpop.xlane.xlu0 %1768
          %v1770 = vmax.f32 %v1373, %v1542
          %1771 = vmax.xlane.f32.xlu0 %v1770
          %v1772 = vpop.xlane.xlu0 %1771
          %v1773 = vmax.f32 %v1375, %v1544
          %1774 = vmax.xlane.f32.xlu0 %v1773
          %v1775 = vpop.xlane.xlu0 %1774
          %v1776 = vmax.f32 %v1378, %v1547
          %1777 = vmax.xlane.f32.xlu0 %v1776
          %v1778 = vpop.xlane.xlu0 %1777
          %v1779 = vmax.f32 %v1380, %v1549
          %1780 = vmax.xlane.f32.xlu0 %v1779
          %v1781 = vpop.xlane.xlu0 %1780
          %v1782 = vmax.f32 %v1383, %v1552
          %1783 = vmax.xlane.f32.xlu0 %v1782
          %v1784 = vpop.xlane.xlu0 %1783
          %v1785 = vmax.f32 %v1385, %v1554
          %1786 = vmax.xlane.f32.xlu0 %v1785
          %v1787 = vpop.xlane.xlu0 %1786
          %v1788 = vmax.f32 %v1388, %v1557
          %1789 = vmax.xlane.f32.xlu0 %v1788
          %v1790 = vpop.xlane.xlu0 %1789
          %v1791 = vmax.f32 %v1390, %v1559
          %1792 = vmax.xlane.f32.xlu0 %v1791
          %v1793 = vpop.xlane.xlu0 %1792
          %v1794 = vmax.f32 %v1393, %v1562
          %1795 = vmax.xlane.f32.xlu0 %v1794
          %v1796 = vpop.xlane.xlu0 %1795
          %v1797 = vmax.f32 %v1395, %v1564
          %1798 = vmax.xlane.f32.xlu0 %v1797
          %v1799 = vpop.xlane.xlu0 %1798
          %v1800 = vmax.f32 %v1398, %v1567
          %1801 = vmax.xlane.f32.xlu0 %v1800
          %v1802 = vpop.xlane.xlu0 %1801
          %v1803 = vmax.f32 %v1400, %v1569
          %1804 = vmax.xlane.f32.xlu0 %v1803
          %v1805 = vpop.xlane.xlu0 %1804
          %v1806 = vmax.f32 %v1403, %v1572
          %1807 = vmax.xlane.f32.xlu0 %v1806
          %v1808 = vpop.xlane.xlu0 %1807
          %v1809 = vmax.f32 %v1405, %v1574
          %1810 = vmax.xlane.f32.xlu0 %v1809
          %v1811 = vpop.xlane.xlu0 %1810
          %v1812 = vmax.f32 %v1408, %v1577
          %1813 = vmax.xlane.f32.xlu0 %v1812
          %v1814 = vpop.xlane.xlu0 %1813
          %v1815 = vmax.f32 %v1410, %v1579
          %1816 = vmax.xlane.f32.xlu0 %v1815
          %v1817 = vpop.xlane.xlu0 %1816
          %v1818 = vmax.f32 %v1413, %v1582
          %1819 = vmax.xlane.f32.xlu0 %v1818
          %v1820 = vpop.xlane.xlu0 %1819
          %v1821 = vmax.f32 %v1415, %v1584
          %1822 = vmax.xlane.f32.xlu0 %v1821
          %v1823 = vpop.xlane.xlu0 %1822
          %v1824 = vmax.f32 %v1418, %v1587
          %1825 = vmax.xlane.f32.xlu0 %v1824
          %v1826 = vpop.xlane.xlu0 %1825
          %v1827 = vmax.f32 %v1420, %v1589
          %1828 = vmax.xlane.f32.xlu0 %v1827
          %v1829 = vpop.xlane.xlu0 %1828
          %v1830 = vmax.f32 %v1423, %v1592
          %1831 = vmax.xlane.f32.xlu0 %v1830
          %v1832 = vpop.xlane.xlu0 %1831
          %v1833 = vmax.f32 %v1425, %v1594
          %1834 = vmax.xlane.f32.xlu0 %v1833
          %v1835 = vpop.xlane.xlu0 %1834
          %v1836 = vmax.f32 %v1428, %v1597
          %1837 = vmax.xlane.f32.xlu0 %v1836
          %v1838 = vpop.xlane.xlu0 %1837
          %v1839 = vmax.f32 %v1430, %v1599
          %1840 = vmax.xlane.f32.xlu0 %v1839
          %v1841 = vpop.xlane.xlu0 %1840
          %v1842 = vmax.f32 %v1433, %v1602
          %1843 = vmax.xlane.f32.xlu0 %v1842
          %v1844 = vpop.xlane.xlu0 %1843
          %v1845 = vmax.f32 %v1435, %v1604
          %1846 = vmax.xlane.f32.xlu0 %v1845
          %v1847 = vpop.xlane.xlu0 %1846
          %v1848 = vmax.f32 %v1438, %v1607
          %1849 = vmax.xlane.f32.xlu0 %v1848
          %v1850 = vpop.xlane.xlu0 %1849
          %v1851 = vmax.f32 %v1440, %v1609
          %1852 = vmax.xlane.f32.xlu0 %v1851
          %v1853 = vpop.xlane.xlu0 %1852
          %v1854 = vmax.f32 %v1443, %v1612
          %1855 = vmax.xlane.f32.xlu0 %v1854
          %v1856 = vpop.xlane.xlu0 %1855
          %v1857 = vmax.f32 %v1445, %v1614
          %1858 = vmax.xlane.f32.xlu0 %v1857
          %v1859 = vpop.xlane.xlu0 %1858
          %v1860 = vmax.f32 %v1448, %v1617
          %1861 = vmax.xlane.f32.xlu0 %v1860
          %v1862 = vpop.xlane.xlu0 %1861
          %v1863 = vmax.f32 %v1450, %v1619
          %1864 = vmax.xlane.f32.xlu0 %v1863
          %v1865 = vpop.xlane.xlu0 %1864
          %v1866 = vmax.f32 %v1453, %v1622
          %1867 = vmax.xlane.f32.xlu0 %v1866
          %v1868 = vpop.xlane.xlu0 %1867
          %v1869 = vmax.f32 %v1455, %v1624
          %1870 = vmax.xlane.f32.xlu0 %v1869
          %v1871 = vpop.xlane.xlu0 %1870
          %v1872 = vmax.f32 %v1458, %v1627
          %1873 = vmax.xlane.f32.xlu0 %v1872
          %v1874 = vpop.xlane.xlu0 %1873
          %v1875 = vmax.f32 %v1460, %v1629
          %1876 = vmax.xlane.f32.xlu0 %v1875
          %v1877 = vpop.xlane.xlu0 %1876
          %v1878 = vmax.f32 %v1463, %v1632
          %1879 = vmax.xlane.f32.xlu0 %v1878
          %v1880 = vpop.xlane.xlu0 %1879
          %v1881 = vmax.f32 %v1465, %v1634
          %1882 = vmax.xlane.f32.xlu0 %v1881
          %v1883 = vpop.xlane.xlu0 %1882
          %v1884 = vmax.f32 %v1468, %v1637
          %1885 = vmax.xlane.f32.xlu0 %v1884
          %v1886 = vpop.xlane.xlu0 %1885
          %v1887 = vmax.f32 %v1470, %v1639
          %1888 = vmax.xlane.f32.xlu0 %v1887
          %v1889 = vpop.xlane.xlu0 %1888
          %v1890 = vmax.f32 %v1473, %v1642
          %1891 = vmax.xlane.f32.xlu0 %v1890
          %v1892 = vpop.xlane.xlu0 %1891
          %v1893 = vmax.f32 %v1475, %v1644
          %1894 = vmax.xlane.f32.xlu0 %v1893
          %v1895 = vpop.xlane.xlu0 %1894
          %v1896 = vmax.f32 %v1478, %v1647
          %1897 = vmax.xlane.f32.xlu0 %v1896
          %v1898 = vpop.xlane.xlu0 %1897
          %v1899 = vmax.f32 %v1480, %v1649
          %1900 = vmax.xlane.f32.xlu0 %v1899
          %v1901 = vpop.xlane.xlu0 %1900
          %v1902 = vmax.f32 %v1483, %v1652
          %1903 = vmax.xlane.f32.xlu0 %v1902
          %v1904 = vpop.xlane.xlu0 %1903
          %v1905 = vmax.f32 %v1485, %v1654
          %1906 = vmax.xlane.f32.xlu0 %v1905
          %v1907 = vpop.xlane.xlu0 %1906
          %v1908 = vmax.f32 %v1488, %v1657
          %1909 = vmax.xlane.f32.xlu0 %v1908
          %v1910 = vpop.xlane.xlu0 %1909
          %v1911 = vmax.f32 %v1490, %v1659
          %1912 = vmax.xlane.f32.xlu0 %v1911
          %v1913 = vpop.xlane.xlu0 %1912
          %v1914 = vmax.f32 %v1493, %v1662
          %1915 = vmax.xlane.f32.xlu0 %v1914
          %v1916 = vpop.xlane.xlu0 %1915
          %v1917 = vmax.f32 %v1495, %v1664
          %1918 = vmax.xlane.f32.xlu0 %v1917
          %v1919 = vpop.xlane.xlu0 %1918
          %v1920 = vmax.f32 %v1498, %v1667
          %1921 = vmax.xlane.f32.xlu0 %v1920
          %v1922 = vpop.xlane.xlu0 %1921
          %v1923 = vmax.f32 %v1500, %v1669
          %1924 = vmax.xlane.f32.xlu0 %v1923
          %v1925 = vpop.xlane.xlu0 %1924
          %v1926 = vmax.f32 %v1503, %v1672
          %1927 = vmax.xlane.f32.xlu0 %v1926
          %v1928 = vpop.xlane.xlu0 %1927
          %v1929 = vmax.f32 %v1505, %v1674
          %1930 = vmax.xlane.f32.xlu0 %v1929
          %v1931 = vpop.xlane.xlu0 %1930
          %v1932 = vmax.f32 %v1676, %v1742
          %v1933 = vmax.f32 %v1677, %v1745
          %v1934 = vmax.f32 %v1678, %v1748
          %v1935 = vmax.f32 %v1679, %v1751
          %v1936 = vmax.f32 %v1680, %v1754
          %v1937 = vmax.f32 %v1681, %v1757
          %v1938 = vmax.f32 %v1682, %v1760
          %v1939 = vmax.f32 %v1683, %v1763
          %v1940 = vmax.f32 %v1684, %v1766
          %v1941 = vmax.f32 %v1685, %v1769
          %v1942 = vmax.f32 %v1686, %v1772
          %v1943 = vmax.f32 %v1687, %v1775
          %v1944 = vmax.f32 %v1688, %v1778
          %v1945 = vmax.f32 %v1689, %v1781
          %v1946 = vmax.f32 %v1690, %v1784
          %v1947 = vmax.f32 %v1691, %v1787
          %v1948 = vmax.f32 %v1692, %v1790
          %v1949 = vmax.f32 %v1693, %v1793
          %v1950 = vmax.f32 %v1694, %v1796
          %v1951 = vmax.f32 %v1695, %v1799
          %v1952 = vmax.f32 %v1696, %v1802
          %v1953 = vmax.f32 %v1697, %v1805
          %v1954 = vmax.f32 %v1698, %v1808
          %v1955 = vmax.f32 %v1699, %v1811
          %v1956 = vmax.f32 %v1700, %v1814
          %v1957 = vmax.f32 %v1701, %v1817
          %v1958 = vmax.f32 %v1702, %v1820
          %v1959 = vmax.f32 %v1703, %v1823
          %v1960 = vmax.f32 %v1704, %v1826
          %v1961 = vmax.f32 %v1705, %v1829
          %v1962 = vmax.f32 %v1706, %v1832
          %v1963 = vmax.f32 %v1707, %v1835
          %v1964 = vmax.f32 %v1708, %v1838
          %v1965 = vmax.f32 %v1709, %v1841
          %v1966 = vmax.f32 %v1710, %v1844
          %v1967 = vmax.f32 %v1711, %v1847
          %v1968 = vmax.f32 %v1712, %v1850
          %v1969 = vmax.f32 %v1713, %v1853
          %v1970 = vmax.f32 %v1714, %v1856
          %v1971 = vmax.f32 %v1715, %v1859
          %v1972 = vmax.f32 %v1716, %v1862
          %v1973 = vmax.f32 %v1717, %v1865
          %v1974 = vmax.f32 %v1718, %v1868
          %v1975 = vmax.f32 %v1719, %v1871
          %v1976 = vmax.f32 %v1720, %v1874
          %v1977 = vmax.f32 %v1721, %v1877
          %v1978 = vmax.f32 %v1722, %v1880
          %v1979 = vmax.f32 %v1723, %v1883
          %v1980 = vmax.f32 %v1724, %v1886
          %v1981 = vmax.f32 %v1725, %v1889
          %v1982 = vmax.f32 %v1726, %v1892
          %v1983 = vmax.f32 %v1727, %v1895
          %v1984 = vmax.f32 %v1728, %v1898
          %v1985 = vmax.f32 %v1729, %v1901
          %v1986 = vmax.f32 %v1730, %v1904
          %v1987 = vmax.f32 %v1731, %v1907
          %v1988 = vmax.f32 %v1732, %v1910
          %v1989 = vmax.f32 %v1733, %v1913
          %v1990 = vmax.f32 %v1734, %v1916
          %v1991 = vmax.f32 %v1735, %v1919
          %v1992 = vmax.f32 %v1736, %v1922
          %v1993 = vmax.f32 %v1737, %v1925
          %v1994 = vmax.f32 %v1738, %v1928
          %v1995 = vmax.f32 %v1739, %v1931
          %v1996 = vsub.f32 %v1676, %v1932
          %v1997 = vsub.f32 %v1677, %v1933
          %v1998 = vsub.f32 %v1678, %v1934
          %v1999 = vsub.f32 %v1679, %v1935
          %v2000 = vsub.f32 %v1680, %v1936
          %v2001 = vsub.f32 %v1681, %v1937
          %v2002 = vsub.f32 %v1682, %v1938
          %v2003 = vsub.f32 %v1683, %v1939
          %v2004 = vsub.f32 %v1684, %v1940
          %v2005 = vsub.f32 %v1685, %v1941
          %v2006 = vsub.f32 %v1686, %v1942
          %v2007 = vsub.f32 %v1687, %v1943
          %v2008 = vsub.f32 %v1688, %v1944
          %v2009 = vsub.f32 %v1689, %v1945
          %v2010 = vsub.f32 %v1690, %v1946
          %v2011 = vsub.f32 %v1691, %v1947
          %v2012 = vsub.f32 %v1692, %v1948
          %v2013 = vsub.f32 %v1693, %v1949
          %v2014 = vsub.f32 %v1694, %v1950
          %v2015 = vsub.f32 %v1695, %v1951
          %v2016 = vsub.f32 %v1696, %v1952
          %v2017 = vsub.f32 %v1697, %v1953
          %v2018 = vsub.f32 %v1698, %v1954
          %v2019 = vsub.f32 %v1699, %v1955
          %v2020 = vsub.f32 %v1700, %v1956
          %v2021 = vsub.f32 %v1701, %v1957
          %v2022 = vsub.f32 %v1702, %v1958
          %v2023 = vsub.f32 %v1703, %v1959
          %v2024 = vsub.f32 %v1704, %v1960
          %v2025 = vsub.f32 %v1705, %v1961
          %v2026 = vsub.f32 %v1706, %v1962
          %v2027 = vsub.f32 %v1707, %v1963
          %v2028 = vsub.f32 %v1708, %v1964
          %v2029 = vsub.f32 %v1709, %v1965
          %v2030 = vsub.f32 %v1710, %v1966
          %v2031 = vsub.f32 %v1711, %v1967
          %v2032 = vsub.f32 %v1712, %v1968
          %v2033 = vsub.f32 %v1713, %v1969
          %v2034 = vsub.f32 %v1714, %v1970
          %v2035 = vsub.f32 %v1715, %v1971
          %v2036 = vsub.f32 %v1716, %v1972
          %v2037 = vsub.f32 %v1717, %v1973
          %v2038 = vsub.f32 %v1718, %v1974
          %v2039 = vsub.f32 %v1719, %v1975
          %v2040 = vsub.f32 %v1720, %v1976
          %v2041 = vsub.f32 %v1721, %v1977
          %v2042 = vsub.f32 %v1722, %v1978
          %v2043 = vsub.f32 %v1723, %v1979
          %v2044 = vsub.f32 %v1724, %v1980
          %v2045 = vsub.f32 %v1725, %v1981
          %v2046 = vsub.f32 %v1726, %v1982
          %v2047 = vsub.f32 %v1727, %v1983
          %v2048 = vsub.f32 %v1728, %v1984
          %v2049 = vsub.f32 %v1729, %v1985
          %v2050 = vsub.f32 %v1730, %v1986
          %v2051 = vsub.f32 %v1731, %v1987
          %v2052 = vsub.f32 %v1732, %v1988
          %v2053 = vsub.f32 %v1733, %v1989
          %v2054 = vsub.f32 %v1734, %v1990
          %v2055 = vsub.f32 %v1735, %v1991
          %v2056 = vsub.f32 %v1736, %v1992
          %v2057 = vsub.f32 %v1737, %v1993
          %v2058 = vsub.f32 %v1738, %v1994
          %v2059 = vsub.f32 %v1739, %v1995
          %v2060 = vmul.f32 %v1996, 1.442695
          %v2061 = vpow.pop %v2060
          %v2062 = vmul.f32 %v1997, 1.442695
          %v2063 = vpow.pop %v2062
          %v2064 = vmul.f32 %v1998, 1.442695
          %v2065 = vpow.pop %v2064
          %v2066 = vmul.f32 %v1999, 1.442695
          %v2067 = vpow.pop %v2066
          %v2068 = vmul.f32 %v2000, 1.442695
          %v2069 = vpow.pop %v2068
          %v2070 = vmul.f32 %v2001, 1.442695
          %v2071 = vpow.pop %v2070
          %v2072 = vmul.f32 %v2002, 1.442695
          %v2073 = vpow.pop %v2072
          %v2074 = vmul.f32 %v2003, 1.442695
          %v2075 = vpow.pop %v2074
          %v2076 = vmul.f32 %v2004, 1.442695
          %v2077 = vpow.pop %v2076
          %v2078 = vmul.f32 %v2005, 1.442695
          %v2079 = vpow.pop %v2078
          %v2080 = vmul.f32 %v2006, 1.442695
          %v2081 = vpow.pop %v2080
          %v2082 = vmul.f32 %v2007, 1.442695
          %v2083 = vpow.pop %v2082
          %v2084 = vmul.f32 %v2008, 1.442695
          %v2085 = vpow.pop %v2084
          %v2086 = vmul.f32 %v2009, 1.442695
          %v2087 = vpow.pop %v2086
          %v2088 = vmul.f32 %v2010, 1.442695
          %v2089 = vpow.pop %v2088
          %v2090 = vmul.f32 %v2011, 1.442695
          %v2091 = vpow.pop %v2090
          %v2092 = vmul.f32 %v2012, 1.442695
          %v2093 = vpow.pop %v2092
          %v2094 = vmul.f32 %v2013, 1.442695
          %v2095 = vpow.pop %v2094
          %v2096 = vmul.f32 %v2014, 1.442695
          %v2097 = vpow.pop %v2096
          %v2098 = vmul.f32 %v2015, 1.442695
          %v2099 = vpow.pop %v2098
          %v2100 = vmul.f32 %v2016, 1.442695
          %v2101 = vpow.pop %v2100
          %v2102 = vmul.f32 %v2017, 1.442695
          %v2103 = vpow.pop %v2102
          %v2104 = vmul.f32 %v2018, 1.442695
          %v2105 = vpow.pop %v2104
          %v2106 = vmul.f32 %v2019, 1.442695
          %v2107 = vpow.pop %v2106
          %v2108 = vmul.f32 %v2020, 1.442695
          %v2109 = vpow.pop %v2108
          %v2110 = vmul.f32 %v2021, 1.442695
          %v2111 = vpow.pop %v2110
          %v2112 = vmul.f32 %v2022, 1.442695
          %v2113 = vpow.pop %v2112
          %v2114 = vmul.f32 %v2023, 1.442695
          %v2115 = vpow.pop %v2114
          %v2116 = vmul.f32 %v2024, 1.442695
          %v2117 = vpow.pop %v2116
          %v2118 = vmul.f32 %v2025, 1.442695
          %v2119 = vpow.pop %v2118
          %v2120 = vmul.f32 %v2026, 1.442695
          %v2121 = vpow.pop %v2120
          %v2122 = vmul.f32 %v2027, 1.442695
          %v2123 = vpow.pop %v2122
          %v2124 = vmul.f32 %v2028, 1.442695
          %v2125 = vpow.pop %v2124
          %v2126 = vmul.f32 %v2029, 1.442695
          %v2127 = vpow.pop %v2126
          %v2128 = vmul.f32 %v2030, 1.442695
          %v2129 = vpow.pop %v2128
          %v2130 = vmul.f32 %v2031, 1.442695
          %v2131 = vpow.pop %v2130
          %v2132 = vmul.f32 %v2032, 1.442695
          %v2133 = vpow.pop %v2132
          %v2134 = vmul.f32 %v2033, 1.442695
          %v2135 = vpow.pop %v2134
          %v2136 = vmul.f32 %v2034, 1.442695
          %v2137 = vpow.pop %v2136
          %v2138 = vmul.f32 %v2035, 1.442695
          %v2139 = vpow.pop %v2138
          %v2140 = vmul.f32 %v2036, 1.442695
          %v2141 = vpow.pop %v2140
          %v2142 = vmul.f32 %v2037, 1.442695
          %v2143 = vpow.pop %v2142
          %v2144 = vmul.f32 %v2038, 1.442695
          %v2145 = vpow.pop %v2144
          %v2146 = vmul.f32 %v2039, 1.442695
          %v2147 = vpow.pop %v2146
          %v2148 = vmul.f32 %v2040, 1.442695
          %v2149 = vpow.pop %v2148
          %v2150 = vmul.f32 %v2041, 1.442695
          %v2151 = vpow.pop %v2150
          %v2152 = vmul.f32 %v2042, 1.442695
          %v2153 = vpow.pop %v2152
          %v2154 = vmul.f32 %v2043, 1.442695
          %v2155 = vpow.pop %v2154
          %v2156 = vmul.f32 %v2044, 1.442695
          %v2157 = vpow.pop %v2156
          %v2158 = vmul.f32 %v2045, 1.442695
          %v2159 = vpow.pop %v2158
          %v2160 = vmul.f32 %v2046, 1.442695
          %v2161 = vpow.pop %v2160
          %v2162 = vmul.f32 %v2047, 1.442695
          %v2163 = vpow.pop %v2162
          %v2164 = vmul.f32 %v2048, 1.442695
          %v2165 = vpow.pop %v2164
          %v2166 = vmul.f32 %v2049, 1.442695
          %v2167 = vpow.pop %v2166
          %v2168 = vmul.f32 %v2050, 1.442695
          %v2169 = vpow.pop %v2168
          %v2170 = vmul.f32 %v2051, 1.442695
          %v2171 = vpow.pop %v2170
          %v2172 = vmul.f32 %v2052, 1.442695
          %v2173 = vpow.pop %v2172
          %v2174 = vmul.f32 %v2053, 1.442695
          %v2175 = vpow.pop %v2174
          %v2176 = vmul.f32 %v2054, 1.442695
          %v2177 = vpow.pop %v2176
          %v2178 = vmul.f32 %v2055, 1.442695
          %v2179 = vpow.pop %v2178
          %v2180 = vmul.f32 %v2056, 1.442695
          %v2181 = vpow.pop %v2180
          %v2182 = vmul.f32 %v2057, 1.442695
          %v2183 = vpow.pop %v2182
          %v2184 = vmul.f32 %v2058, 1.442695
          %v2185 = vpow.pop %v2184
          %v2186 = vmul.f32 %v2059, 1.442695
          %v2187 = vpow.pop %v2186
          %2189 = vset.pattern.permute.xlu0 0
          %2190 = vperm.xlu0 %2189, %v1932
          %v2191 = vpop.permute.xlu0 %2190
          %2194 = vset.pattern.permute.xlu0 0
          %2195 = vperm.xlu0 %2194, %v1933
          %v2196 = vpop.permute.xlu0 %2195
          %2199 = vset.pattern.permute.xlu0 0
          %2200 = vperm.xlu0 %2199, %v1934
          %v2201 = vpop.permute.xlu0 %2200
          %2204 = vset.pattern.permute.xlu0 0
          %2205 = vperm.xlu0 %2204, %v1935
          %v2206 = vpop.permute.xlu0 %2205
          %2209 = vset.pattern.permute.xlu0 0
          %2210 = vperm.xlu0 %2209, %v1936
          %v2211 = vpop.permute.xlu0 %2210
          %2214 = vset.pattern.permute.xlu0 0
          %2215 = vperm.xlu0 %2214, %v1937
          %v2216 = vpop.permute.xlu0 %2215
          %2219 = vset.pattern.permute.xlu0 0
          %2220 = vperm.xlu0 %2219, %v1938
          %v2221 = vpop.permute.xlu0 %2220
          %2224 = vset.pattern.permute.xlu0 0
          %2225 = vperm.xlu0 %2224, %v1939
          %v2226 = vpop.permute.xlu0 %2225
          %2229 = vset.pattern.permute.xlu0 0
          %2230 = vperm.xlu0 %2229, %v1940
          %v2231 = vpop.permute.xlu0 %2230
          %2234 = vset.pattern.permute.xlu0 0
          %2235 = vperm.xlu0 %2234, %v1941
          %v2236 = vpop.permute.xlu0 %2235
          %2239 = vset.pattern.permute.xlu0 0
          %2240 = vperm.xlu0 %2239, %v1942
          %v2241 = vpop.permute.xlu0 %2240
          %2244 = vset.pattern.permute.xlu0 0
          %2245 = vperm.xlu0 %2244, %v1943
          %v2246 = vpop.permute.xlu0 %2245
          %2249 = vset.pattern.permute.xlu0 0
          %2250 = vperm.xlu0 %2249, %v1944
          %v2251 = vpop.permute.xlu0 %2250
          %2254 = vset.pattern.permute.xlu0 0
          %2255 = vperm.xlu0 %2254, %v1945
          %v2256 = vpop.permute.xlu0 %2255
          %2259 = vset.pattern.permute.xlu0 0
          %2260 = vperm.xlu0 %2259, %v1946
          %v2261 = vpop.permute.xlu0 %2260
          %2264 = vset.pattern.permute.xlu0 0
          %2265 = vperm.xlu0 %2264, %v1947
          %v2266 = vpop.permute.xlu0 %2265
          %2269 = vset.pattern.permute.xlu0 0
          %2270 = vperm.xlu0 %2269, %v1948
          %v2271 = vpop.permute.xlu0 %2270
          %2274 = vset.pattern.permute.xlu0 0
          %2275 = vperm.xlu0 %2274, %v1949
          %v2276 = vpop.permute.xlu0 %2275
          %2279 = vset.pattern.permute.xlu0 0
          %2280 = vperm.xlu0 %2279, %v1950
          %v2281 = vpop.permute.xlu0 %2280
          %2284 = vset.pattern.permute.xlu0 0
          %2285 = vperm.xlu0 %2284, %v1951
          %v2286 = vpop.permute.xlu0 %2285
          %2289 = vset.pattern.permute.xlu0 0
          %2290 = vperm.xlu0 %2289, %v1952
          %v2291 = vpop.permute.xlu0 %2290
          %2294 = vset.pattern.permute.xlu0 0
          %2295 = vperm.xlu0 %2294, %v1953
          %v2296 = vpop.permute.xlu0 %2295
          %2299 = vset.pattern.permute.xlu0 0
          %2300 = vperm.xlu0 %2299, %v1954
          %v2301 = vpop.permute.xlu0 %2300
          %2304 = vset.pattern.permute.xlu0 0
          %2305 = vperm.xlu0 %2304, %v1955
          %v2306 = vpop.permute.xlu0 %2305
          %2309 = vset.pattern.permute.xlu0 0
          %2310 = vperm.xlu0 %2309, %v1956
          %v2311 = vpop.permute.xlu0 %2310
          %2314 = vset.pattern.permute.xlu0 0
          %2315 = vperm.xlu0 %2314, %v1957
          %v2316 = vpop.permute.xlu0 %2315
          %2319 = vset.pattern.permute.xlu0 0
          %2320 = vperm.xlu0 %2319, %v1958
          %v2321 = vpop.permute.xlu0 %2320
          %2324 = vset.pattern.permute.xlu0 0
          %2325 = vperm.xlu0 %2324, %v1959
          %v2326 = vpop.permute.xlu0 %2325
          %2329 = vset.pattern.permute.xlu0 0
          %2330 = vperm.xlu0 %2329, %v1960
          %v2331 = vpop.permute.xlu0 %2330
          %2334 = vset.pattern.permute.xlu0 0
          %2335 = vperm.xlu0 %2334, %v1961
          %v2336 = vpop.permute.xlu0 %2335
          %2339 = vset.pattern.permute.xlu0 0
          %2340 = vperm.xlu0 %2339, %v1962
          %v2341 = vpop.permute.xlu0 %2340
          %2344 = vset.pattern.permute.xlu0 0
          %2345 = vperm.xlu0 %2344, %v1963
          %v2346 = vpop.permute.xlu0 %2345
          %2349 = vset.pattern.permute.xlu0 0
          %2350 = vperm.xlu0 %2349, %v1964
          %v2351 = vpop.permute.xlu0 %2350
          %2354 = vset.pattern.permute.xlu0 0
          %2355 = vperm.xlu0 %2354, %v1965
          %v2356 = vpop.permute.xlu0 %2355
          %2359 = vset.pattern.permute.xlu0 0
          %2360 = vperm.xlu0 %2359, %v1966
          %v2361 = vpop.permute.xlu0 %2360
          %2364 = vset.pattern.permute.xlu0 0
          %2365 = vperm.xlu0 %2364, %v1967
          %v2366 = vpop.permute.xlu0 %2365
          %2369 = vset.pattern.permute.xlu0 0
          %2370 = vperm.xlu0 %2369, %v1968
          %v2371 = vpop.permute.xlu0 %2370
          %2374 = vset.pattern.permute.xlu0 0
          %2375 = vperm.xlu0 %2374, %v1969
          %v2376 = vpop.permute.xlu0 %2375
          %2379 = vset.pattern.permute.xlu0 0
          %2380 = vperm.xlu0 %2379, %v1970
          %v2381 = vpop.permute.xlu0 %2380
          %2384 = vset.pattern.permute.xlu0 0
          %2385 = vperm.xlu0 %2384, %v1971
          %v2386 = vpop.permute.xlu0 %2385
          %2389 = vset.pattern.permute.xlu0 0
          %2390 = vperm.xlu0 %2389, %v1972
          %v2391 = vpop.permute.xlu0 %2390
          %2394 = vset.pattern.permute.xlu0 0
          %2395 = vperm.xlu0 %2394, %v1973
          %v2396 = vpop.permute.xlu0 %2395
          %2399 = vset.pattern.permute.xlu0 0
          %2400 = vperm.xlu0 %2399, %v1974
          %v2401 = vpop.permute.xlu0 %2400
          %2404 = vset.pattern.permute.xlu0 0
          %2405 = vperm.xlu0 %2404, %v1975
          %v2406 = vpop.permute.xlu0 %2405
          %2409 = vset.pattern.permute.xlu0 0
          %2410 = vperm.xlu0 %2409, %v1976
          %v2411 = vpop.permute.xlu0 %2410
          %2414 = vset.pattern.permute.xlu0 0
          %2415 = vperm.xlu0 %2414, %v1977
          %v2416 = vpop.permute.xlu0 %2415
          %2419 = vset.pattern.permute.xlu0 0
          %2420 = vperm.xlu0 %2419, %v1978
          %v2421 = vpop.permute.xlu0 %2420
          %2424 = vset.pattern.permute.xlu0 0
          %2425 = vperm.xlu0 %2424, %v1979
          %v2426 = vpop.permute.xlu0 %2425
          %2429 = vset.pattern.permute.xlu0 0
          %2430 = vperm.xlu0 %2429, %v1980
          %v2431 = vpop.permute.xlu0 %2430
          %2434 = vset.pattern.permute.xlu0 0
          %2435 = vperm.xlu0 %2434, %v1981
          %v2436 = vpop.permute.xlu0 %2435
          %2439 = vset.pattern.permute.xlu0 0
          %2440 = vperm.xlu0 %2439, %v1982
          %v2441 = vpop.permute.xlu0 %2440
          %2444 = vset.pattern.permute.xlu0 0
          %2445 = vperm.xlu0 %2444, %v1983
          %v2446 = vpop.permute.xlu0 %2445
          %2449 = vset.pattern.permute.xlu0 0
          %2450 = vperm.xlu0 %2449, %v1984
          %v2451 = vpop.permute.xlu0 %2450
          %2454 = vset.pattern.permute.xlu0 0
          %2455 = vperm.xlu0 %2454, %v1985
          %v2456 = vpop.permute.xlu0 %2455
          %2459 = vset.pattern.permute.xlu0 0
          %2460 = vperm.xlu0 %2459, %v1986
          %v2461 = vpop.permute.xlu0 %2460
          %2464 = vset.pattern.permute.xlu0 0
          %2465 = vperm.xlu0 %2464, %v1987
          %v2466 = vpop.permute.xlu0 %2465
          %2469 = vset.pattern.permute.xlu0 0
          %2470 = vperm.xlu0 %2469, %v1988
          %v2471 = vpop.permute.xlu0 %2470
          %2474 = vset.pattern.permute.xlu0 0
          %2475 = vperm.xlu0 %2474, %v1989
          %v2476 = vpop.permute.xlu0 %2475
          %2479 = vset.pattern.permute.xlu0 0
          %2480 = vperm.xlu0 %2479, %v1990
          %v2481 = vpop.permute.xlu0 %2480
          %2484 = vset.pattern.permute.xlu0 0
          %2485 = vperm.xlu0 %2484, %v1991
          %v2486 = vpop.permute.xlu0 %2485
          %2489 = vset.pattern.permute.xlu0 0
          %2490 = vperm.xlu0 %2489, %v1992
          %v2491 = vpop.permute.xlu0 %2490
          %2494 = vset.pattern.permute.xlu0 0
          %2495 = vperm.xlu0 %2494, %v1993
          %v2496 = vpop.permute.xlu0 %2495
          %2499 = vset.pattern.permute.xlu0 0
          %2500 = vperm.xlu0 %2499, %v1994
          %v2501 = vpop.permute.xlu0 %2500
          %2504 = vset.pattern.permute.xlu0 0
          %2505 = vperm.xlu0 %2504, %v1995
          %v2506 = vpop.permute.xlu0 %2505
          %v2508 = vsub.f32 %v1348, %v2191
          %v2509 = vsub.f32 %v1517, %v2191
          %v2510 = vsub.f32 %v1350, %v2196
          %v2511 = vsub.f32 %v1519, %v2196
          %v2512 = vsub.f32 %v1353, %v2201
          %v2513 = vsub.f32 %v1522, %v2201
          %v2514 = vsub.f32 %v1355, %v2206
          %v2515 = vsub.f32 %v1524, %v2206
          %v2516 = vsub.f32 %v1358, %v2211
          %v2517 = vsub.f32 %v1527, %v2211
          %v2518 = vsub.f32 %v1360, %v2216
          %v2519 = vsub.f32 %v1529, %v2216
          %v2520 = vsub.f32 %v1363, %v2221
          %v2521 = vsub.f32 %v1532, %v2221
          %v2522 = vsub.f32 %v1365, %v2226
          %v2523 = vsub.f32 %v1534, %v2226
          %v2524 = vsub.f32 %v1368, %v2231
          %v2525 = vsub.f32 %v1537, %v2231
          %v2526 = vsub.f32 %v1370, %v2236
          %v2527 = vsub.f32 %v1539, %v2236
          %v2528 = vsub.f32 %v1373, %v2241
          %v2529 = vsub.f32 %v1542, %v2241
          %v2530 = vsub.f32 %v1375, %v2246
          %v2531 = vsub.f32 %v1544, %v2246
          %v2532 = vsub.f32 %v1378, %v2251
          %v2533 = vsub.f32 %v1547, %v2251
          %v2534 = vsub.f32 %v1380, %v2256
          %v2535 = vsub.f32 %v1549, %v2256
          %v2536 = vsub.f32 %v1383, %v2261
          %v2537 = vsub.f32 %v1552, %v2261
          %v2538 = vsub.f32 %v1385, %v2266
          %v2539 = vsub.f32 %v1554, %v2266
          %v2540 = vsub.f32 %v1388, %v2271
          %v2541 = vsub.f32 %v1557, %v2271
          %v2542 = vsub.f32 %v1390, %v2276
          %v2543 = vsub.f32 %v1559, %v2276
          %v2544 = vsub.f32 %v1393, %v2281
          %v2545 = vsub.f32 %v1562, %v2281
          %v2546 = vsub.f32 %v1395, %v2286
          %v2547 = vsub.f32 %v1564, %v2286
          %v2548 = vsub.f32 %v1398, %v2291
          %v2549 = vsub.f32 %v1567, %v2291
          %v2550 = vsub.f32 %v1400, %v2296
          %v2551 = vsub.f32 %v1569, %v2296
          %v2552 = vsub.f32 %v1403, %v2301
          %v2553 = vsub.f32 %v1572, %v2301
          %v2554 = vsub.f32 %v1405, %v2306
          %v2555 = vsub.f32 %v1574, %v2306
          %v2556 = vsub.f32 %v1408, %v2311
          %v2557 = vsub.f32 %v1577, %v2311
          %v2558 = vsub.f32 %v1410, %v2316
          %v2559 = vsub.f32 %v1579, %v2316
          %v2560 = vsub.f32 %v1413, %v2321
          %v2561 = vsub.f32 %v1582, %v2321
          %v2562 = vsub.f32 %v1415, %v2326
          %v2563 = vsub.f32 %v1584, %v2326
          %v2564 = vsub.f32 %v1418, %v2331
          %v2565 = vsub.f32 %v1587, %v2331
          %v2566 = vsub.f32 %v1420, %v2336
          %v2567 = vsub.f32 %v1589, %v2336
          %v2568 = vsub.f32 %v1423, %v2341
          %v2569 = vsub.f32 %v1592, %v2341
          %v2570 = vsub.f32 %v1425, %v2346
          %v2571 = vsub.f32 %v1594, %v2346
          %v2572 = vsub.f32 %v1428, %v2351
          %v2573 = vsub.f32 %v1597, %v2351
          %v2574 = vsub.f32 %v1430, %v2356
          %v2575 = vsub.f32 %v1599, %v2356
          %v2576 = vsub.f32 %v1433, %v2361
          %v2577 = vsub.f32 %v1602, %v2361
          %v2578 = vsub.f32 %v1435, %v2366
          %v2579 = vsub.f32 %v1604, %v2366
          %v2580 = vsub.f32 %v1438, %v2371
          %v2581 = vsub.f32 %v1607, %v2371
          %v2582 = vsub.f32 %v1440, %v2376
          %v2583 = vsub.f32 %v1609, %v2376
          %v2584 = vsub.f32 %v1443, %v2381
          %v2585 = vsub.f32 %v1612, %v2381
          %v2586 = vsub.f32 %v1445, %v2386
          %v2587 = vsub.f32 %v1614, %v2386
          %v2588 = vsub.f32 %v1448, %v2391
          %v2589 = vsub.f32 %v1617, %v2391
          %v2590 = vsub.f32 %v1450, %v2396
          %v2591 = vsub.f32 %v1619, %v2396
          %v2592 = vsub.f32 %v1453, %v2401
          %v2593 = vsub.f32 %v1622, %v2401
          %v2594 = vsub.f32 %v1455, %v2406
          %v2595 = vsub.f32 %v1624, %v2406
          %v2596 = vsub.f32 %v1458, %v2411
          %v2597 = vsub.f32 %v1627, %v2411
          %v2598 = vsub.f32 %v1460, %v2416
          %v2599 = vsub.f32 %v1629, %v2416
          %v2600 = vsub.f32 %v1463, %v2421
          %v2601 = vsub.f32 %v1632, %v2421
          %v2602 = vsub.f32 %v1465, %v2426
          %v2603 = vsub.f32 %v1634, %v2426
          %v2604 = vsub.f32 %v1468, %v2431
          %v2605 = vsub.f32 %v1637, %v2431
          %v2606 = vsub.f32 %v1470, %v2436
          %v2607 = vsub.f32 %v1639, %v2436
          %v2608 = vsub.f32 %v1473, %v2441
          %v2609 = vsub.f32 %v1642, %v2441
          %v2610 = vsub.f32 %v1475, %v2446
          %v2611 = vsub.f32 %v1644, %v2446
          %v2612 = vsub.f32 %v1478, %v2451
          %v2613 = vsub.f32 %v1647, %v2451
          %v2614 = vsub.f32 %v1480, %v2456
          %v2615 = vsub.f32 %v1649, %v2456
          %v2616 = vsub.f32 %v1483, %v2461
          %v2617 = vsub.f32 %v1652, %v2461
          %v2618 = vsub.f32 %v1485, %v2466
          %v2619 = vsub.f32 %v1654, %v2466
          %v2620 = vsub.f32 %v1488, %v2471
          %v2621 = vsub.f32 %v1657, %v2471
          %v2622 = vsub.f32 %v1490, %v2476
          %v2623 = vsub.f32 %v1659, %v2476
          %v2624 = vsub.f32 %v1493, %v2481
          %v2625 = vsub.f32 %v1662, %v2481
          %v2626 = vsub.f32 %v1495, %v2486
          %v2627 = vsub.f32 %v1664, %v2486
          %v2628 = vsub.f32 %v1498, %v2491
          %v2629 = vsub.f32 %v1667, %v2491
          %v2630 = vsub.f32 %v1500, %v2496
          %v2631 = vsub.f32 %v1669, %v2496
          %v2632 = vsub.f32 %v1503, %v2501
          %v2633 = vsub.f32 %v1672, %v2501
          %v2634 = vsub.f32 %v1505, %v2506
          %v2635 = vsub.f32 %v1674, %v2506
          %v2636 = vmul.f32 %v2508, 1.442695
          %v2637 = vpow.pop %v2636
          %v2638 = vmul.f32 %v2509, 1.442695
          %v2639 = vpow.pop %v2638
          %v2640 = vmul.f32 %v2510, 1.442695
          %v2641 = vpow.pop %v2640
          %v2642 = vmul.f32 %v2511, 1.442695
          %v2643 = vpow.pop %v2642
          %v2644 = vmul.f32 %v2512, 1.442695
          %v2645 = vpow.pop %v2644
          %v2646 = vmul.f32 %v2513, 1.442695
          %v2647 = vpow.pop %v2646
          %v2648 = vmul.f32 %v2514, 1.442695
          %v2649 = vpow.pop %v2648
          %v2650 = vmul.f32 %v2515, 1.442695
          %v2651 = vpow.pop %v2650
          %v2652 = vmul.f32 %v2516, 1.442695
          %v2653 = vpow.pop %v2652
          %v2654 = vmul.f32 %v2517, 1.442695
          %v2655 = vpow.pop %v2654
          %v2656 = vmul.f32 %v2518, 1.442695
          %v2657 = vpow.pop %v2656
          %v2658 = vmul.f32 %v2519, 1.442695
          %v2659 = vpow.pop %v2658
          %v2660 = vmul.f32 %v2520, 1.442695
          %v2661 = vpow.pop %v2660
          %v2662 = vmul.f32 %v2521, 1.442695
          %v2663 = vpow.pop %v2662
          %v2664 = vmul.f32 %v2522, 1.442695
          %v2665 = vpow.pop %v2664
          %v2666 = vmul.f32 %v2523, 1.442695
          %v2667 = vpow.pop %v2666
          %v2668 = vmul.f32 %v2524, 1.442695
          %v2669 = vpow.pop %v2668
          %v2670 = vmul.f32 %v2525, 1.442695
          %v2671 = vpow.pop %v2670
          %v2672 = vmul.f32 %v2526, 1.442695
          %v2673 = vpow.pop %v2672
          %v2674 = vmul.f32 %v2527, 1.442695
          %v2675 = vpow.pop %v2674
          %v2676 = vmul.f32 %v2528, 1.442695
          %v2677 = vpow.pop %v2676
          %v2678 = vmul.f32 %v2529, 1.442695
          %v2679 = vpow.pop %v2678
          %v2680 = vmul.f32 %v2530, 1.442695
          %v2681 = vpow.pop %v2680
          %v2682 = vmul.f32 %v2531, 1.442695
          %v2683 = vpow.pop %v2682
          %v2684 = vmul.f32 %v2532, 1.442695
          %v2685 = vpow.pop %v2684
          %v2686 = vmul.f32 %v2533, 1.442695
          %v2687 = vpow.pop %v2686
          %v2688 = vmul.f32 %v2534, 1.442695
          %v2689 = vpow.pop %v2688
          %v2690 = vmul.f32 %v2535, 1.442695
          %v2691 = vpow.pop %v2690
          %v2692 = vmul.f32 %v2536, 1.442695
          %v2693 = vpow.pop %v2692
          %v2694 = vmul.f32 %v2537, 1.442695
          %v2695 = vpow.pop %v2694
          %v2696 = vmul.f32 %v2538, 1.442695
          %v2697 = vpow.pop %v2696
          %v2698 = vmul.f32 %v2539, 1.442695
          %v2699 = vpow.pop %v2698
          %v2700 = vmul.f32 %v2540, 1.442695
          %v2701 = vpow.pop %v2700
          %v2702 = vmul.f32 %v2541, 1.442695
          %v2703 = vpow.pop %v2702
          %v2704 = vmul.f32 %v2542, 1.442695
          %v2705 = vpow.pop %v2704
          %v2706 = vmul.f32 %v2543, 1.442695
          %v2707 = vpow.pop %v2706
          %v2708 = vmul.f32 %v2544, 1.442695
          %v2709 = vpow.pop %v2708
          %v2710 = vmul.f32 %v2545, 1.442695
          %v2711 = vpow.pop %v2710
          %v2712 = vmul.f32 %v2546, 1.442695
          %v2713 = vpow.pop %v2712
          %v2714 = vmul.f32 %v2547, 1.442695
          %v2715 = vpow.pop %v2714
          %v2716 = vmul.f32 %v2548, 1.442695
          %v2717 = vpow.pop %v2716
          %v2718 = vmul.f32 %v2549, 1.442695
          %v2719 = vpow.pop %v2718
          %v2720 = vmul.f32 %v2550, 1.442695
          %v2721 = vpow.pop %v2720
          %v2722 = vmul.f32 %v2551, 1.442695
          %v2723 = vpow.pop %v2722
          %v2724 = vmul.f32 %v2552, 1.442695
          %v2725 = vpow.pop %v2724
          %v2726 = vmul.f32 %v2553, 1.442695
          %v2727 = vpow.pop %v2726
          %v2728 = vmul.f32 %v2554, 1.442695
          %v2729 = vpow.pop %v2728
          %v2730 = vmul.f32 %v2555, 1.442695
          %v2731 = vpow.pop %v2730
          %v2732 = vmul.f32 %v2556, 1.442695
          %v2733 = vpow.pop %v2732
          %v2734 = vmul.f32 %v2557, 1.442695
          %v2735 = vpow.pop %v2734
          %v2736 = vmul.f32 %v2558, 1.442695
          %v2737 = vpow.pop %v2736
          %v2738 = vmul.f32 %v2559, 1.442695
          %v2739 = vpow.pop %v2738
          %v2740 = vmul.f32 %v2560, 1.442695
          %v2741 = vpow.pop %v2740
          %v2742 = vmul.f32 %v2561, 1.442695
          %v2743 = vpow.pop %v2742
          %v2744 = vmul.f32 %v2562, 1.442695
          %v2745 = vpow.pop %v2744
          %v2746 = vmul.f32 %v2563, 1.442695
          %v2747 = vpow.pop %v2746
          %v2748 = vmul.f32 %v2564, 1.442695
          %v2749 = vpow.pop %v2748
          %v2750 = vmul.f32 %v2565, 1.442695
          %v2751 = vpow.pop %v2750
          %v2752 = vmul.f32 %v2566, 1.442695
          %v2753 = vpow.pop %v2752
          %v2754 = vmul.f32 %v2567, 1.442695
          %v2755 = vpow.pop %v2754
          %v2756 = vmul.f32 %v2568, 1.442695
          %v2757 = vpow.pop %v2756
          %v2758 = vmul.f32 %v2569, 1.442695
          %v2759 = vpow.pop %v2758
          %v2760 = vmul.f32 %v2570, 1.442695
          %v2761 = vpow.pop %v2760
          %v2762 = vmul.f32 %v2571, 1.442695
          %v2763 = vpow.pop %v2762
          %v2764 = vmul.f32 %v2572, 1.442695
          %v2765 = vpow.pop %v2764
          %v2766 = vmul.f32 %v2573, 1.442695
          %v2767 = vpow.pop %v2766
          %v2768 = vmul.f32 %v2574, 1.442695
          %v2769 = vpow.pop %v2768
          %v2770 = vmul.f32 %v2575, 1.442695
          %v2771 = vpow.pop %v2770
          %v2772 = vmul.f32 %v2576, 1.442695
          %v2773 = vpow.pop %v2772
          %v2774 = vmul.f32 %v2577, 1.442695
          %v2775 = vpow.pop %v2774
          %v2776 = vmul.f32 %v2578, 1.442695
          %v2777 = vpow.pop %v2776
          %v2778 = vmul.f32 %v2579, 1.442695
          %v2779 = vpow.pop %v2778
          %v2780 = vmul.f32 %v2580, 1.442695
          %v2781 = vpow.pop %v2780
          %v2782 = vmul.f32 %v2581, 1.442695
          %v2783 = vpow.pop %v2782
          %v2784 = vmul.f32 %v2582, 1.442695
          %v2785 = vpow.pop %v2784
          %v2786 = vmul.f32 %v2583, 1.442695
          %v2787 = vpow.pop %v2786
          %v2788 = vmul.f32 %v2584, 1.442695
          %v2789 = vpow.pop %v2788
          %v2790 = vmul.f32 %v2585, 1.442695
          %v2791 = vpow.pop %v2790
          %v2792 = vmul.f32 %v2586, 1.442695
          %v2793 = vpow.pop %v2792
          %v2794 = vmul.f32 %v2587, 1.442695
          %v2795 = vpow.pop %v2794
          %v2796 = vmul.f32 %v2588, 1.442695
          %v2797 = vpow.pop %v2796
          %v2798 = vmul.f32 %v2589, 1.442695
          %v2799 = vpow.pop %v2798
          %v2800 = vmul.f32 %v2590, 1.442695
          %v2801 = vpow.pop %v2800
          %v2802 = vmul.f32 %v2591, 1.442695
          %v2803 = vpow.pop %v2802
          %v2804 = vmul.f32 %v2592, 1.442695
          %v2805 = vpow.pop %v2804
          %v2806 = vmul.f32 %v2593, 1.442695
          %v2807 = vpow.pop %v2806
          %v2808 = vmul.f32 %v2594, 1.442695
          %v2809 = vpow.pop %v2808
          %v2810 = vmul.f32 %v2595, 1.442695
          %v2811 = vpow.pop %v2810
          %v2812 = vmul.f32 %v2596, 1.442695
          %v2813 = vpow.pop %v2812
          %v2814 = vmul.f32 %v2597, 1.442695
          %v2815 = vpow.pop %v2814
          %v2816 = vmul.f32 %v2598, 1.442695
          %v2817 = vpow.pop %v2816
          %v2818 = vmul.f32 %v2599, 1.442695
          %v2819 = vpow.pop %v2818
          %v2820 = vmul.f32 %v2600, 1.442695
          %v2821 = vpow.pop %v2820
          %v2822 = vmul.f32 %v2601, 1.442695
          %v2823 = vpow.pop %v2822
          %v2824 = vmul.f32 %v2602, 1.442695
          %v2825 = vpow.pop %v2824
          %v2826 = vmul.f32 %v2603, 1.442695
          %v2827 = vpow.pop %v2826
          %v2828 = vmul.f32 %v2604, 1.442695
          %v2829 = vpow.pop %v2828
          %v2830 = vmul.f32 %v2605, 1.442695
          %v2831 = vpow.pop %v2830
          %v2832 = vmul.f32 %v2606, 1.442695
          %v2833 = vpow.pop %v2832
          %v2834 = vmul.f32 %v2607, 1.442695
          %v2835 = vpow.pop %v2834
          %v2836 = vmul.f32 %v2608, 1.442695
          %v2837 = vpow.pop %v2836
          %v2838 = vmul.f32 %v2609, 1.442695
          %v2839 = vpow.pop %v2838
          %v2840 = vmul.f32 %v2610, 1.442695
          %v2841 = vpow.pop %v2840
          %v2842 = vmul.f32 %v2611, 1.442695
          %v2843 = vpow.pop %v2842
          %v2844 = vmul.f32 %v2612, 1.442695
          %v2845 = vpow.pop %v2844
          %v2846 = vmul.f32 %v2613, 1.442695
          %v2847 = vpow.pop %v2846
          %v2848 = vmul.f32 %v2614, 1.442695
          %v2849 = vpow.pop %v2848
          %v2850 = vmul.f32 %v2615, 1.442695
          %v2851 = vpow.pop %v2850
          %v2852 = vmul.f32 %v2616, 1.442695
          %v2853 = vpow.pop %v2852
          %v2854 = vmul.f32 %v2617, 1.442695
          %v2855 = vpow.pop %v2854
          %v2856 = vmul.f32 %v2618, 1.442695
          %v2857 = vpow.pop %v2856
          %v2858 = vmul.f32 %v2619, 1.442695
          %v2859 = vpow.pop %v2858
          %v2860 = vmul.f32 %v2620, 1.442695
          %v2861 = vpow.pop %v2860
          %v2862 = vmul.f32 %v2621, 1.442695
          %v2863 = vpow.pop %v2862
          %v2864 = vmul.f32 %v2622, 1.442695
          %v2865 = vpow.pop %v2864
          %v2866 = vmul.f32 %v2623, 1.442695
          %v2867 = vpow.pop %v2866
          %v2868 = vmul.f32 %v2624, 1.442695
          %v2869 = vpow.pop %v2868
          %v2870 = vmul.f32 %v2625, 1.442695
          %v2871 = vpow.pop %v2870
          %v2872 = vmul.f32 %v2626, 1.442695
          %v2873 = vpow.pop %v2872
          %v2874 = vmul.f32 %v2627, 1.442695
          %v2875 = vpow.pop %v2874
          %v2876 = vmul.f32 %v2628, 1.442695
          %v2877 = vpow.pop %v2876
          %v2878 = vmul.f32 %v2629, 1.442695
          %v2879 = vpow.pop %v2878
          %v2880 = vmul.f32 %v2630, 1.442695
          %v2881 = vpow.pop %v2880
          %v2882 = vmul.f32 %v2631, 1.442695
          %v2883 = vpow.pop %v2882
          %v2884 = vmul.f32 %v2632, 1.442695
          %v2885 = vpow.pop %v2884
          %v2886 = vmul.f32 %v2633, 1.442695
          %v2887 = vpow.pop %v2886
          %v2888 = vmul.f32 %v2634, 1.442695
          %v2889 = vpow.pop %v2888
          %v2890 = vmul.f32 %v2635, 1.442695
          %v2891 = vpow.pop %v2890
          %v2892 = vadd.f32 %v2637, %v2639
          %2893 = vadd.xlane.f32.xlu0 %v2892
          %v2894 = vpop.xlane.xlu0 %2893
          %v2895 = vadd.f32 %v2641, %v2643
          %2896 = vadd.xlane.f32.xlu0 %v2895
          %v2897 = vpop.xlane.xlu0 %2896
          %v2898 = vadd.f32 %v2645, %v2647
          %2899 = vadd.xlane.f32.xlu0 %v2898
          %v2900 = vpop.xlane.xlu0 %2899
          %v2901 = vadd.f32 %v2649, %v2651
          %2902 = vadd.xlane.f32.xlu0 %v2901
          %v2903 = vpop.xlane.xlu0 %2902
          %v2904 = vadd.f32 %v2653, %v2655
          %2905 = vadd.xlane.f32.xlu0 %v2904
          %v2906 = vpop.xlane.xlu0 %2905
          %v2907 = vadd.f32 %v2657, %v2659
          %2908 = vadd.xlane.f32.xlu0 %v2907
          %v2909 = vpop.xlane.xlu0 %2908
          %v2910 = vadd.f32 %v2661, %v2663
          %2911 = vadd.xlane.f32.xlu0 %v2910
          %v2912 = vpop.xlane.xlu0 %2911
          %v2913 = vadd.f32 %v2665, %v2667
          %2914 = vadd.xlane.f32.xlu0 %v2913
          %v2915 = vpop.xlane.xlu0 %2914
          %v2916 = vadd.f32 %v2669, %v2671
          %2917 = vadd.xlane.f32.xlu0 %v2916
          %v2918 = vpop.xlane.xlu0 %2917
          %v2919 = vadd.f32 %v2673, %v2675
          %2920 = vadd.xlane.f32.xlu0 %v2919
          %v2921 = vpop.xlane.xlu0 %2920
          %v2922 = vadd.f32 %v2677, %v2679
          %2923 = vadd.xlane.f32.xlu0 %v2922
          %v2924 = vpop.xlane.xlu0 %2923
          %v2925 = vadd.f32 %v2681, %v2683
          %2926 = vadd.xlane.f32.xlu0 %v2925
          %v2927 = vpop.xlane.xlu0 %2926
          %v2928 = vadd.f32 %v2685, %v2687
          %2929 = vadd.xlane.f32.xlu0 %v2928
          %v2930 = vpop.xlane.xlu0 %2929
          %v2931 = vadd.f32 %v2689, %v2691
          %2932 = vadd.xlane.f32.xlu0 %v2931
          %v2933 = vpop.xlane.xlu0 %2932
          %v2934 = vadd.f32 %v2693, %v2695
          %2935 = vadd.xlane.f32.xlu0 %v2934
          %v2936 = vpop.xlane.xlu0 %2935
          %v2937 = vadd.f32 %v2697, %v2699
          %2938 = vadd.xlane.f32.xlu0 %v2937
          %v2939 = vpop.xlane.xlu0 %2938
          %v2940 = vadd.f32 %v2701, %v2703
          %2941 = vadd.xlane.f32.xlu0 %v2940
          %v2942 = vpop.xlane.xlu0 %2941
          %v2943 = vadd.f32 %v2705, %v2707
          %2944 = vadd.xlane.f32.xlu0 %v2943
          %v2945 = vpop.xlane.xlu0 %2944
          %v2946 = vadd.f32 %v2709, %v2711
          %2947 = vadd.xlane.f32.xlu0 %v2946
          %v2948 = vpop.xlane.xlu0 %2947
          %v2949 = vadd.f32 %v2713, %v2715
          %2950 = vadd.xlane.f32.xlu0 %v2949
          %v2951 = vpop.xlane.xlu0 %2950
          %v2952 = vadd.f32 %v2717, %v2719
          %2953 = vadd.xlane.f32.xlu0 %v2952
          %v2954 = vpop.xlane.xlu0 %2953
          %v2955 = vadd.f32 %v2721, %v2723
          %2956 = vadd.xlane.f32.xlu0 %v2955
          %v2957 = vpop.xlane.xlu0 %2956
          %v2958 = vadd.f32 %v2725, %v2727
          %2959 = vadd.xlane.f32.xlu0 %v2958
          %v2960 = vpop.xlane.xlu0 %2959
          %v2961 = vadd.f32 %v2729, %v2731
          %2962 = vadd.xlane.f32.xlu0 %v2961
          %v2963 = vpop.xlane.xlu0 %2962
          %v2964 = vadd.f32 %v2733, %v2735
          %2965 = vadd.xlane.f32.xlu0 %v2964
          %v2966 = vpop.xlane.xlu0 %2965
          %v2967 = vadd.f32 %v2737, %v2739
          %2968 = vadd.xlane.f32.xlu0 %v2967
          %v2969 = vpop.xlane.xlu0 %2968
          %v2970 = vadd.f32 %v2741, %v2743
          %2971 = vadd.xlane.f32.xlu0 %v2970
          %v2972 = vpop.xlane.xlu0 %2971
          %v2973 = vadd.f32 %v2745, %v2747
          %2974 = vadd.xlane.f32.xlu0 %v2973
          %v2975 = vpop.xlane.xlu0 %2974
          %v2976 = vadd.f32 %v2749, %v2751
          %2977 = vadd.xlane.f32.xlu0 %v2976
          %v2978 = vpop.xlane.xlu0 %2977
          %v2979 = vadd.f32 %v2753, %v2755
          %2980 = vadd.xlane.f32.xlu0 %v2979
          %v2981 = vpop.xlane.xlu0 %2980
          %v2982 = vadd.f32 %v2757, %v2759
          %2983 = vadd.xlane.f32.xlu0 %v2982
          %v2984 = vpop.xlane.xlu0 %2983
          %v2985 = vadd.f32 %v2761, %v2763
          %2986 = vadd.xlane.f32.xlu0 %v2985
          %v2987 = vpop.xlane.xlu0 %2986
          %v2988 = vadd.f32 %v2765, %v2767
          %2989 = vadd.xlane.f32.xlu0 %v2988
          %v2990 = vpop.xlane.xlu0 %2989
          %v2991 = vadd.f32 %v2769, %v2771
          %2992 = vadd.xlane.f32.xlu0 %v2991
          %v2993 = vpop.xlane.xlu0 %2992
          %v2994 = vadd.f32 %v2773, %v2775
          %2995 = vadd.xlane.f32.xlu0 %v2994
          %v2996 = vpop.xlane.xlu0 %2995
          %v2997 = vadd.f32 %v2777, %v2779
          %2998 = vadd.xlane.f32.xlu0 %v2997
          %v2999 = vpop.xlane.xlu0 %2998
          %v3000 = vadd.f32 %v2781, %v2783
          %3001 = vadd.xlane.f32.xlu0 %v3000
          %v3002 = vpop.xlane.xlu0 %3001
          %v3003 = vadd.f32 %v2785, %v2787
          %3004 = vadd.xlane.f32.xlu0 %v3003
          %v3005 = vpop.xlane.xlu0 %3004
          %v3006 = vadd.f32 %v2789, %v2791
          %3007 = vadd.xlane.f32.xlu0 %v3006
          %v3008 = vpop.xlane.xlu0 %3007
          %v3009 = vadd.f32 %v2793, %v2795
          %3010 = vadd.xlane.f32.xlu0 %v3009
          %v3011 = vpop.xlane.xlu0 %3010
          %v3012 = vadd.f32 %v2797, %v2799
          %3013 = vadd.xlane.f32.xlu0 %v3012
          %v3014 = vpop.xlane.xlu0 %3013
          %v3015 = vadd.f32 %v2801, %v2803
          %3016 = vadd.xlane.f32.xlu0 %v3015
          %v3017 = vpop.xlane.xlu0 %3016
          %v3018 = vadd.f32 %v2805, %v2807
          %3019 = vadd.xlane.f32.xlu0 %v3018
          %v3020 = vpop.xlane.xlu0 %3019
          %v3021 = vadd.f32 %v2809, %v2811
          %3022 = vadd.xlane.f32.xlu0 %v3021
          %v3023 = vpop.xlane.xlu0 %3022
          %v3024 = vadd.f32 %v2813, %v2815
          %3025 = vadd.xlane.f32.xlu0 %v3024
          %v3026 = vpop.xlane.xlu0 %3025
          %v3027 = vadd.f32 %v2817, %v2819
          %3028 = vadd.xlane.f32.xlu0 %v3027
          %v3029 = vpop.xlane.xlu0 %3028
          %v3030 = vadd.f32 %v2821, %v2823
          %3031 = vadd.xlane.f32.xlu0 %v3030
          %v3032 = vpop.xlane.xlu0 %3031
          %v3033 = vadd.f32 %v2825, %v2827
          %3034 = vadd.xlane.f32.xlu0 %v3033
          %v3035 = vpop.xlane.xlu0 %3034
          %v3036 = vadd.f32 %v2829, %v2831
          %3037 = vadd.xlane.f32.xlu0 %v3036
          %v3038 = vpop.xlane.xlu0 %3037
          %v3039 = vadd.f32 %v2833, %v2835
          %3040 = vadd.xlane.f32.xlu0 %v3039
          %v3041 = vpop.xlane.xlu0 %3040
          %v3042 = vadd.f32 %v2837, %v2839
          %3043 = vadd.xlane.f32.xlu0 %v3042
          %v3044 = vpop.xlane.xlu0 %3043
          %v3045 = vadd.f32 %v2841, %v2843
          %3046 = vadd.xlane.f32.xlu0 %v3045
          %v3047 = vpop.xlane.xlu0 %3046
          %v3048 = vadd.f32 %v2845, %v2847
          %3049 = vadd.xlane.f32.xlu0 %v3048
          %v3050 = vpop.xlane.xlu0 %3049
          %v3051 = vadd.f32 %v2849, %v2851
          %3052 = vadd.xlane.f32.xlu0 %v3051
          %v3053 = vpop.xlane.xlu0 %3052
          %v3054 = vadd.f32 %v2853, %v2855
          %3055 = vadd.xlane.f32.xlu0 %v3054
          %v3056 = vpop.xlane.xlu0 %3055
          %v3057 = vadd.f32 %v2857, %v2859
          %3058 = vadd.xlane.f32.xlu0 %v3057
          %v3059 = vpop.xlane.xlu0 %3058
          %v3060 = vadd.f32 %v2861, %v2863
          %3061 = vadd.xlane.f32.xlu0 %v3060
          %v3062 = vpop.xlane.xlu0 %3061
          %v3063 = vadd.f32 %v2865, %v2867
          %3064 = vadd.xlane.f32.xlu0 %v3063
          %v3065 = vpop.xlane.xlu0 %3064
          %v3066 = vadd.f32 %v2869, %v2871
          %3067 = vadd.xlane.f32.xlu0 %v3066
          %v3068 = vpop.xlane.xlu0 %3067
          %v3069 = vadd.f32 %v2873, %v2875
          %3070 = vadd.xlane.f32.xlu0 %v3069
          %v3071 = vpop.xlane.xlu0 %3070
          %v3072 = vadd.f32 %v2877, %v2879
          %3073 = vadd.xlane.f32.xlu0 %v3072
          %v3074 = vpop.xlane.xlu0 %3073
          %v3075 = vadd.f32 %v2881, %v2883
          %3076 = vadd.xlane.f32.xlu0 %v3075
          %v3077 = vpop.xlane.xlu0 %3076
          %v3078 = vadd.f32 %v2885, %v2887
          %3079 = vadd.xlane.f32.xlu0 %v3078
          %v3080 = vpop.xlane.xlu0 %3079
          %v3081 = vadd.f32 %v2889, %v2891
          %3082 = vadd.xlane.f32.xlu0 %v3081
          %v3083 = vpop.xlane.xlu0 %3082
          %v3084 = vpack.c.bf16 %v2641, %v2637
          %v3085 = vpack.c.bf16 %v2643, %v2639
          %v3086 = vpack.c.bf16 %v2649, %v2645
          %v3087 = vpack.c.bf16 %v2651, %v2647
          %v3088 = vpack.c.bf16 %v2657, %v2653
          %v3089 = vpack.c.bf16 %v2659, %v2655
          %v3090 = vpack.c.bf16 %v2665, %v2661
          %v3091 = vpack.c.bf16 %v2667, %v2663
          %v3092 = vpack.c.bf16 %v2673, %v2669
          %v3093 = vpack.c.bf16 %v2675, %v2671
          %v3094 = vpack.c.bf16 %v2681, %v2677
          %v3095 = vpack.c.bf16 %v2683, %v2679
          %v3096 = vpack.c.bf16 %v2689, %v2685
          %v3097 = vpack.c.bf16 %v2691, %v2687
          %v3098 = vpack.c.bf16 %v2697, %v2693
          %v3099 = vpack.c.bf16 %v2699, %v2695
          %v3100 = vpack.c.bf16 %v2705, %v2701
          %v3101 = vpack.c.bf16 %v2707, %v2703
          %v3102 = vpack.c.bf16 %v2713, %v2709
          %v3103 = vpack.c.bf16 %v2715, %v2711
          %v3104 = vpack.c.bf16 %v2721, %v2717
          %v3105 = vpack.c.bf16 %v2723, %v2719
          %v3106 = vpack.c.bf16 %v2729, %v2725
          %v3107 = vpack.c.bf16 %v2731, %v2727
          %v3108 = vpack.c.bf16 %v2737, %v2733
          %v3109 = vpack.c.bf16 %v2739, %v2735
          %v3110 = vpack.c.bf16 %v2745, %v2741
          %v3111 = vpack.c.bf16 %v2747, %v2743
          %v3112 = vpack.c.bf16 %v2753, %v2749
          %v3113 = vpack.c.bf16 %v2755, %v2751
          %v3114 = vpack.c.bf16 %v2761, %v2757
          %v3115 = vpack.c.bf16 %v2763, %v2759
          %v3116 = vpack.c.bf16 %v2769, %v2765
          %v3117 = vpack.c.bf16 %v2771, %v2767
          %v3118 = vpack.c.bf16 %v2777, %v2773
          %v3119 = vpack.c.bf16 %v2779, %v2775
          %v3120 = vpack.c.bf16 %v2785, %v2781
          %v3121 = vpack.c.bf16 %v2787, %v2783
          %v3122 = vpack.c.bf16 %v2793, %v2789
          %v3123 = vpack.c.bf16 %v2795, %v2791
          %v3124 = vpack.c.bf16 %v2801, %v2797
          %v3125 = vpack.c.bf16 %v2803, %v2799
          %v3126 = vpack.c.bf16 %v2809, %v2805
          %v3127 = vpack.c.bf16 %v2811, %v2807
          %v3128 = vpack.c.bf16 %v2817, %v2813
          %v3129 = vpack.c.bf16 %v2819, %v2815
          %v3130 = vpack.c.bf16 %v2825, %v2821
          %v3131 = vpack.c.bf16 %v2827, %v2823
          %v3132 = vpack.c.bf16 %v2833, %v2829
          %v3133 = vpack.c.bf16 %v2835, %v2831
          %v3134 = vpack.c.bf16 %v2841, %v2837
          %v3135 = vpack.c.bf16 %v2843, %v2839
          %v3136 = vpack.c.bf16 %v2849, %v2845
          %v3137 = vpack.c.bf16 %v2851, %v2847
          %v3138 = vpack.c.bf16 %v2857, %v2853
          %v3139 = vpack.c.bf16 %v2859, %v2855
          %v3140 = vpack.c.bf16 %v2865, %v2861
          %v3141 = vpack.c.bf16 %v2867, %v2863
          %v3142 = vpack.c.bf16 %v2873, %v2869
          %v3143 = vpack.c.bf16 %v2875, %v2871
          %v3144 = vpack.c.bf16 %v2881, %v2877
          %v3145 = vpack.c.bf16 %v2883, %v2879
          %v3146 = vpack.c.bf16 %v2889, %v2885
          %v3147 = vpack.c.bf16 %v2891, %v2887
          %v3148 = vld [vmem:[#allocation3] sm:$0xff]
          %v3149 = vld [vmem:[#allocation3 + $0x8] sm:$0xff]
          %v3150 = vld [vmem:[#allocation3 + $0x10] sm:$0xff]
          %v3151 = vld [vmem:[#allocation3 + $0x18] sm:$0xff]
          %v3152 = vld [vmem:[#allocation3 + $0x20] sm:$0xff]
          %v3153 = vld [vmem:[#allocation3 + $0x28] sm:$0xff]
          %v3154 = vld [vmem:[#allocation3 + $0x30] sm:$0xff]
          %v3155 = vld [vmem:[#allocation3 + $0x38] sm:$0xff]
          %v3156 = vld [vmem:[#allocation3 + $0x40] sm:$0xff]
          %v3157 = vld [vmem:[#allocation3 + $0x48] sm:$0xff]
          %v3158 = vld [vmem:[#allocation3 + $0x50] sm:$0xff]
          %v3159 = vld [vmem:[#allocation3 + $0x58] sm:$0xff]
          %v3160 = vld [vmem:[#allocation3 + $0x60] sm:$0xff]
          %v3161 = vld [vmem:[#allocation3 + $0x68] sm:$0xff]
          %v3162 = vld [vmem:[#allocation3 + $0x70] sm:$0xff]
          %v3163 = vld [vmem:[#allocation3 + $0x78] sm:$0xff]
          %v3164 = vld [vmem:[#allocation3 + $0x80] sm:$0xff]
          %v3165 = vld [vmem:[#allocation3 + $0x88] sm:$0xff]
          %v3166 = vld [vmem:[#allocation3 + $0x90] sm:$0xff]
          %v3167 = vld [vmem:[#allocation3 + $0x98] sm:$0xff]
          %v3168 = vld [vmem:[#allocation3 + $0xa0] sm:$0xff]
          %v3169 = vld [vmem:[#allocation3 + $0xa8] sm:$0xff]
          %v3170 = vld [vmem:[#allocation3 + $0xb0] sm:$0xff]
          %v3171 = vld [vmem:[#allocation3 + $0xb8] sm:$0xff]
          %v3172 = vld [vmem:[#allocation3 + $0xc0] sm:$0xff]
          %v3173 = vld [vmem:[#allocation3 + $0xc8] sm:$0xff]
          %v3174 = vld [vmem:[#allocation3 + $0xd0] sm:$0xff]
          %v3175 = vld [vmem:[#allocation3 + $0xd8] sm:$0xff]
          %v3176 = vld [vmem:[#allocation3 + $0xe0] sm:$0xff]
          %v3177 = vld [vmem:[#allocation3 + $0xe8] sm:$0xff]
          %v3178 = vld [vmem:[#allocation3 + $0xf0] sm:$0xff]
          %v3179 = vld [vmem:[#allocation3 + $0xf8] sm:$0xff]
          %v3180 = vld [vmem:[#allocation3 + $0x100] sm:$0xff]
          %v3181 = vld [vmem:[#allocation3 + $0x108] sm:$0xff]
          %v3182 = vld [vmem:[#allocation3 + $0x110] sm:$0xff]
          %v3183 = vld [vmem:[#allocation3 + $0x118] sm:$0xff]
          %v3184 = vld [vmem:[#allocation3 + $0x120] sm:$0xff]
          %v3185 = vld [vmem:[#allocation3 + $0x128] sm:$0xff]
          %v3186 = vld [vmem:[#allocation3 + $0x130] sm:$0xff]
          %v3187 = vld [vmem:[#allocation3 + $0x138] sm:$0xff]
          %v3188 = vld [vmem:[#allocation3 + $0x140] sm:$0xff]
          %v3189 = vld [vmem:[#allocation3 + $0x148] sm:$0xff]
          %v3190 = vld [vmem:[#allocation3 + $0x150] sm:$0xff]
          %v3191 = vld [vmem:[#allocation3 + $0x158] sm:$0xff]
          %v3192 = vld [vmem:[#allocation3 + $0x160] sm:$0xff]
          %v3193 = vld [vmem:[#allocation3 + $0x168] sm:$0xff]
          %v3194 = vld [vmem:[#allocation3 + $0x170] sm:$0xff]
          %v3195 = vld [vmem:[#allocation3 + $0x178] sm:$0xff]
          %v3196 = vld [vmem:[#allocation3 + $0x180] sm:$0xff]
          %v3197 = vld [vmem:[#allocation3 + $0x188] sm:$0xff]
          %v3198 = vld [vmem:[#allocation3 + $0x190] sm:$0xff]
          %v3199 = vld [vmem:[#allocation3 + $0x198] sm:$0xff]
          %v3200 = vld [vmem:[#allocation3 + $0x1a0] sm:$0xff]
          %v3201 = vld [vmem:[#allocation3 + $0x1a8] sm:$0xff]
          %v3202 = vld [vmem:[#allocation3 + $0x1b0] sm:$0xff]
          %v3203 = vld [vmem:[#allocation3 + $0x1b8] sm:$0xff]
          %v3204 = vld [vmem:[#allocation3 + $0x1c0] sm:$0xff]
          %v3205 = vld [vmem:[#allocation3 + $0x1c8] sm:$0xff]
          %v3206 = vld [vmem:[#allocation3 + $0x1d0] sm:$0xff]
          %v3207 = vld [vmem:[#allocation3 + $0x1d8] sm:$0xff]
          %v3208 = vld [vmem:[#allocation3 + $0x1e0] sm:$0xff]
          %v3209 = vld [vmem:[#allocation3 + $0x1e8] sm:$0xff]
          %v3210 = vld [vmem:[#allocation3 + $0x1f0] sm:$0xff]
          %v3211 = vld [vmem:[#allocation3 + $0x1f8] sm:$0xff]
          %v3212 = vmul.f32 %v2061, %v3148
          %v3213 = vmul.f32 %v2063, %v3149
          %v3214 = vmul.f32 %v2065, %v3150
          %v3215 = vmul.f32 %v2067, %v3151
          %v3216 = vmul.f32 %v2069, %v3152
          %v3217 = vmul.f32 %v2071, %v3153
          %v3218 = vmul.f32 %v2073, %v3154
          %v3219 = vmul.f32 %v2075, %v3155
          %v3220 = vmul.f32 %v2077, %v3156
          %v3221 = vmul.f32 %v2079, %v3157
          %v3222 = vmul.f32 %v2081, %v3158
          %v3223 = vmul.f32 %v2083, %v3159
          %v3224 = vmul.f32 %v2085, %v3160
          %v3225 = vmul.f32 %v2087, %v3161
          %v3226 = vmul.f32 %v2089, %v3162
          %v3227 = vmul.f32 %v2091, %v3163
          %v3228 = vmul.f32 %v2093, %v3164
          %v3229 = vmul.f32 %v2095, %v3165
          %v3230 = vmul.f32 %v2097, %v3166
          %v3231 = vmul.f32 %v2099, %v3167
          %v3232 = vmul.f32 %v2101, %v3168
          %v3233 = vmul.f32 %v2103, %v3169
          %v3234 = vmul.f32 %v2105, %v3170
          %v3235 = vmul.f32 %v2107, %v3171
          %v3236 = vmul.f32 %v2109, %v3172
          %v3237 = vmul.f32 %v2111, %v3173
          %v3238 = vmul.f32 %v2113, %v3174
          %v3239 = vmul.f32 %v2115, %v3175
          %v3240 = vmul.f32 %v2117, %v3176
          %v3241 = vmul.f32 %v2119, %v3177
          %v3242 = vmul.f32 %v2121, %v3178
          %v3243 = vmul.f32 %v2123, %v3179
          %v3244 = vmul.f32 %v2125, %v3180
          %v3245 = vmul.f32 %v2127, %v3181
          %v3246 = vmul.f32 %v2129, %v3182
          %v3247 = vmul.f32 %v2131, %v3183
          %v3248 = vmul.f32 %v2133, %v3184
          %v3249 = vmul.f32 %v2135, %v3185
          %v3250 = vmul.f32 %v2137, %v3186
          %v3251 = vmul.f32 %v2139, %v3187
          %v3252 = vmul.f32 %v2141, %v3188
          %v3253 = vmul.f32 %v2143, %v3189
          %v3254 = vmul.f32 %v2145, %v3190
          %v3255 = vmul.f32 %v2147, %v3191
          %v3256 = vmul.f32 %v2149, %v3192
          %v3257 = vmul.f32 %v2151, %v3193
          %v3258 = vmul.f32 %v2153, %v3194
          %v3259 = vmul.f32 %v2155, %v3195
          %v3260 = vmul.f32 %v2157, %v3196
          %v3261 = vmul.f32 %v2159, %v3197
          %v3262 = vmul.f32 %v2161, %v3198
          %v3263 = vmul.f32 %v2163, %v3199
          %v3264 = vmul.f32 %v2165, %v3200
          %v3265 = vmul.f32 %v2167, %v3201
          %v3266 = vmul.f32 %v2169, %v3202
          %v3267 = vmul.f32 %v2171, %v3203
          %v3268 = vmul.f32 %v2173, %v3204
          %v3269 = vmul.f32 %v2175, %v3205
          %v3270 = vmul.f32 %v2177, %v3206
          %v3271 = vmul.f32 %v2179, %v3207
          %v3272 = vmul.f32 %v2181, %v3208
          %v3273 = vmul.f32 %v2183, %v3209
          %v3274 = vmul.f32 %v2185, %v3210
          %v3275 = vmul.f32 %v2187, %v3211
          %v3276 = vadd.f32 %v3212, %v2894
          %v3277 = vadd.f32 %v3213, %v2897
          %v3278 = vadd.f32 %v3214, %v2900
          %v3279 = vadd.f32 %v3215, %v2903
          %v3280 = vadd.f32 %v3216, %v2906
          %v3281 = vadd.f32 %v3217, %v2909
          %v3282 = vadd.f32 %v3218, %v2912
          %v3283 = vadd.f32 %v3219, %v2915
          %v3284 = vadd.f32 %v3220, %v2918
          %v3285 = vadd.f32 %v3221, %v2921
          %v3286 = vadd.f32 %v3222, %v2924
          %v3287 = vadd.f32 %v3223, %v2927
          %v3288 = vadd.f32 %v3224, %v2930
          %v3289 = vadd.f32 %v3225, %v2933
          %v3290 = vadd.f32 %v3226, %v2936
          %v3291 = vadd.f32 %v3227, %v2939
          %v3292 = vadd.f32 %v3228, %v2942
          %v3293 = vadd.f32 %v3229, %v2945
          %v3294 = vadd.f32 %v3230, %v2948
          %v3295 = vadd.f32 %v3231, %v2951
          %v3296 = vadd.f32 %v3232, %v2954
          %v3297 = vadd.f32 %v3233, %v2957
          %v3298 = vadd.f32 %v3234, %v2960
          %v3299 = vadd.f32 %v3235, %v2963
          %v3300 = vadd.f32 %v3236, %v2966
          %v3301 = vadd.f32 %v3237, %v2969
          %v3302 = vadd.f32 %v3238, %v2972
          %v3303 = vadd.f32 %v3239, %v2975
          %v3304 = vadd.f32 %v3240, %v2978
          %v3305 = vadd.f32 %v3241, %v2981
          %v3306 = vadd.f32 %v3242, %v2984
          %v3307 = vadd.f32 %v3243, %v2987
          %v3308 = vadd.f32 %v3244, %v2990
          %v3309 = vadd.f32 %v3245, %v2993
          %v3310 = vadd.f32 %v3246, %v2996
          %v3311 = vadd.f32 %v3247, %v2999
          %v3312 = vadd.f32 %v3248, %v3002
          %v3313 = vadd.f32 %v3249, %v3005
          %v3314 = vadd.f32 %v3250, %v3008
          %v3315 = vadd.f32 %v3251, %v3011
          %v3316 = vadd.f32 %v3252, %v3014
          %v3317 = vadd.f32 %v3253, %v3017
          %v3318 = vadd.f32 %v3254, %v3020
          %v3319 = vadd.f32 %v3255, %v3023
          %v3320 = vadd.f32 %v3256, %v3026
          %v3321 = vadd.f32 %v3257, %v3029
          %v3322 = vadd.f32 %v3258, %v3032
          %v3323 = vadd.f32 %v3259, %v3035
          %v3324 = vadd.f32 %v3260, %v3038
          %v3325 = vadd.f32 %v3261, %v3041
          %v3326 = vadd.f32 %v3262, %v3044
          %v3327 = vadd.f32 %v3263, %v3047
          %v3328 = vadd.f32 %v3264, %v3050
          %v3329 = vadd.f32 %v3265, %v3053
          %v3330 = vadd.f32 %v3266, %v3056
          %v3331 = vadd.f32 %v3267, %v3059
          %v3332 = vadd.f32 %v3268, %v3062
          %v3333 = vadd.f32 %v3269, %v3065
          %v3334 = vadd.f32 %v3270, %v3068
          %v3335 = vadd.f32 %v3271, %v3071
          %v3336 = vadd.f32 %v3272, %v3074
          %v3337 = vadd.f32 %v3273, %v3077
          %v3338 = vadd.f32 %v3274, %v3080
          %v3339 = vadd.f32 %v3275, %v3083
          %vm3340 = vcmask 7168
          %3341 = vst.msk [vmem:[#allocation3] sm:$0xff] %vm3340, %v3276
          %3342 = vst.msk [vmem:[#allocation3 + $0x8] sm:$0xff] %vm3340, %v3277
          %3343 = vst.msk [vmem:[#allocation3 + $0x10] sm:$0xff] %vm3340, %v3278
          %3344 = vst.msk [vmem:[#allocation3 + $0x18] sm:$0xff] %vm3340, %v3279
          %3345 = vst.msk [vmem:[#allocation3 + $0x20] sm:$0xff] %vm3340, %v3280
          %3346 = vst.msk [vmem:[#allocation3 + $0x28] sm:$0xff] %vm3340, %v3281
          %3347 = vst.msk [vmem:[#allocation3 + $0x30] sm:$0xff] %vm3340, %v3282
          %3348 = vst.msk [vmem:[#allocation3 + $0x38] sm:$0xff] %vm3340, %v3283
          %3349 = vst.msk [vmem:[#allocation3 + $0x40] sm:$0xff] %vm3340, %v3284
          %3350 = vst.msk [vmem:[#allocation3 + $0x48] sm:$0xff] %vm3340, %v3285
          %3351 = vst.msk [vmem:[#allocation3 + $0x50] sm:$0xff] %vm3340, %v3286
          %3352 = vst.msk [vmem:[#allocation3 + $0x58] sm:$0xff] %vm3340, %v3287
          %3353 = vst.msk [vmem:[#allocation3 + $0x60] sm:$0xff] %vm3340, %v3288
          %3354 = vst.msk [vmem:[#allocation3 + $0x68] sm:$0xff] %vm3340, %v3289
          %3355 = vst.msk [vmem:[#allocation3 + $0x70] sm:$0xff] %vm3340, %v3290
          %3356 = vst.msk [vmem:[#allocation3 + $0x78] sm:$0xff] %vm3340, %v3291
          %3357 = vst.msk [vmem:[#allocation3 + $0x80] sm:$0xff] %vm3340, %v3292
          %3358 = vst.msk [vmem:[#allocation3 + $0x88] sm:$0xff] %vm3340, %v3293
          %3359 = vst.msk [vmem:[#allocation3 + $0x90] sm:$0xff] %vm3340, %v3294
          %3360 = vst.msk [vmem:[#allocation3 + $0x98] sm:$0xff] %vm3340, %v3295
          %3361 = vst.msk [vmem:[#allocation3 + $0xa0] sm:$0xff] %vm3340, %v3296
          %3362 = vst.msk [vmem:[#allocation3 + $0xa8] sm:$0xff] %vm3340, %v3297
          %3363 = vst.msk [vmem:[#allocation3 + $0xb0] sm:$0xff] %vm3340, %v3298
          %3364 = vst.msk [vmem:[#allocation3 + $0xb8] sm:$0xff] %vm3340, %v3299
          %3365 = vst.msk [vmem:[#allocation3 + $0xc0] sm:$0xff] %vm3340, %v3300
          %3366 = vst.msk [vmem:[#allocation3 + $0xc8] sm:$0xff] %vm3340, %v3301
          %3367 = vst.msk [vmem:[#allocation3 + $0xd0] sm:$0xff] %vm3340, %v3302
          %3368 = vst.msk [vmem:[#allocation3 + $0xd8] sm:$0xff] %vm3340, %v3303
          %3369 = vst.msk [vmem:[#allocation3 + $0xe0] sm:$0xff] %vm3340, %v3304
          %3370 = vst.msk [vmem:[#allocation3 + $0xe8] sm:$0xff] %vm3340, %v3305
          %3371 = vst.msk [vmem:[#allocation3 + $0xf0] sm:$0xff] %vm3340, %v3306
          %3372 = vst.msk [vmem:[#allocation3 + $0xf8] sm:$0xff] %vm3340, %v3307
          %3373 = vst.msk [vmem:[#allocation3 + $0x100] sm:$0xff] %vm3340, %v3308
          %3374 = vst.msk [vmem:[#allocation3 + $0x108] sm:$0xff] %vm3340, %v3309
          %3375 = vst.msk [vmem:[#allocation3 + $0x110] sm:$0xff] %vm3340, %v3310
          %3376 = vst.msk [vmem:[#allocation3 + $0x118] sm:$0xff] %vm3340, %v3311
          %3377 = vst.msk [vmem:[#allocation3 + $0x120] sm:$0xff] %vm3340, %v3312
          %3378 = vst.msk [vmem:[#allocation3 + $0x128] sm:$0xff] %vm3340, %v3313
          %3379 = vst.msk [vmem:[#allocation3 + $0x130] sm:$0xff] %vm3340, %v3314
          %3380 = vst.msk [vmem:[#allocation3 + $0x138] sm:$0xff] %vm3340, %v3315
          %3381 = vst.msk [vmem:[#allocation3 + $0x140] sm:$0xff] %vm3340, %v3316
          %3382 = vst.msk [vmem:[#allocation3 + $0x148] sm:$0xff] %vm3340, %v3317
          %3383 = vst.msk [vmem:[#allocation3 + $0x150] sm:$0xff] %vm3340, %v3318
          %3384 = vst.msk [vmem:[#allocation3 + $0x158] sm:$0xff] %vm3340, %v3319
          %3385 = vst.msk [vmem:[#allocation3 + $0x160] sm:$0xff] %vm3340, %v3320
          %3386 = vst.msk [vmem:[#allocation3 + $0x168] sm:$0xff] %vm3340, %v3321
          %3387 = vst.msk [vmem:[#allocation3 + $0x170] sm:$0xff] %vm3340, %v3322
          %3388 = vst.msk [vmem:[#allocation3 + $0x178] sm:$0xff] %vm3340, %v3323
          %3389 = vst.msk [vmem:[#allocation3 + $0x180] sm:$0xff] %vm3340, %v3324
          %3390 = vst.msk [vmem:[#allocation3 + $0x188] sm:$0xff] %vm3340, %v3325
          %3391 = vst.msk [vmem:[#allocation3 + $0x190] sm:$0xff] %vm3340, %v3326
          %3392 = vst.msk [vmem:[#allocation3 + $0x198] sm:$0xff] %vm3340, %v3327
          %3393 = vst.msk [vmem:[#allocation3 + $0x1a0] sm:$0xff] %vm3340, %v3328
          %3394 = vst.msk [vmem:[#allocation3 + $0x1a8] sm:$0xff] %vm3340, %v3329
          %3395 = vst.msk [vmem:[#allocation3 + $0x1b0] sm:$0xff] %vm3340, %v3330
          %3396 = vst.msk [vmem:[#allocation3 + $0x1b8] sm:$0xff] %vm3340, %v3331
          %3397 = vst.msk [vmem:[#allocation3 + $0x1c0] sm:$0xff] %vm3340, %v3332
          %3398 = vst.msk [vmem:[#allocation3 + $0x1c8] sm:$0xff] %vm3340, %v3333
          %3399 = vst.msk [vmem:[#allocation3 + $0x1d0] sm:$0xff] %vm3340, %v3334
          %3400 = vst.msk [vmem:[#allocation3 + $0x1d8] sm:$0xff] %vm3340, %v3335
          %3401 = vst.msk [vmem:[#allocation3 + $0x1e0] sm:$0xff] %vm3340, %v3336
          %3402 = vst.msk [vmem:[#allocation3 + $0x1e8] sm:$0xff] %vm3340, %v3337
          %3403 = vst.msk [vmem:[#allocation3 + $0x1f0] sm:$0xff] %vm3340, %v3338
          %3404 = vst.msk [vmem:[#allocation3 + $0x1f8] sm:$0xff] %vm3340, %v3339
          %v3405 = vld [vmem:[#allocation4] sm:$0xff]
          %v3406 = vld [vmem:[#allocation4 + $0x8] sm:$0xff]
          %v3407 = vld [vmem:[#allocation4 + $0x10] sm:$0xff]
          %v3408 = vld [vmem:[#allocation4 + $0x18] sm:$0xff]
          %v3409 = vld [vmem:[#allocation4 + $0x20] sm:$0xff]
          %v3410 = vld [vmem:[#allocation4 + $0x28] sm:$0xff]
          %v3411 = vld [vmem:[#allocation4 + $0x30] sm:$0xff]
          %v3412 = vld [vmem:[#allocation4 + $0x38] sm:$0xff]
          %v3413 = vld [vmem:[#allocation4 + $0x40] sm:$0xff]
          %v3414 = vld [vmem:[#allocation4 + $0x48] sm:$0xff]
          %v3415 = vld [vmem:[#allocation4 + $0x50] sm:$0xff]
          %v3416 = vld [vmem:[#allocation4 + $0x58] sm:$0xff]
          %v3417 = vld [vmem:[#allocation4 + $0x60] sm:$0xff]
          %v3418 = vld [vmem:[#allocation4 + $0x68] sm:$0xff]
          %v3419 = vld [vmem:[#allocation4 + $0x70] sm:$0xff]
          %v3420 = vld [vmem:[#allocation4 + $0x78] sm:$0xff]
          %v3421 = vld [vmem:[#allocation4 + $0x80] sm:$0xff]
          %v3422 = vld [vmem:[#allocation4 + $0x88] sm:$0xff]
          %v3423 = vld [vmem:[#allocation4 + $0x90] sm:$0xff]
          %v3424 = vld [vmem:[#allocation4 + $0x98] sm:$0xff]
          %v3425 = vld [vmem:[#allocation4 + $0xa0] sm:$0xff]
          %v3426 = vld [vmem:[#allocation4 + $0xa8] sm:$0xff]
          %v3427 = vld [vmem:[#allocation4 + $0xb0] sm:$0xff]
          %v3428 = vld [vmem:[#allocation4 + $0xb8] sm:$0xff]
          %v3429 = vld [vmem:[#allocation4 + $0xc0] sm:$0xff]
          %v3430 = vld [vmem:[#allocation4 + $0xc8] sm:$0xff]
          %v3431 = vld [vmem:[#allocation4 + $0xd0] sm:$0xff]
          %v3432 = vld [vmem:[#allocation4 + $0xd8] sm:$0xff]
          %v3433 = vld [vmem:[#allocation4 + $0xe0] sm:$0xff]
          %v3434 = vld [vmem:[#allocation4 + $0xe8] sm:$0xff]
          %v3435 = vld [vmem:[#allocation4 + $0xf0] sm:$0xff]
          %v3436 = vld [vmem:[#allocation4 + $0xf8] sm:$0xff]
          %v3437 = vld [vmem:[#allocation4 + $0x100] sm:$0xff]
          %v3438 = vld [vmem:[#allocation4 + $0x108] sm:$0xff]
          %v3439 = vld [vmem:[#allocation4 + $0x110] sm:$0xff]
          %v3440 = vld [vmem:[#allocation4 + $0x118] sm:$0xff]
          %v3441 = vld [vmem:[#allocation4 + $0x120] sm:$0xff]
          %v3442 = vld [vmem:[#allocation4 + $0x128] sm:$0xff]
          %v3443 = vld [vmem:[#allocation4 + $0x130] sm:$0xff]
          %v3444 = vld [vmem:[#allocation4 + $0x138] sm:$0xff]
          %v3445 = vld [vmem:[#allocation4 + $0x140] sm:$0xff]
          %v3446 = vld [vmem:[#allocation4 + $0x148] sm:$0xff]
          %v3447 = vld [vmem:[#allocation4 + $0x150] sm:$0xff]
          %v3448 = vld [vmem:[#allocation4 + $0x158] sm:$0xff]
          %v3449 = vld [vmem:[#allocation4 + $0x160] sm:$0xff]
          %v3450 = vld [vmem:[#allocation4 + $0x168] sm:$0xff]
          %v3451 = vld [vmem:[#allocation4 + $0x170] sm:$0xff]
          %v3452 = vld [vmem:[#allocation4 + $0x178] sm:$0xff]
          %v3453 = vld [vmem:[#allocation4 + $0x180] sm:$0xff]
          %v3454 = vld [vmem:[#allocation4 + $0x188] sm:$0xff]
          %v3455 = vld [vmem:[#allocation4 + $0x190] sm:$0xff]
          %v3456 = vld [vmem:[#allocation4 + $0x198] sm:$0xff]
          %v3457 = vld [vmem:[#allocation4 + $0x1a0] sm:$0xff]
          %v3458 = vld [vmem:[#allocation4 + $0x1a8] sm:$0xff]
          %v3459 = vld [vmem:[#allocation4 + $0x1b0] sm:$0xff]
          %v3460 = vld [vmem:[#allocation4 + $0x1b8] sm:$0xff]
          %v3461 = vld [vmem:[#allocation4 + $0x1c0] sm:$0xff]
          %v3462 = vld [vmem:[#allocation4 + $0x1c8] sm:$0xff]
          %v3463 = vld [vmem:[#allocation4 + $0x1d0] sm:$0xff]
          %v3464 = vld [vmem:[#allocation4 + $0x1d8] sm:$0xff]
          %v3465 = vld [vmem:[#allocation4 + $0x1e0] sm:$0xff]
          %v3466 = vld [vmem:[#allocation4 + $0x1e8] sm:$0xff]
          %v3467 = vld [vmem:[#allocation4 + $0x1f0] sm:$0xff]
          %v3468 = vld [vmem:[#allocation4 + $0x1f8] sm:$0xff]
          %3470 = vset.pattern.permute.xlu0 0
          %3471 = vperm.xlu0 %3470, %v2061
          %v3472 = vpop.permute.xlu0 %3471
          %3475 = vset.pattern.permute.xlu0 0
          %3476 = vperm.xlu0 %3475, %v2063
          %v3477 = vpop.permute.xlu0 %3476
          %3480 = vset.pattern.permute.xlu0 0
          %3481 = vperm.xlu0 %3480, %v2065
          %v3482 = vpop.permute.xlu0 %3481
          %3485 = vset.pattern.permute.xlu0 0
          %3486 = vperm.xlu0 %3485, %v2067
          %v3487 = vpop.permute.xlu0 %3486
          %3490 = vset.pattern.permute.xlu0 0
          %3491 = vperm.xlu0 %3490, %v2069
          %v3492 = vpop.permute.xlu0 %3491
          %3495 = vset.pattern.permute.xlu0 0
          %3496 = vperm.xlu0 %3495, %v2071
          %v3497 = vpop.permute.xlu0 %3496
          %3500 = vset.pattern.permute.xlu0 0
          %3501 = vperm.xlu0 %3500, %v2073
          %v3502 = vpop.permute.xlu0 %3501
          %3505 = vset.pattern.permute.xlu0 0
          %3506 = vperm.xlu0 %3505, %v2075
          %v3507 = vpop.permute.xlu0 %3506
          %3510 = vset.pattern.permute.xlu0 0
          %3511 = vperm.xlu0 %3510, %v2077
          %v3512 = vpop.permute.xlu0 %3511
          %3515 = vset.pattern.permute.xlu0 0
          %3516 = vperm.xlu0 %3515, %v2079
          %v3517 = vpop.permute.xlu0 %3516
          %3520 = vset.pattern.permute.xlu0 0
          %3521 = vperm.xlu0 %3520, %v2081
          %v3522 = vpop.permute.xlu0 %3521
          %3525 = vset.pattern.permute.xlu0 0
          %3526 = vperm.xlu0 %3525, %v2083
          %v3527 = vpop.permute.xlu0 %3526
          %3530 = vset.pattern.permute.xlu0 0
          %3531 = vperm.xlu0 %3530, %v2085
          %v3532 = vpop.permute.xlu0 %3531
          %3535 = vset.pattern.permute.xlu0 0
          %3536 = vperm.xlu0 %3535, %v2087
          %v3537 = vpop.permute.xlu0 %3536
          %3540 = vset.pattern.permute.xlu0 0
          %3541 = vperm.xlu0 %3540, %v2089
          %v3542 = vpop.permute.xlu0 %3541
          %3545 = vset.pattern.permute.xlu0 0
          %3546 = vperm.xlu0 %3545, %v2091
          %v3547 = vpop.permute.xlu0 %3546
          %3550 = vset.pattern.permute.xlu0 0
          %3551 = vperm.xlu0 %3550, %v2093
          %v3552 = vpop.permute.xlu0 %3551
          %3555 = vset.pattern.permute.xlu0 0
          %3556 = vperm.xlu0 %3555, %v2095
          %v3557 = vpop.permute.xlu0 %3556
          %3560 = vset.pattern.permute.xlu0 0
          %3561 = vperm.xlu0 %3560, %v2097
          %v3562 = vpop.permute.xlu0 %3561
          %3565 = vset.pattern.permute.xlu0 0
          %3566 = vperm.xlu0 %3565, %v2099
          %v3567 = vpop.permute.xlu0 %3566
          %3570 = vset.pattern.permute.xlu0 0
          %3571 = vperm.xlu0 %3570, %v2101
          %v3572 = vpop.permute.xlu0 %3571
          %3575 = vset.pattern.permute.xlu0 0
          %3576 = vperm.xlu0 %3575, %v2103
          %v3577 = vpop.permute.xlu0 %3576
          %3580 = vset.pattern.permute.xlu0 0
          %3581 = vperm.xlu0 %3580, %v2105
          %v3582 = vpop.permute.xlu0 %3581
          %3585 = vset.pattern.permute.xlu0 0
          %3586 = vperm.xlu0 %3585, %v2107
          %v3587 = vpop.permute.xlu0 %3586
          %3590 = vset.pattern.permute.xlu0 0
          %3591 = vperm.xlu0 %3590, %v2109
          %v3592 = vpop.permute.xlu0 %3591
          %3595 = vset.pattern.permute.xlu0 0
          %3596 = vperm.xlu0 %3595, %v2111
          %v3597 = vpop.permute.xlu0 %3596
          %3600 = vset.pattern.permute.xlu0 0
          %3601 = vperm.xlu0 %3600, %v2113
          %v3602 = vpop.permute.xlu0 %3601
          %3605 = vset.pattern.permute.xlu0 0
          %3606 = vperm.xlu0 %3605, %v2115
          %v3607 = vpop.permute.xlu0 %3606
          %3610 = vset.pattern.permute.xlu0 0
          %3611 = vperm.xlu0 %3610, %v2117
          %v3612 = vpop.permute.xlu0 %3611
          %3615 = vset.pattern.permute.xlu0 0
          %3616 = vperm.xlu0 %3615, %v2119
          %v3617 = vpop.permute.xlu0 %3616
          %3620 = vset.pattern.permute.xlu0 0
          %3621 = vperm.xlu0 %3620, %v2121
          %v3622 = vpop.permute.xlu0 %3621
          %3625 = vset.pattern.permute.xlu0 0
          %3626 = vperm.xlu0 %3625, %v2123
          %v3627 = vpop.permute.xlu0 %3626
          %3630 = vset.pattern.permute.xlu0 0
          %3631 = vperm.xlu0 %3630, %v2125
          %v3632 = vpop.permute.xlu0 %3631
          %3635 = vset.pattern.permute.xlu0 0
          %3636 = vperm.xlu0 %3635, %v2127
          %v3637 = vpop.permute.xlu0 %3636
          %3640 = vset.pattern.permute.xlu0 0
          %3641 = vperm.xlu0 %3640, %v2129
          %v3642 = vpop.permute.xlu0 %3641
          %3645 = vset.pattern.permute.xlu0 0
          %3646 = vperm.xlu0 %3645, %v2131
          %v3647 = vpop.permute.xlu0 %3646
          %3650 = vset.pattern.permute.xlu0 0
          %3651 = vperm.xlu0 %3650, %v2133
          %v3652 = vpop.permute.xlu0 %3651
          %3655 = vset.pattern.permute.xlu0 0
          %3656 = vperm.xlu0 %3655, %v2135
          %v3657 = vpop.permute.xlu0 %3656
          %3660 = vset.pattern.permute.xlu0 0
          %3661 = vperm.xlu0 %3660, %v2137
          %v3662 = vpop.permute.xlu0 %3661
          %3665 = vset.pattern.permute.xlu0 0
          %3666 = vperm.xlu0 %3665, %v2139
          %v3667 = vpop.permute.xlu0 %3666
          %3670 = vset.pattern.permute.xlu0 0
          %3671 = vperm.xlu0 %3670, %v2141
          %v3672 = vpop.permute.xlu0 %3671
          %3675 = vset.pattern.permute.xlu0 0
          %3676 = vperm.xlu0 %3675, %v2143
          %v3677 = vpop.permute.xlu0 %3676
          %3680 = vset.pattern.permute.xlu0 0
          %3681 = vperm.xlu0 %3680, %v2145
          %v3682 = vpop.permute.xlu0 %3681
          %3685 = vset.pattern.permute.xlu0 0
          %3686 = vperm.xlu0 %3685, %v2147
          %v3687 = vpop.permute.xlu0 %3686
          %3690 = vset.pattern.permute.xlu0 0
          %3691 = vperm.xlu0 %3690, %v2149
          %v3692 = vpop.permute.xlu0 %3691
          %3695 = vset.pattern.permute.xlu0 0
          %3696 = vperm.xlu0 %3695, %v2151
          %v3697 = vpop.permute.xlu0 %3696
          %3700 = vset.pattern.permute.xlu0 0
          %3701 = vperm.xlu0 %3700, %v2153
          %v3702 = vpop.permute.xlu0 %3701
          %3705 = vset.pattern.permute.xlu0 0
          %3706 = vperm.xlu0 %3705, %v2155
          %v3707 = vpop.permute.xlu0 %3706
          %3710 = vset.pattern.permute.xlu0 0
          %3711 = vperm.xlu0 %3710, %v2157
          %v3712 = vpop.permute.xlu0 %3711
          %3715 = vset.pattern.permute.xlu0 0
          %3716 = vperm.xlu0 %3715, %v2159
          %v3717 = vpop.permute.xlu0 %3716
          %3720 = vset.pattern.permute.xlu0 0
          %3721 = vperm.xlu0 %3720, %v2161
          %v3722 = vpop.permute.xlu0 %3721
          %3725 = vset.pattern.permute.xlu0 0
          %3726 = vperm.xlu0 %3725, %v2163
          %v3727 = vpop.permute.xlu0 %3726
          %3730 = vset.pattern.permute.xlu0 0
          %3731 = vperm.xlu0 %3730, %v2165
          %v3732 = vpop.permute.xlu0 %3731
          %3735 = vset.pattern.permute.xlu0 0
          %3736 = vperm.xlu0 %3735, %v2167
          %v3737 = vpop.permute.xlu0 %3736
          %3740 = vset.pattern.permute.xlu0 0
          %3741 = vperm.xlu0 %3740, %v2169
          %v3742 = vpop.permute.xlu0 %3741
          %3745 = vset.pattern.permute.xlu0 0
          %3746 = vperm.xlu0 %3745, %v2171
          %v3747 = vpop.permute.xlu0 %3746
          %3750 = vset.pattern.permute.xlu0 0
          %3751 = vperm.xlu0 %3750, %v2173
          %v3752 = vpop.permute.xlu0 %3751
          %3755 = vset.pattern.permute.xlu0 0
          %3756 = vperm.xlu0 %3755, %v2175
          %v3757 = vpop.permute.xlu0 %3756
          %3760 = vset.pattern.permute.xlu0 0
          %3761 = vperm.xlu0 %3760, %v2177
          %v3762 = vpop.permute.xlu0 %3761
          %3765 = vset.pattern.permute.xlu0 0
          %3766 = vperm.xlu0 %3765, %v2179
          %v3767 = vpop.permute.xlu0 %3766
          %3770 = vset.pattern.permute.xlu0 0
          %3771 = vperm.xlu0 %3770, %v2181
          %v3772 = vpop.permute.xlu0 %3771
          %3775 = vset.pattern.permute.xlu0 0
          %3776 = vperm.xlu0 %3775, %v2183
          %v3777 = vpop.permute.xlu0 %3776
          %3780 = vset.pattern.permute.xlu0 0
          %3781 = vperm.xlu0 %3780, %v2185
          %v3782 = vpop.permute.xlu0 %3781
          %3785 = vset.pattern.permute.xlu0 0
          %3786 = vperm.xlu0 %3785, %v2187
          %v3787 = vpop.permute.xlu0 %3786
          %v3789 = vmul.f32 %v3472, %v3405
          %v3790 = vmul.f32 %v3477, %v3406
          %v3791 = vmul.f32 %v3482, %v3407
          %v3792 = vmul.f32 %v3487, %v3408
          %v3793 = vmul.f32 %v3492, %v3409
          %v3794 = vmul.f32 %v3497, %v3410
          %v3795 = vmul.f32 %v3502, %v3411
          %v3796 = vmul.f32 %v3507, %v3412
          %v3797 = vmul.f32 %v3512, %v3413
          %v3798 = vmul.f32 %v3517, %v3414
          %v3799 = vmul.f32 %v3522, %v3415
          %v3800 = vmul.f32 %v3527, %v3416
          %v3801 = vmul.f32 %v3532, %v3417
          %v3802 = vmul.f32 %v3537, %v3418
          %v3803 = vmul.f32 %v3542, %v3419
          %v3804 = vmul.f32 %v3547, %v3420
          %v3805 = vmul.f32 %v3552, %v3421
          %v3806 = vmul.f32 %v3557, %v3422
          %v3807 = vmul.f32 %v3562, %v3423
          %v3808 = vmul.f32 %v3567, %v3424
          %v3809 = vmul.f32 %v3572, %v3425
          %v3810 = vmul.f32 %v3577, %v3426
          %v3811 = vmul.f32 %v3582, %v3427
          %v3812 = vmul.f32 %v3587, %v3428
          %v3813 = vmul.f32 %v3592, %v3429
          %v3814 = vmul.f32 %v3597, %v3430
          %v3815 = vmul.f32 %v3602, %v3431
          %v3816 = vmul.f32 %v3607, %v3432
          %v3817 = vmul.f32 %v3612, %v3433
          %v3818 = vmul.f32 %v3617, %v3434
          %v3819 = vmul.f32 %v3622, %v3435
          %v3820 = vmul.f32 %v3627, %v3436
          %v3821 = vmul.f32 %v3632, %v3437
          %v3822 = vmul.f32 %v3637, %v3438
          %v3823 = vmul.f32 %v3642, %v3439
          %v3824 = vmul.f32 %v3647, %v3440
          %v3825 = vmul.f32 %v3652, %v3441
          %v3826 = vmul.f32 %v3657, %v3442
          %v3827 = vmul.f32 %v3662, %v3443
          %v3828 = vmul.f32 %v3667, %v3444
          %v3829 = vmul.f32 %v3672, %v3445
          %v3830 = vmul.f32 %v3677, %v3446
          %v3831 = vmul.f32 %v3682, %v3447
          %v3832 = vmul.f32 %v3687, %v3448
          %v3833 = vmul.f32 %v3692, %v3449
          %v3834 = vmul.f32 %v3697, %v3450
          %v3835 = vmul.f32 %v3702, %v3451
          %v3836 = vmul.f32 %v3707, %v3452
          %v3837 = vmul.f32 %v3712, %v3453
          %v3838 = vmul.f32 %v3717, %v3454
          %v3839 = vmul.f32 %v3722, %v3455
          %v3840 = vmul.f32 %v3727, %v3456
          %v3841 = vmul.f32 %v3732, %v3457
          %v3842 = vmul.f32 %v3737, %v3458
          %v3843 = vmul.f32 %v3742, %v3459
          %v3844 = vmul.f32 %v3747, %v3460
          %v3845 = vmul.f32 %v3752, %v3461
          %v3846 = vmul.f32 %v3757, %v3462
          %v3847 = vmul.f32 %v3762, %v3463
          %v3848 = vmul.f32 %v3767, %v3464
          %v3849 = vmul.f32 %v3772, %v3465
          %v3850 = vmul.f32 %v3777, %v3466
          %v3851 = vmul.f32 %v3782, %v3467
          %v3852 = vmul.f32 %v3787, %v3468
          %v3885 = vunpack.c.l.b16 %v954
          %v3886 = vunpack.c.l.b16 %v955
          %v3887 = vunpack.c.l.b16 %v956
          %v3888 = vunpack.c.l.b16 %v957
          %v3889 = vunpack.c.l.b16 %v958
          %v3890 = vunpack.c.l.b16 %v959
          %v3891 = vunpack.c.l.b16 %v960
          %v3892 = vunpack.c.l.b16 %v961
          %v3893 = vunpack.c.l.b16 %v962
          %v3894 = vunpack.c.l.b16 %v963
          %v3895 = vunpack.c.l.b16 %v964
          %v3896 = vunpack.c.l.b16 %v965
          %v3897 = vunpack.c.l.b16 %v966
          %v3898 = vunpack.c.l.b16 %v967
          %v3899 = vunpack.c.l.b16 %v968
          %v3900 = vunpack.c.l.b16 %v969
          %v3901 = vunpack.c.l.b16 %v970
          %v3902 = vunpack.c.l.b16 %v971
          %v3903 = vunpack.c.l.b16 %v972
          %v3904 = vunpack.c.l.b16 %v973
          %v3905 = vunpack.c.l.b16 %v974
          %v3906 = vunpack.c.l.b16 %v975
          %v3907 = vunpack.c.l.b16 %v976
          %v3908 = vunpack.c.l.b16 %v977
          %v3909 = vunpack.c.l.b16 %v978
          %v3910 = vunpack.c.l.b16 %v979
          %v3911 = vunpack.c.l.b16 %v980
          %v3912 = vunpack.c.l.b16 %v981
          %v3913 = vunpack.c.l.b16 %v982
          %v3914 = vunpack.c.l.b16 %v983
          %v3915 = vunpack.c.l.b16 %v984
          %v3916 = vunpack.c.l.b16 %v985
          %v3917 = vpack.c.b16 %v3886, %v3885
          %v3918 = vpack.c.b16 %v3888, %v3887
          %v3919 = vpack.c.b16 %v3890, %v3889
          %v3920 = vpack.c.b16 %v3892, %v3891
          %v3921 = vpack.c.b16 %v3894, %v3893
          %v3922 = vpack.c.b16 %v3896, %v3895
          %v3923 = vpack.c.b16 %v3898, %v3897
          %v3924 = vpack.c.b16 %v3900, %v3899
          %v3925 = vpack.c.b16 %v3902, %v3901
          %v3926 = vpack.c.b16 %v3904, %v3903
          %v3927 = vpack.c.b16 %v3906, %v3905
          %v3928 = vpack.c.b16 %v3908, %v3907
          %v3929 = vpack.c.b16 %v3910, %v3909
          %v3930 = vpack.c.b16 %v3912, %v3911
          %v3931 = vpack.c.b16 %v3914, %v3913
          %v3932 = vpack.c.b16 %v3916, %v3915
          %3949 = vmatpush.bf16.msra.mxu0 %v3924
          %3950 = vmatpush.bf16.msra.mxu0 %v3923
          %3951 = vmatpush.bf16.msra.mxu0 %v3922
          %3952 = vmatpush.bf16.msra.mxu0 %v3921
          %3953 = vmatpush.bf16.msra.mxu0 %v3920
          %3954 = vmatpush.bf16.msra.mxu0 %v3919
          %3955 = vmatpush.bf16.msra.mxu0 %v3918
          %3956 = vmatpush.bf16.msra.mxu0 %v3917
          %3957 = vmatmul.bf16.gmra.mxu0 %v3084
          %v3958 = vpop.f32.mrf.mxu0
          %v3959 = vadd.f32 0.0, %v3958
          %v3960 = vpop.f32.mrf.mxu0
          %v3961 = vadd.f32 0.0, %v3960
          %3962 = vmatmul.bf16.gmra.mxu0 %v3086
          %v3963 = vpop.f32.mrf.mxu0
          %v3964 = vadd.f32 0.0, %v3963
          %v3965 = vpop.f32.mrf.mxu0
          %v3966 = vadd.f32 0.0, %v3965
          %3967 = vmatmul.bf16.gmra.mxu0 %v3088
          %v3968 = vpop.f32.mrf.mxu0
          %v3969 = vadd.f32 0.0, %v3968
          %v3970 = vpop.f32.mrf.mxu0
          %v3971 = vadd.f32 0.0, %v3970
          %3972 = vmatmul.bf16.gmra.mxu0 %v3090
          %v3973 = vpop.f32.mrf.mxu0
          %v3974 = vadd.f32 0.0, %v3973
          %v3975 = vpop.f32.mrf.mxu0
          %v3976 = vadd.f32 0.0, %v3975
          %3977 = vmatmul.bf16.gmra.mxu0 %v3092
          %v3978 = vpop.f32.mrf.mxu0
          %v3979 = vadd.f32 0.0, %v3978
          %v3980 = vpop.f32.mrf.mxu0
          %v3981 = vadd.f32 0.0, %v3980
          %3982 = vmatmul.bf16.gmra.mxu0 %v3094
          %v3983 = vpop.f32.mrf.mxu0
          %v3984 = vadd.f32 0.0, %v3983
          %v3985 = vpop.f32.mrf.mxu0
          %v3986 = vadd.f32 0.0, %v3985
          %3987 = vmatmul.bf16.gmra.mxu0 %v3096
          %v3988 = vpop.f32.mrf.mxu0
          %v3989 = vadd.f32 0.0, %v3988
          %v3990 = vpop.f32.mrf.mxu0
          %v3991 = vadd.f32 0.0, %v3990
          %3992 = vmatmul.bf16.gmra.mxu0 %v3098
          %v3993 = vpop.f32.mrf.mxu0
          %v3994 = vadd.f32 0.0, %v3993
          %v3995 = vpop.f32.mrf.mxu0
          %v3996 = vadd.f32 0.0, %v3995
          %3997 = vmatmul.bf16.gmra.mxu0 %v3100
          %v3998 = vpop.f32.mrf.mxu0
          %v3999 = vadd.f32 0.0, %v3998
          %v4000 = vpop.f32.mrf.mxu0
          %v4001 = vadd.f32 0.0, %v4000
          %4002 = vmatmul.bf16.gmra.mxu0 %v3102
          %v4003 = vpop.f32.mrf.mxu0
          %v4004 = vadd.f32 0.0, %v4003
          %v4005 = vpop.f32.mrf.mxu0
          %v4006 = vadd.f32 0.0, %v4005
          %4007 = vmatmul.bf16.gmra.mxu0 %v3104
          %v4008 = vpop.f32.mrf.mxu0
          %v4009 = vadd.f32 0.0, %v4008
          %v4010 = vpop.f32.mrf.mxu0
          %v4011 = vadd.f32 0.0, %v4010
          %4012 = vmatmul.bf16.gmra.mxu0 %v3106
          %v4013 = vpop.f32.mrf.mxu0
          %v4014 = vadd.f32 0.0, %v4013
          %v4015 = vpop.f32.mrf.mxu0
          %v4016 = vadd.f32 0.0, %v4015
          %4017 = vmatmul.bf16.gmra.mxu0 %v3108
          %v4018 = vpop.f32.mrf.mxu0
          %v4019 = vadd.f32 0.0, %v4018
          %v4020 = vpop.f32.mrf.mxu0
          %v4021 = vadd.f32 0.0, %v4020
          %4022 = vmatmul.bf16.gmra.mxu0 %v3110
          %v4023 = vpop.f32.mrf.mxu0
          %v4024 = vadd.f32 0.0, %v4023
          %v4025 = vpop.f32.mrf.mxu0
          %v4026 = vadd.f32 0.0, %v4025
          %4027 = vmatmul.bf16.gmra.mxu0 %v3112
          %v4028 = vpop.f32.mrf.mxu0
          %v4029 = vadd.f32 0.0, %v4028
          %v4030 = vpop.f32.mrf.mxu0
          %v4031 = vadd.f32 0.0, %v4030
          %4032 = vmatmul.bf16.gmra.mxu0 %v3114
          %v4033 = vpop.f32.mrf.mxu0
          %v4034 = vadd.f32 0.0, %v4033
          %v4035 = vpop.f32.mrf.mxu0
          %v4036 = vadd.f32 0.0, %v4035
          %4037 = vmatmul.bf16.gmra.mxu0 %v3116
          %v4038 = vpop.f32.mrf.mxu0
          %v4039 = vadd.f32 0.0, %v4038
          %v4040 = vpop.f32.mrf.mxu0
          %v4041 = vadd.f32 0.0, %v4040
          %4042 = vmatmul.bf16.gmra.mxu0 %v3118
          %v4043 = vpop.f32.mrf.mxu0
          %v4044 = vadd.f32 0.0, %v4043
          %v4045 = vpop.f32.mrf.mxu0
          %v4046 = vadd.f32 0.0, %v4045
          %4047 = vmatmul.bf16.gmra.mxu0 %v3120
          %v4048 = vpop.f32.mrf.mxu0
          %v4049 = vadd.f32 0.0, %v4048
          %v4050 = vpop.f32.mrf.mxu0
          %v4051 = vadd.f32 0.0, %v4050
          %4052 = vmatmul.bf16.gmra.mxu0 %v3122
          %v4053 = vpop.f32.mrf.mxu0
          %v4054 = vadd.f32 0.0, %v4053
          %v4055 = vpop.f32.mrf.mxu0
          %v4056 = vadd.f32 0.0, %v4055
          %4057 = vmatmul.bf16.gmra.mxu0 %v3124
          %v4058 = vpop.f32.mrf.mxu0
          %v4059 = vadd.f32 0.0, %v4058
          %v4060 = vpop.f32.mrf.mxu0
          %v4061 = vadd.f32 0.0, %v4060
          %4062 = vmatmul.bf16.gmra.mxu0 %v3126
          %v4063 = vpop.f32.mrf.mxu0
          %v4064 = vadd.f32 0.0, %v4063
          %v4065 = vpop.f32.mrf.mxu0
          %v4066 = vadd.f32 0.0, %v4065
          %4067 = vmatmul.bf16.gmra.mxu0 %v3128
          %v4068 = vpop.f32.mrf.mxu0
          %v4069 = vadd.f32 0.0, %v4068
          %v4070 = vpop.f32.mrf.mxu0
          %v4071 = vadd.f32 0.0, %v4070
          %4072 = vmatmul.bf16.gmra.mxu0 %v3130
          %v4073 = vpop.f32.mrf.mxu0
          %v4074 = vadd.f32 0.0, %v4073
          %v4075 = vpop.f32.mrf.mxu0
          %v4076 = vadd.f32 0.0, %v4075
          %4077 = vmatmul.bf16.gmra.mxu0 %v3132
          %v4078 = vpop.f32.mrf.mxu0
          %v4079 = vadd.f32 0.0, %v4078
          %v4080 = vpop.f32.mrf.mxu0
          %v4081 = vadd.f32 0.0, %v4080
          %4082 = vmatmul.bf16.gmra.mxu0 %v3134
          %v4083 = vpop.f32.mrf.mxu0
          %v4084 = vadd.f32 0.0, %v4083
          %v4085 = vpop.f32.mrf.mxu0
          %v4086 = vadd.f32 0.0, %v4085
          %4087 = vmatmul.bf16.gmra.mxu0 %v3136
          %v4088 = vpop.f32.mrf.mxu0
          %v4089 = vadd.f32 0.0, %v4088
          %v4090 = vpop.f32.mrf.mxu0
          %v4091 = vadd.f32 0.0, %v4090
          %4092 = vmatmul.bf16.gmra.mxu0 %v3138
          %v4093 = vpop.f32.mrf.mxu0
          %v4094 = vadd.f32 0.0, %v4093
          %v4095 = vpop.f32.mrf.mxu0
          %v4096 = vadd.f32 0.0, %v4095
          %4097 = vmatmul.bf16.gmra.mxu0 %v3140
          %v4098 = vpop.f32.mrf.mxu0
          %v4099 = vadd.f32 0.0, %v4098
          %v4100 = vpop.f32.mrf.mxu0
          %v4101 = vadd.f32 0.0, %v4100
          %4102 = vmatmul.bf16.gmra.mxu0 %v3142
          %v4103 = vpop.f32.mrf.mxu0
          %v4104 = vadd.f32 0.0, %v4103
          %v4105 = vpop.f32.mrf.mxu0
          %v4106 = vadd.f32 0.0, %v4105
          %4107 = vmatmul.bf16.gmra.mxu0 %v3144
          %v4108 = vpop.f32.mrf.mxu0
          %v4109 = vadd.f32 0.0, %v4108
          %v4110 = vpop.f32.mrf.mxu0
          %v4111 = vadd.f32 0.0, %v4110
          %4112 = vmatmul.bf16.gmra.mxu0 %v3146
          %v4113 = vpop.f32.mrf.mxu0
          %v4114 = vadd.f32 0.0, %v4113
          %v4115 = vpop.f32.mrf.mxu0
          %v4116 = vadd.f32 0.0, %v4115
          %4117 = vdwg.mxu0
          %4118 = vmatpush.bf16.msra.mxu0 %v3932
          %4119 = vmatpush.bf16.msra.mxu0 %v3931
          %4120 = vmatpush.bf16.msra.mxu0 %v3930
          %4121 = vmatpush.bf16.msra.mxu0 %v3929
          %4122 = vmatpush.bf16.msra.mxu0 %v3928
          %4123 = vmatpush.bf16.msra.mxu0 %v3927
          %4124 = vmatpush.bf16.msra.mxu0 %v3926
          %4125 = vmatpush.bf16.msra.mxu0 %v3925
          %4126 = vmatmul.bf16.gmra.mxu0 %v3085
          %v4127 = vpop.f32.mrf.mxu0
          %v4128 = vadd.f32 %v3959, %v4127
          %v4129 = vpop.f32.mrf.mxu0
          %v4130 = vadd.f32 %v3961, %v4129
          %4131 = vmatmul.bf16.gmra.mxu0 %v3087
          %v4132 = vpop.f32.mrf.mxu0
          %v4133 = vadd.f32 %v3964, %v4132
          %v4134 = vpop.f32.mrf.mxu0
          %v4135 = vadd.f32 %v3966, %v4134
          %4136 = vmatmul.bf16.gmra.mxu0 %v3089
          %v4137 = vpop.f32.mrf.mxu0
          %v4138 = vadd.f32 %v3969, %v4137
          %v4139 = vpop.f32.mrf.mxu0
          %v4140 = vadd.f32 %v3971, %v4139
          %4141 = vmatmul.bf16.gmra.mxu0 %v3091
          %v4142 = vpop.f32.mrf.mxu0
          %v4143 = vadd.f32 %v3974, %v4142
          %v4144 = vpop.f32.mrf.mxu0
          %v4145 = vadd.f32 %v3976, %v4144
          %4146 = vmatmul.bf16.gmra.mxu0 %v3093
          %v4147 = vpop.f32.mrf.mxu0
          %v4148 = vadd.f32 %v3979, %v4147
          %v4149 = vpop.f32.mrf.mxu0
          %v4150 = vadd.f32 %v3981, %v4149
          %4151 = vmatmul.bf16.gmra.mxu0 %v3095
          %v4152 = vpop.f32.mrf.mxu0
          %v4153 = vadd.f32 %v3984, %v4152
          %v4154 = vpop.f32.mrf.mxu0
          %v4155 = vadd.f32 %v3986, %v4154
          %4156 = vmatmul.bf16.gmra.mxu0 %v3097
          %v4157 = vpop.f32.mrf.mxu0
          %v4158 = vadd.f32 %v3989, %v4157
          %v4159 = vpop.f32.mrf.mxu0
          %v4160 = vadd.f32 %v3991, %v4159
          %4161 = vmatmul.bf16.gmra.mxu0 %v3099
          %v4162 = vpop.f32.mrf.mxu0
          %v4163 = vadd.f32 %v3994, %v4162
          %v4164 = vpop.f32.mrf.mxu0
          %v4165 = vadd.f32 %v3996, %v4164
          %4166 = vmatmul.bf16.gmra.mxu0 %v3101
          %v4167 = vpop.f32.mrf.mxu0
          %v4168 = vadd.f32 %v3999, %v4167
          %v4169 = vpop.f32.mrf.mxu0
          %v4170 = vadd.f32 %v4001, %v4169
          %4171 = vmatmul.bf16.gmra.mxu0 %v3103
          %v4172 = vpop.f32.mrf.mxu0
          %v4173 = vadd.f32 %v4004, %v4172
          %v4174 = vpop.f32.mrf.mxu0
          %v4175 = vadd.f32 %v4006, %v4174
          %4176 = vmatmul.bf16.gmra.mxu0 %v3105
          %v4177 = vpop.f32.mrf.mxu0
          %v4178 = vadd.f32 %v4009, %v4177
          %v4179 = vpop.f32.mrf.mxu0
          %v4180 = vadd.f32 %v4011, %v4179
          %4181 = vmatmul.bf16.gmra.mxu0 %v3107
          %v4182 = vpop.f32.mrf.mxu0
          %v4183 = vadd.f32 %v4014, %v4182
          %v4184 = vpop.f32.mrf.mxu0
          %v4185 = vadd.f32 %v4016, %v4184
          %4186 = vmatmul.bf16.gmra.mxu0 %v3109
          %v4187 = vpop.f32.mrf.mxu0
          %v4188 = vadd.f32 %v4019, %v4187
          %v4189 = vpop.f32.mrf.mxu0
          %v4190 = vadd.f32 %v4021, %v4189
          %4191 = vmatmul.bf16.gmra.mxu0 %v3111
          %v4192 = vpop.f32.mrf.mxu0
          %v4193 = vadd.f32 %v4024, %v4192
          %v4194 = vpop.f32.mrf.mxu0
          %v4195 = vadd.f32 %v4026, %v4194
          %4196 = vmatmul.bf16.gmra.mxu0 %v3113
          %v4197 = vpop.f32.mrf.mxu0
          %v4198 = vadd.f32 %v4029, %v4197
          %v4199 = vpop.f32.mrf.mxu0
          %v4200 = vadd.f32 %v4031, %v4199
          %4201 = vmatmul.bf16.gmra.mxu0 %v3115
          %v4202 = vpop.f32.mrf.mxu0
          %v4203 = vadd.f32 %v4034, %v4202
          %v4204 = vpop.f32.mrf.mxu0
          %v4205 = vadd.f32 %v4036, %v4204
          %4206 = vmatmul.bf16.gmra.mxu0 %v3117
          %v4207 = vpop.f32.mrf.mxu0
          %v4208 = vadd.f32 %v4039, %v4207
          %v4209 = vpop.f32.mrf.mxu0
          %v4210 = vadd.f32 %v4041, %v4209
          %4211 = vmatmul.bf16.gmra.mxu0 %v3119
          %v4212 = vpop.f32.mrf.mxu0
          %v4213 = vadd.f32 %v4044, %v4212
          %v4214 = vpop.f32.mrf.mxu0
          %v4215 = vadd.f32 %v4046, %v4214
          %4216 = vmatmul.bf16.gmra.mxu0 %v3121
          %v4217 = vpop.f32.mrf.mxu0
          %v4218 = vadd.f32 %v4049, %v4217
          %v4219 = vpop.f32.mrf.mxu0
          %v4220 = vadd.f32 %v4051, %v4219
          %4221 = vmatmul.bf16.gmra.mxu0 %v3123
          %v4222 = vpop.f32.mrf.mxu0
          %v4223 = vadd.f32 %v4054, %v4222
          %v4224 = vpop.f32.mrf.mxu0
          %v4225 = vadd.f32 %v4056, %v4224
          %4226 = vmatmul.bf16.gmra.mxu0 %v3125
          %v4227 = vpop.f32.mrf.mxu0
          %v4228 = vadd.f32 %v4059, %v4227
          %v4229 = vpop.f32.mrf.mxu0
          %v4230 = vadd.f32 %v4061, %v4229
          %4231 = vmatmul.bf16.gmra.mxu0 %v3127
          %v4232 = vpop.f32.mrf.mxu0
          %v4233 = vadd.f32 %v4064, %v4232
          %v4234 = vpop.f32.mrf.mxu0
          %v4235 = vadd.f32 %v4066, %v4234
          %4236 = vmatmul.bf16.gmra.mxu0 %v3129
          %v4237 = vpop.f32.mrf.mxu0
          %v4238 = vadd.f32 %v4069, %v4237
          %v4239 = vpop.f32.mrf.mxu0
          %v4240 = vadd.f32 %v4071, %v4239
          %4241 = vmatmul.bf16.gmra.mxu0 %v3131
          %v4242 = vpop.f32.mrf.mxu0
          %v4243 = vadd.f32 %v4074, %v4242
          %v4244 = vpop.f32.mrf.mxu0
          %v4245 = vadd.f32 %v4076, %v4244
          %4246 = vmatmul.bf16.gmra.mxu0 %v3133
          %v4247 = vpop.f32.mrf.mxu0
          %v4248 = vadd.f32 %v4079, %v4247
          %v4249 = vpop.f32.mrf.mxu0
          %v4250 = vadd.f32 %v4081, %v4249
          %4251 = vmatmul.bf16.gmra.mxu0 %v3135
          %v4252 = vpop.f32.mrf.mxu0
          %v4253 = vadd.f32 %v4084, %v4252
          %v4254 = vpop.f32.mrf.mxu0
          %v4255 = vadd.f32 %v4086, %v4254
          %4256 = vmatmul.bf16.gmra.mxu0 %v3137
          %v4257 = vpop.f32.mrf.mxu0
          %v4258 = vadd.f32 %v4089, %v4257
          %v4259 = vpop.f32.mrf.mxu0
          %v4260 = vadd.f32 %v4091, %v4259
          %4261 = vmatmul.bf16.gmra.mxu0 %v3139
          %v4262 = vpop.f32.mrf.mxu0
          %v4263 = vadd.f32 %v4094, %v4262
          %v4264 = vpop.f32.mrf.mxu0
          %v4265 = vadd.f32 %v4096, %v4264
          %4266 = vmatmul.bf16.gmra.mxu0 %v3141
          %v4267 = vpop.f32.mrf.mxu0
          %v4268 = vadd.f32 %v4099, %v4267
          %v4269 = vpop.f32.mrf.mxu0
          %v4270 = vadd.f32 %v4101, %v4269
          %4271 = vmatmul.bf16.gmra.mxu0 %v3143
          %v4272 = vpop.f32.mrf.mxu0
          %v4273 = vadd.f32 %v4104, %v4272
          %v4274 = vpop.f32.mrf.mxu0
          %v4275 = vadd.f32 %v4106, %v4274
          %4276 = vmatmul.bf16.gmra.mxu0 %v3145
          %v4277 = vpop.f32.mrf.mxu0
          %v4278 = vadd.f32 %v4109, %v4277
          %v4279 = vpop.f32.mrf.mxu0
          %v4280 = vadd.f32 %v4111, %v4279
          %4281 = vmatmul.bf16.gmra.mxu0 %v3147
          %v4282 = vpop.f32.mrf.mxu0
          %v4283 = vadd.f32 %v4114, %v4282
          %v4284 = vpop.f32.mrf.mxu0
          %v4285 = vadd.f32 %v4116, %v4284
          %4286 = vdwg.mxu0
          %v4287 = vadd.f32 %v3789, %v4128
          %v4288 = vadd.f32 %v3790, %v4130
          %v4289 = vadd.f32 %v3791, %v4133
          %v4290 = vadd.f32 %v3792, %v4135
          %v4291 = vadd.f32 %v3793, %v4138
          %v4292 = vadd.f32 %v3794, %v4140
          %v4293 = vadd.f32 %v3795, %v4143
          %v4294 = vadd.f32 %v3796, %v4145
          %v4295 = vadd.f32 %v3797, %v4148
          %v4296 = vadd.f32 %v3798, %v4150
          %v4297 = vadd.f32 %v3799, %v4153
          %v4298 = vadd.f32 %v3800, %v4155
          %v4299 = vadd.f32 %v3801, %v4158
          %v4300 = vadd.f32 %v3802, %v4160
          %v4301 = vadd.f32 %v3803, %v4163
          %v4302 = vadd.f32 %v3804, %v4165
          %v4303 = vadd.f32 %v3805, %v4168
          %v4304 = vadd.f32 %v3806, %v4170
          %v4305 = vadd.f32 %v3807, %v4173
          %v4306 = vadd.f32 %v3808, %v4175
          %v4307 = vadd.f32 %v3809, %v4178
          %v4308 = vadd.f32 %v3810, %v4180
          %v4309 = vadd.f32 %v3811, %v4183
          %v4310 = vadd.f32 %v3812, %v4185
          %v4311 = vadd.f32 %v3813, %v4188
          %v4312 = vadd.f32 %v3814, %v4190
          %v4313 = vadd.f32 %v3815, %v4193
          %v4314 = vadd.f32 %v3816, %v4195
          %v4315 = vadd.f32 %v3817, %v4198
          %v4316 = vadd.f32 %v3818, %v4200
          %v4317 = vadd.f32 %v3819, %v4203
          %v4318 = vadd.f32 %v3820, %v4205
          %v4319 = vadd.f32 %v3821, %v4208
          %v4320 = vadd.f32 %v3822, %v4210
          %v4321 = vadd.f32 %v3823, %v4213
          %v4322 = vadd.f32 %v3824, %v4215
          %v4323 = vadd.f32 %v3825, %v4218
          %v4324 = vadd.f32 %v3826, %v4220
          %v4325 = vadd.f32 %v3827, %v4223
          %v4326 = vadd.f32 %v3828, %v4225
          %v4327 = vadd.f32 %v3829, %v4228
          %v4328 = vadd.f32 %v3830, %v4230
          %v4329 = vadd.f32 %v3831, %v4233
          %v4330 = vadd.f32 %v3832, %v4235
          %v4331 = vadd.f32 %v3833, %v4238
          %v4332 = vadd.f32 %v3834, %v4240
          %v4333 = vadd.f32 %v3835, %v4243
          %v4334 = vadd.f32 %v3836, %v4245
          %v4335 = vadd.f32 %v3837, %v4248
          %v4336 = vadd.f32 %v3838, %v4250
          %v4337 = vadd.f32 %v3839, %v4253
          %v4338 = vadd.f32 %v3840, %v4255
          %v4339 = vadd.f32 %v3841, %v4258
          %v4340 = vadd.f32 %v3842, %v4260
          %v4341 = vadd.f32 %v3843, %v4263
          %v4342 = vadd.f32 %v3844, %v4265
          %v4343 = vadd.f32 %v3845, %v4268
          %v4344 = vadd.f32 %v3846, %v4270
          %v4345 = vadd.f32 %v3847, %v4273
          %v4346 = vadd.f32 %v3848, %v4275
          %v4347 = vadd.f32 %v3849, %v4278
          %v4348 = vadd.f32 %v3850, %v4280
          %v4349 = vadd.f32 %v3851, %v4283
          %v4350 = vadd.f32 %v3852, %v4285
          %4351 = vst [vmem:[#allocation4] sm:$0xff] %v4287
          %4352 = vst [vmem:[#allocation4 + $0x8] sm:$0xff] %v4288
          %4353 = vst [vmem:[#allocation4 + $0x10] sm:$0xff] %v4289
          %4354 = vst [vmem:[#allocation4 + $0x18] sm:$0xff] %v4290
          %4355 = vst [vmem:[#allocation4 + $0x20] sm:$0xff] %v4291
          %4356 = vst [vmem:[#allocation4 + $0x28] sm:$0xff] %v4292
          %4357 = vst [vmem:[#allocation4 + $0x30] sm:$0xff] %v4293
          %4358 = vst [vmem:[#allocation4 + $0x38] sm:$0xff] %v4294
          %4359 = vst [vmem:[#allocation4 + $0x40] sm:$0xff] %v4295
          %4360 = vst [vmem:[#allocation4 + $0x48] sm:$0xff] %v4296
          %4361 = vst [vmem:[#allocation4 + $0x50] sm:$0xff] %v4297
          %4362 = vst [vmem:[#allocation4 + $0x58] sm:$0xff] %v4298
          %4363 = vst [vmem:[#allocation4 + $0x60] sm:$0xff] %v4299
          %4364 = vst [vmem:[#allocation4 + $0x68] sm:$0xff] %v4300
          %4365 = vst [vmem:[#allocation4 + $0x70] sm:$0xff] %v4301
          %4366 = vst [vmem:[#allocation4 + $0x78] sm:$0xff] %v4302
          %4367 = vst [vmem:[#allocation4 + $0x80] sm:$0xff] %v4303
          %4368 = vst [vmem:[#allocation4 + $0x88] sm:$0xff] %v4304
          %4369 = vst [vmem:[#allocation4 + $0x90] sm:$0xff] %v4305
          %4370 = vst [vmem:[#allocation4 + $0x98] sm:$0xff] %v4306
          %4371 = vst [vmem:[#allocation4 + $0xa0] sm:$0xff] %v4307
          %4372 = vst [vmem:[#allocation4 + $0xa8] sm:$0xff] %v4308
          %4373 = vst [vmem:[#allocation4 + $0xb0] sm:$0xff] %v4309
          %4374 = vst [vmem:[#allocation4 + $0xb8] sm:$0xff] %v4310
          %4375 = vst [vmem:[#allocation4 + $0xc0] sm:$0xff] %v4311
          %4376 = vst [vmem:[#allocation4 + $0xc8] sm:$0xff] %v4312
          %4377 = vst [vmem:[#allocation4 + $0xd0] sm:$0xff] %v4313
          %4378 = vst [vmem:[#allocation4 + $0xd8] sm:$0xff] %v4314
          %4379 = vst [vmem:[#allocation4 + $0xe0] sm:$0xff] %v4315
          %4380 = vst [vmem:[#allocation4 + $0xe8] sm:$0xff] %v4316
          %4381 = vst [vmem:[#allocation4 + $0xf0] sm:$0xff] %v4317
          %4382 = vst [vmem:[#allocation4 + $0xf8] sm:$0xff] %v4318
          %4383 = vst [vmem:[#allocation4 + $0x100] sm:$0xff] %v4319
          %4384 = vst [vmem:[#allocation4 + $0x108] sm:$0xff] %v4320
          %4385 = vst [vmem:[#allocation4 + $0x110] sm:$0xff] %v4321
          %4386 = vst [vmem:[#allocation4 + $0x118] sm:$0xff] %v4322
          %4387 = vst [vmem:[#allocation4 + $0x120] sm:$0xff] %v4323
          %4388 = vst [vmem:[#allocation4 + $0x128] sm:$0xff] %v4324
          %4389 = vst [vmem:[#allocation4 + $0x130] sm:$0xff] %v4325
          %4390 = vst [vmem:[#allocation4 + $0x138] sm:$0xff] %v4326
          %4391 = vst [vmem:[#allocation4 + $0x140] sm:$0xff] %v4327
          %4392 = vst [vmem:[#allocation4 + $0x148] sm:$0xff] %v4328
          %4393 = vst [vmem:[#allocation4 + $0x150] sm:$0xff] %v4329
          %4394 = vst [vmem:[#allocation4 + $0x158] sm:$0xff] %v4330
          %4395 = vst [vmem:[#allocation4 + $0x160] sm:$0xff] %v4331
          %4396 = vst [vmem:[#allocation4 + $0x168] sm:$0xff] %v4332
          %4397 = vst [vmem:[#allocation4 + $0x170] sm:$0xff] %v4333
          %4398 = vst [vmem:[#allocation4 + $0x178] sm:$0xff] %v4334
          %4399 = vst [vmem:[#allocation4 + $0x180] sm:$0xff] %v4335
          %4400 = vst [vmem:[#allocation4 + $0x188] sm:$0xff] %v4336
          %4401 = vst [vmem:[#allocation4 + $0x190] sm:$0xff] %v4337
          %4402 = vst [vmem:[#allocation4 + $0x198] sm:$0xff] %v4338
          %4403 = vst [vmem:[#allocation4 + $0x1a0] sm:$0xff] %v4339
          %4404 = vst [vmem:[#allocation4 + $0x1a8] sm:$0xff] %v4340
          %4405 = vst [vmem:[#allocation4 + $0x1b0] sm:$0xff] %v4341
          %4406 = vst [vmem:[#allocation4 + $0x1b8] sm:$0xff] %v4342
          %4407 = vst [vmem:[#allocation4 + $0x1c0] sm:$0xff] %v4343
          %4408 = vst [vmem:[#allocation4 + $0x1c8] sm:$0xff] %v4344
          %4409 = vst [vmem:[#allocation4 + $0x1d0] sm:$0xff] %v4345
          %4410 = vst [vmem:[#allocation4 + $0x1d8] sm:$0xff] %v4346
          %4411 = vst [vmem:[#allocation4 + $0x1e0] sm:$0xff] %v4347
          %4412 = vst [vmem:[#allocation4 + $0x1e8] sm:$0xff] %v4348
          %4413 = vst [vmem:[#allocation4 + $0x1f0] sm:$0xff] %v4349
          %4414 = vst [vmem:[#allocation4 + $0x1f8] sm:$0xff] %v4350
          %4415 = vst.msk [vmem:[#allocation2] sm:$0xff] %vm3340, %v1932
          %4416 = vst.msk [vmem:[#allocation2 + $0x8] sm:$0xff] %vm3340, %v1933
          %4417 = vst.msk [vmem:[#allocation2 + $0x10] sm:$0xff] %vm3340, %v1934
          %4418 = vst.msk [vmem:[#allocation2 + $0x18] sm:$0xff] %vm3340, %v1935
          %4419 = vst.msk [vmem:[#allocation2 + $0x20] sm:$0xff] %vm3340, %v1936
          %4420 = vst.msk [vmem:[#allocation2 + $0x28] sm:$0xff] %vm3340, %v1937
          %4421 = vst.msk [vmem:[#allocation2 + $0x30] sm:$0xff] %vm3340, %v1938
          %4422 = vst.msk [vmem:[#allocation2 + $0x38] sm:$0xff] %vm3340, %v1939
          %4423 = vst.msk [vmem:[#allocation2 + $0x40] sm:$0xff] %vm3340, %v1940
          %4424 = vst.msk [vmem:[#allocation2 + $0x48] sm:$0xff] %vm3340, %v1941
          %4425 = vst.msk [vmem:[#allocation2 + $0x50] sm:$0xff] %vm3340, %v1942
          %4426 = vst.msk [vmem:[#allocation2 + $0x58] sm:$0xff] %vm3340, %v1943
          %4427 = vst.msk [vmem:[#allocation2 + $0x60] sm:$0xff] %vm3340, %v1944
          %4428 = vst.msk [vmem:[#allocation2 + $0x68] sm:$0xff] %vm3340, %v1945
          %4429 = vst.msk [vmem:[#allocation2 + $0x70] sm:$0xff] %vm3340, %v1946
          %4430 = vst.msk [vmem:[#allocation2 + $0x78] sm:$0xff] %vm3340, %v1947
          %4431 = vst.msk [vmem:[#allocation2 + $0x80] sm:$0xff] %vm3340, %v1948
          %4432 = vst.msk [vmem:[#allocation2 + $0x88] sm:$0xff] %vm3340, %v1949
          %4433 = vst.msk [vmem:[#allocation2 + $0x90] sm:$0xff] %vm3340, %v1950
          %4434 = vst.msk [vmem:[#allocation2 + $0x98] sm:$0xff] %vm3340, %v1951
          %4435 = vst.msk [vmem:[#allocation2 + $0xa0] sm:$0xff] %vm3340, %v1952
          %4436 = vst.msk [vmem:[#allocation2 + $0xa8] sm:$0xff] %vm3340, %v1953
          %4437 = vst.msk [vmem:[#allocation2 + $0xb0] sm:$0xff] %vm3340, %v1954
          %4438 = vst.msk [vmem:[#allocation2 + $0xb8] sm:$0xff] %vm3340, %v1955
          %4439 = vst.msk [vmem:[#allocation2 + $0xc0] sm:$0xff] %vm3340, %v1956
          %4440 = vst.msk [vmem:[#allocation2 + $0xc8] sm:$0xff] %vm3340, %v1957
          %4441 = vst.msk [vmem:[#allocation2 + $0xd0] sm:$0xff] %vm3340, %v1958
          %4442 = vst.msk [vmem:[#allocation2 + $0xd8] sm:$0xff] %vm3340, %v1959
          %4443 = vst.msk [vmem:[#allocation2 + $0xe0] sm:$0xff] %vm3340, %v1960
          %4444 = vst.msk [vmem:[#allocation2 + $0xe8] sm:$0xff] %vm3340, %v1961
          %4445 = vst.msk [vmem:[#allocation2 + $0xf0] sm:$0xff] %vm3340, %v1962
          %4446 = vst.msk [vmem:[#allocation2 + $0xf8] sm:$0xff] %vm3340, %v1963
          %4447 = vst.msk [vmem:[#allocation2 + $0x100] sm:$0xff] %vm3340, %v1964
          %4448 = vst.msk [vmem:[#allocation2 + $0x108] sm:$0xff] %vm3340, %v1965
          %4449 = vst.msk [vmem:[#allocation2 + $0x110] sm:$0xff] %vm3340, %v1966
          %4450 = vst.msk [vmem:[#allocation2 + $0x118] sm:$0xff] %vm3340, %v1967
          %4451 = vst.msk [vmem:[#allocation2 + $0x120] sm:$0xff] %vm3340, %v1968
          %4452 = vst.msk [vmem:[#allocation2 + $0x128] sm:$0xff] %vm3340, %v1969
          %4453 = vst.msk [vmem:[#allocation2 + $0x130] sm:$0xff] %vm3340, %v1970
          %4454 = vst.msk [vmem:[#allocation2 + $0x138] sm:$0xff] %vm3340, %v1971
          %4455 = vst.msk [vmem:[#allocation2 + $0x140] sm:$0xff] %vm3340, %v1972
          %4456 = vst.msk [vmem:[#allocation2 + $0x148] sm:$0xff] %vm3340, %v1973
          %4457 = vst.msk [vmem:[#allocation2 + $0x150] sm:$0xff] %vm3340, %v1974
          %4458 = vst.msk [vmem:[#allocation2 + $0x158] sm:$0xff] %vm3340, %v1975
          %4459 = vst.msk [vmem:[#allocation2 + $0x160] sm:$0xff] %vm3340, %v1976
          %4460 = vst.msk [vmem:[#allocation2 + $0x168] sm:$0xff] %vm3340, %v1977
          %4461 = vst.msk [vmem:[#allocation2 + $0x170] sm:$0xff] %vm3340, %v1978
          %4462 = vst.msk [vmem:[#allocation2 + $0x178] sm:$0xff] %vm3340, %v1979
          %4463 = vst.msk [vmem:[#allocation2 + $0x180] sm:$0xff] %vm3340, %v1980
          %4464 = vst.msk [vmem:[#allocation2 + $0x188] sm:$0xff] %vm3340, %v1981
          %4465 = vst.msk [vmem:[#allocation2 + $0x190] sm:$0xff] %vm3340, %v1982
          %4466 = vst.msk [vmem:[#allocation2 + $0x198] sm:$0xff] %vm3340, %v1983
          %4467 = vst.msk [vmem:[#allocation2 + $0x1a0] sm:$0xff] %vm3340, %v1984
          %4468 = vst.msk [vmem:[#allocation2 + $0x1a8] sm:$0xff] %vm3340, %v1985
          %4469 = vst.msk [vmem:[#allocation2 + $0x1b0] sm:$0xff] %vm3340, %v1986
          %4470 = vst.msk [vmem:[#allocation2 + $0x1b8] sm:$0xff] %vm3340, %v1987
          %4471 = vst.msk [vmem:[#allocation2 + $0x1c0] sm:$0xff] %vm3340, %v1988
          %4472 = vst.msk [vmem:[#allocation2 + $0x1c8] sm:$0xff] %vm3340, %v1989
          %4473 = vst.msk [vmem:[#allocation2 + $0x1d0] sm:$0xff] %vm3340, %v1990
          %4474 = vst.msk [vmem:[#allocation2 + $0x1d8] sm:$0xff] %vm3340, %v1991
          %4475 = vst.msk [vmem:[#allocation2 + $0x1e0] sm:$0xff] %vm3340, %v1992
          %4476 = vst.msk [vmem:[#allocation2 + $0x1e8] sm:$0xff] %vm3340, %v1993
          %4477 = vst.msk [vmem:[#allocation2 + $0x1f0] sm:$0xff] %vm3340, %v1994
          %4478 = vst.msk [vmem:[#allocation2 + $0x1f8] sm:$0xff] %vm3340, %v1995
        $region52: #{tpu_custom_call.1} parent=31 // pred_fallthru
          _
        %p4479 = scmp.eq.s32.totalorder %s336, %s335
        // Predicated region
        $region53: #{tpu_custom_call.1} parent=31 // pred_check
          %p4480 = pneg %p4479
        $region54: #{tpu_custom_call.1} parent=31 // pred_check_branch
          %4482 = sbr.rel (%p4480) target = $region56
        $region55: #{tpu_custom_call.1} parent=31 // pred_region
          %v4483 = vld [vmem:[%s281] sm:$0xf]
          %v4484 = vld [vmem:[%s281 + $0x4] sm:$0xf]
          %v4485 = vld [vmem:[%s281 + $0x8] sm:$0xf]
          %v4486 = vld [vmem:[%s281 + $0xc] sm:$0xf]
          %v4487 = vld [vmem:[%s281 + $0x10] sm:$0xf]
          %v4488 = vld [vmem:[%s281 + $0x14] sm:$0xf]
          %v4489 = vld [vmem:[%s281 + $0x18] sm:$0xf]
          %v4490 = vld [vmem:[%s281 + $0x1c] sm:$0xf]
          %v4491 = vld [vmem:[%s281 + $0x20] sm:$0xf]
          %v4492 = vld [vmem:[%s281 + $0x24] sm:$0xf]
          %v4493 = vld [vmem:[%s281 + $0x28] sm:$0xf]
          %v4494 = vld [vmem:[%s281 + $0x2c] sm:$0xf]
          %v4495 = vld [vmem:[%s281 + $0x30] sm:$0xf]
          %v4496 = vld [vmem:[%s281 + $0x34] sm:$0xf]
          %v4497 = vld [vmem:[%s281 + $0x38] sm:$0xf]
          %v4498 = vld [vmem:[%s281 + $0x3c] sm:$0xf]
          %v4499 = vld [vmem:[%s281 + $0x40] sm:$0xf]
          %v4500 = vld [vmem:[%s281 + $0x44] sm:$0xf]
          %v4501 = vld [vmem:[%s281 + $0x48] sm:$0xf]
          %v4502 = vld [vmem:[%s281 + $0x4c] sm:$0xf]
          %v4503 = vld [vmem:[%s281 + $0x50] sm:$0xf]
          %v4504 = vld [vmem:[%s281 + $0x54] sm:$0xf]
          %v4505 = vld [vmem:[%s281 + $0x58] sm:$0xf]
          %v4506 = vld [vmem:[%s281 + $0x5c] sm:$0xf]
          %v4507 = vld [vmem:[%s281 + $0x60] sm:$0xf]
          %v4508 = vld [vmem:[%s281 + $0x64] sm:$0xf]
          %v4509 = vld [vmem:[%s281 + $0x68] sm:$0xf]
          %v4510 = vld [vmem:[%s281 + $0x6c] sm:$0xf]
          %v4511 = vld [vmem:[%s281 + $0x70] sm:$0xf]
          %v4512 = vld [vmem:[%s281 + $0x74] sm:$0xf]
          %v4513 = vld [vmem:[%s281 + $0x78] sm:$0xf]
          %v4514 = vld [vmem:[%s281 + $0x7c] sm:$0xf]
          %v4515 = vld [vmem:[%s291] sm:$0xf]
          %v4516 = vld [vmem:[%s291 + $0x4] sm:$0xf]
          %v4517 = vld [vmem:[%s291 + $0x8] sm:$0xf]
          %v4518 = vld [vmem:[%s291 + $0xc] sm:$0xf]
          %v4519 = vld [vmem:[%s291 + $0x10] sm:$0xf]
          %v4520 = vld [vmem:[%s291 + $0x14] sm:$0xf]
          %v4521 = vld [vmem:[%s291 + $0x18] sm:$0xf]
          %v4522 = vld [vmem:[%s291 + $0x1c] sm:$0xf]
          %v4523 = vld [vmem:[%s291 + $0x20] sm:$0xf]
          %v4524 = vld [vmem:[%s291 + $0x24] sm:$0xf]
          %v4525 = vld [vmem:[%s291 + $0x28] sm:$0xf]
          %v4526 = vld [vmem:[%s291 + $0x2c] sm:$0xf]
          %v4527 = vld [vmem:[%s291 + $0x30] sm:$0xf]
          %v4528 = vld [vmem:[%s291 + $0x34] sm:$0xf]
          %v4529 = vld [vmem:[%s291 + $0x38] sm:$0xf]
          %v4530 = vld [vmem:[%s291 + $0x3c] sm:$0xf]
          %v4531 = vld [vmem:[%s291 + $0x40] sm:$0xf]
          %v4532 = vld [vmem:[%s291 + $0x44] sm:$0xf]
          %v4533 = vld [vmem:[%s291 + $0x48] sm:$0xf]
          %v4534 = vld [vmem:[%s291 + $0x4c] sm:$0xf]
          %v4535 = vld [vmem:[%s291 + $0x50] sm:$0xf]
          %v4536 = vld [vmem:[%s291 + $0x54] sm:$0xf]
          %v4537 = vld [vmem:[%s291 + $0x58] sm:$0xf]
          %v4538 = vld [vmem:[%s291 + $0x5c] sm:$0xf]
          %v4539 = vld [vmem:[%s291 + $0x60] sm:$0xf]
          %v4540 = vld [vmem:[%s291 + $0x64] sm:$0xf]
          %v4541 = vld [vmem:[%s291 + $0x68] sm:$0xf]
          %v4542 = vld [vmem:[%s291 + $0x6c] sm:$0xf]
          %v4543 = vld [vmem:[%s291 + $0x70] sm:$0xf]
          %v4544 = vld [vmem:[%s291 + $0x74] sm:$0xf]
          %v4545 = vld [vmem:[%s291 + $0x78] sm:$0xf]
          %v4546 = vld [vmem:[%s291 + $0x7c] sm:$0xf]
          %v4547 = vld [vmem:[#allocation5] sm:$0xf]
          %v4548 = vld [vmem:[#allocation5 + $0x4] sm:$0xf]
          %v4549 = vld [vmem:[#allocation5 + $0x8] sm:$0xf]
          %v4550 = vld [vmem:[#allocation5 + $0xc] sm:$0xf]
          %v4551 = vld [vmem:[#allocation5 + $0x10] sm:$0xf]
          %v4552 = vld [vmem:[#allocation5 + $0x14] sm:$0xf]
          %v4553 = vld [vmem:[#allocation5 + $0x18] sm:$0xf]
          %v4554 = vld [vmem:[#allocation5 + $0x1c] sm:$0xf]
          %v4555 = vld [vmem:[#allocation5 + $0x20] sm:$0xf]
          %v4556 = vld [vmem:[#allocation5 + $0x24] sm:$0xf]
          %v4557 = vld [vmem:[#allocation5 + $0x28] sm:$0xf]
          %v4558 = vld [vmem:[#allocation5 + $0x2c] sm:$0xf]
          %v4559 = vld [vmem:[#allocation5 + $0x30] sm:$0xf]
          %v4560 = vld [vmem:[#allocation5 + $0x34] sm:$0xf]
          %v4561 = vld [vmem:[#allocation5 + $0x38] sm:$0xf]
          %v4562 = vld [vmem:[#allocation5 + $0x3c] sm:$0xf]
          %v4563 = vld [vmem:[#allocation5 + $0x40] sm:$0xf]
          %v4564 = vld [vmem:[#allocation5 + $0x44] sm:$0xf]
          %v4565 = vld [vmem:[#allocation5 + $0x48] sm:$0xf]
          %v4566 = vld [vmem:[#allocation5 + $0x4c] sm:$0xf]
          %v4567 = vld [vmem:[#allocation5 + $0x50] sm:$0xf]
          %v4568 = vld [vmem:[#allocation5 + $0x54] sm:$0xf]
          %v4569 = vld [vmem:[#allocation5 + $0x58] sm:$0xf]
          %v4570 = vld [vmem:[#allocation5 + $0x5c] sm:$0xf]
          %v4571 = vld [vmem:[#allocation5 + $0x60] sm:$0xf]
          %v4572 = vld [vmem:[#allocation5 + $0x64] sm:$0xf]
          %v4573 = vld [vmem:[#allocation5 + $0x68] sm:$0xf]
          %v4574 = vld [vmem:[#allocation5 + $0x6c] sm:$0xf]
          %v4575 = vld [vmem:[#allocation5 + $0x70] sm:$0xf]
          %v4576 = vld [vmem:[#allocation5 + $0x74] sm:$0xf]
          %v4577 = vld [vmem:[#allocation5 + $0x78] sm:$0xf]
          %v4578 = vld [vmem:[#allocation5 + $0x7c] sm:$0xf]
          %v4579 = vld [vmem:[#allocation5 + $0x80] sm:$0xf]
          %v4580 = vld [vmem:[#allocation5 + $0x84] sm:$0xf]
          %v4581 = vld [vmem:[#allocation5 + $0x88] sm:$0xf]
          %v4582 = vld [vmem:[#allocation5 + $0x8c] sm:$0xf]
          %v4583 = vld [vmem:[#allocation5 + $0x90] sm:$0xf]
          %v4584 = vld [vmem:[#allocation5 + $0x94] sm:$0xf]
          %v4585 = vld [vmem:[#allocation5 + $0x98] sm:$0xf]
          %v4586 = vld [vmem:[#allocation5 + $0x9c] sm:$0xf]
          %v4587 = vld [vmem:[#allocation5 + $0xa0] sm:$0xf]
          %v4588 = vld [vmem:[#allocation5 + $0xa4] sm:$0xf]
          %v4589 = vld [vmem:[#allocation5 + $0xa8] sm:$0xf]
          %v4590 = vld [vmem:[#allocation5 + $0xac] sm:$0xf]
          %v4591 = vld [vmem:[#allocation5 + $0xb0] sm:$0xf]
          %v4592 = vld [vmem:[#allocation5 + $0xb4] sm:$0xf]
          %v4593 = vld [vmem:[#allocation5 + $0xb8] sm:$0xf]
          %v4594 = vld [vmem:[#allocation5 + $0xbc] sm:$0xf]
          %v4595 = vld [vmem:[#allocation5 + $0xc0] sm:$0xf]
          %v4596 = vld [vmem:[#allocation5 + $0xc4] sm:$0xf]
          %v4597 = vld [vmem:[#allocation5 + $0xc8] sm:$0xf]
          %v4598 = vld [vmem:[#allocation5 + $0xcc] sm:$0xf]
          %v4599 = vld [vmem:[#allocation5 + $0xd0] sm:$0xf]
          %v4600 = vld [vmem:[#allocation5 + $0xd4] sm:$0xf]
          %v4601 = vld [vmem:[#allocation5 + $0xd8] sm:$0xf]
          %v4602 = vld [vmem:[#allocation5 + $0xdc] sm:$0xf]
          %v4603 = vld [vmem:[#allocation5 + $0xe0] sm:$0xf]
          %v4604 = vld [vmem:[#allocation5 + $0xe4] sm:$0xf]
          %v4605 = vld [vmem:[#allocation5 + $0xe8] sm:$0xf]
          %v4606 = vld [vmem:[#allocation5 + $0xec] sm:$0xf]
          %v4607 = vld [vmem:[#allocation5 + $0xf0] sm:$0xf]
          %v4608 = vld [vmem:[#allocation5 + $0xf4] sm:$0xf]
          %v4609 = vld [vmem:[#allocation5 + $0xf8] sm:$0xf]
          %v4610 = vld [vmem:[#allocation5 + $0xfc] sm:$0xf]
          %v4675 = vunpack.c.l.b16 %v4547
          %v4676 = vunpack.c.l.b16 %v4548
          %v4677 = vunpack.c.l.b16 %v4549
          %v4678 = vunpack.c.l.b16 %v4550
          %v4679 = vunpack.c.l.b16 %v4551
          %v4680 = vunpack.c.l.b16 %v4552
          %v4681 = vunpack.c.l.b16 %v4553
          %v4682 = vunpack.c.l.b16 %v4554
          %v4683 = vunpack.c.l.b16 %v4555
          %v4684 = vunpack.c.l.b16 %v4556
          %v4685 = vunpack.c.l.b16 %v4557
          %v4686 = vunpack.c.l.b16 %v4558
          %v4687 = vunpack.c.l.b16 %v4559
          %v4688 = vunpack.c.l.b16 %v4560
          %v4689 = vunpack.c.l.b16 %v4561
          %v4690 = vunpack.c.l.b16 %v4562
          %v4691 = vunpack.c.l.b16 %v4563
          %v4692 = vunpack.c.l.b16 %v4564
          %v4693 = vunpack.c.l.b16 %v4565
          %v4694 = vunpack.c.l.b16 %v4566
          %v4695 = vunpack.c.l.b16 %v4567
          %v4696 = vunpack.c.l.b16 %v4568
          %v4697 = vunpack.c.l.b16 %v4569
          %v4698 = vunpack.c.l.b16 %v4570
          %v4699 = vunpack.c.l.b16 %v4571
          %v4700 = vunpack.c.l.b16 %v4572
          %v4701 = vunpack.c.l.b16 %v4573
          %v4702 = vunpack.c.l.b16 %v4574
          %v4703 = vunpack.c.l.b16 %v4575
          %v4704 = vunpack.c.l.b16 %v4576
          %v4705 = vunpack.c.l.b16 %v4577
          %v4706 = vunpack.c.l.b16 %v4578
          %v4707 = vunpack.c.l.b16 %v4579
          %v4708 = vunpack.c.l.b16 %v4580
          %v4709 = vunpack.c.l.b16 %v4581
          %v4710 = vunpack.c.l.b16 %v4582
          %v4711 = vunpack.c.l.b16 %v4583
          %v4712 = vunpack.c.l.b16 %v4584
          %v4713 = vunpack.c.l.b16 %v4585
          %v4714 = vunpack.c.l.b16 %v4586
          %v4715 = vunpack.c.l.b16 %v4587
          %v4716 = vunpack.c.l.b16 %v4588
          %v4717 = vunpack.c.l.b16 %v4589
          %v4718 = vunpack.c.l.b16 %v4590
          %v4719 = vunpack.c.l.b16 %v4591
          %v4720 = vunpack.c.l.b16 %v4592
          %v4721 = vunpack.c.l.b16 %v4593
          %v4722 = vunpack.c.l.b16 %v4594
          %v4723 = vunpack.c.l.b16 %v4595
          %v4724 = vunpack.c.l.b16 %v4596
          %v4725 = vunpack.c.l.b16 %v4597
          %v4726 = vunpack.c.l.b16 %v4598
          %v4727 = vunpack.c.l.b16 %v4599
          %v4728 = vunpack.c.l.b16 %v4600
          %v4729 = vunpack.c.l.b16 %v4601
          %v4730 = vunpack.c.l.b16 %v4602
          %v4731 = vunpack.c.l.b16 %v4603
          %v4732 = vunpack.c.l.b16 %v4604
          %v4733 = vunpack.c.l.b16 %v4605
          %v4734 = vunpack.c.l.b16 %v4606
          %v4735 = vunpack.c.l.b16 %v4607
          %v4736 = vunpack.c.l.b16 %v4608
          %v4737 = vunpack.c.l.b16 %v4609
          %v4738 = vunpack.c.l.b16 %v4610
          %v4739 = vpack.c.b16 %v4676, %v4675
          %v4740 = vpack.c.b16 %v4678, %v4677
          %v4741 = vpack.c.b16 %v4680, %v4679
          %v4742 = vpack.c.b16 %v4682, %v4681
          %v4743 = vpack.c.b16 %v4684, %v4683
          %v4744 = vpack.c.b16 %v4686, %v4685
          %v4745 = vpack.c.b16 %v4688, %v4687
          %v4746 = vpack.c.b16 %v4690, %v4689
          %v4747 = vpack.c.b16 %v4692, %v4691
          %v4748 = vpack.c.b16 %v4694, %v4693
          %v4749 = vpack.c.b16 %v4696, %v4695
          %v4750 = vpack.c.b16 %v4698, %v4697
          %v4751 = vpack.c.b16 %v4700, %v4699
          %v4752 = vpack.c.b16 %v4702, %v4701
          %v4753 = vpack.c.b16 %v4704, %v4703
          %v4754 = vpack.c.b16 %v4706, %v4705
          %v4755 = vpack.c.b16 %v4708, %v4707
          %v4756 = vpack.c.b16 %v4710, %v4709
          %v4757 = vpack.c.b16 %v4712, %v4711
          %v4758 = vpack.c.b16 %v4714, %v4713
          %v4759 = vpack.c.b16 %v4716, %v4715
          %v4760 = vpack.c.b16 %v4718, %v4717
          %v4761 = vpack.c.b16 %v4720, %v4719
          %v4762 = vpack.c.b16 %v4722, %v4721
          %v4763 = vpack.c.b16 %v4724, %v4723
          %v4764 = vpack.c.b16 %v4726, %v4725
          %v4765 = vpack.c.b16 %v4728, %v4727
          %v4766 = vpack.c.b16 %v4730, %v4729
          %v4767 = vpack.c.b16 %v4732, %v4731
          %v4768 = vpack.c.b16 %v4734, %v4733
          %v4769 = vpack.c.b16 %v4736, %v4735
          %v4770 = vpack.c.b16 %v4738, %v4737
          %v4835 = vunpack.c.l.b16 %v4483
          %v4836 = vunpack.c.l.b16 %v4484
          %v4837 = vunpack.c.l.b16 %v4485
          %v4838 = vunpack.c.l.b16 %v4486
          %v4839 = vunpack.c.l.b16 %v4487
          %v4840 = vunpack.c.l.b16 %v4488
          %v4841 = vunpack.c.l.b16 %v4489
          %v4842 = vunpack.c.l.b16 %v4490
          %v4843 = vunpack.c.l.b16 %v4491
          %v4844 = vunpack.c.l.b16 %v4492
          %v4845 = vunpack.c.l.b16 %v4493
          %v4846 = vunpack.c.l.b16 %v4494
          %v4847 = vunpack.c.l.b16 %v4495
          %v4848 = vunpack.c.l.b16 %v4496
          %v4849 = vunpack.c.l.b16 %v4497
          %v4850 = vunpack.c.l.b16 %v4498
          %v4851 = vunpack.c.l.b16 %v4499
          %v4852 = vunpack.c.l.b16 %v4500
          %v4853 = vunpack.c.l.b16 %v4501
          %v4854 = vunpack.c.l.b16 %v4502
          %v4855 = vunpack.c.l.b16 %v4503
          %v4856 = vunpack.c.l.b16 %v4504
          %v4857 = vunpack.c.l.b16 %v4505
          %v4858 = vunpack.c.l.b16 %v4506
          %v4859 = vunpack.c.l.b16 %v4507
          %v4860 = vunpack.c.l.b16 %v4508
          %v4861 = vunpack.c.l.b16 %v4509
          %v4862 = vunpack.c.l.b16 %v4510
          %v4863 = vunpack.c.l.b16 %v4511
          %v4864 = vunpack.c.l.b16 %v4512
          %v4865 = vunpack.c.l.b16 %v4513
          %v4866 = vunpack.c.l.b16 %v4514
          %v4867 = vpack.c.b16 %v4836, %v4835
          %v4868 = vpack.c.b16 %v4838, %v4837
          %v4869 = vpack.c.b16 %v4840, %v4839
          %v4870 = vpack.c.b16 %v4842, %v4841
          %v4871 = vpack.c.b16 %v4844, %v4843
          %v4872 = vpack.c.b16 %v4846, %v4845
          %v4873 = vpack.c.b16 %v4848, %v4847
          %v4874 = vpack.c.b16 %v4850, %v4849
          %v4875 = vpack.c.b16 %v4852, %v4851
          %v4876 = vpack.c.b16 %v4854, %v4853
          %v4877 = vpack.c.b16 %v4856, %v4855
          %v4878 = vpack.c.b16 %v4858, %v4857
          %v4879 = vpack.c.b16 %v4860, %v4859
          %v4880 = vpack.c.b16 %v4862, %v4861
          %v4881 = vpack.c.b16 %v4864, %v4863
          %v4882 = vpack.c.b16 %v4866, %v4865
          %4899 = vmatpush.bf16.xpose.msra.mxu0 %v4874
          %4900 = vmatpush.bf16.xpose.msra.mxu0 %v4873
          %4901 = vmatpush.bf16.xpose.msra.mxu0 %v4872
          %4902 = vmatpush.bf16.xpose.msra.mxu0 %v4871
          %4903 = vmatpush.bf16.xpose.msra.mxu0 %v4870
          %4904 = vmatpush.bf16.xpose.msra.mxu0 %v4869
          %4905 = vmatpush.bf16.xpose.msra.mxu0 %v4868
          %4906 = vmatpush.bf16.xpose.msra.mxu0 %v4867
          %4907 = vmatmul.bf16.gmra.mxu0 %v4739
          %v4908 = vpop.f32.mrf.mxu0
          %v4909 = vadd.f32 0.0, %v4908
          %v4910 = vpop.f32.mrf.mxu0
          %v4911 = vadd.f32 0.0, %v4910
          %4912 = vmatmul.bf16.gmra.mxu0 %v4740
          %v4913 = vpop.f32.mrf.mxu0
          %v4914 = vadd.f32 0.0, %v4913
          %v4915 = vpop.f32.mrf.mxu0
          %v4916 = vadd.f32 0.0, %v4915
          %4917 = vmatmul.bf16.gmra.mxu0 %v4741
          %v4918 = vpop.f32.mrf.mxu0
          %v4919 = vadd.f32 0.0, %v4918
          %v4920 = vpop.f32.mrf.mxu0
          %v4921 = vadd.f32 0.0, %v4920
          %4922 = vmatmul.bf16.gmra.mxu0 %v4742
          %v4923 = vpop.f32.mrf.mxu0
          %v4924 = vadd.f32 0.0, %v4923
          %v4925 = vpop.f32.mrf.mxu0
          %v4926 = vadd.f32 0.0, %v4925
          %4927 = vmatmul.bf16.gmra.mxu0 %v4743
          %v4928 = vpop.f32.mrf.mxu0
          %v4929 = vadd.f32 0.0, %v4928
          %v4930 = vpop.f32.mrf.mxu0
          %v4931 = vadd.f32 0.0, %v4930
          %4932 = vmatmul.bf16.gmra.mxu0 %v4744
          %v4933 = vpop.f32.mrf.mxu0
          %v4934 = vadd.f32 0.0, %v4933
          %v4935 = vpop.f32.mrf.mxu0
          %v4936 = vadd.f32 0.0, %v4935
          %4937 = vmatmul.bf16.gmra.mxu0 %v4745
          %v4938 = vpop.f32.mrf.mxu0
          %v4939 = vadd.f32 0.0, %v4938
          %v4940 = vpop.f32.mrf.mxu0
          %v4941 = vadd.f32 0.0, %v4940
          %4942 = vmatmul.bf16.gmra.mxu0 %v4746
          %v4943 = vpop.f32.mrf.mxu0
          %v4944 = vadd.f32 0.0, %v4943
          %v4945 = vpop.f32.mrf.mxu0
          %v4946 = vadd.f32 0.0, %v4945
          %4947 = vmatmul.bf16.gmra.mxu0 %v4747
          %v4948 = vpop.f32.mrf.mxu0
          %v4949 = vadd.f32 0.0, %v4948
          %v4950 = vpop.f32.mrf.mxu0
          %v4951 = vadd.f32 0.0, %v4950
          %4952 = vmatmul.bf16.gmra.mxu0 %v4748
          %v4953 = vpop.f32.mrf.mxu0
          %v4954 = vadd.f32 0.0, %v4953
          %v4955 = vpop.f32.mrf.mxu0
          %v4956 = vadd.f32 0.0, %v4955
          %4957 = vmatmul.bf16.gmra.mxu0 %v4749
          %v4958 = vpop.f32.mrf.mxu0
          %v4959 = vadd.f32 0.0, %v4958
          %v4960 = vpop.f32.mrf.mxu0
          %v4961 = vadd.f32 0.0, %v4960
          %4962 = vmatmul.bf16.gmra.mxu0 %v4750
          %v4963 = vpop.f32.mrf.mxu0
          %v4964 = vadd.f32 0.0, %v4963
          %v4965 = vpop.f32.mrf.mxu0
          %v4966 = vadd.f32 0.0, %v4965
          %4967 = vmatmul.bf16.gmra.mxu0 %v4751
          %v4968 = vpop.f32.mrf.mxu0
          %v4969 = vadd.f32 0.0, %v4968
          %v4970 = vpop.f32.mrf.mxu0
          %v4971 = vadd.f32 0.0, %v4970
          %4972 = vmatmul.bf16.gmra.mxu0 %v4752
          %v4973 = vpop.f32.mrf.mxu0
          %v4974 = vadd.f32 0.0, %v4973
          %v4975 = vpop.f32.mrf.mxu0
          %v4976 = vadd.f32 0.0, %v4975
          %4977 = vmatmul.bf16.gmra.mxu0 %v4753
          %v4978 = vpop.f32.mrf.mxu0
          %v4979 = vadd.f32 0.0, %v4978
          %v4980 = vpop.f32.mrf.mxu0
          %v4981 = vadd.f32 0.0, %v4980
          %4982 = vmatmul.bf16.gmra.mxu0 %v4754
          %v4983 = vpop.f32.mrf.mxu0
          %v4984 = vadd.f32 0.0, %v4983
          %v4985 = vpop.f32.mrf.mxu0
          %v4986 = vadd.f32 0.0, %v4985
          %4987 = vmatmul.bf16.gmra.mxu0 %v4755
          %v4988 = vpop.f32.mrf.mxu0
          %v4989 = vadd.f32 0.0, %v4988
          %v4990 = vpop.f32.mrf.mxu0
          %v4991 = vadd.f32 0.0, %v4990
          %4992 = vmatmul.bf16.gmra.mxu0 %v4756
          %v4993 = vpop.f32.mrf.mxu0
          %v4994 = vadd.f32 0.0, %v4993
          %v4995 = vpop.f32.mrf.mxu0
          %v4996 = vadd.f32 0.0, %v4995
          %4997 = vmatmul.bf16.gmra.mxu0 %v4757
          %v4998 = vpop.f32.mrf.mxu0
          %v4999 = vadd.f32 0.0, %v4998
          %v5000 = vpop.f32.mrf.mxu0
          %v5001 = vadd.f32 0.0, %v5000
          %5002 = vmatmul.bf16.gmra.mxu0 %v4758
          %v5003 = vpop.f32.mrf.mxu0
          %v5004 = vadd.f32 0.0, %v5003
          %v5005 = vpop.f32.mrf.mxu0
          %v5006 = vadd.f32 0.0, %v5005
          %5007 = vmatmul.bf16.gmra.mxu0 %v4759
          %v5008 = vpop.f32.mrf.mxu0
          %v5009 = vadd.f32 0.0, %v5008
          %v5010 = vpop.f32.mrf.mxu0
          %v5011 = vadd.f32 0.0, %v5010
          %5012 = vmatmul.bf16.gmra.mxu0 %v4760
          %v5013 = vpop.f32.mrf.mxu0
          %v5014 = vadd.f32 0.0, %v5013
          %v5015 = vpop.f32.mrf.mxu0
          %v5016 = vadd.f32 0.0, %v5015
          %5017 = vmatmul.bf16.gmra.mxu0 %v4761
          %v5018 = vpop.f32.mrf.mxu0
          %v5019 = vadd.f32 0.0, %v5018
          %v5020 = vpop.f32.mrf.mxu0
          %v5021 = vadd.f32 0.0, %v5020
          %5022 = vmatmul.bf16.gmra.mxu0 %v4762
          %v5023 = vpop.f32.mrf.mxu0
          %v5024 = vadd.f32 0.0, %v5023
          %v5025 = vpop.f32.mrf.mxu0
          %v5026 = vadd.f32 0.0, %v5025
          %5027 = vmatmul.bf16.gmra.mxu0 %v4763
          %v5028 = vpop.f32.mrf.mxu0
          %v5029 = vadd.f32 0.0, %v5028
          %v5030 = vpop.f32.mrf.mxu0
          %v5031 = vadd.f32 0.0, %v5030
          %5032 = vmatmul.bf16.gmra.mxu0 %v4764
          %v5033 = vpop.f32.mrf.mxu0
          %v5034 = vadd.f32 0.0, %v5033
          %v5035 = vpop.f32.mrf.mxu0
          %v5036 = vadd.f32 0.0, %v5035
          %5037 = vmatmul.bf16.gmra.mxu0 %v4765
          %v5038 = vpop.f32.mrf.mxu0
          %v5039 = vadd.f32 0.0, %v5038
          %v5040 = vpop.f32.mrf.mxu0
          %v5041 = vadd.f32 0.0, %v5040
          %5042 = vmatmul.bf16.gmra.mxu0 %v4766
          %v5043 = vpop.f32.mrf.mxu0
          %v5044 = vadd.f32 0.0, %v5043
          %v5045 = vpop.f32.mrf.mxu0
          %v5046 = vadd.f32 0.0, %v5045
          %5047 = vmatmul.bf16.gmra.mxu0 %v4767
          %v5048 = vpop.f32.mrf.mxu0
          %v5049 = vadd.f32 0.0, %v5048
          %v5050 = vpop.f32.mrf.mxu0
          %v5051 = vadd.f32 0.0, %v5050
          %5052 = vmatmul.bf16.gmra.mxu0 %v4768
          %v5053 = vpop.f32.mrf.mxu0
          %v5054 = vadd.f32 0.0, %v5053
          %v5055 = vpop.f32.mrf.mxu0
          %v5056 = vadd.f32 0.0, %v5055
          %5057 = vmatmul.bf16.gmra.mxu0 %v4769
          %v5058 = vpop.f32.mrf.mxu0
          %v5059 = vadd.f32 0.0, %v5058
          %v5060 = vpop.f32.mrf.mxu0
          %v5061 = vadd.f32 0.0, %v5060
          %5062 = vmatmul.bf16.gmra.mxu0 %v4770
          %v5063 = vpop.f32.mrf.mxu0
          %v5064 = vadd.f32 0.0, %v5063
          %v5065 = vpop.f32.mrf.mxu0
          %v5066 = vadd.f32 0.0, %v5065
          %5067 = vdwg.mxu0
          %5068 = vmatpush.bf16.xpose.msra.mxu0 %v4882
          %5069 = vmatpush.bf16.xpose.msra.mxu0 %v4881
          %5070 = vmatpush.bf16.xpose.msra.mxu0 %v4880
          %5071 = vmatpush.bf16.xpose.msra.mxu0 %v4879
          %5072 = vmatpush.bf16.xpose.msra.mxu0 %v4878
          %5073 = vmatpush.bf16.xpose.msra.mxu0 %v4877
          %5074 = vmatpush.bf16.xpose.msra.mxu0 %v4876
          %5075 = vmatpush.bf16.xpose.msra.mxu0 %v4875
          %5076 = vmatmul.bf16.gmra.mxu0 %v4739
          %v5077 = vpop.f32.mrf.mxu0
          %v5078 = vadd.f32 0.0, %v5077
          %v5079 = vpop.f32.mrf.mxu0
          %v5080 = vadd.f32 0.0, %v5079
          %5081 = vmatmul.bf16.gmra.mxu0 %v4740
          %v5082 = vpop.f32.mrf.mxu0
          %v5083 = vadd.f32 0.0, %v5082
          %v5084 = vpop.f32.mrf.mxu0
          %v5085 = vadd.f32 0.0, %v5084
          %5086 = vmatmul.bf16.gmra.mxu0 %v4741
          %v5087 = vpop.f32.mrf.mxu0
          %v5088 = vadd.f32 0.0, %v5087
          %v5089 = vpop.f32.mrf.mxu0
          %v5090 = vadd.f32 0.0, %v5089
          %5091 = vmatmul.bf16.gmra.mxu0 %v4742
          %v5092 = vpop.f32.mrf.mxu0
          %v5093 = vadd.f32 0.0, %v5092
          %v5094 = vpop.f32.mrf.mxu0
          %v5095 = vadd.f32 0.0, %v5094
          %5096 = vmatmul.bf16.gmra.mxu0 %v4743
          %v5097 = vpop.f32.mrf.mxu0
          %v5098 = vadd.f32 0.0, %v5097
          %v5099 = vpop.f32.mrf.mxu0
          %v5100 = vadd.f32 0.0, %v5099
          %5101 = vmatmul.bf16.gmra.mxu0 %v4744
          %v5102 = vpop.f32.mrf.mxu0
          %v5103 = vadd.f32 0.0, %v5102
          %v5104 = vpop.f32.mrf.mxu0
          %v5105 = vadd.f32 0.0, %v5104
          %5106 = vmatmul.bf16.gmra.mxu0 %v4745
          %v5107 = vpop.f32.mrf.mxu0
          %v5108 = vadd.f32 0.0, %v5107
          %v5109 = vpop.f32.mrf.mxu0
          %v5110 = vadd.f32 0.0, %v5109
          %5111 = vmatmul.bf16.gmra.mxu0 %v4746
          %v5112 = vpop.f32.mrf.mxu0
          %v5113 = vadd.f32 0.0, %v5112
          %v5114 = vpop.f32.mrf.mxu0
          %v5115 = vadd.f32 0.0, %v5114
          %5116 = vmatmul.bf16.gmra.mxu0 %v4747
          %v5117 = vpop.f32.mrf.mxu0
          %v5118 = vadd.f32 0.0, %v5117
          %v5119 = vpop.f32.mrf.mxu0
          %v5120 = vadd.f32 0.0, %v5119
          %5121 = vmatmul.bf16.gmra.mxu0 %v4748
          %v5122 = vpop.f32.mrf.mxu0
          %v5123 = vadd.f32 0.0, %v5122
          %v5124 = vpop.f32.mrf.mxu0
          %v5125 = vadd.f32 0.0, %v5124
          %5126 = vmatmul.bf16.gmra.mxu0 %v4749
          %v5127 = vpop.f32.mrf.mxu0
          %v5128 = vadd.f32 0.0, %v5127
          %v5129 = vpop.f32.mrf.mxu0
          %v5130 = vadd.f32 0.0, %v5129
          %5131 = vmatmul.bf16.gmra.mxu0 %v4750
          %v5132 = vpop.f32.mrf.mxu0
          %v5133 = vadd.f32 0.0, %v5132
          %v5134 = vpop.f32.mrf.mxu0
          %v5135 = vadd.f32 0.0, %v5134
          %5136 = vmatmul.bf16.gmra.mxu0 %v4751
          %v5137 = vpop.f32.mrf.mxu0
          %v5138 = vadd.f32 0.0, %v5137
          %v5139 = vpop.f32.mrf.mxu0
          %v5140 = vadd.f32 0.0, %v5139
          %5141 = vmatmul.bf16.gmra.mxu0 %v4752
          %v5142 = vpop.f32.mrf.mxu0
          %v5143 = vadd.f32 0.0, %v5142
          %v5144 = vpop.f32.mrf.mxu0
          %v5145 = vadd.f32 0.0, %v5144
          %5146 = vmatmul.bf16.gmra.mxu0 %v4753
          %v5147 = vpop.f32.mrf.mxu0
          %v5148 = vadd.f32 0.0, %v5147
          %v5149 = vpop.f32.mrf.mxu0
          %v5150 = vadd.f32 0.0, %v5149
          %5151 = vmatmul.bf16.gmra.mxu0 %v4754
          %v5152 = vpop.f32.mrf.mxu0
          %v5153 = vadd.f32 0.0, %v5152
          %v5154 = vpop.f32.mrf.mxu0
          %v5155 = vadd.f32 0.0, %v5154
          %5156 = vmatmul.bf16.gmra.mxu0 %v4755
          %v5157 = vpop.f32.mrf.mxu0
          %v5158 = vadd.f32 0.0, %v5157
          %v5159 = vpop.f32.mrf.mxu0
          %v5160 = vadd.f32 0.0, %v5159
          %5161 = vmatmul.bf16.gmra.mxu0 %v4756
          %v5162 = vpop.f32.mrf.mxu0
          %v5163 = vadd.f32 0.0, %v5162
          %v5164 = vpop.f32.mrf.mxu0
          %v5165 = vadd.f32 0.0, %v5164
          %5166 = vmatmul.bf16.gmra.mxu0 %v4757
          %v5167 = vpop.f32.mrf.mxu0
          %v5168 = vadd.f32 0.0, %v5167
          %v5169 = vpop.f32.mrf.mxu0
          %v5170 = vadd.f32 0.0, %v5169
          %5171 = vmatmul.bf16.gmra.mxu0 %v4758
          %v5172 = vpop.f32.mrf.mxu0
          %v5173 = vadd.f32 0.0, %v5172
          %v5174 = vpop.f32.mrf.mxu0
          %v5175 = vadd.f32 0.0, %v5174
          %5176 = vmatmul.bf16.gmra.mxu0 %v4759
          %v5177 = vpop.f32.mrf.mxu0
          %v5178 = vadd.f32 0.0, %v5177
          %v5179 = vpop.f32.mrf.mxu0
          %v5180 = vadd.f32 0.0, %v5179
          %5181 = vmatmul.bf16.gmra.mxu0 %v4760
          %v5182 = vpop.f32.mrf.mxu0
          %v5183 = vadd.f32 0.0, %v5182
          %v5184 = vpop.f32.mrf.mxu0
          %v5185 = vadd.f32 0.0, %v5184
          %5186 = vmatmul.bf16.gmra.mxu0 %v4761
          %v5187 = vpop.f32.mrf.mxu0
          %v5188 = vadd.f32 0.0, %v5187
          %v5189 = vpop.f32.mrf.mxu0
          %v5190 = vadd.f32 0.0, %v5189
          %5191 = vmatmul.bf16.gmra.mxu0 %v4762
          %v5192 = vpop.f32.mrf.mxu0
          %v5193 = vadd.f32 0.0, %v5192
          %v5194 = vpop.f32.mrf.mxu0
          %v5195 = vadd.f32 0.0, %v5194
          %5196 = vmatmul.bf16.gmra.mxu0 %v4763
          %v5197 = vpop.f32.mrf.mxu0
          %v5198 = vadd.f32 0.0, %v5197
          %v5199 = vpop.f32.mrf.mxu0
          %v5200 = vadd.f32 0.0, %v5199
          %5201 = vmatmul.bf16.gmra.mxu0 %v4764
          %v5202 = vpop.f32.mrf.mxu0
          %v5203 = vadd.f32 0.0, %v5202
          %v5204 = vpop.f32.mrf.mxu0
          %v5205 = vadd.f32 0.0, %v5204
          %5206 = vmatmul.bf16.gmra.mxu0 %v4765
          %v5207 = vpop.f32.mrf.mxu0
          %v5208 = vadd.f32 0.0, %v5207
          %v5209 = vpop.f32.mrf.mxu0
          %v5210 = vadd.f32 0.0, %v5209
          %5211 = vmatmul.bf16.gmra.mxu0 %v4766
          %v5212 = vpop.f32.mrf.mxu0
          %v5213 = vadd.f32 0.0, %v5212
          %v5214 = vpop.f32.mrf.mxu0
          %v5215 = vadd.f32 0.0, %v5214
          %5216 = vmatmul.bf16.gmra.mxu0 %v4767
          %v5217 = vpop.f32.mrf.mxu0
          %v5218 = vadd.f32 0.0, %v5217
          %v5219 = vpop.f32.mrf.mxu0
          %v5220 = vadd.f32 0.0, %v5219
          %5221 = vmatmul.bf16.gmra.mxu0 %v4768
          %v5222 = vpop.f32.mrf.mxu0
          %v5223 = vadd.f32 0.0, %v5222
          %v5224 = vpop.f32.mrf.mxu0
          %v5225 = vadd.f32 0.0, %v5224
          %5226 = vmatmul.bf16.gmra.mxu0 %v4769
          %v5227 = vpop.f32.mrf.mxu0
          %v5228 = vadd.f32 0.0, %v5227
          %v5229 = vpop.f32.mrf.mxu0
          %v5230 = vadd.f32 0.0, %v5229
          %5231 = vmatmul.bf16.gmra.mxu0 %v4770
          %v5232 = vpop.f32.mrf.mxu0
          %v5233 = vadd.f32 0.0, %v5232
          %v5234 = vpop.f32.mrf.mxu0
          %v5235 = vadd.f32 0.0, %v5234
          %5236 = vdwg.mxu0
          %v5237 = vlaneseq
          %v5238 = vshrl.u32 %v5237, 7
          %v5239 = vadd.s32 %v5238, 8
          %v5240 = vadd.s32 %v5238, 16
          %v5241 = vadd.s32 %v5238, 24
          %v5242 = vadd.s32 %v5238, 32
          %v5243 = vadd.s32 %v5238, 40
          %v5244 = vadd.s32 %v5238, 48
          %v5245 = vadd.s32 %v5238, 56
          %v5246 = vadd.s32 %v5238, 64
          %v5247 = vadd.s32 %v5238, 72
          %v5248 = vadd.s32 %v5238, 80
          %v5249 = vadd.s32 %v5238, 88
          %v5250 = vadd.s32 %v5238, 96
          %v5251 = vadd.s32 %v5238, 104
          %v5252 = vadd.s32 %v5238, 112
          %v5253 = vadd.s32 %v5238, 120
          %v5254 = vadd.s32 %v5238, 128
          %v5255 = vadd.s32 %v5238, 136
          %v5256 = vadd.s32 %v5238, 144
          %v5257 = vadd.s32 %v5238, 152
          %v5258 = vadd.s32 %v5238, 160
          %v5259 = vadd.s32 %v5238, 168
          %v5260 = vadd.s32 %v5238, 176
          %v5261 = vadd.s32 %v5238, 184
          %v5262 = vadd.s32 %v5238, 192
          %v5263 = vadd.s32 %v5238, 200
          %v5264 = vadd.s32 %v5238, 208
          %v5265 = vadd.s32 %v5238, 216
          %v5266 = vadd.s32 %v5238, 224
          %v5267 = vadd.s32 %v5238, 232
          %v5268 = vadd.s32 %v5238, 240
          %v5269 = vadd.s32 %v5238, 248
          %v5270 = vadd.s32 %v5238, 256
          %v5271 = vadd.s32 %v5238, 264
          %v5272 = vadd.s32 %v5238, 272
          %v5273 = vadd.s32 %v5238, 280
          %v5274 = vadd.s32 %v5238, 288
          %v5275 = vadd.s32 %v5238, 296
          %v5276 = vadd.s32 %v5238, 304
          %v5277 = vadd.s32 %v5238, 312
          %v5278 = vadd.s32 %v5238, 320
          %v5279 = vadd.s32 %v5238, 328
          %v5280 = vadd.s32 %v5238, 336
          %v5281 = vadd.s32 %v5238, 344
          %v5282 = vadd.s32 %v5238, 352
          %v5283 = vadd.s32 %v5238, 360
          %v5284 = vadd.s32 %v5238, 368
          %v5285 = vadd.s32 %v5238, 376
          %v5286 = vadd.s32 %v5238, 384
          %v5287 = vadd.s32 %v5238, 392
          %v5288 = vadd.s32 %v5238, 400
          %v5289 = vadd.s32 %v5238, 408
          %v5290 = vadd.s32 %v5238, 416
          %v5291 = vadd.s32 %v5238, 424
          %v5292 = vadd.s32 %v5238, 432
          %v5293 = vadd.s32 %v5238, 440
          %v5294 = vadd.s32 %v5238, 448
          %v5295 = vadd.s32 %v5238, 456
          %v5296 = vadd.s32 %v5238, 464
          %v5297 = vadd.s32 %v5238, 472
          %v5298 = vadd.s32 %v5238, 480
          %v5299 = vadd.s32 %v5238, 488
          %v5300 = vadd.s32 %v5238, 496
          %v5301 = vadd.s32 %v5238, 504
          %vm5302 = vcmp.lt.s32.totalorder %v5238, 0
          %v5303 = vsub.s32 0, %v5238
          %v5304 = vsel %vm5302, %v5303, %v5238
          %v5305 = vshrl.u32 %v5304, 8
          %v5306 = vand.u32 %v5304, 255
          %v5307 = vsub.s32 0, %v5306
          %v5308 = vsel %vm5302, %v5307, %v5306
          %vm5309 = vcmp.lt.s32.totalorder %v5239, 0
          %v5310 = vsub.s32 0, %v5239
          %v5311 = vsel %vm5309, %v5310, %v5239
          %v5312 = vshrl.u32 %v5311, 8
          %v5313 = vand.u32 %v5311, 255
          %v5314 = vsub.s32 0, %v5313
          %v5315 = vsel %vm5309, %v5314, %v5313
          %vm5316 = vcmp.lt.s32.totalorder %v5240, 0
          %v5317 = vsub.s32 0, %v5240
          %v5318 = vsel %vm5316, %v5317, %v5240
          %v5319 = vshrl.u32 %v5318, 8
          %v5320 = vand.u32 %v5318, 255
          %v5321 = vsub.s32 0, %v5320
          %v5322 = vsel %vm5316, %v5321, %v5320
          %vm5323 = vcmp.lt.s32.totalorder %v5241, 0
          %v5324 = vsub.s32 0, %v5241
          %v5325 = vsel %vm5323, %v5324, %v5241
          %v5326 = vshrl.u32 %v5325, 8
          %v5327 = vand.u32 %v5325, 255
          %v5328 = vsub.s32 0, %v5327
          %v5329 = vsel %vm5323, %v5328, %v5327
          %vm5330 = vcmp.lt.s32.totalorder %v5242, 0
          %v5331 = vsub.s32 0, %v5242
          %v5332 = vsel %vm5330, %v5331, %v5242
          %v5333 = vshrl.u32 %v5332, 8
          %v5334 = vand.u32 %v5332, 255
          %v5335 = vsub.s32 0, %v5334
          %v5336 = vsel %vm5330, %v5335, %v5334
          %vm5337 = vcmp.lt.s32.totalorder %v5243, 0
          %v5338 = vsub.s32 0, %v5243
          %v5339 = vsel %vm5337, %v5338, %v5243
          %v5340 = vshrl.u32 %v5339, 8
          %v5341 = vand.u32 %v5339, 255
          %v5342 = vsub.s32 0, %v5341
          %v5343 = vsel %vm5337, %v5342, %v5341
          %vm5344 = vcmp.lt.s32.totalorder %v5244, 0
          %v5345 = vsub.s32 0, %v5244
          %v5346 = vsel %vm5344, %v5345, %v5244
          %v5347 = vshrl.u32 %v5346, 8
          %v5348 = vand.u32 %v5346, 255
          %v5349 = vsub.s32 0, %v5348
          %v5350 = vsel %vm5344, %v5349, %v5348
          %vm5351 = vcmp.lt.s32.totalorder %v5245, 0
          %v5352 = vsub.s32 0, %v5245
          %v5353 = vsel %vm5351, %v5352, %v5245
          %v5354 = vshrl.u32 %v5353, 8
          %v5355 = vand.u32 %v5353, 255
          %v5356 = vsub.s32 0, %v5355
          %v5357 = vsel %vm5351, %v5356, %v5355
          %vm5358 = vcmp.lt.s32.totalorder %v5246, 0
          %v5359 = vsub.s32 0, %v5246
          %v5360 = vsel %vm5358, %v5359, %v5246
          %v5361 = vshrl.u32 %v5360, 8
          %v5362 = vand.u32 %v5360, 255
          %v5363 = vsub.s32 0, %v5362
          %v5364 = vsel %vm5358, %v5363, %v5362
          %vm5365 = vcmp.lt.s32.totalorder %v5247, 0
          %v5366 = vsub.s32 0, %v5247
          %v5367 = vsel %vm5365, %v5366, %v5247
          %v5368 = vshrl.u32 %v5367, 8
          %v5369 = vand.u32 %v5367, 255
          %v5370 = vsub.s32 0, %v5369
          %v5371 = vsel %vm5365, %v5370, %v5369
          %vm5372 = vcmp.lt.s32.totalorder %v5248, 0
          %v5373 = vsub.s32 0, %v5248
          %v5374 = vsel %vm5372, %v5373, %v5248
          %v5375 = vshrl.u32 %v5374, 8
          %v5376 = vand.u32 %v5374, 255
          %v5377 = vsub.s32 0, %v5376
          %v5378 = vsel %vm5372, %v5377, %v5376
          %vm5379 = vcmp.lt.s32.totalorder %v5249, 0
          %v5380 = vsub.s32 0, %v5249
          %v5381 = vsel %vm5379, %v5380, %v5249
          %v5382 = vshrl.u32 %v5381, 8
          %v5383 = vand.u32 %v5381, 255
          %v5384 = vsub.s32 0, %v5383
          %v5385 = vsel %vm5379, %v5384, %v5383
          %vm5386 = vcmp.lt.s32.totalorder %v5250, 0
          %v5387 = vsub.s32 0, %v5250
          %v5388 = vsel %vm5386, %v5387, %v5250
          %v5389 = vshrl.u32 %v5388, 8
          %v5390 = vand.u32 %v5388, 255
          %v5391 = vsub.s32 0, %v5390
          %v5392 = vsel %vm5386, %v5391, %v5390
          %vm5393 = vcmp.lt.s32.totalorder %v5251, 0
          %v5394 = vsub.s32 0, %v5251
          %v5395 = vsel %vm5393, %v5394, %v5251
          %v5396 = vshrl.u32 %v5395, 8
          %v5397 = vand.u32 %v5395, 255
          %v5398 = vsub.s32 0, %v5397
          %v5399 = vsel %vm5393, %v5398, %v5397
          %vm5400 = vcmp.lt.s32.totalorder %v5252, 0
          %v5401 = vsub.s32 0, %v5252
          %v5402 = vsel %vm5400, %v5401, %v5252
          %v5403 = vshrl.u32 %v5402, 8
          %v5404 = vand.u32 %v5402, 255
          %v5405 = vsub.s32 0, %v5404
          %v5406 = vsel %vm5400, %v5405, %v5404
          %vm5407 = vcmp.lt.s32.totalorder %v5253, 0
          %v5408 = vsub.s32 0, %v5253
          %v5409 = vsel %vm5407, %v5408, %v5253
          %v5410 = vshrl.u32 %v5409, 8
          %v5411 = vand.u32 %v5409, 255
          %v5412 = vsub.s32 0, %v5411
          %v5413 = vsel %vm5407, %v5412, %v5411
          %vm5414 = vcmp.lt.s32.totalorder %v5254, 0
          %v5415 = vsub.s32 0, %v5254
          %v5416 = vsel %vm5414, %v5415, %v5254
          %v5417 = vshrl.u32 %v5416, 8
          %v5418 = vand.u32 %v5416, 255
          %v5419 = vsub.s32 0, %v5418
          %v5420 = vsel %vm5414, %v5419, %v5418
          %vm5421 = vcmp.lt.s32.totalorder %v5255, 0
          %v5422 = vsub.s32 0, %v5255
          %v5423 = vsel %vm5421, %v5422, %v5255
          %v5424 = vshrl.u32 %v5423, 8
          %v5425 = vand.u32 %v5423, 255
          %v5426 = vsub.s32 0, %v5425
          %v5427 = vsel %vm5421, %v5426, %v5425
          %vm5428 = vcmp.lt.s32.totalorder %v5256, 0
          %v5429 = vsub.s32 0, %v5256
          %v5430 = vsel %vm5428, %v5429, %v5256
          %v5431 = vshrl.u32 %v5430, 8
          %v5432 = vand.u32 %v5430, 255
          %v5433 = vsub.s32 0, %v5432
          %v5434 = vsel %vm5428, %v5433, %v5432
          %vm5435 = vcmp.lt.s32.totalorder %v5257, 0
          %v5436 = vsub.s32 0, %v5257
          %v5437 = vsel %vm5435, %v5436, %v5257
          %v5438 = vshrl.u32 %v5437, 8
          %v5439 = vand.u32 %v5437, 255
          %v5440 = vsub.s32 0, %v5439
          %v5441 = vsel %vm5435, %v5440, %v5439
          %vm5442 = vcmp.lt.s32.totalorder %v5258, 0
          %v5443 = vsub.s32 0, %v5258
          %v5444 = vsel %vm5442, %v5443, %v5258
          %v5445 = vshrl.u32 %v5444, 8
          %v5446 = vand.u32 %v5444, 255
          %v5447 = vsub.s32 0, %v5446
          %v5448 = vsel %vm5442, %v5447, %v5446
          %vm5449 = vcmp.lt.s32.totalorder %v5259, 0
          %v5450 = vsub.s32 0, %v5259
          %v5451 = vsel %vm5449, %v5450, %v5259
          %v5452 = vshrl.u32 %v5451, 8
          %v5453 = vand.u32 %v5451, 255
          %v5454 = vsub.s32 0, %v5453
          %v5455 = vsel %vm5449, %v5454, %v5453
          %vm5456 = vcmp.lt.s32.totalorder %v5260, 0
          %v5457 = vsub.s32 0, %v5260
          %v5458 = vsel %vm5456, %v5457, %v5260
          %v5459 = vshrl.u32 %v5458, 8
          %v5460 = vand.u32 %v5458, 255
          %v5461 = vsub.s32 0, %v5460
          %v5462 = vsel %vm5456, %v5461, %v5460
          %vm5463 = vcmp.lt.s32.totalorder %v5261, 0
          %v5464 = vsub.s32 0, %v5261
          %v5465 = vsel %vm5463, %v5464, %v5261
          %v5466 = vshrl.u32 %v5465, 8
          %v5467 = vand.u32 %v5465, 255
          %v5468 = vsub.s32 0, %v5467
          %v5469 = vsel %vm5463, %v5468, %v5467
          %vm5470 = vcmp.lt.s32.totalorder %v5262, 0
          %v5471 = vsub.s32 0, %v5262
          %v5472 = vsel %vm5470, %v5471, %v5262
          %v5473 = vshrl.u32 %v5472, 8
          %v5474 = vand.u32 %v5472, 255
          %v5475 = vsub.s32 0, %v5474
          %v5476 = vsel %vm5470, %v5475, %v5474
          %vm5477 = vcmp.lt.s32.totalorder %v5263, 0
          %v5478 = vsub.s32 0, %v5263
          %v5479 = vsel %vm5477, %v5478, %v5263
          %v5480 = vshrl.u32 %v5479, 8
          %v5481 = vand.u32 %v5479, 255
          %v5482 = vsub.s32 0, %v5481
          %v5483 = vsel %vm5477, %v5482, %v5481
          %vm5484 = vcmp.lt.s32.totalorder %v5264, 0
          %v5485 = vsub.s32 0, %v5264
          %v5486 = vsel %vm5484, %v5485, %v5264
          %v5487 = vshrl.u32 %v5486, 8
          %v5488 = vand.u32 %v5486, 255
          %v5489 = vsub.s32 0, %v5488
          %v5490 = vsel %vm5484, %v5489, %v5488
          %vm5491 = vcmp.lt.s32.totalorder %v5265, 0
          %v5492 = vsub.s32 0, %v5265
          %v5493 = vsel %vm5491, %v5492, %v5265
          %v5494 = vshrl.u32 %v5493, 8
          %v5495 = vand.u32 %v5493, 255
          %v5496 = vsub.s32 0, %v5495
          %v5497 = vsel %vm5491, %v5496, %v5495
          %vm5498 = vcmp.lt.s32.totalorder %v5266, 0
          %v5499 = vsub.s32 0, %v5266
          %v5500 = vsel %vm5498, %v5499, %v5266
          %v5501 = vshrl.u32 %v5500, 8
          %v5502 = vand.u32 %v5500, 255
          %v5503 = vsub.s32 0, %v5502
          %v5504 = vsel %vm5498, %v5503, %v5502
          %vm5505 = vcmp.lt.s32.totalorder %v5267, 0
          %v5506 = vsub.s32 0, %v5267
          %v5507 = vsel %vm5505, %v5506, %v5267
          %v5508 = vshrl.u32 %v5507, 8
          %v5509 = vand.u32 %v5507, 255
          %v5510 = vsub.s32 0, %v5509
          %v5511 = vsel %vm5505, %v5510, %v5509
          %vm5512 = vcmp.lt.s32.totalorder %v5268, 0
          %v5513 = vsub.s32 0, %v5268
          %v5514 = vsel %vm5512, %v5513, %v5268
          %v5515 = vshrl.u32 %v5514, 8
          %v5516 = vand.u32 %v5514, 255
          %v5517 = vsub.s32 0, %v5516
          %v5518 = vsel %vm5512, %v5517, %v5516
          %vm5519 = vcmp.lt.s32.totalorder %v5269, 0
          %v5520 = vsub.s32 0, %v5269
          %v5521 = vsel %vm5519, %v5520, %v5269
          %v5522 = vshrl.u32 %v5521, 8
          %v5523 = vand.u32 %v5521, 255
          %v5524 = vsub.s32 0, %v5523
          %v5525 = vsel %vm5519, %v5524, %v5523
          %vm5526 = vcmp.lt.s32.totalorder %v5270, 0
          %v5527 = vsub.s32 0, %v5270
          %v5528 = vsel %vm5526, %v5527, %v5270
          %v5529 = vshrl.u32 %v5528, 8
          %v5530 = vand.u32 %v5528, 255
          %v5531 = vsub.s32 0, %v5530
          %v5532 = vsel %vm5526, %v5531, %v5530
          %vm5533 = vcmp.lt.s32.totalorder %v5271, 0
          %v5534 = vsub.s32 0, %v5271
          %v5535 = vsel %vm5533, %v5534, %v5271
          %v5536 = vshrl.u32 %v5535, 8
          %v5537 = vand.u32 %v5535, 255
          %v5538 = vsub.s32 0, %v5537
          %v5539 = vsel %vm5533, %v5538, %v5537
          %vm5540 = vcmp.lt.s32.totalorder %v5272, 0
          %v5541 = vsub.s32 0, %v5272
          %v5542 = vsel %vm5540, %v5541, %v5272
          %v5543 = vshrl.u32 %v5542, 8
          %v5544 = vand.u32 %v5542, 255
          %v5545 = vsub.s32 0, %v5544
          %v5546 = vsel %vm5540, %v5545, %v5544
          %vm5547 = vcmp.lt.s32.totalorder %v5273, 0
          %v5548 = vsub.s32 0, %v5273
          %v5549 = vsel %vm5547, %v5548, %v5273
          %v5550 = vshrl.u32 %v5549, 8
          %v5551 = vand.u32 %v5549, 255
          %v5552 = vsub.s32 0, %v5551
          %v5553 = vsel %vm5547, %v5552, %v5551
          %vm5554 = vcmp.lt.s32.totalorder %v5274, 0
          %v5555 = vsub.s32 0, %v5274
          %v5556 = vsel %vm5554, %v5555, %v5274
          %v5557 = vshrl.u32 %v5556, 8
          %v5558 = vand.u32 %v5556, 255
          %v5559 = vsub.s32 0, %v5558
          %v5560 = vsel %vm5554, %v5559, %v5558
          %vm5561 = vcmp.lt.s32.totalorder %v5275, 0
          %v5562 = vsub.s32 0, %v5275
          %v5563 = vsel %vm5561, %v5562, %v5275
          %v5564 = vshrl.u32 %v5563, 8
          %v5565 = vand.u32 %v5563, 255
          %v5566 = vsub.s32 0, %v5565
          %v5567 = vsel %vm5561, %v5566, %v5565
          %vm5568 = vcmp.lt.s32.totalorder %v5276, 0
          %v5569 = vsub.s32 0, %v5276
          %v5570 = vsel %vm5568, %v5569, %v5276
          %v5571 = vshrl.u32 %v5570, 8
          %v5572 = vand.u32 %v5570, 255
          %v5573 = vsub.s32 0, %v5572
          %v5574 = vsel %vm5568, %v5573, %v5572
          %vm5575 = vcmp.lt.s32.totalorder %v5277, 0
          %v5576 = vsub.s32 0, %v5277
          %v5577 = vsel %vm5575, %v5576, %v5277
          %v5578 = vshrl.u32 %v5577, 8
          %v5579 = vand.u32 %v5577, 255
          %v5580 = vsub.s32 0, %v5579
          %v5581 = vsel %vm5575, %v5580, %v5579
          %vm5582 = vcmp.lt.s32.totalorder %v5278, 0
          %v5583 = vsub.s32 0, %v5278
          %v5584 = vsel %vm5582, %v5583, %v5278
          %v5585 = vshrl.u32 %v5584, 8
          %v5586 = vand.u32 %v5584, 255
          %v5587 = vsub.s32 0, %v5586
          %v5588 = vsel %vm5582, %v5587, %v5586
          %vm5589 = vcmp.lt.s32.totalorder %v5279, 0
          %v5590 = vsub.s32 0, %v5279
          %v5591 = vsel %vm5589, %v5590, %v5279
          %v5592 = vshrl.u32 %v5591, 8
          %v5593 = vand.u32 %v5591, 255
          %v5594 = vsub.s32 0, %v5593
          %v5595 = vsel %vm5589, %v5594, %v5593
          %vm5596 = vcmp.lt.s32.totalorder %v5280, 0
          %v5597 = vsub.s32 0, %v5280
          %v5598 = vsel %vm5596, %v5597, %v5280
          %v5599 = vshrl.u32 %v5598, 8
          %v5600 = vand.u32 %v5598, 255
          %v5601 = vsub.s32 0, %v5600
          %v5602 = vsel %vm5596, %v5601, %v5600
          %vm5603 = vcmp.lt.s32.totalorder %v5281, 0
          %v5604 = vsub.s32 0, %v5281
          %v5605 = vsel %vm5603, %v5604, %v5281
          %v5606 = vshrl.u32 %v5605, 8
          %v5607 = vand.u32 %v5605, 255
          %v5608 = vsub.s32 0, %v5607
          %v5609 = vsel %vm5603, %v5608, %v5607
          %vm5610 = vcmp.lt.s32.totalorder %v5282, 0
          %v5611 = vsub.s32 0, %v5282
          %v5612 = vsel %vm5610, %v5611, %v5282
          %v5613 = vshrl.u32 %v5612, 8
          %v5614 = vand.u32 %v5612, 255
          %v5615 = vsub.s32 0, %v5614
          %v5616 = vsel %vm5610, %v5615, %v5614
          %vm5617 = vcmp.lt.s32.totalorder %v5283, 0
          %v5618 = vsub.s32 0, %v5283
          %v5619 = vsel %vm5617, %v5618, %v5283
          %v5620 = vshrl.u32 %v5619, 8
          %v5621 = vand.u32 %v5619, 255
          %v5622 = vsub.s32 0, %v5621
          %v5623 = vsel %vm5617, %v5622, %v5621
          %vm5624 = vcmp.lt.s32.totalorder %v5284, 0
          %v5625 = vsub.s32 0, %v5284
          %v5626 = vsel %vm5624, %v5625, %v5284
          %v5627 = vshrl.u32 %v5626, 8
          %v5628 = vand.u32 %v5626, 255
          %v5629 = vsub.s32 0, %v5628
          %v5630 = vsel %vm5624, %v5629, %v5628
          %vm5631 = vcmp.lt.s32.totalorder %v5285, 0
          %v5632 = vsub.s32 0, %v5285
          %v5633 = vsel %vm5631, %v5632, %v5285
          %v5634 = vshrl.u32 %v5633, 8
          %v5635 = vand.u32 %v5633, 255
          %v5636 = vsub.s32 0, %v5635
          %v5637 = vsel %vm5631, %v5636, %v5635
          %vm5638 = vcmp.lt.s32.totalorder %v5286, 0
          %v5639 = vsub.s32 0, %v5286
          %v5640 = vsel %vm5638, %v5639, %v5286
          %v5641 = vshrl.u32 %v5640, 8
          %v5642 = vand.u32 %v5640, 255
          %v5643 = vsub.s32 0, %v5642
          %v5644 = vsel %vm5638, %v5643, %v5642
          %vm5645 = vcmp.lt.s32.totalorder %v5287, 0
          %v5646 = vsub.s32 0, %v5287
          %v5647 = vsel %vm5645, %v5646, %v5287
          %v5648 = vshrl.u32 %v5647, 8
          %v5649 = vand.u32 %v5647, 255
          %v5650 = vsub.s32 0, %v5649
          %v5651 = vsel %vm5645, %v5650, %v5649
          %vm5652 = vcmp.lt.s32.totalorder %v5288, 0
          %v5653 = vsub.s32 0, %v5288
          %v5654 = vsel %vm5652, %v5653, %v5288
          %v5655 = vshrl.u32 %v5654, 8
          %v5656 = vand.u32 %v5654, 255
          %v5657 = vsub.s32 0, %v5656
          %v5658 = vsel %vm5652, %v5657, %v5656
          %vm5659 = vcmp.lt.s32.totalorder %v5289, 0
          %v5660 = vsub.s32 0, %v5289
          %v5661 = vsel %vm5659, %v5660, %v5289
          %v5662 = vshrl.u32 %v5661, 8
          %v5663 = vand.u32 %v5661, 255
          %v5664 = vsub.s32 0, %v5663
          %v5665 = vsel %vm5659, %v5664, %v5663
          %vm5666 = vcmp.lt.s32.totalorder %v5290, 0
          %v5667 = vsub.s32 0, %v5290
          %v5668 = vsel %vm5666, %v5667, %v5290
          %v5669 = vshrl.u32 %v5668, 8
          %v5670 = vand.u32 %v5668, 255
          %v5671 = vsub.s32 0, %v5670
          %v5672 = vsel %vm5666, %v5671, %v5670
          %vm5673 = vcmp.lt.s32.totalorder %v5291, 0
          %v5674 = vsub.s32 0, %v5291
          %v5675 = vsel %vm5673, %v5674, %v5291
          %v5676 = vshrl.u32 %v5675, 8
          %v5677 = vand.u32 %v5675, 255
          %v5678 = vsub.s32 0, %v5677
          %v5679 = vsel %vm5673, %v5678, %v5677
          %vm5680 = vcmp.lt.s32.totalorder %v5292, 0
          %v5681 = vsub.s32 0, %v5292
          %v5682 = vsel %vm5680, %v5681, %v5292
          %v5683 = vshrl.u32 %v5682, 8
          %v5684 = vand.u32 %v5682, 255
          %v5685 = vsub.s32 0, %v5684
          %v5686 = vsel %vm5680, %v5685, %v5684
          %vm5687 = vcmp.lt.s32.totalorder %v5293, 0
          %v5688 = vsub.s32 0, %v5293
          %v5689 = vsel %vm5687, %v5688, %v5293
          %v5690 = vshrl.u32 %v5689, 8
          %v5691 = vand.u32 %v5689, 255
          %v5692 = vsub.s32 0, %v5691
          %v5693 = vsel %vm5687, %v5692, %v5691
          %vm5694 = vcmp.lt.s32.totalorder %v5294, 0
          %v5695 = vsub.s32 0, %v5294
          %v5696 = vsel %vm5694, %v5695, %v5294
          %v5697 = vshrl.u32 %v5696, 8
          %v5698 = vand.u32 %v5696, 255
          %v5699 = vsub.s32 0, %v5698
          %v5700 = vsel %vm5694, %v5699, %v5698
          %vm5701 = vcmp.lt.s32.totalorder %v5295, 0
          %v5702 = vsub.s32 0, %v5295
          %v5703 = vsel %vm5701, %v5702, %v5295
          %v5704 = vshrl.u32 %v5703, 8
          %v5705 = vand.u32 %v5703, 255
          %v5706 = vsub.s32 0, %v5705
          %v5707 = vsel %vm5701, %v5706, %v5705
          %vm5708 = vcmp.lt.s32.totalorder %v5296, 0
          %v5709 = vsub.s32 0, %v5296
          %v5710 = vsel %vm5708, %v5709, %v5296
          %v5711 = vshrl.u32 %v5710, 8
          %v5712 = vand.u32 %v5710, 255
          %v5713 = vsub.s32 0, %v5712
          %v5714 = vsel %vm5708, %v5713, %v5712
          %vm5715 = vcmp.lt.s32.totalorder %v5297, 0
          %v5716 = vsub.s32 0, %v5297
          %v5717 = vsel %vm5715, %v5716, %v5297
          %v5718 = vshrl.u32 %v5717, 8
          %v5719 = vand.u32 %v5717, 255
          %v5720 = vsub.s32 0, %v5719
          %v5721 = vsel %vm5715, %v5720, %v5719
          %vm5722 = vcmp.lt.s32.totalorder %v5298, 0
          %v5723 = vsub.s32 0, %v5298
          %v5724 = vsel %vm5722, %v5723, %v5298
          %v5725 = vshrl.u32 %v5724, 8
          %v5726 = vand.u32 %v5724, 255
          %v5727 = vsub.s32 0, %v5726
          %v5728 = vsel %vm5722, %v5727, %v5726
          %vm5729 = vcmp.lt.s32.totalorder %v5299, 0
          %v5730 = vsub.s32 0, %v5299
          %v5731 = vsel %vm5729, %v5730, %v5299
          %v5732 = vshrl.u32 %v5731, 8
          %v5733 = vand.u32 %v5731, 255
          %v5734 = vsub.s32 0, %v5733
          %v5735 = vsel %vm5729, %v5734, %v5733
          %vm5736 = vcmp.lt.s32.totalorder %v5300, 0
          %v5737 = vsub.s32 0, %v5300
          %v5738 = vsel %vm5736, %v5737, %v5300
          %v5739 = vshrl.u32 %v5738, 8
          %v5740 = vand.u32 %v5738, 255
          %v5741 = vsub.s32 0, %v5740
          %v5742 = vsel %vm5736, %v5741, %v5740
          %vm5743 = vcmp.lt.s32.totalorder %v5301, 0
          %v5744 = vsub.s32 0, %v5301
          %v5745 = vsel %vm5743, %v5744, %v5301
          %v5746 = vshrl.u32 %v5745, 8
          %v5747 = vand.u32 %v5745, 255
          %v5748 = vsub.s32 0, %v5747
          %v5749 = vsel %vm5743, %v5748, %v5747
          %vm5750 = vcmp.ne.s32.totalorder %v5308, 0
          %vm5751 = vcmp.ne.s32.totalorder %v5315, 0
          %vm5752 = vcmp.ne.s32.totalorder %v5322, 0
          %vm5753 = vcmp.ne.s32.totalorder %v5329, 0
          %vm5754 = vcmp.ne.s32.totalorder %v5336, 0
          %vm5755 = vcmp.ne.s32.totalorder %v5343, 0
          %vm5756 = vcmp.ne.s32.totalorder %v5350, 0
          %vm5757 = vcmp.ne.s32.totalorder %v5357, 0
          %vm5758 = vcmp.ne.s32.totalorder %v5364, 0
          %vm5759 = vcmp.ne.s32.totalorder %v5371, 0
          %vm5760 = vcmp.ne.s32.totalorder %v5378, 0
          %vm5761 = vcmp.ne.s32.totalorder %v5385, 0
          %vm5762 = vcmp.ne.s32.totalorder %v5392, 0
          %vm5763 = vcmp.ne.s32.totalorder %v5399, 0
          %vm5764 = vcmp.ne.s32.totalorder %v5406, 0
          %vm5765 = vcmp.ne.s32.totalorder %v5413, 0
          %vm5766 = vcmp.ne.s32.totalorder %v5420, 0
          %vm5767 = vcmp.ne.s32.totalorder %v5427, 0
          %vm5768 = vcmp.ne.s32.totalorder %v5434, 0
          %vm5769 = vcmp.ne.s32.totalorder %v5441, 0
          %vm5770 = vcmp.ne.s32.totalorder %v5448, 0
          %vm5771 = vcmp.ne.s32.totalorder %v5455, 0
          %vm5772 = vcmp.ne.s32.totalorder %v5462, 0
          %vm5773 = vcmp.ne.s32.totalorder %v5469, 0
          %vm5774 = vcmp.ne.s32.totalorder %v5476, 0
          %vm5775 = vcmp.ne.s32.totalorder %v5483, 0
          %vm5776 = vcmp.ne.s32.totalorder %v5490, 0
          %vm5777 = vcmp.ne.s32.totalorder %v5497, 0
          %vm5778 = vcmp.ne.s32.totalorder %v5504, 0
          %vm5779 = vcmp.ne.s32.totalorder %v5511, 0
          %vm5780 = vcmp.ne.s32.totalorder %v5518, 0
          %vm5781 = vcmp.ne.s32.totalorder %v5525, 0
          %vm5782 = vcmp.ne.s32.totalorder %v5532, 0
          %vm5783 = vcmp.ne.s32.totalorder %v5539, 0
          %vm5784 = vcmp.ne.s32.totalorder %v5546, 0
          %vm5785 = vcmp.ne.s32.totalorder %v5553, 0
          %vm5786 = vcmp.ne.s32.totalorder %v5560, 0
          %vm5787 = vcmp.ne.s32.totalorder %v5567, 0
          %vm5788 = vcmp.ne.s32.totalorder %v5574, 0
          %vm5789 = vcmp.ne.s32.totalorder %v5581, 0
          %vm5790 = vcmp.ne.s32.totalorder %v5588, 0
          %vm5791 = vcmp.ne.s32.totalorder %v5595, 0
          %vm5792 = vcmp.ne.s32.totalorder %v5602, 0
          %vm5793 = vcmp.ne.s32.totalorder %v5609, 0
          %vm5794 = vcmp.ne.s32.totalorder %v5616, 0
          %vm5795 = vcmp.ne.s32.totalorder %v5623, 0
          %vm5796 = vcmp.ne.s32.totalorder %v5630, 0
          %vm5797 = vcmp.ne.s32.totalorder %v5637, 0
          %vm5798 = vcmp.ne.s32.totalorder %v5644, 0
          %vm5799 = vcmp.ne.s32.totalorder %v5651, 0
          %vm5800 = vcmp.ne.s32.totalorder %v5658, 0
          %vm5801 = vcmp.ne.s32.totalorder %v5665, 0
          %vm5802 = vcmp.ne.s32.totalorder %v5672, 0
          %vm5803 = vcmp.ne.s32.totalorder %v5679, 0
          %vm5804 = vcmp.ne.s32.totalorder %v5686, 0
          %vm5805 = vcmp.ne.s32.totalorder %v5693, 0
          %vm5806 = vcmp.ne.s32.totalorder %v5700, 0
          %vm5807 = vcmp.ne.s32.totalorder %v5707, 0
          %vm5808 = vcmp.ne.s32.totalorder %v5714, 0
          %vm5809 = vcmp.ne.s32.totalorder %v5721, 0
          %vm5810 = vcmp.ne.s32.totalorder %v5728, 0
          %vm5811 = vcmp.ne.s32.totalorder %v5735, 0
          %vm5812 = vcmp.ne.s32.totalorder %v5742, 0
          %vm5813 = vcmp.ne.s32.totalorder %v5749, 0
          %vm5814 = vcmp.lt.s32.totalorder %v5308, 0
          %vm5815 = vcmp.lt.s32.totalorder %v5315, 0
          %vm5816 = vcmp.lt.s32.totalorder %v5322, 0
          %vm5817 = vcmp.lt.s32.totalorder %v5329, 0
          %vm5818 = vcmp.lt.s32.totalorder %v5336, 0
          %vm5819 = vcmp.lt.s32.totalorder %v5343, 0
          %vm5820 = vcmp.lt.s32.totalorder %v5350, 0
          %vm5821 = vcmp.lt.s32.totalorder %v5357, 0
          %vm5822 = vcmp.lt.s32.totalorder %v5364, 0
          %vm5823 = vcmp.lt.s32.totalorder %v5371, 0
          %vm5824 = vcmp.lt.s32.totalorder %v5378, 0
          %vm5825 = vcmp.lt.s32.totalorder %v5385, 0
          %vm5826 = vcmp.lt.s32.totalorder %v5392, 0
          %vm5827 = vcmp.lt.s32.totalorder %v5399, 0
          %vm5828 = vcmp.lt.s32.totalorder %v5406, 0
          %vm5829 = vcmp.lt.s32.totalorder %v5413, 0
          %vm5830 = vcmp.lt.s32.totalorder %v5420, 0
          %vm5831 = vcmp.lt.s32.totalorder %v5427, 0
          %vm5832 = vcmp.lt.s32.totalorder %v5434, 0
          %vm5833 = vcmp.lt.s32.totalorder %v5441, 0
          %vm5834 = vcmp.lt.s32.totalorder %v5448, 0
          %vm5835 = vcmp.lt.s32.totalorder %v5455, 0
          %vm5836 = vcmp.lt.s32.totalorder %v5462, 0
          %vm5837 = vcmp.lt.s32.totalorder %v5469, 0
          %vm5838 = vcmp.lt.s32.totalorder %v5476, 0
          %vm5839 = vcmp.lt.s32.totalorder %v5483, 0
          %vm5840 = vcmp.lt.s32.totalorder %v5490, 0
          %vm5841 = vcmp.lt.s32.totalorder %v5497, 0
          %vm5842 = vcmp.lt.s32.totalorder %v5504, 0
          %vm5843 = vcmp.lt.s32.totalorder %v5511, 0
          %vm5844 = vcmp.lt.s32.totalorder %v5518, 0
          %vm5845 = vcmp.lt.s32.totalorder %v5525, 0
          %vm5846 = vcmp.lt.s32.totalorder %v5532, 0
          %vm5847 = vcmp.lt.s32.totalorder %v5539, 0
          %vm5848 = vcmp.lt.s32.totalorder %v5546, 0
          %vm5849 = vcmp.lt.s32.totalorder %v5553, 0
          %vm5850 = vcmp.lt.s32.totalorder %v5560, 0
          %vm5851 = vcmp.lt.s32.totalorder %v5567, 0
          %vm5852 = vcmp.lt.s32.totalorder %v5574, 0
          %vm5853 = vcmp.lt.s32.totalorder %v5581, 0
          %vm5854 = vcmp.lt.s32.totalorder %v5588, 0
          %vm5855 = vcmp.lt.s32.totalorder %v5595, 0
          %vm5856 = vcmp.lt.s32.totalorder %v5602, 0
          %vm5857 = vcmp.lt.s32.totalorder %v5609, 0
          %vm5858 = vcmp.lt.s32.totalorder %v5616, 0
          %vm5859 = vcmp.lt.s32.totalorder %v5623, 0
          %vm5860 = vcmp.lt.s32.totalorder %v5630, 0
          %vm5861 = vcmp.lt.s32.totalorder %v5637, 0
          %vm5862 = vcmp.lt.s32.totalorder %v5644, 0
          %vm5863 = vcmp.lt.s32.totalorder %v5651, 0
          %vm5864 = vcmp.lt.s32.totalorder %v5658, 0
          %vm5865 = vcmp.lt.s32.totalorder %v5665, 0
          %vm5866 = vcmp.lt.s32.totalorder %v5672, 0
          %vm5867 = vcmp.lt.s32.totalorder %v5679, 0
          %vm5868 = vcmp.lt.s32.totalorder %v5686, 0
          %vm5869 = vcmp.lt.s32.totalorder %v5693, 0
          %vm5870 = vcmp.lt.s32.totalorder %v5700, 0
          %vm5871 = vcmp.lt.s32.totalorder %v5707, 0
          %vm5872 = vcmp.lt.s32.totalorder %v5714, 0
          %vm5873 = vcmp.lt.s32.totalorder %v5721, 0
          %vm5874 = vcmp.lt.s32.totalorder %v5728, 0
          %vm5875 = vcmp.lt.s32.totalorder %v5735, 0
          %vm5876 = vcmp.lt.s32.totalorder %v5742, 0
          %vm5877 = vcmp.lt.s32.totalorder %v5749, 0
          %vm5878 = vmand %vm5814, %vm5750
          %vm5879 = vmand %vm5815, %vm5751
          %vm5880 = vmand %vm5816, %vm5752
          %vm5881 = vmand %vm5817, %vm5753
          %vm5882 = vmand %vm5818, %vm5754
          %vm5883 = vmand %vm5819, %vm5755
          %vm5884 = vmand %vm5820, %vm5756
          %vm5885 = vmand %vm5821, %vm5757
          %vm5886 = vmand %vm5822, %vm5758
          %vm5887 = vmand %vm5823, %vm5759
          %vm5888 = vmand %vm5824, %vm5760
          %vm5889 = vmand %vm5825, %vm5761
          %vm5890 = vmand %vm5826, %vm5762
          %vm5891 = vmand %vm5827, %vm5763
          %vm5892 = vmand %vm5828, %vm5764
          %vm5893 = vmand %vm5829, %vm5765
          %vm5894 = vmand %vm5830, %vm5766
          %vm5895 = vmand %vm5831, %vm5767
          %vm5896 = vmand %vm5832, %vm5768
          %vm5897 = vmand %vm5833, %vm5769
          %vm5898 = vmand %vm5834, %vm5770
          %vm5899 = vmand %vm5835, %vm5771
          %vm5900 = vmand %vm5836, %vm5772
          %vm5901 = vmand %vm5837, %vm5773
          %vm5902 = vmand %vm5838, %vm5774
          %vm5903 = vmand %vm5839, %vm5775
          %vm5904 = vmand %vm5840, %vm5776
          %vm5905 = vmand %vm5841, %vm5777
          %vm5906 = vmand %vm5842, %vm5778
          %vm5907 = vmand %vm5843, %vm5779
          %vm5908 = vmand %vm5844, %vm5780
          %vm5909 = vmand %vm5845, %vm5781
          %vm5910 = vmand %vm5846, %vm5782
          %vm5911 = vmand %vm5847, %vm5783
          %vm5912 = vmand %vm5848, %vm5784
          %vm5913 = vmand %vm5849, %vm5785
          %vm5914 = vmand %vm5850, %vm5786
          %vm5915 = vmand %vm5851, %vm5787
          %vm5916 = vmand %vm5852, %vm5788
          %vm5917 = vmand %vm5853, %vm5789
          %vm5918 = vmand %vm5854, %vm5790
          %vm5919 = vmand %vm5855, %vm5791
          %vm5920 = vmand %vm5856, %vm5792
          %vm5921 = vmand %vm5857, %vm5793
          %vm5922 = vmand %vm5858, %vm5794
          %vm5923 = vmand %vm5859, %vm5795
          %vm5924 = vmand %vm5860, %vm5796
          %vm5925 = vmand %vm5861, %vm5797
          %vm5926 = vmand %vm5862, %vm5798
          %vm5927 = vmand %vm5863, %vm5799
          %vm5928 = vmand %vm5864, %vm5800
          %vm5929 = vmand %vm5865, %vm5801
          %vm5930 = vmand %vm5866, %vm5802
          %vm5931 = vmand %vm5867, %vm5803
          %vm5932 = vmand %vm5868, %vm5804
          %vm5933 = vmand %vm5869, %vm5805
          %vm5934 = vmand %vm5870, %vm5806
          %vm5935 = vmand %vm5871, %vm5807
          %vm5936 = vmand %vm5872, %vm5808
          %vm5937 = vmand %vm5873, %vm5809
          %vm5938 = vmand %vm5874, %vm5810
          %vm5939 = vmand %vm5875, %vm5811
          %vm5940 = vmand %vm5876, %vm5812
          %vm5941 = vmand %vm5877, %vm5813
          %v5942 = vadd.s32 %v5308, 256
          %v5943 = vadd.s32 %v5315, 256
          %v5944 = vadd.s32 %v5322, 256
          %v5945 = vadd.s32 %v5329, 256
          %v5946 = vadd.s32 %v5336, 256
          %v5947 = vadd.s32 %v5343, 256
          %v5948 = vadd.s32 %v5350, 256
          %v5949 = vadd.s32 %v5357, 256
          %v5950 = vadd.s32 %v5364, 256
          %v5951 = vadd.s32 %v5371, 256
          %v5952 = vadd.s32 %v5378, 256
          %v5953 = vadd.s32 %v5385, 256
          %v5954 = vadd.s32 %v5392, 256
          %v5955 = vadd.s32 %v5399, 256
          %v5956 = vadd.s32 %v5406, 256
          %v5957 = vadd.s32 %v5413, 256
          %v5958 = vadd.s32 %v5420, 256
          %v5959 = vadd.s32 %v5427, 256
          %v5960 = vadd.s32 %v5434, 256
          %v5961 = vadd.s32 %v5441, 256
          %v5962 = vadd.s32 %v5448, 256
          %v5963 = vadd.s32 %v5455, 256
          %v5964 = vadd.s32 %v5462, 256
          %v5965 = vadd.s32 %v5469, 256
          %v5966 = vadd.s32 %v5476, 256
          %v5967 = vadd.s32 %v5483, 256
          %v5968 = vadd.s32 %v5490, 256
          %v5969 = vadd.s32 %v5497, 256
          %v5970 = vadd.s32 %v5504, 256
          %v5971 = vadd.s32 %v5511, 256
          %v5972 = vadd.s32 %v5518, 256
          %v5973 = vadd.s32 %v5525, 256
          %v5974 = vadd.s32 %v5532, 256
          %v5975 = vadd.s32 %v5539, 256
          %v5976 = vadd.s32 %v5546, 256
          %v5977 = vadd.s32 %v5553, 256
          %v5978 = vadd.s32 %v5560, 256
          %v5979 = vadd.s32 %v5567, 256
          %v5980 = vadd.s32 %v5574, 256
          %v5981 = vadd.s32 %v5581, 256
          %v5982 = vadd.s32 %v5588, 256
          %v5983 = vadd.s32 %v5595, 256
          %v5984 = vadd.s32 %v5602, 256
          %v5985 = vadd.s32 %v5609, 256
          %v5986 = vadd.s32 %v5616, 256
          %v5987 = vadd.s32 %v5623, 256
          %v5988 = vadd.s32 %v5630, 256
          %v5989 = vadd.s32 %v5637, 256
          %v5990 = vadd.s32 %v5644, 256
          %v5991 = vadd.s32 %v5651, 256
          %v5992 = vadd.s32 %v5658, 256
          %v5993 = vadd.s32 %v5665, 256
          %v5994 = vadd.s32 %v5672, 256
          %v5995 = vadd.s32 %v5679, 256
          %v5996 = vadd.s32 %v5686, 256
          %v5997 = vadd.s32 %v5693, 256
          %v5998 = vadd.s32 %v5700, 256
          %v5999 = vadd.s32 %v5707, 256
          %v6000 = vadd.s32 %v5714, 256
          %v6001 = vadd.s32 %v5721, 256
          %v6002 = vadd.s32 %v5728, 256
          %v6003 = vadd.s32 %v5735, 256
          %v6004 = vadd.s32 %v5742, 256
          %v6005 = vadd.s32 %v5749, 256
          %v6006 = vsel %vm5878, %v5942, %v5308
          %v6007 = vsel %vm5879, %v5943, %v5315
          %v6008 = vsel %vm5880, %v5944, %v5322
          %v6009 = vsel %vm5881, %v5945, %v5329
          %v6010 = vsel %vm5882, %v5946, %v5336
          %v6011 = vsel %vm5883, %v5947, %v5343
          %v6012 = vsel %vm5884, %v5948, %v5350
          %v6013 = vsel %vm5885, %v5949, %v5357
          %v6014 = vsel %vm5886, %v5950, %v5364
          %v6015 = vsel %vm5887, %v5951, %v5371
          %v6016 = vsel %vm5888, %v5952, %v5378
          %v6017 = vsel %vm5889, %v5953, %v5385
          %v6018 = vsel %vm5890, %v5954, %v5392
          %v6019 = vsel %vm5891, %v5955, %v5399
          %v6020 = vsel %vm5892, %v5956, %v5406
          %v6021 = vsel %vm5893, %v5957, %v5413
          %v6022 = vsel %vm5894, %v5958, %v5420
          %v6023 = vsel %vm5895, %v5959, %v5427
          %v6024 = vsel %vm5896, %v5960, %v5434
          %v6025 = vsel %vm5897, %v5961, %v5441
          %v6026 = vsel %vm5898, %v5962, %v5448
          %v6027 = vsel %vm5899, %v5963, %v5455
          %v6028 = vsel %vm5900, %v5964, %v5462
          %v6029 = vsel %vm5901, %v5965, %v5469
          %v6030 = vsel %vm5902, %v5966, %v5476
          %v6031 = vsel %vm5903, %v5967, %v5483
          %v6032 = vsel %vm5904, %v5968, %v5490
          %v6033 = vsel %vm5905, %v5969, %v5497
          %v6034 = vsel %vm5906, %v5970, %v5504
          %v6035 = vsel %vm5907, %v5971, %v5511
          %v6036 = vsel %vm5908, %v5972, %v5518
          %v6037 = vsel %vm5909, %v5973, %v5525
          %v6038 = vsel %vm5910, %v5974, %v5532
          %v6039 = vsel %vm5911, %v5975, %v5539
          %v6040 = vsel %vm5912, %v5976, %v5546
          %v6041 = vsel %vm5913, %v5977, %v5553
          %v6042 = vsel %vm5914, %v5978, %v5560
          %v6043 = vsel %vm5915, %v5979, %v5567
          %v6044 = vsel %vm5916, %v5980, %v5574
          %v6045 = vsel %vm5917, %v5981, %v5581
          %v6046 = vsel %vm5918, %v5982, %v5588
          %v6047 = vsel %vm5919, %v5983, %v5595
          %v6048 = vsel %vm5920, %v5984, %v5602
          %v6049 = vsel %vm5921, %v5985, %v5609
          %v6050 = vsel %vm5922, %v5986, %v5616
          %v6051 = vsel %vm5923, %v5987, %v5623
          %v6052 = vsel %vm5924, %v5988, %v5630
          %v6053 = vsel %vm5925, %v5989, %v5637
          %v6054 = vsel %vm5926, %v5990, %v5644
          %v6055 = vsel %vm5927, %v5991, %v5651
          %v6056 = vsel %vm5928, %v5992, %v5658
          %v6057 = vsel %vm5929, %v5993, %v5665
          %v6058 = vsel %vm5930, %v5994, %v5672
          %v6059 = vsel %vm5931, %v5995, %v5679
          %v6060 = vsel %vm5932, %v5996, %v5686
          %v6061 = vsel %vm5933, %v5997, %v5693
          %v6062 = vsel %vm5934, %v5998, %v5700
          %v6063 = vsel %vm5935, %v5999, %v5707
          %v6064 = vsel %vm5936, %v6000, %v5714
          %v6065 = vsel %vm5937, %v6001, %v5721
          %v6066 = vsel %vm5938, %v6002, %v5728
          %v6067 = vsel %vm5939, %v6003, %v5735
          %v6068 = vsel %vm5940, %v6004, %v5742
          %v6069 = vsel %vm5941, %v6005, %v5749
          %v6070 = vlaneseq
          %v6071 = vand.u32 %v6070, 127
          %v6072 = vadd.s32 %v6071, 128
          %vm6073 = vcmp.ge.s32.totalorder %v6006, %v6071
          %vm6074 = vcmp.ge.s32.totalorder %v6006, %v6072
          %vm6075 = vcmp.ge.s32.totalorder %v6007, %v6071
          %vm6076 = vcmp.ge.s32.totalorder %v6007, %v6072
          %vm6077 = vcmp.ge.s32.totalorder %v6008, %v6071
          %vm6078 = vcmp.ge.s32.totalorder %v6008, %v6072
          %vm6079 = vcmp.ge.s32.totalorder %v6009, %v6071
          %vm6080 = vcmp.ge.s32.totalorder %v6009, %v6072
          %vm6081 = vcmp.ge.s32.totalorder %v6010, %v6071
          %vm6082 = vcmp.ge.s32.totalorder %v6010, %v6072
          %vm6083 = vcmp.ge.s32.totalorder %v6011, %v6071
          %vm6084 = vcmp.ge.s32.totalorder %v6011, %v6072
          %vm6085 = vcmp.ge.s32.totalorder %v6012, %v6071
          %vm6086 = vcmp.ge.s32.totalorder %v6012, %v6072
          %vm6087 = vcmp.ge.s32.totalorder %v6013, %v6071
          %vm6088 = vcmp.ge.s32.totalorder %v6013, %v6072
          %vm6089 = vcmp.ge.s32.totalorder %v6014, %v6071
          %vm6090 = vcmp.ge.s32.totalorder %v6014, %v6072
          %vm6091 = vcmp.ge.s32.totalorder %v6015, %v6071
          %vm6092 = vcmp.ge.s32.totalorder %v6015, %v6072
          %vm6093 = vcmp.ge.s32.totalorder %v6016, %v6071
          %vm6094 = vcmp.ge.s32.totalorder %v6016, %v6072
          %vm6095 = vcmp.ge.s32.totalorder %v6017, %v6071
          %vm6096 = vcmp.ge.s32.totalorder %v6017, %v6072
          %vm6097 = vcmp.ge.s32.totalorder %v6018, %v6071
          %vm6098 = vcmp.ge.s32.totalorder %v6018, %v6072
          %vm6099 = vcmp.ge.s32.totalorder %v6019, %v6071
          %vm6100 = vcmp.ge.s32.totalorder %v6019, %v6072
          %vm6101 = vcmp.ge.s32.totalorder %v6020, %v6071
          %vm6102 = vcmp.ge.s32.totalorder %v6020, %v6072
          %vm6103 = vcmp.ge.s32.totalorder %v6021, %v6071
          %vm6104 = vcmp.ge.s32.totalorder %v6021, %v6072
          %vm6105 = vcmp.ge.s32.totalorder %v6022, %v6071
          %vm6106 = vcmp.ge.s32.totalorder %v6022, %v6072
          %vm6107 = vcmp.ge.s32.totalorder %v6023, %v6071
          %vm6108 = vcmp.ge.s32.totalorder %v6023, %v6072
          %vm6109 = vcmp.ge.s32.totalorder %v6024, %v6071
          %vm6110 = vcmp.ge.s32.totalorder %v6024, %v6072
          %vm6111 = vcmp.ge.s32.totalorder %v6025, %v6071
          %vm6112 = vcmp.ge.s32.totalorder %v6025, %v6072
          %vm6113 = vcmp.ge.s32.totalorder %v6026, %v6071
          %vm6114 = vcmp.ge.s32.totalorder %v6026, %v6072
          %vm6115 = vcmp.ge.s32.totalorder %v6027, %v6071
          %vm6116 = vcmp.ge.s32.totalorder %v6027, %v6072
          %vm6117 = vcmp.ge.s32.totalorder %v6028, %v6071
          %vm6118 = vcmp.ge.s32.totalorder %v6028, %v6072
          %vm6119 = vcmp.ge.s32.totalorder %v6029, %v6071
          %vm6120 = vcmp.ge.s32.totalorder %v6029, %v6072
          %vm6121 = vcmp.ge.s32.totalorder %v6030, %v6071
          %vm6122 = vcmp.ge.s32.totalorder %v6030, %v6072
          %vm6123 = vcmp.ge.s32.totalorder %v6031, %v6071
          %vm6124 = vcmp.ge.s32.totalorder %v6031, %v6072
          %vm6125 = vcmp.ge.s32.totalorder %v6032, %v6071
          %vm6126 = vcmp.ge.s32.totalorder %v6032, %v6072
          %vm6127 = vcmp.ge.s32.totalorder %v6033, %v6071
          %vm6128 = vcmp.ge.s32.totalorder %v6033, %v6072
          %vm6129 = vcmp.ge.s32.totalorder %v6034, %v6071
          %vm6130 = vcmp.ge.s32.totalorder %v6034, %v6072
          %vm6131 = vcmp.ge.s32.totalorder %v6035, %v6071
          %vm6132 = vcmp.ge.s32.totalorder %v6035, %v6072
          %vm6133 = vcmp.ge.s32.totalorder %v6036, %v6071
          %vm6134 = vcmp.ge.s32.totalorder %v6036, %v6072
          %vm6135 = vcmp.ge.s32.totalorder %v6037, %v6071
          %vm6136 = vcmp.ge.s32.totalorder %v6037, %v6072
          %vm6137 = vcmp.ge.s32.totalorder %v6038, %v6071
          %vm6138 = vcmp.ge.s32.totalorder %v6038, %v6072
          %vm6139 = vcmp.ge.s32.totalorder %v6039, %v6071
          %vm6140 = vcmp.ge.s32.totalorder %v6039, %v6072
          %vm6141 = vcmp.ge.s32.totalorder %v6040, %v6071
          %vm6142 = vcmp.ge.s32.totalorder %v6040, %v6072
          %vm6143 = vcmp.ge.s32.totalorder %v6041, %v6071
          %vm6144 = vcmp.ge.s32.totalorder %v6041, %v6072
          %vm6145 = vcmp.ge.s32.totalorder %v6042, %v6071
          %vm6146 = vcmp.ge.s32.totalorder %v6042, %v6072
          %vm6147 = vcmp.ge.s32.totalorder %v6043, %v6071
          %vm6148 = vcmp.ge.s32.totalorder %v6043, %v6072
          %vm6149 = vcmp.ge.s32.totalorder %v6044, %v6071
          %vm6150 = vcmp.ge.s32.totalorder %v6044, %v6072
          %vm6151 = vcmp.ge.s32.totalorder %v6045, %v6071
          %vm6152 = vcmp.ge.s32.totalorder %v6045, %v6072
          %vm6153 = vcmp.ge.s32.totalorder %v6046, %v6071
          %vm6154 = vcmp.ge.s32.totalorder %v6046, %v6072
          %vm6155 = vcmp.ge.s32.totalorder %v6047, %v6071
          %vm6156 = vcmp.ge.s32.totalorder %v6047, %v6072
          %vm6157 = vcmp.ge.s32.totalorder %v6048, %v6071
          %vm6158 = vcmp.ge.s32.totalorder %v6048, %v6072
          %vm6159 = vcmp.ge.s32.totalorder %v6049, %v6071
          %vm6160 = vcmp.ge.s32.totalorder %v6049, %v6072
          %vm6161 = vcmp.ge.s32.totalorder %v6050, %v6071
          %vm6162 = vcmp.ge.s32.totalorder %v6050, %v6072
          %vm6163 = vcmp.ge.s32.totalorder %v6051, %v6071
          %vm6164 = vcmp.ge.s32.totalorder %v6051, %v6072
          %vm6165 = vcmp.ge.s32.totalorder %v6052, %v6071
          %vm6166 = vcmp.ge.s32.totalorder %v6052, %v6072
          %vm6167 = vcmp.ge.s32.totalorder %v6053, %v6071
          %vm6168 = vcmp.ge.s32.totalorder %v6053, %v6072
          %vm6169 = vcmp.ge.s32.totalorder %v6054, %v6071
          %vm6170 = vcmp.ge.s32.totalorder %v6054, %v6072
          %vm6171 = vcmp.ge.s32.totalorder %v6055, %v6071
          %vm6172 = vcmp.ge.s32.totalorder %v6055, %v6072
          %vm6173 = vcmp.ge.s32.totalorder %v6056, %v6071
          %vm6174 = vcmp.ge.s32.totalorder %v6056, %v6072
          %vm6175 = vcmp.ge.s32.totalorder %v6057, %v6071
          %vm6176 = vcmp.ge.s32.totalorder %v6057, %v6072
          %vm6177 = vcmp.ge.s32.totalorder %v6058, %v6071
          %vm6178 = vcmp.ge.s32.totalorder %v6058, %v6072
          %vm6179 = vcmp.ge.s32.totalorder %v6059, %v6071
          %vm6180 = vcmp.ge.s32.totalorder %v6059, %v6072
          %vm6181 = vcmp.ge.s32.totalorder %v6060, %v6071
          %vm6182 = vcmp.ge.s32.totalorder %v6060, %v6072
          %vm6183 = vcmp.ge.s32.totalorder %v6061, %v6071
          %vm6184 = vcmp.ge.s32.totalorder %v6061, %v6072
          %vm6185 = vcmp.ge.s32.totalorder %v6062, %v6071
          %vm6186 = vcmp.ge.s32.totalorder %v6062, %v6072
          %vm6187 = vcmp.ge.s32.totalorder %v6063, %v6071
          %vm6188 = vcmp.ge.s32.totalorder %v6063, %v6072
          %vm6189 = vcmp.ge.s32.totalorder %v6064, %v6071
          %vm6190 = vcmp.ge.s32.totalorder %v6064, %v6072
          %vm6191 = vcmp.ge.s32.totalorder %v6065, %v6071
          %vm6192 = vcmp.ge.s32.totalorder %v6065, %v6072
          %vm6193 = vcmp.ge.s32.totalorder %v6066, %v6071
          %vm6194 = vcmp.ge.s32.totalorder %v6066, %v6072
          %vm6195 = vcmp.ge.s32.totalorder %v6067, %v6071
          %vm6196 = vcmp.ge.s32.totalorder %v6067, %v6072
          %vm6197 = vcmp.ge.s32.totalorder %v6068, %v6071
          %vm6198 = vcmp.ge.s32.totalorder %v6068, %v6072
          %vm6199 = vcmp.ge.s32.totalorder %v6069, %v6071
          %vm6200 = vcmp.ge.s32.totalorder %v6069, %v6072
          %v6201 = vsel %vm6073, %v4909, -inf
          %v6202 = vsel %vm6074, %v5078, -inf
          %v6203 = vsel %vm6075, %v4911, -inf
          %v6204 = vsel %vm6076, %v5080, -inf
          %v6205 = vsel %vm6077, %v4914, -inf
          %v6206 = vsel %vm6078, %v5083, -inf
          %v6207 = vsel %vm6079, %v4916, -inf
          %v6208 = vsel %vm6080, %v5085, -inf
          %v6209 = vsel %vm6081, %v4919, -inf
          %v6210 = vsel %vm6082, %v5088, -inf
          %v6211 = vsel %vm6083, %v4921, -inf
          %v6212 = vsel %vm6084, %v5090, -inf
          %v6213 = vsel %vm6085, %v4924, -inf
          %v6214 = vsel %vm6086, %v5093, -inf
          %v6215 = vsel %vm6087, %v4926, -inf
          %v6216 = vsel %vm6088, %v5095, -inf
          %v6217 = vsel %vm6089, %v4929, -inf
          %v6218 = vsel %vm6090, %v5098, -inf
          %v6219 = vsel %vm6091, %v4931, -inf
          %v6220 = vsel %vm6092, %v5100, -inf
          %v6221 = vsel %vm6093, %v4934, -inf
          %v6222 = vsel %vm6094, %v5103, -inf
          %v6223 = vsel %vm6095, %v4936, -inf
          %v6224 = vsel %vm6096, %v5105, -inf
          %v6225 = vsel %vm6097, %v4939, -inf
          %v6226 = vsel %vm6098, %v5108, -inf
          %v6227 = vsel %vm6099, %v4941, -inf
          %v6228 = vsel %vm6100, %v5110, -inf
          %v6229 = vsel %vm6101, %v4944, -inf
          %v6230 = vsel %vm6102, %v5113, -inf
          %v6231 = vsel %vm6103, %v4946, -inf
          %v6232 = vsel %vm6104, %v5115, -inf
          %v6233 = vsel %vm6105, %v4949, -inf
          %v6234 = vsel %vm6106, %v5118, -inf
          %v6235 = vsel %vm6107, %v4951, -inf
          %v6236 = vsel %vm6108, %v5120, -inf
          %v6237 = vsel %vm6109, %v4954, -inf
          %v6238 = vsel %vm6110, %v5123, -inf
          %v6239 = vsel %vm6111, %v4956, -inf
          %v6240 = vsel %vm6112, %v5125, -inf
          %v6241 = vsel %vm6113, %v4959, -inf
          %v6242 = vsel %vm6114, %v5128, -inf
          %v6243 = vsel %vm6115, %v4961, -inf
          %v6244 = vsel %vm6116, %v5130, -inf
          %v6245 = vsel %vm6117, %v4964, -inf
          %v6246 = vsel %vm6118, %v5133, -inf
          %v6247 = vsel %vm6119, %v4966, -inf
          %v6248 = vsel %vm6120, %v5135, -inf
          %v6249 = vsel %vm6121, %v4969, -inf
          %v6250 = vsel %vm6122, %v5138, -inf
          %v6251 = vsel %vm6123, %v4971, -inf
          %v6252 = vsel %vm6124, %v5140, -inf
          %v6253 = vsel %vm6125, %v4974, -inf
          %v6254 = vsel %vm6126, %v5143, -inf
          %v6255 = vsel %vm6127, %v4976, -inf
          %v6256 = vsel %vm6128, %v5145, -inf
          %v6257 = vsel %vm6129, %v4979, -inf
          %v6258 = vsel %vm6130, %v5148, -inf
          %v6259 = vsel %vm6131, %v4981, -inf
          %v6260 = vsel %vm6132, %v5150, -inf
          %v6261 = vsel %vm6133, %v4984, -inf
          %v6262 = vsel %vm6134, %v5153, -inf
          %v6263 = vsel %vm6135, %v4986, -inf
          %v6264 = vsel %vm6136, %v5155, -inf
          %v6265 = vsel %vm6137, %v4989, -inf
          %v6266 = vsel %vm6138, %v5158, -inf
          %v6267 = vsel %vm6139, %v4991, -inf
          %v6268 = vsel %vm6140, %v5160, -inf
          %v6269 = vsel %vm6141, %v4994, -inf
          %v6270 = vsel %vm6142, %v5163, -inf
          %v6271 = vsel %vm6143, %v4996, -inf
          %v6272 = vsel %vm6144, %v5165, -inf
          %v6273 = vsel %vm6145, %v4999, -inf
          %v6274 = vsel %vm6146, %v5168, -inf
          %v6275 = vsel %vm6147, %v5001, -inf
          %v6276 = vsel %vm6148, %v5170, -inf
          %v6277 = vsel %vm6149, %v5004, -inf
          %v6278 = vsel %vm6150, %v5173, -inf
          %v6279 = vsel %vm6151, %v5006, -inf
          %v6280 = vsel %vm6152, %v5175, -inf
          %v6281 = vsel %vm6153, %v5009, -inf
          %v6282 = vsel %vm6154, %v5178, -inf
          %v6283 = vsel %vm6155, %v5011, -inf
          %v6284 = vsel %vm6156, %v5180, -inf
          %v6285 = vsel %vm6157, %v5014, -inf
          %v6286 = vsel %vm6158, %v5183, -inf
          %v6287 = vsel %vm6159, %v5016, -inf
          %v6288 = vsel %vm6160, %v5185, -inf
          %v6289 = vsel %vm6161, %v5019, -inf
          %v6290 = vsel %vm6162, %v5188, -inf
          %v6291 = vsel %vm6163, %v5021, -inf
          %v6292 = vsel %vm6164, %v5190, -inf
          %v6293 = vsel %vm6165, %v5024, -inf
          %v6294 = vsel %vm6166, %v5193, -inf
          %v6295 = vsel %vm6167, %v5026, -inf
          %v6296 = vsel %vm6168, %v5195, -inf
          %v6297 = vsel %vm6169, %v5029, -inf
          %v6298 = vsel %vm6170, %v5198, -inf
          %v6299 = vsel %vm6171, %v5031, -inf
          %v6300 = vsel %vm6172, %v5200, -inf
          %v6301 = vsel %vm6173, %v5034, -inf
          %v6302 = vsel %vm6174, %v5203, -inf
          %v6303 = vsel %vm6175, %v5036, -inf
          %v6304 = vsel %vm6176, %v5205, -inf
          %v6305 = vsel %vm6177, %v5039, -inf
          %v6306 = vsel %vm6178, %v5208, -inf
          %v6307 = vsel %vm6179, %v5041, -inf
          %v6308 = vsel %vm6180, %v5210, -inf
          %v6309 = vsel %vm6181, %v5044, -inf
          %v6310 = vsel %vm6182, %v5213, -inf
          %v6311 = vsel %vm6183, %v5046, -inf
          %v6312 = vsel %vm6184, %v5215, -inf
          %v6313 = vsel %vm6185, %v5049, -inf
          %v6314 = vsel %vm6186, %v5218, -inf
          %v6315 = vsel %vm6187, %v5051, -inf
          %v6316 = vsel %vm6188, %v5220, -inf
          %v6317 = vsel %vm6189, %v5054, -inf
          %v6318 = vsel %vm6190, %v5223, -inf
          %v6319 = vsel %vm6191, %v5056, -inf
          %v6320 = vsel %vm6192, %v5225, -inf
          %v6321 = vsel %vm6193, %v5059, -inf
          %v6322 = vsel %vm6194, %v5228, -inf
          %v6323 = vsel %vm6195, %v5061, -inf
          %v6324 = vsel %vm6196, %v5230, -inf
          %v6325 = vsel %vm6197, %v5064, -inf
          %v6326 = vsel %vm6198, %v5233, -inf
          %v6327 = vsel %vm6199, %v5066, -inf
          %v6328 = vsel %vm6200, %v5235, -inf
          %v6329 = vld [vmem:[#allocation2] sm:$0xff]
          %v6330 = vld [vmem:[#allocation2 + $0x8] sm:$0xff]
          %v6331 = vld [vmem:[#allocation2 + $0x10] sm:$0xff]
          %v6332 = vld [vmem:[#allocation2 + $0x18] sm:$0xff]
          %v6333 = vld [vmem:[#allocation2 + $0x20] sm:$0xff]
          %v6334 = vld [vmem:[#allocation2 + $0x28] sm:$0xff]
          %v6335 = vld [vmem:[#allocation2 + $0x30] sm:$0xff]
          %v6336 = vld [vmem:[#allocation2 + $0x38] sm:$0xff]
          %v6337 = vld [vmem:[#allocation2 + $0x40] sm:$0xff]
          %v6338 = vld [vmem:[#allocation2 + $0x48] sm:$0xff]
          %v6339 = vld [vmem:[#allocation2 + $0x50] sm:$0xff]
          %v6340 = vld [vmem:[#allocation2 + $0x58] sm:$0xff]
          %v6341 = vld [vmem:[#allocation2 + $0x60] sm:$0xff]
          %v6342 = vld [vmem:[#allocation2 + $0x68] sm:$0xff]
          %v6343 = vld [vmem:[#allocation2 + $0x70] sm:$0xff]
          %v6344 = vld [vmem:[#allocation2 + $0x78] sm:$0xff]
          %v6345 = vld [vmem:[#allocation2 + $0x80] sm:$0xff]
          %v6346 = vld [vmem:[#allocation2 + $0x88] sm:$0xff]
          %v6347 = vld [vmem:[#allocation2 + $0x90] sm:$0xff]
          %v6348 = vld [vmem:[#allocation2 + $0x98] sm:$0xff]
          %v6349 = vld [vmem:[#allocation2 + $0xa0] sm:$0xff]
          %v6350 = vld [vmem:[#allocation2 + $0xa8] sm:$0xff]
          %v6351 = vld [vmem:[#allocation2 + $0xb0] sm:$0xff]
          %v6352 = vld [vmem:[#allocation2 + $0xb8] sm:$0xff]
          %v6353 = vld [vmem:[#allocation2 + $0xc0] sm:$0xff]
          %v6354 = vld [vmem:[#allocation2 + $0xc8] sm:$0xff]
          %v6355 = vld [vmem:[#allocation2 + $0xd0] sm:$0xff]
          %v6356 = vld [vmem:[#allocation2 + $0xd8] sm:$0xff]
          %v6357 = vld [vmem:[#allocation2 + $0xe0] sm:$0xff]
          %v6358 = vld [vmem:[#allocation2 + $0xe8] sm:$0xff]
          %v6359 = vld [vmem:[#allocation2 + $0xf0] sm:$0xff]
          %v6360 = vld [vmem:[#allocation2 + $0xf8] sm:$0xff]
          %v6361 = vld [vmem:[#allocation2 + $0x100] sm:$0xff]
          %v6362 = vld [vmem:[#allocation2 + $0x108] sm:$0xff]
          %v6363 = vld [vmem:[#allocation2 + $0x110] sm:$0xff]
          %v6364 = vld [vmem:[#allocation2 + $0x118] sm:$0xff]
          %v6365 = vld [vmem:[#allocation2 + $0x120] sm:$0xff]
          %v6366 = vld [vmem:[#allocation2 + $0x128] sm:$0xff]
          %v6367 = vld [vmem:[#allocation2 + $0x130] sm:$0xff]
          %v6368 = vld [vmem:[#allocation2 + $0x138] sm:$0xff]
          %v6369 = vld [vmem:[#allocation2 + $0x140] sm:$0xff]
          %v6370 = vld [vmem:[#allocation2 + $0x148] sm:$0xff]
          %v6371 = vld [vmem:[#allocation2 + $0x150] sm:$0xff]
          %v6372 = vld [vmem:[#allocation2 + $0x158] sm:$0xff]
          %v6373 = vld [vmem:[#allocation2 + $0x160] sm:$0xff]
          %v6374 = vld [vmem:[#allocation2 + $0x168] sm:$0xff]
          %v6375 = vld [vmem:[#allocation2 + $0x170] sm:$0xff]
          %v6376 = vld [vmem:[#allocation2 + $0x178] sm:$0xff]
          %v6377 = vld [vmem:[#allocation2 + $0x180] sm:$0xff]
          %v6378 = vld [vmem:[#allocation2 + $0x188] sm:$0xff]
          %v6379 = vld [vmem:[#allocation2 + $0x190] sm:$0xff]
          %v6380 = vld [vmem:[#allocation2 + $0x198] sm:$0xff]
          %v6381 = vld [vmem:[#allocation2 + $0x1a0] sm:$0xff]
          %v6382 = vld [vmem:[#allocation2 + $0x1a8] sm:$0xff]
          %v6383 = vld [vmem:[#allocation2 + $0x1b0] sm:$0xff]
          %v6384 = vld [vmem:[#allocation2 + $0x1b8] sm:$0xff]
          %v6385 = vld [vmem:[#allocation2 + $0x1c0] sm:$0xff]
          %v6386 = vld [vmem:[#allocation2 + $0x1c8] sm:$0xff]
          %v6387 = vld [vmem:[#allocation2 + $0x1d0] sm:$0xff]
          %v6388 = vld [vmem:[#allocation2 + $0x1d8] sm:$0xff]
          %v6389 = vld [vmem:[#allocation2 + $0x1e0] sm:$0xff]
          %v6390 = vld [vmem:[#allocation2 + $0x1e8] sm:$0xff]
          %v6391 = vld [vmem:[#allocation2 + $0x1f0] sm:$0xff]
          %v6392 = vld [vmem:[#allocation2 + $0x1f8] sm:$0xff]
          %v6393 = vmax.f32 %v6201, %v6202
          %6394 = vmax.xlane.f32.xlu0 %v6393
          %v6395 = vpop.xlane.xlu0 %6394
          %v6396 = vmax.f32 %v6203, %v6204
          %6397 = vmax.xlane.f32.xlu0 %v6396
          %v6398 = vpop.xlane.xlu0 %6397
          %v6399 = vmax.f32 %v6205, %v6206
          %6400 = vmax.xlane.f32.xlu0 %v6399
          %v6401 = vpop.xlane.xlu0 %6400
          %v6402 = vmax.f32 %v6207, %v6208
          %6403 = vmax.xlane.f32.xlu0 %v6402
          %v6404 = vpop.xlane.xlu0 %6403
          %v6405 = vmax.f32 %v6209, %v6210
          %6406 = vmax.xlane.f32.xlu0 %v6405
          %v6407 = vpop.xlane.xlu0 %6406
          %v6408 = vmax.f32 %v6211, %v6212
          %6409 = vmax.xlane.f32.xlu0 %v6408
          %v6410 = vpop.xlane.xlu0 %6409
          %v6411 = vmax.f32 %v6213, %v6214
          %6412 = vmax.xlane.f32.xlu0 %v6411
          %v6413 = vpop.xlane.xlu0 %6412
          %v6414 = vmax.f32 %v6215, %v6216
          %6415 = vmax.xlane.f32.xlu0 %v6414
          %v6416 = vpop.xlane.xlu0 %6415
          %v6417 = vmax.f32 %v6217, %v6218
          %6418 = vmax.xlane.f32.xlu0 %v6417
          %v6419 = vpop.xlane.xlu0 %6418
          %v6420 = vmax.f32 %v6219, %v6220
          %6421 = vmax.xlane.f32.xlu0 %v6420
          %v6422 = vpop.xlane.xlu0 %6421
          %v6423 = vmax.f32 %v6221, %v6222
          %6424 = vmax.xlane.f32.xlu0 %v6423
          %v6425 = vpop.xlane.xlu0 %6424
          %v6426 = vmax.f32 %v6223, %v6224
          %6427 = vmax.xlane.f32.xlu0 %v6426
          %v6428 = vpop.xlane.xlu0 %6427
          %v6429 = vmax.f32 %v6225, %v6226
          %6430 = vmax.xlane.f32.xlu0 %v6429
          %v6431 = vpop.xlane.xlu0 %6430
          %v6432 = vmax.f32 %v6227, %v6228
          %6433 = vmax.xlane.f32.xlu0 %v6432
          %v6434 = vpop.xlane.xlu0 %6433
          %v6435 = vmax.f32 %v6229, %v6230
          %6436 = vmax.xlane.f32.xlu0 %v6435
          %v6437 = vpop.xlane.xlu0 %6436
          %v6438 = vmax.f32 %v6231, %v6232
          %6439 = vmax.xlane.f32.xlu0 %v6438
          %v6440 = vpop.xlane.xlu0 %6439
          %v6441 = vmax.f32 %v6233, %v6234
          %6442 = vmax.xlane.f32.xlu0 %v6441
          %v6443 = vpop.xlane.xlu0 %6442
          %v6444 = vmax.f32 %v6235, %v6236
          %6445 = vmax.xlane.f32.xlu0 %v6444
          %v6446 = vpop.xlane.xlu0 %6445
          %v6447 = vmax.f32 %v6237, %v6238
          %6448 = vmax.xlane.f32.xlu0 %v6447
          %v6449 = vpop.xlane.xlu0 %6448
          %v6450 = vmax.f32 %v6239, %v6240
          %6451 = vmax.xlane.f32.xlu0 %v6450
          %v6452 = vpop.xlane.xlu0 %6451
          %v6453 = vmax.f32 %v6241, %v6242
          %6454 = vmax.xlane.f32.xlu0 %v6453
          %v6455 = vpop.xlane.xlu0 %6454
          %v6456 = vmax.f32 %v6243, %v6244
          %6457 = vmax.xlane.f32.xlu0 %v6456
          %v6458 = vpop.xlane.xlu0 %6457
          %v6459 = vmax.f32 %v6245, %v6246
          %6460 = vmax.xlane.f32.xlu0 %v6459
          %v6461 = vpop.xlane.xlu0 %6460
          %v6462 = vmax.f32 %v6247, %v6248
          %6463 = vmax.xlane.f32.xlu0 %v6462
          %v6464 = vpop.xlane.xlu0 %6463
          %v6465 = vmax.f32 %v6249, %v6250
          %6466 = vmax.xlane.f32.xlu0 %v6465
          %v6467 = vpop.xlane.xlu0 %6466
          %v6468 = vmax.f32 %v6251, %v6252
          %6469 = vmax.xlane.f32.xlu0 %v6468
          %v6470 = vpop.xlane.xlu0 %6469
          %v6471 = vmax.f32 %v6253, %v6254
          %6472 = vmax.xlane.f32.xlu0 %v6471
          %v6473 = vpop.xlane.xlu0 %6472
          %v6474 = vmax.f32 %v6255, %v6256
          %6475 = vmax.xlane.f32.xlu0 %v6474
          %v6476 = vpop.xlane.xlu0 %6475
          %v6477 = vmax.f32 %v6257, %v6258
          %6478 = vmax.xlane.f32.xlu0 %v6477
          %v6479 = vpop.xlane.xlu0 %6478
          %v6480 = vmax.f32 %v6259, %v6260
          %6481 = vmax.xlane.f32.xlu0 %v6480
          %v6482 = vpop.xlane.xlu0 %6481
          %v6483 = vmax.f32 %v6261, %v6262
          %6484 = vmax.xlane.f32.xlu0 %v6483
          %v6485 = vpop.xlane.xlu0 %6484
          %v6486 = vmax.f32 %v6263, %v6264
          %6487 = vmax.xlane.f32.xlu0 %v6486
          %v6488 = vpop.xlane.xlu0 %6487
          %v6489 = vmax.f32 %v6265, %v6266
          %6490 = vmax.xlane.f32.xlu0 %v6489
          %v6491 = vpop.xlane.xlu0 %6490
          %v6492 = vmax.f32 %v6267, %v6268
          %6493 = vmax.xlane.f32.xlu0 %v6492
          %v6494 = vpop.xlane.xlu0 %6493
          %v6495 = vmax.f32 %v6269, %v6270
          %6496 = vmax.xlane.f32.xlu0 %v6495
          %v6497 = vpop.xlane.xlu0 %6496
          %v6498 = vmax.f32 %v6271, %v6272
          %6499 = vmax.xlane.f32.xlu0 %v6498
          %v6500 = vpop.xlane.xlu0 %6499
          %v6501 = vmax.f32 %v6273, %v6274
          %6502 = vmax.xlane.f32.xlu0 %v6501
          %v6503 = vpop.xlane.xlu0 %6502
          %v6504 = vmax.f32 %v6275, %v6276
          %6505 = vmax.xlane.f32.xlu0 %v6504
          %v6506 = vpop.xlane.xlu0 %6505
          %v6507 = vmax.f32 %v6277, %v6278
          %6508 = vmax.xlane.f32.xlu0 %v6507
          %v6509 = vpop.xlane.xlu0 %6508
          %v6510 = vmax.f32 %v6279, %v6280
          %6511 = vmax.xlane.f32.xlu0 %v6510
          %v6512 = vpop.xlane.xlu0 %6511
          %v6513 = vmax.f32 %v6281, %v6282
          %6514 = vmax.xlane.f32.xlu0 %v6513
          %v6515 = vpop.xlane.xlu0 %6514
          %v6516 = vmax.f32 %v6283, %v6284
          %6517 = vmax.xlane.f32.xlu0 %v6516
          %v6518 = vpop.xlane.xlu0 %6517
          %v6519 = vmax.f32 %v6285, %v6286
          %6520 = vmax.xlane.f32.xlu0 %v6519
          %v6521 = vpop.xlane.xlu0 %6520
          %v6522 = vmax.f32 %v6287, %v6288
          %6523 = vmax.xlane.f32.xlu0 %v6522
          %v6524 = vpop.xlane.xlu0 %6523
          %v6525 = vmax.f32 %v6289, %v6290
          %6526 = vmax.xlane.f32.xlu0 %v6525
          %v6527 = vpop.xlane.xlu0 %6526
          %v6528 = vmax.f32 %v6291, %v6292
          %6529 = vmax.xlane.f32.xlu0 %v6528
          %v6530 = vpop.xlane.xlu0 %6529
          %v6531 = vmax.f32 %v6293, %v6294
          %6532 = vmax.xlane.f32.xlu0 %v6531
          %v6533 = vpop.xlane.xlu0 %6532
          %v6534 = vmax.f32 %v6295, %v6296
          %6535 = vmax.xlane.f32.xlu0 %v6534
          %v6536 = vpop.xlane.xlu0 %6535
          %v6537 = vmax.f32 %v6297, %v6298
          %6538 = vmax.xlane.f32.xlu0 %v6537
          %v6539 = vpop.xlane.xlu0 %6538
          %v6540 = vmax.f32 %v6299, %v6300
          %6541 = vmax.xlane.f32.xlu0 %v6540
          %v6542 = vpop.xlane.xlu0 %6541
          %v6543 = vmax.f32 %v6301, %v6302
          %6544 = vmax.xlane.f32.xlu0 %v6543
          %v6545 = vpop.xlane.xlu0 %6544
          %v6546 = vmax.f32 %v6303, %v6304
          %6547 = vmax.xlane.f32.xlu0 %v6546
          %v6548 = vpop.xlane.xlu0 %6547
          %v6549 = vmax.f32 %v6305, %v6306
          %6550 = vmax.xlane.f32.xlu0 %v6549
          %v6551 = vpop.xlane.xlu0 %6550
          %v6552 = vmax.f32 %v6307, %v6308
          %6553 = vmax.xlane.f32.xlu0 %v6552
          %v6554 = vpop.xlane.xlu0 %6553
          %v6555 = vmax.f32 %v6309, %v6310
          %6556 = vmax.xlane.f32.xlu0 %v6555
          %v6557 = vpop.xlane.xlu0 %6556
          %v6558 = vmax.f32 %v6311, %v6312
          %6559 = vmax.xlane.f32.xlu0 %v6558
          %v6560 = vpop.xlane.xlu0 %6559
          %v6561 = vmax.f32 %v6313, %v6314
          %6562 = vmax.xlane.f32.xlu0 %v6561
          %v6563 = vpop.xlane.xlu0 %6562
          %v6564 = vmax.f32 %v6315, %v6316
          %6565 = vmax.xlane.f32.xlu0 %v6564
          %v6566 = vpop.xlane.xlu0 %6565
          %v6567 = vmax.f32 %v6317, %v6318
          %6568 = vmax.xlane.f32.xlu0 %v6567
          %v6569 = vpop.xlane.xlu0 %6568
          %v6570 = vmax.f32 %v6319, %v6320
          %6571 = vmax.xlane.f32.xlu0 %v6570
          %v6572 = vpop.xlane.xlu0 %6571
          %v6573 = vmax.f32 %v6321, %v6322
          %6574 = vmax.xlane.f32.xlu0 %v6573
          %v6575 = vpop.xlane.xlu0 %6574
          %v6576 = vmax.f32 %v6323, %v6324
          %6577 = vmax.xlane.f32.xlu0 %v6576
          %v6578 = vpop.xlane.xlu0 %6577
          %v6579 = vmax.f32 %v6325, %v6326
          %6580 = vmax.xlane.f32.xlu0 %v6579
          %v6581 = vpop.xlane.xlu0 %6580
          %v6582 = vmax.f32 %v6327, %v6328
          %6583 = vmax.xlane.f32.xlu0 %v6582
          %v6584 = vpop.xlane.xlu0 %6583
          %v6585 = vmax.f32 %v6329, %v6395
          %v6586 = vmax.f32 %v6330, %v6398
          %v6587 = vmax.f32 %v6331, %v6401
          %v6588 = vmax.f32 %v6332, %v6404
          %v6589 = vmax.f32 %v6333, %v6407
          %v6590 = vmax.f32 %v6334, %v6410
          %v6591 = vmax.f32 %v6335, %v6413
          %v6592 = vmax.f32 %v6336, %v6416
          %v6593 = vmax.f32 %v6337, %v6419
          %v6594 = vmax.f32 %v6338, %v6422
          %v6595 = vmax.f32 %v6339, %v6425
          %v6596 = vmax.f32 %v6340, %v6428
          %v6597 = vmax.f32 %v6341, %v6431
          %v6598 = vmax.f32 %v6342, %v6434
          %v6599 = vmax.f32 %v6343, %v6437
          %v6600 = vmax.f32 %v6344, %v6440
          %v6601 = vmax.f32 %v6345, %v6443
          %v6602 = vmax.f32 %v6346, %v6446
          %v6603 = vmax.f32 %v6347, %v6449
          %v6604 = vmax.f32 %v6348, %v6452
          %v6605 = vmax.f32 %v6349, %v6455
          %v6606 = vmax.f32 %v6350, %v6458
          %v6607 = vmax.f32 %v6351, %v6461
          %v6608 = vmax.f32 %v6352, %v6464
          %v6609 = vmax.f32 %v6353, %v6467
          %v6610 = vmax.f32 %v6354, %v6470
          %v6611 = vmax.f32 %v6355, %v6473
          %v6612 = vmax.f32 %v6356, %v6476
          %v6613 = vmax.f32 %v6357, %v6479
          %v6614 = vmax.f32 %v6358, %v6482
          %v6615 = vmax.f32 %v6359, %v6485
          %v6616 = vmax.f32 %v6360, %v6488
          %v6617 = vmax.f32 %v6361, %v6491
          %v6618 = vmax.f32 %v6362, %v6494
          %v6619 = vmax.f32 %v6363, %v6497
          %v6620 = vmax.f32 %v6364, %v6500
          %v6621 = vmax.f32 %v6365, %v6503
          %v6622 = vmax.f32 %v6366, %v6506
          %v6623 = vmax.f32 %v6367, %v6509
          %v6624 = vmax.f32 %v6368, %v6512
          %v6625 = vmax.f32 %v6369, %v6515
          %v6626 = vmax.f32 %v6370, %v6518
          %v6627 = vmax.f32 %v6371, %v6521
          %v6628 = vmax.f32 %v6372, %v6524
          %v6629 = vmax.f32 %v6373, %v6527
          %v6630 = vmax.f32 %v6374, %v6530
          %v6631 = vmax.f32 %v6375, %v6533
          %v6632 = vmax.f32 %v6376, %v6536
          %v6633 = vmax.f32 %v6377, %v6539
          %v6634 = vmax.f32 %v6378, %v6542
          %v6635 = vmax.f32 %v6379, %v6545
          %v6636 = vmax.f32 %v6380, %v6548
          %v6637 = vmax.f32 %v6381, %v6551
          %v6638 = vmax.f32 %v6382, %v6554
          %v6639 = vmax.f32 %v6383, %v6557
          %v6640 = vmax.f32 %v6384, %v6560
          %v6641 = vmax.f32 %v6385, %v6563
          %v6642 = vmax.f32 %v6386, %v6566
          %v6643 = vmax.f32 %v6387, %v6569
          %v6644 = vmax.f32 %v6388, %v6572
          %v6645 = vmax.f32 %v6389, %v6575
          %v6646 = vmax.f32 %v6390, %v6578
          %v6647 = vmax.f32 %v6391, %v6581
          %v6648 = vmax.f32 %v6392, %v6584
          %v6649 = vsub.f32 %v6329, %v6585
          %v6650 = vsub.f32 %v6330, %v6586
          %v6651 = vsub.f32 %v6331, %v6587
          %v6652 = vsub.f32 %v6332, %v6588
          %v6653 = vsub.f32 %v6333, %v6589
          %v6654 = vsub.f32 %v6334, %v6590
          %v6655 = vsub.f32 %v6335, %v6591
          %v6656 = vsub.f32 %v6336, %v6592
          %v6657 = vsub.f32 %v6337, %v6593
          %v6658 = vsub.f32 %v6338, %v6594
          %v6659 = vsub.f32 %v6339, %v6595
          %v6660 = vsub.f32 %v6340, %v6596
          %v6661 = vsub.f32 %v6341, %v6597
          %v6662 = vsub.f32 %v6342, %v6598
          %v6663 = vsub.f32 %v6343, %v6599
          %v6664 = vsub.f32 %v6344, %v6600
          %v6665 = vsub.f32 %v6345, %v6601
          %v6666 = vsub.f32 %v6346, %v6602
          %v6667 = vsub.f32 %v6347, %v6603
          %v6668 = vsub.f32 %v6348, %v6604
          %v6669 = vsub.f32 %v6349, %v6605
          %v6670 = vsub.f32 %v6350, %v6606
          %v6671 = vsub.f32 %v6351, %v6607
          %v6672 = vsub.f32 %v6352, %v6608
          %v6673 = vsub.f32 %v6353, %v6609
          %v6674 = vsub.f32 %v6354, %v6610
          %v6675 = vsub.f32 %v6355, %v6611
          %v6676 = vsub.f32 %v6356, %v6612
          %v6677 = vsub.f32 %v6357, %v6613
          %v6678 = vsub.f32 %v6358, %v6614
          %v6679 = vsub.f32 %v6359, %v6615
          %v6680 = vsub.f32 %v6360, %v6616
          %v6681 = vsub.f32 %v6361, %v6617
          %v6682 = vsub.f32 %v6362, %v6618
          %v6683 = vsub.f32 %v6363, %v6619
          %v6684 = vsub.f32 %v6364, %v6620
          %v6685 = vsub.f32 %v6365, %v6621
          %v6686 = vsub.f32 %v6366, %v6622
          %v6687 = vsub.f32 %v6367, %v6623
          %v6688 = vsub.f32 %v6368, %v6624
          %v6689 = vsub.f32 %v6369, %v6625
          %v6690 = vsub.f32 %v6370, %v6626
          %v6691 = vsub.f32 %v6371, %v6627
          %v6692 = vsub.f32 %v6372, %v6628
          %v6693 = vsub.f32 %v6373, %v6629
          %v6694 = vsub.f32 %v6374, %v6630
          %v6695 = vsub.f32 %v6375, %v6631
          %v6696 = vsub.f32 %v6376, %v6632
          %v6697 = vsub.f32 %v6377, %v6633
          %v6698 = vsub.f32 %v6378, %v6634
          %v6699 = vsub.f32 %v6379, %v6635
          %v6700 = vsub.f32 %v6380, %v6636
          %v6701 = vsub.f32 %v6381, %v6637
          %v6702 = vsub.f32 %v6382, %v6638
          %v6703 = vsub.f32 %v6383, %v6639
          %v6704 = vsub.f32 %v6384, %v6640
          %v6705 = vsub.f32 %v6385, %v6641
          %v6706 = vsub.f32 %v6386, %v6642
          %v6707 = vsub.f32 %v6387, %v6643
          %v6708 = vsub.f32 %v6388, %v6644
          %v6709 = vsub.f32 %v6389, %v6645
          %v6710 = vsub.f32 %v6390, %v6646
          %v6711 = vsub.f32 %v6391, %v6647
          %v6712 = vsub.f32 %v6392, %v6648
          %v6713 = vmul.f32 %v6649, 1.442695
          %v6714 = vpow.pop %v6713
          %v6715 = vmul.f32 %v6650, 1.442695
          %v6716 = vpow.pop %v6715
          %v6717 = vmul.f32 %v6651, 1.442695
          %v6718 = vpow.pop %v6717
          %v6719 = vmul.f32 %v6652, 1.442695
          %v6720 = vpow.pop %v6719
          %v6721 = vmul.f32 %v6653, 1.442695
          %v6722 = vpow.pop %v6721
          %v6723 = vmul.f32 %v6654, 1.442695
          %v6724 = vpow.pop %v6723
          %v6725 = vmul.f32 %v6655, 1.442695
          %v6726 = vpow.pop %v6725
          %v6727 = vmul.f32 %v6656, 1.442695
          %v6728 = vpow.pop %v6727
          %v6729 = vmul.f32 %v6657, 1.442695
          %v6730 = vpow.pop %v6729
          %v6731 = vmul.f32 %v6658, 1.442695
          %v6732 = vpow.pop %v6731
          %v6733 = vmul.f32 %v6659, 1.442695
          %v6734 = vpow.pop %v6733
          %v6735 = vmul.f32 %v6660, 1.442695
          %v6736 = vpow.pop %v6735
          %v6737 = vmul.f32 %v6661, 1.442695
          %v6738 = vpow.pop %v6737
          %v6739 = vmul.f32 %v6662, 1.442695
          %v6740 = vpow.pop %v6739
          %v6741 = vmul.f32 %v6663, 1.442695
          %v6742 = vpow.pop %v6741
          %v6743 = vmul.f32 %v6664, 1.442695
          %v6744 = vpow.pop %v6743
          %v6745 = vmul.f32 %v6665, 1.442695
          %v6746 = vpow.pop %v6745
          %v6747 = vmul.f32 %v6666, 1.442695
          %v6748 = vpow.pop %v6747
          %v6749 = vmul.f32 %v6667, 1.442695
          %v6750 = vpow.pop %v6749
          %v6751 = vmul.f32 %v6668, 1.442695
          %v6752 = vpow.pop %v6751
          %v6753 = vmul.f32 %v6669, 1.442695
          %v6754 = vpow.pop %v6753
          %v6755 = vmul.f32 %v6670, 1.442695
          %v6756 = vpow.pop %v6755
          %v6757 = vmul.f32 %v6671, 1.442695
          %v6758 = vpow.pop %v6757
          %v6759 = vmul.f32 %v6672, 1.442695
          %v6760 = vpow.pop %v6759
          %v6761 = vmul.f32 %v6673, 1.442695
          %v6762 = vpow.pop %v6761
          %v6763 = vmul.f32 %v6674, 1.442695
          %v6764 = vpow.pop %v6763
          %v6765 = vmul.f32 %v6675, 1.442695
          %v6766 = vpow.pop %v6765
          %v6767 = vmul.f32 %v6676, 1.442695
          %v6768 = vpow.pop %v6767
          %v6769 = vmul.f32 %v6677, 1.442695
          %v6770 = vpow.pop %v6769
          %v6771 = vmul.f32 %v6678, 1.442695
          %v6772 = vpow.pop %v6771
          %v6773 = vmul.f32 %v6679, 1.442695
          %v6774 = vpow.pop %v6773
          %v6775 = vmul.f32 %v6680, 1.442695
          %v6776 = vpow.pop %v6775
          %v6777 = vmul.f32 %v6681, 1.442695
          %v6778 = vpow.pop %v6777
          %v6779 = vmul.f32 %v6682, 1.442695
          %v6780 = vpow.pop %v6779
          %v6781 = vmul.f32 %v6683, 1.442695
          %v6782 = vpow.pop %v6781
          %v6783 = vmul.f32 %v6684, 1.442695
          %v6784 = vpow.pop %v6783
          %v6785 = vmul.f32 %v6685, 1.442695
          %v6786 = vpow.pop %v6785
          %v6787 = vmul.f32 %v6686, 1.442695
          %v6788 = vpow.pop %v6787
          %v6789 = vmul.f32 %v6687, 1.442695
          %v6790 = vpow.pop %v6789
          %v6791 = vmul.f32 %v6688, 1.442695
          %v6792 = vpow.pop %v6791
          %v6793 = vmul.f32 %v6689, 1.442695
          %v6794 = vpow.pop %v6793
          %v6795 = vmul.f32 %v6690, 1.442695
          %v6796 = vpow.pop %v6795
          %v6797 = vmul.f32 %v6691, 1.442695
          %v6798 = vpow.pop %v6797
          %v6799 = vmul.f32 %v6692, 1.442695
          %v6800 = vpow.pop %v6799
          %v6801 = vmul.f32 %v6693, 1.442695
          %v6802 = vpow.pop %v6801
          %v6803 = vmul.f32 %v6694, 1.442695
          %v6804 = vpow.pop %v6803
          %v6805 = vmul.f32 %v6695, 1.442695
          %v6806 = vpow.pop %v6805
          %v6807 = vmul.f32 %v6696, 1.442695
          %v6808 = vpow.pop %v6807
          %v6809 = vmul.f32 %v6697, 1.442695
          %v6810 = vpow.pop %v6809
          %v6811 = vmul.f32 %v6698, 1.442695
          %v6812 = vpow.pop %v6811
          %v6813 = vmul.f32 %v6699, 1.442695
          %v6814 = vpow.pop %v6813
          %v6815 = vmul.f32 %v6700, 1.442695
          %v6816 = vpow.pop %v6815
          %v6817 = vmul.f32 %v6701, 1.442695
          %v6818 = vpow.pop %v6817
          %v6819 = vmul.f32 %v6702, 1.442695
          %v6820 = vpow.pop %v6819
          %v6821 = vmul.f32 %v6703, 1.442695
          %v6822 = vpow.pop %v6821
          %v6823 = vmul.f32 %v6704, 1.442695
          %v6824 = vpow.pop %v6823
          %v6825 = vmul.f32 %v6705, 1.442695
          %v6826 = vpow.pop %v6825
          %v6827 = vmul.f32 %v6706, 1.442695
          %v6828 = vpow.pop %v6827
          %v6829 = vmul.f32 %v6707, 1.442695
          %v6830 = vpow.pop %v6829
          %v6831 = vmul.f32 %v6708, 1.442695
          %v6832 = vpow.pop %v6831
          %v6833 = vmul.f32 %v6709, 1.442695
          %v6834 = vpow.pop %v6833
          %v6835 = vmul.f32 %v6710, 1.442695
          %v6836 = vpow.pop %v6835
          %v6837 = vmul.f32 %v6711, 1.442695
          %v6838 = vpow.pop %v6837
          %v6839 = vmul.f32 %v6712, 1.442695
          %v6840 = vpow.pop %v6839
          %6842 = vset.pattern.permute.xlu0 0
          %6843 = vperm.xlu0 %6842, %v6585
          %v6844 = vpop.permute.xlu0 %6843
          %6847 = vset.pattern.permute.xlu0 0
          %6848 = vperm.xlu0 %6847, %v6586
          %v6849 = vpop.permute.xlu0 %6848
          %6852 = vset.pattern.permute.xlu0 0
          %6853 = vperm.xlu0 %6852, %v6587
          %v6854 = vpop.permute.xlu0 %6853
          %6857 = vset.pattern.permute.xlu0 0
          %6858 = vperm.xlu0 %6857, %v6588
          %v6859 = vpop.permute.xlu0 %6858
          %6862 = vset.pattern.permute.xlu0 0
          %6863 = vperm.xlu0 %6862, %v6589
          %v6864 = vpop.permute.xlu0 %6863
          %6867 = vset.pattern.permute.xlu0 0
          %6868 = vperm.xlu0 %6867, %v6590
          %v6869 = vpop.permute.xlu0 %6868
          %6872 = vset.pattern.permute.xlu0 0
          %6873 = vperm.xlu0 %6872, %v6591
          %v6874 = vpop.permute.xlu0 %6873
          %6877 = vset.pattern.permute.xlu0 0
          %6878 = vperm.xlu0 %6877, %v6592
          %v6879 = vpop.permute.xlu0 %6878
          %6882 = vset.pattern.permute.xlu0 0
          %6883 = vperm.xlu0 %6882, %v6593
          %v6884 = vpop.permute.xlu0 %6883
          %6887 = vset.pattern.permute.xlu0 0
          %6888 = vperm.xlu0 %6887, %v6594
          %v6889 = vpop.permute.xlu0 %6888
          %6892 = vset.pattern.permute.xlu0 0
          %6893 = vperm.xlu0 %6892, %v6595
          %v6894 = vpop.permute.xlu0 %6893
          %6897 = vset.pattern.permute.xlu0 0
          %6898 = vperm.xlu0 %6897, %v6596
          %v6899 = vpop.permute.xlu0 %6898
          %6902 = vset.pattern.permute.xlu0 0
          %6903 = vperm.xlu0 %6902, %v6597
          %v6904 = vpop.permute.xlu0 %6903
          %6907 = vset.pattern.permute.xlu0 0
          %6908 = vperm.xlu0 %6907, %v6598
          %v6909 = vpop.permute.xlu0 %6908
          %6912 = vset.pattern.permute.xlu0 0
          %6913 = vperm.xlu0 %6912, %v6599
          %v6914 = vpop.permute.xlu0 %6913
          %6917 = vset.pattern.permute.xlu0 0
          %6918 = vperm.xlu0 %6917, %v6600
          %v6919 = vpop.permute.xlu0 %6918
          %6922 = vset.pattern.permute.xlu0 0
          %6923 = vperm.xlu0 %6922, %v6601
          %v6924 = vpop.permute.xlu0 %6923
          %6927 = vset.pattern.permute.xlu0 0
          %6928 = vperm.xlu0 %6927, %v6602
          %v6929 = vpop.permute.xlu0 %6928
          %6932 = vset.pattern.permute.xlu0 0
          %6933 = vperm.xlu0 %6932, %v6603
          %v6934 = vpop.permute.xlu0 %6933
          %6937 = vset.pattern.permute.xlu0 0
          %6938 = vperm.xlu0 %6937, %v6604
          %v6939 = vpop.permute.xlu0 %6938
          %6942 = vset.pattern.permute.xlu0 0
          %6943 = vperm.xlu0 %6942, %v6605
          %v6944 = vpop.permute.xlu0 %6943
          %6947 = vset.pattern.permute.xlu0 0
          %6948 = vperm.xlu0 %6947, %v6606
          %v6949 = vpop.permute.xlu0 %6948
          %6952 = vset.pattern.permute.xlu0 0
          %6953 = vperm.xlu0 %6952, %v6607
          %v6954 = vpop.permute.xlu0 %6953
          %6957 = vset.pattern.permute.xlu0 0
          %6958 = vperm.xlu0 %6957, %v6608
          %v6959 = vpop.permute.xlu0 %6958
          %6962 = vset.pattern.permute.xlu0 0
          %6963 = vperm.xlu0 %6962, %v6609
          %v6964 = vpop.permute.xlu0 %6963
          %6967 = vset.pattern.permute.xlu0 0
          %6968 = vperm.xlu0 %6967, %v6610
          %v6969 = vpop.permute.xlu0 %6968
          %6972 = vset.pattern.permute.xlu0 0
          %6973 = vperm.xlu0 %6972, %v6611
          %v6974 = vpop.permute.xlu0 %6973
          %6977 = vset.pattern.permute.xlu0 0
          %6978 = vperm.xlu0 %6977, %v6612
          %v6979 = vpop.permute.xlu0 %6978
          %6982 = vset.pattern.permute.xlu0 0
          %6983 = vperm.xlu0 %6982, %v6613
          %v6984 = vpop.permute.xlu0 %6983
          %6987 = vset.pattern.permute.xlu0 0
          %6988 = vperm.xlu0 %6987, %v6614
          %v6989 = vpop.permute.xlu0 %6988
          %6992 = vset.pattern.permute.xlu0 0
          %6993 = vperm.xlu0 %6992, %v6615
          %v6994 = vpop.permute.xlu0 %6993
          %6997 = vset.pattern.permute.xlu0 0
          %6998 = vperm.xlu0 %6997, %v6616
          %v6999 = vpop.permute.xlu0 %6998
          %7002 = vset.pattern.permute.xlu0 0
          %7003 = vperm.xlu0 %7002, %v6617
          %v7004 = vpop.permute.xlu0 %7003
          %7007 = vset.pattern.permute.xlu0 0
          %7008 = vperm.xlu0 %7007, %v6618
          %v7009 = vpop.permute.xlu0 %7008
          %7012 = vset.pattern.permute.xlu0 0
          %7013 = vperm.xlu0 %7012, %v6619
          %v7014 = vpop.permute.xlu0 %7013
          %7017 = vset.pattern.permute.xlu0 0
          %7018 = vperm.xlu0 %7017, %v6620
          %v7019 = vpop.permute.xlu0 %7018
          %7022 = vset.pattern.permute.xlu0 0
          %7023 = vperm.xlu0 %7022, %v6621
          %v7024 = vpop.permute.xlu0 %7023
          %7027 = vset.pattern.permute.xlu0 0
          %7028 = vperm.xlu0 %7027, %v6622
          %v7029 = vpop.permute.xlu0 %7028
          %7032 = vset.pattern.permute.xlu0 0
          %7033 = vperm.xlu0 %7032, %v6623
          %v7034 = vpop.permute.xlu0 %7033
          %7037 = vset.pattern.permute.xlu0 0
          %7038 = vperm.xlu0 %7037, %v6624
          %v7039 = vpop.permute.xlu0 %7038
          %7042 = vset.pattern.permute.xlu0 0
          %7043 = vperm.xlu0 %7042, %v6625
          %v7044 = vpop.permute.xlu0 %7043
          %7047 = vset.pattern.permute.xlu0 0
          %7048 = vperm.xlu0 %7047, %v6626
          %v7049 = vpop.permute.xlu0 %7048
          %7052 = vset.pattern.permute.xlu0 0
          %7053 = vperm.xlu0 %7052, %v6627
          %v7054 = vpop.permute.xlu0 %7053
          %7057 = vset.pattern.permute.xlu0 0
          %7058 = vperm.xlu0 %7057, %v6628
          %v7059 = vpop.permute.xlu0 %7058
          %7062 = vset.pattern.permute.xlu0 0
          %7063 = vperm.xlu0 %7062, %v6629
          %v7064 = vpop.permute.xlu0 %7063
          %7067 = vset.pattern.permute.xlu0 0
          %7068 = vperm.xlu0 %7067, %v6630
          %v7069 = vpop.permute.xlu0 %7068
          %7072 = vset.pattern.permute.xlu0 0
          %7073 = vperm.xlu0 %7072, %v6631
          %v7074 = vpop.permute.xlu0 %7073
          %7077 = vset.pattern.permute.xlu0 0
          %7078 = vperm.xlu0 %7077, %v6632
          %v7079 = vpop.permute.xlu0 %7078
          %7082 = vset.pattern.permute.xlu0 0
          %7083 = vperm.xlu0 %7082, %v6633
          %v7084 = vpop.permute.xlu0 %7083
          %7087 = vset.pattern.permute.xlu0 0
          %7088 = vperm.xlu0 %7087, %v6634
          %v7089 = vpop.permute.xlu0 %7088
          %7092 = vset.pattern.permute.xlu0 0
          %7093 = vperm.xlu0 %7092, %v6635
          %v7094 = vpop.permute.xlu0 %7093
          %7097 = vset.pattern.permute.xlu0 0
          %7098 = vperm.xlu0 %7097, %v6636
          %v7099 = vpop.permute.xlu0 %7098
          %7102 = vset.pattern.permute.xlu0 0
          %7103 = vperm.xlu0 %7102, %v6637
          %v7104 = vpop.permute.xlu0 %7103
          %7107 = vset.pattern.permute.xlu0 0
          %7108 = vperm.xlu0 %7107, %v6638
          %v7109 = vpop.permute.xlu0 %7108
          %7112 = vset.pattern.permute.xlu0 0
          %7113 = vperm.xlu0 %7112, %v6639
          %v7114 = vpop.permute.xlu0 %7113
          %7117 = vset.pattern.permute.xlu0 0
          %7118 = vperm.xlu0 %7117, %v6640
          %v7119 = vpop.permute.xlu0 %7118
          %7122 = vset.pattern.permute.xlu0 0
          %7123 = vperm.xlu0 %7122, %v6641
          %v7124 = vpop.permute.xlu0 %7123
          %7127 = vset.pattern.permute.xlu0 0
          %7128 = vperm.xlu0 %7127, %v6642
          %v7129 = vpop.permute.xlu0 %7128
          %7132 = vset.pattern.permute.xlu0 0
          %7133 = vperm.xlu0 %7132, %v6643
          %v7134 = vpop.permute.xlu0 %7133
          %7137 = vset.pattern.permute.xlu0 0
          %7138 = vperm.xlu0 %7137, %v6644
          %v7139 = vpop.permute.xlu0 %7138
          %7142 = vset.pattern.permute.xlu0 0
          %7143 = vperm.xlu0 %7142, %v6645
          %v7144 = vpop.permute.xlu0 %7143
          %7147 = vset.pattern.permute.xlu0 0
          %7148 = vperm.xlu0 %7147, %v6646
          %v7149 = vpop.permute.xlu0 %7148
          %7152 = vset.pattern.permute.xlu0 0
          %7153 = vperm.xlu0 %7152, %v6647
          %v7154 = vpop.permute.xlu0 %7153
          %7157 = vset.pattern.permute.xlu0 0
          %7158 = vperm.xlu0 %7157, %v6648
          %v7159 = vpop.permute.xlu0 %7158
          %v7161 = vsub.f32 %v6201, %v6844
          %v7162 = vsub.f32 %v6202, %v6844
          %v7163 = vsub.f32 %v6203, %v6849
          %v7164 = vsub.f32 %v6204, %v6849
          %v7165 = vsub.f32 %v6205, %v6854
          %v7166 = vsub.f32 %v6206, %v6854
          %v7167 = vsub.f32 %v6207, %v6859
          %v7168 = vsub.f32 %v6208, %v6859
          %v7169 = vsub.f32 %v6209, %v6864
          %v7170 = vsub.f32 %v6210, %v6864
          %v7171 = vsub.f32 %v6211, %v6869
          %v7172 = vsub.f32 %v6212, %v6869
          %v7173 = vsub.f32 %v6213, %v6874
          %v7174 = vsub.f32 %v6214, %v6874
          %v7175 = vsub.f32 %v6215, %v6879
          %v7176 = vsub.f32 %v6216, %v6879
          %v7177 = vsub.f32 %v6217, %v6884
          %v7178 = vsub.f32 %v6218, %v6884
          %v7179 = vsub.f32 %v6219, %v6889
          %v7180 = vsub.f32 %v6220, %v6889
          %v7181 = vsub.f32 %v6221, %v6894
          %v7182 = vsub.f32 %v6222, %v6894
          %v7183 = vsub.f32 %v6223, %v6899
          %v7184 = vsub.f32 %v6224, %v6899
          %v7185 = vsub.f32 %v6225, %v6904
          %v7186 = vsub.f32 %v6226, %v6904
          %v7187 = vsub.f32 %v6227, %v6909
          %v7188 = vsub.f32 %v6228, %v6909
          %v7189 = vsub.f32 %v6229, %v6914
          %v7190 = vsub.f32 %v6230, %v6914
          %v7191 = vsub.f32 %v6231, %v6919
          %v7192 = vsub.f32 %v6232, %v6919
          %v7193 = vsub.f32 %v6233, %v6924
          %v7194 = vsub.f32 %v6234, %v6924
          %v7195 = vsub.f32 %v6235, %v6929
          %v7196 = vsub.f32 %v6236, %v6929
          %v7197 = vsub.f32 %v6237, %v6934
          %v7198 = vsub.f32 %v6238, %v6934
          %v7199 = vsub.f32 %v6239, %v6939
          %v7200 = vsub.f32 %v6240, %v6939
          %v7201 = vsub.f32 %v6241, %v6944
          %v7202 = vsub.f32 %v6242, %v6944
          %v7203 = vsub.f32 %v6243, %v6949
          %v7204 = vsub.f32 %v6244, %v6949
          %v7205 = vsub.f32 %v6245, %v6954
          %v7206 = vsub.f32 %v6246, %v6954
          %v7207 = vsub.f32 %v6247, %v6959
          %v7208 = vsub.f32 %v6248, %v6959
          %v7209 = vsub.f32 %v6249, %v6964
          %v7210 = vsub.f32 %v6250, %v6964
          %v7211 = vsub.f32 %v6251, %v6969
          %v7212 = vsub.f32 %v6252, %v6969
          %v7213 = vsub.f32 %v6253, %v6974
          %v7214 = vsub.f32 %v6254, %v6974
          %v7215 = vsub.f32 %v6255, %v6979
          %v7216 = vsub.f32 %v6256, %v6979
          %v7217 = vsub.f32 %v6257, %v6984
          %v7218 = vsub.f32 %v6258, %v6984
          %v7219 = vsub.f32 %v6259, %v6989
          %v7220 = vsub.f32 %v6260, %v6989
          %v7221 = vsub.f32 %v6261, %v6994
          %v7222 = vsub.f32 %v6262, %v6994
          %v7223 = vsub.f32 %v6263, %v6999
          %v7224 = vsub.f32 %v6264, %v6999
          %v7225 = vsub.f32 %v6265, %v7004
          %v7226 = vsub.f32 %v6266, %v7004
          %v7227 = vsub.f32 %v6267, %v7009
          %v7228 = vsub.f32 %v6268, %v7009
          %v7229 = vsub.f32 %v6269, %v7014
          %v7230 = vsub.f32 %v6270, %v7014
          %v7231 = vsub.f32 %v6271, %v7019
          %v7232 = vsub.f32 %v6272, %v7019
          %v7233 = vsub.f32 %v6273, %v7024
          %v7234 = vsub.f32 %v6274, %v7024
          %v7235 = vsub.f32 %v6275, %v7029
          %v7236 = vsub.f32 %v6276, %v7029
          %v7237 = vsub.f32 %v6277, %v7034
          %v7238 = vsub.f32 %v6278, %v7034
          %v7239 = vsub.f32 %v6279, %v7039
          %v7240 = vsub.f32 %v6280, %v7039
          %v7241 = vsub.f32 %v6281, %v7044
          %v7242 = vsub.f32 %v6282, %v7044
          %v7243 = vsub.f32 %v6283, %v7049
          %v7244 = vsub.f32 %v6284, %v7049
          %v7245 = vsub.f32 %v6285, %v7054
          %v7246 = vsub.f32 %v6286, %v7054
          %v7247 = vsub.f32 %v6287, %v7059
          %v7248 = vsub.f32 %v6288, %v7059
          %v7249 = vsub.f32 %v6289, %v7064
          %v7250 = vsub.f32 %v6290, %v7064
          %v7251 = vsub.f32 %v6291, %v7069
          %v7252 = vsub.f32 %v6292, %v7069
          %v7253 = vsub.f32 %v6293, %v7074
          %v7254 = vsub.f32 %v6294, %v7074
          %v7255 = vsub.f32 %v6295, %v7079
          %v7256 = vsub.f32 %v6296, %v7079
          %v7257 = vsub.f32 %v6297, %v7084
          %v7258 = vsub.f32 %v6298, %v7084
          %v7259 = vsub.f32 %v6299, %v7089
          %v7260 = vsub.f32 %v6300, %v7089
          %v7261 = vsub.f32 %v6301, %v7094
          %v7262 = vsub.f32 %v6302, %v7094
          %v7263 = vsub.f32 %v6303, %v7099
          %v7264 = vsub.f32 %v6304, %v7099
          %v7265 = vsub.f32 %v6305, %v7104
          %v7266 = vsub.f32 %v6306, %v7104
          %v7267 = vsub.f32 %v6307, %v7109
          %v7268 = vsub.f32 %v6308, %v7109
          %v7269 = vsub.f32 %v6309, %v7114
          %v7270 = vsub.f32 %v6310, %v7114
          %v7271 = vsub.f32 %v6311, %v7119
          %v7272 = vsub.f32 %v6312, %v7119
          %v7273 = vsub.f32 %v6313, %v7124
          %v7274 = vsub.f32 %v6314, %v7124
          %v7275 = vsub.f32 %v6315, %v7129
          %v7276 = vsub.f32 %v6316, %v7129
          %v7277 = vsub.f32 %v6317, %v7134
          %v7278 = vsub.f32 %v6318, %v7134
          %v7279 = vsub.f32 %v6319, %v7139
          %v7280 = vsub.f32 %v6320, %v7139
          %v7281 = vsub.f32 %v6321, %v7144
          %v7282 = vsub.f32 %v6322, %v7144
          %v7283 = vsub.f32 %v6323, %v7149
          %v7284 = vsub.f32 %v6324, %v7149
          %v7285 = vsub.f32 %v6325, %v7154
          %v7286 = vsub.f32 %v6326, %v7154
          %v7287 = vsub.f32 %v6327, %v7159
          %v7288 = vsub.f32 %v6328, %v7159
          %v7289 = vmul.f32 %v7161, 1.442695
          %v7290 = vpow.pop %v7289
          %v7291 = vmul.f32 %v7162, 1.442695
          %v7292 = vpow.pop %v7291
          %v7293 = vmul.f32 %v7163, 1.442695
          %v7294 = vpow.pop %v7293
          %v7295 = vmul.f32 %v7164, 1.442695
          %v7296 = vpow.pop %v7295
          %v7297 = vmul.f32 %v7165, 1.442695
          %v7298 = vpow.pop %v7297
          %v7299 = vmul.f32 %v7166, 1.442695
          %v7300 = vpow.pop %v7299
          %v7301 = vmul.f32 %v7167, 1.442695
          %v7302 = vpow.pop %v7301
          %v7303 = vmul.f32 %v7168, 1.442695
          %v7304 = vpow.pop %v7303
          %v7305 = vmul.f32 %v7169, 1.442695
          %v7306 = vpow.pop %v7305
          %v7307 = vmul.f32 %v7170, 1.442695
          %v7308 = vpow.pop %v7307
          %v7309 = vmul.f32 %v7171, 1.442695
          %v7310 = vpow.pop %v7309
          %v7311 = vmul.f32 %v7172, 1.442695
          %v7312 = vpow.pop %v7311
          %v7313 = vmul.f32 %v7173, 1.442695
          %v7314 = vpow.pop %v7313
          %v7315 = vmul.f32 %v7174, 1.442695
          %v7316 = vpow.pop %v7315
          %v7317 = vmul.f32 %v7175, 1.442695
          %v7318 = vpow.pop %v7317
          %v7319 = vmul.f32 %v7176, 1.442695
          %v7320 = vpow.pop %v7319
          %v7321 = vmul.f32 %v7177, 1.442695
          %v7322 = vpow.pop %v7321
          %v7323 = vmul.f32 %v7178, 1.442695
          %v7324 = vpow.pop %v7323
          %v7325 = vmul.f32 %v7179, 1.442695
          %v7326 = vpow.pop %v7325
          %v7327 = vmul.f32 %v7180, 1.442695
          %v7328 = vpow.pop %v7327
          %v7329 = vmul.f32 %v7181, 1.442695
          %v7330 = vpow.pop %v7329
          %v7331 = vmul.f32 %v7182, 1.442695
          %v7332 = vpow.pop %v7331
          %v7333 = vmul.f32 %v7183, 1.442695
          %v7334 = vpow.pop %v7333
          %v7335 = vmul.f32 %v7184, 1.442695
          %v7336 = vpow.pop %v7335
          %v7337 = vmul.f32 %v7185, 1.442695
          %v7338 = vpow.pop %v7337
          %v7339 = vmul.f32 %v7186, 1.442695
          %v7340 = vpow.pop %v7339
          %v7341 = vmul.f32 %v7187, 1.442695
          %v7342 = vpow.pop %v7341
          %v7343 = vmul.f32 %v7188, 1.442695
          %v7344 = vpow.pop %v7343
          %v7345 = vmul.f32 %v7189, 1.442695
          %v7346 = vpow.pop %v7345
          %v7347 = vmul.f32 %v7190, 1.442695
          %v7348 = vpow.pop %v7347
          %v7349 = vmul.f32 %v7191, 1.442695
          %v7350 = vpow.pop %v7349
          %v7351 = vmul.f32 %v7192, 1.442695
          %v7352 = vpow.pop %v7351
          %v7353 = vmul.f32 %v7193, 1.442695
          %v7354 = vpow.pop %v7353
          %v7355 = vmul.f32 %v7194, 1.442695
          %v7356 = vpow.pop %v7355
          %v7357 = vmul.f32 %v7195, 1.442695
          %v7358 = vpow.pop %v7357
          %v7359 = vmul.f32 %v7196, 1.442695
          %v7360 = vpow.pop %v7359
          %v7361 = vmul.f32 %v7197, 1.442695
          %v7362 = vpow.pop %v7361
          %v7363 = vmul.f32 %v7198, 1.442695
          %v7364 = vpow.pop %v7363
          %v7365 = vmul.f32 %v7199, 1.442695
          %v7366 = vpow.pop %v7365
          %v7367 = vmul.f32 %v7200, 1.442695
          %v7368 = vpow.pop %v7367
          %v7369 = vmul.f32 %v7201, 1.442695
          %v7370 = vpow.pop %v7369
          %v7371 = vmul.f32 %v7202, 1.442695
          %v7372 = vpow.pop %v7371
          %v7373 = vmul.f32 %v7203, 1.442695
          %v7374 = vpow.pop %v7373
          %v7375 = vmul.f32 %v7204, 1.442695
          %v7376 = vpow.pop %v7375
          %v7377 = vmul.f32 %v7205, 1.442695
          %v7378 = vpow.pop %v7377
          %v7379 = vmul.f32 %v7206, 1.442695
          %v7380 = vpow.pop %v7379
          %v7381 = vmul.f32 %v7207, 1.442695
          %v7382 = vpow.pop %v7381
          %v7383 = vmul.f32 %v7208, 1.442695
          %v7384 = vpow.pop %v7383
          %v7385 = vmul.f32 %v7209, 1.442695
          %v7386 = vpow.pop %v7385
          %v7387 = vmul.f32 %v7210, 1.442695
          %v7388 = vpow.pop %v7387
          %v7389 = vmul.f32 %v7211, 1.442695
          %v7390 = vpow.pop %v7389
          %v7391 = vmul.f32 %v7212, 1.442695
          %v7392 = vpow.pop %v7391
          %v7393 = vmul.f32 %v7213, 1.442695
          %v7394 = vpow.pop %v7393
          %v7395 = vmul.f32 %v7214, 1.442695
          %v7396 = vpow.pop %v7395
          %v7397 = vmul.f32 %v7215, 1.442695
          %v7398 = vpow.pop %v7397
          %v7399 = vmul.f32 %v7216, 1.442695
          %v7400 = vpow.pop %v7399
          %v7401 = vmul.f32 %v7217, 1.442695
          %v7402 = vpow.pop %v7401
          %v7403 = vmul.f32 %v7218, 1.442695
          %v7404 = vpow.pop %v7403
          %v7405 = vmul.f32 %v7219, 1.442695
          %v7406 = vpow.pop %v7405
          %v7407 = vmul.f32 %v7220, 1.442695
          %v7408 = vpow.pop %v7407
          %v7409 = vmul.f32 %v7221, 1.442695
          %v7410 = vpow.pop %v7409
          %v7411 = vmul.f32 %v7222, 1.442695
          %v7412 = vpow.pop %v7411
          %v7413 = vmul.f32 %v7223, 1.442695
          %v7414 = vpow.pop %v7413
          %v7415 = vmul.f32 %v7224, 1.442695
          %v7416 = vpow.pop %v7415
          %v7417 = vmul.f32 %v7225, 1.442695
          %v7418 = vpow.pop %v7417
          %v7419 = vmul.f32 %v7226, 1.442695
          %v7420 = vpow.pop %v7419
          %v7421 = vmul.f32 %v7227, 1.442695
          %v7422 = vpow.pop %v7421
          %v7423 = vmul.f32 %v7228, 1.442695
          %v7424 = vpow.pop %v7423
          %v7425 = vmul.f32 %v7229, 1.442695
          %v7426 = vpow.pop %v7425
          %v7427 = vmul.f32 %v7230, 1.442695
          %v7428 = vpow.pop %v7427
          %v7429 = vmul.f32 %v7231, 1.442695
          %v7430 = vpow.pop %v7429
          %v7431 = vmul.f32 %v7232, 1.442695
          %v7432 = vpow.pop %v7431
          %v7433 = vmul.f32 %v7233, 1.442695
          %v7434 = vpow.pop %v7433
          %v7435 = vmul.f32 %v7234, 1.442695
          %v7436 = vpow.pop %v7435
          %v7437 = vmul.f32 %v7235, 1.442695
          %v7438 = vpow.pop %v7437
          %v7439 = vmul.f32 %v7236, 1.442695
          %v7440 = vpow.pop %v7439
          %v7441 = vmul.f32 %v7237, 1.442695
          %v7442 = vpow.pop %v7441
          %v7443 = vmul.f32 %v7238, 1.442695
          %v7444 = vpow.pop %v7443
          %v7445 = vmul.f32 %v7239, 1.442695
          %v7446 = vpow.pop %v7445
          %v7447 = vmul.f32 %v7240, 1.442695
          %v7448 = vpow.pop %v7447
          %v7449 = vmul.f32 %v7241, 1.442695
          %v7450 = vpow.pop %v7449
          %v7451 = vmul.f32 %v7242, 1.442695
          %v7452 = vpow.pop %v7451
          %v7453 = vmul.f32 %v7243, 1.442695
          %v7454 = vpow.pop %v7453
          %v7455 = vmul.f32 %v7244, 1.442695
          %v7456 = vpow.pop %v7455
          %v7457 = vmul.f32 %v7245, 1.442695
          %v7458 = vpow.pop %v7457
          %v7459 = vmul.f32 %v7246, 1.442695
          %v7460 = vpow.pop %v7459
          %v7461 = vmul.f32 %v7247, 1.442695
          %v7462 = vpow.pop %v7461
          %v7463 = vmul.f32 %v7248, 1.442695
          %v7464 = vpow.pop %v7463
          %v7465 = vmul.f32 %v7249, 1.442695
          %v7466 = vpow.pop %v7465
          %v7467 = vmul.f32 %v7250, 1.442695
          %v7468 = vpow.pop %v7467
          %v7469 = vmul.f32 %v7251, 1.442695
          %v7470 = vpow.pop %v7469
          %v7471 = vmul.f32 %v7252, 1.442695
          %v7472 = vpow.pop %v7471
          %v7473 = vmul.f32 %v7253, 1.442695
          %v7474 = vpow.pop %v7473
          %v7475 = vmul.f32 %v7254, 1.442695
          %v7476 = vpow.pop %v7475
          %v7477 = vmul.f32 %v7255, 1.442695
          %v7478 = vpow.pop %v7477
          %v7479 = vmul.f32 %v7256, 1.442695
          %v7480 = vpow.pop %v7479
          %v7481 = vmul.f32 %v7257, 1.442695
          %v7482 = vpow.pop %v7481
          %v7483 = vmul.f32 %v7258, 1.442695
          %v7484 = vpow.pop %v7483
          %v7485 = vmul.f32 %v7259, 1.442695
          %v7486 = vpow.pop %v7485
          %v7487 = vmul.f32 %v7260, 1.442695
          %v7488 = vpow.pop %v7487
          %v7489 = vmul.f32 %v7261, 1.442695
          %v7490 = vpow.pop %v7489
          %v7491 = vmul.f32 %v7262, 1.442695
          %v7492 = vpow.pop %v7491
          %v7493 = vmul.f32 %v7263, 1.442695
          %v7494 = vpow.pop %v7493
          %v7495 = vmul.f32 %v7264, 1.442695
          %v7496 = vpow.pop %v7495
          %v7497 = vmul.f32 %v7265, 1.442695
          %v7498 = vpow.pop %v7497
          %v7499 = vmul.f32 %v7266, 1.442695
          %v7500 = vpow.pop %v7499
          %v7501 = vmul.f32 %v7267, 1.442695
          %v7502 = vpow.pop %v7501
          %v7503 = vmul.f32 %v7268, 1.442695
          %v7504 = vpow.pop %v7503
          %v7505 = vmul.f32 %v7269, 1.442695
          %v7506 = vpow.pop %v7505
          %v7507 = vmul.f32 %v7270, 1.442695
          %v7508 = vpow.pop %v7507
          %v7509 = vmul.f32 %v7271, 1.442695
          %v7510 = vpow.pop %v7509
          %v7511 = vmul.f32 %v7272, 1.442695
          %v7512 = vpow.pop %v7511
          %v7513 = vmul.f32 %v7273, 1.442695
          %v7514 = vpow.pop %v7513
          %v7515 = vmul.f32 %v7274, 1.442695
          %v7516 = vpow.pop %v7515
          %v7517 = vmul.f32 %v7275, 1.442695
          %v7518 = vpow.pop %v7517
          %v7519 = vmul.f32 %v7276, 1.442695
          %v7520 = vpow.pop %v7519
          %v7521 = vmul.f32 %v7277, 1.442695
          %v7522 = vpow.pop %v7521
          %v7523 = vmul.f32 %v7278, 1.442695
          %v7524 = vpow.pop %v7523
          %v7525 = vmul.f32 %v7279, 1.442695
          %v7526 = vpow.pop %v7525
          %v7527 = vmul.f32 %v7280, 1.442695
          %v7528 = vpow.pop %v7527
          %v7529 = vmul.f32 %v7281, 1.442695
          %v7530 = vpow.pop %v7529
          %v7531 = vmul.f32 %v7282, 1.442695
          %v7532 = vpow.pop %v7531
          %v7533 = vmul.f32 %v7283, 1.442695
          %v7534 = vpow.pop %v7533
          %v7535 = vmul.f32 %v7284, 1.442695
          %v7536 = vpow.pop %v7535
          %v7537 = vmul.f32 %v7285, 1.442695
          %v7538 = vpow.pop %v7537
          %v7539 = vmul.f32 %v7286, 1.442695
          %v7540 = vpow.pop %v7539
          %v7541 = vmul.f32 %v7287, 1.442695
          %v7542 = vpow.pop %v7541
          %v7543 = vmul.f32 %v7288, 1.442695
          %v7544 = vpow.pop %v7543
          %v7545 = vadd.f32 %v7290, %v7292
          %7546 = vadd.xlane.f32.xlu0 %v7545
          %v7547 = vpop.xlane.xlu0 %7546
          %v7548 = vadd.f32 %v7294, %v7296
          %7549 = vadd.xlane.f32.xlu0 %v7548
          %v7550 = vpop.xlane.xlu0 %7549
          %v7551 = vadd.f32 %v7298, %v7300
          %7552 = vadd.xlane.f32.xlu0 %v7551
          %v7553 = vpop.xlane.xlu0 %7552
          %v7554 = vadd.f32 %v7302, %v7304
          %7555 = vadd.xlane.f32.xlu0 %v7554
          %v7556 = vpop.xlane.xlu0 %7555
          %v7557 = vadd.f32 %v7306, %v7308
          %7558 = vadd.xlane.f32.xlu0 %v7557
          %v7559 = vpop.xlane.xlu0 %7558
          %v7560 = vadd.f32 %v7310, %v7312
          %7561 = vadd.xlane.f32.xlu0 %v7560
          %v7562 = vpop.xlane.xlu0 %7561
          %v7563 = vadd.f32 %v7314, %v7316
          %7564 = vadd.xlane.f32.xlu0 %v7563
          %v7565 = vpop.xlane.xlu0 %7564
          %v7566 = vadd.f32 %v7318, %v7320
          %7567 = vadd.xlane.f32.xlu0 %v7566
          %v7568 = vpop.xlane.xlu0 %7567
          %v7569 = vadd.f32 %v7322, %v7324
          %7570 = vadd.xlane.f32.xlu0 %v7569
          %v7571 = vpop.xlane.xlu0 %7570
          %v7572 = vadd.f32 %v7326, %v7328
          %7573 = vadd.xlane.f32.xlu0 %v7572
          %v7574 = vpop.xlane.xlu0 %7573
          %v7575 = vadd.f32 %v7330, %v7332
          %7576 = vadd.xlane.f32.xlu0 %v7575
          %v7577 = vpop.xlane.xlu0 %7576
          %v7578 = vadd.f32 %v7334, %v7336
          %7579 = vadd.xlane.f32.xlu0 %v7578
          %v7580 = vpop.xlane.xlu0 %7579
          %v7581 = vadd.f32 %v7338, %v7340
          %7582 = vadd.xlane.f32.xlu0 %v7581
          %v7583 = vpop.xlane.xlu0 %7582
          %v7584 = vadd.f32 %v7342, %v7344
          %7585 = vadd.xlane.f32.xlu0 %v7584
          %v7586 = vpop.xlane.xlu0 %7585
          %v7587 = vadd.f32 %v7346, %v7348
          %7588 = vadd.xlane.f32.xlu0 %v7587
          %v7589 = vpop.xlane.xlu0 %7588
          %v7590 = vadd.f32 %v7350, %v7352
          %7591 = vadd.xlane.f32.xlu0 %v7590
          %v7592 = vpop.xlane.xlu0 %7591
          %v7593 = vadd.f32 %v7354, %v7356
          %7594 = vadd.xlane.f32.xlu0 %v7593
          %v7595 = vpop.xlane.xlu0 %7594
          %v7596 = vadd.f32 %v7358, %v7360
          %7597 = vadd.xlane.f32.xlu0 %v7596
          %v7598 = vpop.xlane.xlu0 %7597
          %v7599 = vadd.f32 %v7362, %v7364
          %7600 = vadd.xlane.f32.xlu0 %v7599
          %v7601 = vpop.xlane.xlu0 %7600
          %v7602 = vadd.f32 %v7366, %v7368
          %7603 = vadd.xlane.f32.xlu0 %v7602
          %v7604 = vpop.xlane.xlu0 %7603
          %v7605 = vadd.f32 %v7370, %v7372
          %7606 = vadd.xlane.f32.xlu0 %v7605
          %v7607 = vpop.xlane.xlu0 %7606
          %v7608 = vadd.f32 %v7374, %v7376
          %7609 = vadd.xlane.f32.xlu0 %v7608
          %v7610 = vpop.xlane.xlu0 %7609
          %v7611 = vadd.f32 %v7378, %v7380
          %7612 = vadd.xlane.f32.xlu0 %v7611
          %v7613 = vpop.xlane.xlu0 %7612
          %v7614 = vadd.f32 %v7382, %v7384
          %7615 = vadd.xlane.f32.xlu0 %v7614
          %v7616 = vpop.xlane.xlu0 %7615
          %v7617 = vadd.f32 %v7386, %v7388
          %7618 = vadd.xlane.f32.xlu0 %v7617
          %v7619 = vpop.xlane.xlu0 %7618
          %v7620 = vadd.f32 %v7390, %v7392
          %7621 = vadd.xlane.f32.xlu0 %v7620
          %v7622 = vpop.xlane.xlu0 %7621
          %v7623 = vadd.f32 %v7394, %v7396
          %7624 = vadd.xlane.f32.xlu0 %v7623
          %v7625 = vpop.xlane.xlu0 %7624
          %v7626 = vadd.f32 %v7398, %v7400
          %7627 = vadd.xlane.f32.xlu0 %v7626
          %v7628 = vpop.xlane.xlu0 %7627
          %v7629 = vadd.f32 %v7402, %v7404
          %7630 = vadd.xlane.f32.xlu0 %v7629
          %v7631 = vpop.xlane.xlu0 %7630
          %v7632 = vadd.f32 %v7406, %v7408
          %7633 = vadd.xlane.f32.xlu0 %v7632
          %v7634 = vpop.xlane.xlu0 %7633
          %v7635 = vadd.f32 %v7410, %v7412
          %7636 = vadd.xlane.f32.xlu0 %v7635
          %v7637 = vpop.xlane.xlu0 %7636
          %v7638 = vadd.f32 %v7414, %v7416
          %7639 = vadd.xlane.f32.xlu0 %v7638
          %v7640 = vpop.xlane.xlu0 %7639
          %v7641 = vadd.f32 %v7418, %v7420
          %7642 = vadd.xlane.f32.xlu0 %v7641
          %v7643 = vpop.xlane.xlu0 %7642
          %v7644 = vadd.f32 %v7422, %v7424
          %7645 = vadd.xlane.f32.xlu0 %v7644
          %v7646 = vpop.xlane.xlu0 %7645
          %v7647 = vadd.f32 %v7426, %v7428
          %7648 = vadd.xlane.f32.xlu0 %v7647
          %v7649 = vpop.xlane.xlu0 %7648
          %v7650 = vadd.f32 %v7430, %v7432
          %7651 = vadd.xlane.f32.xlu0 %v7650
          %v7652 = vpop.xlane.xlu0 %7651
          %v7653 = vadd.f32 %v7434, %v7436
          %7654 = vadd.xlane.f32.xlu0 %v7653
          %v7655 = vpop.xlane.xlu0 %7654
          %v7656 = vadd.f32 %v7438, %v7440
          %7657 = vadd.xlane.f32.xlu0 %v7656
          %v7658 = vpop.xlane.xlu0 %7657
          %v7659 = vadd.f32 %v7442, %v7444
          %7660 = vadd.xlane.f32.xlu0 %v7659
          %v7661 = vpop.xlane.xlu0 %7660
          %v7662 = vadd.f32 %v7446, %v7448
          %7663 = vadd.xlane.f32.xlu0 %v7662
          %v7664 = vpop.xlane.xlu0 %7663
          %v7665 = vadd.f32 %v7450, %v7452
          %7666 = vadd.xlane.f32.xlu0 %v7665
          %v7667 = vpop.xlane.xlu0 %7666
          %v7668 = vadd.f32 %v7454, %v7456
          %7669 = vadd.xlane.f32.xlu0 %v7668
          %v7670 = vpop.xlane.xlu0 %7669
          %v7671 = vadd.f32 %v7458, %v7460
          %7672 = vadd.xlane.f32.xlu0 %v7671
          %v7673 = vpop.xlane.xlu0 %7672
          %v7674 = vadd.f32 %v7462, %v7464
          %7675 = vadd.xlane.f32.xlu0 %v7674
          %v7676 = vpop.xlane.xlu0 %7675
          %v7677 = vadd.f32 %v7466, %v7468
          %7678 = vadd.xlane.f32.xlu0 %v7677
          %v7679 = vpop.xlane.xlu0 %7678
          %v7680 = vadd.f32 %v7470, %v7472
          %7681 = vadd.xlane.f32.xlu0 %v7680
          %v7682 = vpop.xlane.xlu0 %7681
          %v7683 = vadd.f32 %v7474, %v7476
          %7684 = vadd.xlane.f32.xlu0 %v7683
          %v7685 = vpop.xlane.xlu0 %7684
          %v7686 = vadd.f32 %v7478, %v7480
          %7687 = vadd.xlane.f32.xlu0 %v7686
          %v7688 = vpop.xlane.xlu0 %7687
          %v7689 = vadd.f32 %v7482, %v7484
          %7690 = vadd.xlane.f32.xlu0 %v7689
          %v7691 = vpop.xlane.xlu0 %7690
          %v7692 = vadd.f32 %v7486, %v7488
          %7693 = vadd.xlane.f32.xlu0 %v7692
          %v7694 = vpop.xlane.xlu0 %7693
          %v7695 = vadd.f32 %v7490, %v7492
          %7696 = vadd.xlane.f32.xlu0 %v7695
          %v7697 = vpop.xlane.xlu0 %7696
          %v7698 = vadd.f32 %v7494, %v7496
          %7699 = vadd.xlane.f32.xlu0 %v7698
          %v7700 = vpop.xlane.xlu0 %7699
          %v7701 = vadd.f32 %v7498, %v7500
          %7702 = vadd.xlane.f32.xlu0 %v7701
          %v7703 = vpop.xlane.xlu0 %7702
          %v7704 = vadd.f32 %v7502, %v7504
          %7705 = vadd.xlane.f32.xlu0 %v7704
          %v7706 = vpop.xlane.xlu0 %7705
          %v7707 = vadd.f32 %v7506, %v7508
          %7708 = vadd.xlane.f32.xlu0 %v7707
          %v7709 = vpop.xlane.xlu0 %7708
          %v7710 = vadd.f32 %v7510, %v7512
          %7711 = vadd.xlane.f32.xlu0 %v7710
          %v7712 = vpop.xlane.xlu0 %7711
          %v7713 = vadd.f32 %v7514, %v7516
          %7714 = vadd.xlane.f32.xlu0 %v7713
          %v7715 = vpop.xlane.xlu0 %7714
          %v7716 = vadd.f32 %v7518, %v7520
          %7717 = vadd.xlane.f32.xlu0 %v7716
          %v7718 = vpop.xlane.xlu0 %7717
          %v7719 = vadd.f32 %v7522, %v7524
          %7720 = vadd.xlane.f32.xlu0 %v7719
          %v7721 = vpop.xlane.xlu0 %7720
          %v7722 = vadd.f32 %v7526, %v7528
          %7723 = vadd.xlane.f32.xlu0 %v7722
          %v7724 = vpop.xlane.xlu0 %7723
          %v7725 = vadd.f32 %v7530, %v7532
          %7726 = vadd.xlane.f32.xlu0 %v7725
          %v7727 = vpop.xlane.xlu0 %7726
          %v7728 = vadd.f32 %v7534, %v7536
          %7729 = vadd.xlane.f32.xlu0 %v7728
          %v7730 = vpop.xlane.xlu0 %7729
          %v7731 = vadd.f32 %v7538, %v7540
          %7732 = vadd.xlane.f32.xlu0 %v7731
          %v7733 = vpop.xlane.xlu0 %7732
          %v7734 = vadd.f32 %v7542, %v7544
          %7735 = vadd.xlane.f32.xlu0 %v7734
          %v7736 = vpop.xlane.xlu0 %7735
          %v7737 = vpack.c.bf16 %v7294, %v7290
          %v7738 = vpack.c.bf16 %v7296, %v7292
          %v7739 = vpack.c.bf16 %v7302, %v7298
          %v7740 = vpack.c.bf16 %v7304, %v7300
          %v7741 = vpack.c.bf16 %v7310, %v7306
          %v7742 = vpack.c.bf16 %v7312, %v7308
          %v7743 = vpack.c.bf16 %v7318, %v7314
          %v7744 = vpack.c.bf16 %v7320, %v7316
          %v7745 = vpack.c.bf16 %v7326, %v7322
          %v7746 = vpack.c.bf16 %v7328, %v7324
          %v7747 = vpack.c.bf16 %v7334, %v7330
          %v7748 = vpack.c.bf16 %v7336, %v7332
          %v7749 = vpack.c.bf16 %v7342, %v7338
          %v7750 = vpack.c.bf16 %v7344, %v7340
          %v7751 = vpack.c.bf16 %v7350, %v7346
          %v7752 = vpack.c.bf16 %v7352, %v7348
          %v7753 = vpack.c.bf16 %v7358, %v7354
          %v7754 = vpack.c.bf16 %v7360, %v7356
          %v7755 = vpack.c.bf16 %v7366, %v7362
          %v7756 = vpack.c.bf16 %v7368, %v7364
          %v7757 = vpack.c.bf16 %v7374, %v7370
          %v7758 = vpack.c.bf16 %v7376, %v7372
          %v7759 = vpack.c.bf16 %v7382, %v7378
          %v7760 = vpack.c.bf16 %v7384, %v7380
          %v7761 = vpack.c.bf16 %v7390, %v7386
          %v7762 = vpack.c.bf16 %v7392, %v7388
          %v7763 = vpack.c.bf16 %v7398, %v7394
          %v7764 = vpack.c.bf16 %v7400, %v7396
          %v7765 = vpack.c.bf16 %v7406, %v7402
          %v7766 = vpack.c.bf16 %v7408, %v7404
          %v7767 = vpack.c.bf16 %v7414, %v7410
          %v7768 = vpack.c.bf16 %v7416, %v7412
          %v7769 = vpack.c.bf16 %v7422, %v7418
          %v7770 = vpack.c.bf16 %v7424, %v7420
          %v7771 = vpack.c.bf16 %v7430, %v7426
          %v7772 = vpack.c.bf16 %v7432, %v7428
          %v7773 = vpack.c.bf16 %v7438, %v7434
          %v7774 = vpack.c.bf16 %v7440, %v7436
          %v7775 = vpack.c.bf16 %v7446, %v7442
          %v7776 = vpack.c.bf16 %v7448, %v7444
          %v7777 = vpack.c.bf16 %v7454, %v7450
          %v7778 = vpack.c.bf16 %v7456, %v7452
          %v7779 = vpack.c.bf16 %v7462, %v7458
          %v7780 = vpack.c.bf16 %v7464, %v7460
          %v7781 = vpack.c.bf16 %v7470, %v7466
          %v7782 = vpack.c.bf16 %v7472, %v7468
          %v7783 = vpack.c.bf16 %v7478, %v7474
          %v7784 = vpack.c.bf16 %v7480, %v7476
          %v7785 = vpack.c.bf16 %v7486, %v7482
          %v7786 = vpack.c.bf16 %v7488, %v7484
          %v7787 = vpack.c.bf16 %v7494, %v7490
          %v7788 = vpack.c.bf16 %v7496, %v7492
          %v7789 = vpack.c.bf16 %v7502, %v7498
          %v7790 = vpack.c.bf16 %v7504, %v7500
          %v7791 = vpack.c.bf16 %v7510, %v7506
          %v7792 = vpack.c.bf16 %v7512, %v7508
          %v7793 = vpack.c.bf16 %v7518, %v7514
          %v7794 = vpack.c.bf16 %v7520, %v7516
          %v7795 = vpack.c.bf16 %v7526, %v7522
          %v7796 = vpack.c.bf16 %v7528, %v7524
          %v7797 = vpack.c.bf16 %v7534, %v7530
          %v7798 = vpack.c.bf16 %v7536, %v7532
          %v7799 = vpack.c.bf16 %v7542, %v7538
          %v7800 = vpack.c.bf16 %v7544, %v7540
          %v7801 = vld [vmem:[#allocation3] sm:$0xff]
          %v7802 = vld [vmem:[#allocation3 + $0x8] sm:$0xff]
          %v7803 = vld [vmem:[#allocation3 + $0x10] sm:$0xff]
          %v7804 = vld [vmem:[#allocation3 + $0x18] sm:$0xff]
          %v7805 = vld [vmem:[#allocation3 + $0x20] sm:$0xff]
          %v7806 = vld [vmem:[#allocation3 + $0x28] sm:$0xff]
          %v7807 = vld [vmem:[#allocation3 + $0x30] sm:$0xff]
          %v7808 = vld [vmem:[#allocation3 + $0x38] sm:$0xff]
          %v7809 = vld [vmem:[#allocation3 + $0x40] sm:$0xff]
          %v7810 = vld [vmem:[#allocation3 + $0x48] sm:$0xff]
          %v7811 = vld [vmem:[#allocation3 + $0x50] sm:$0xff]
          %v7812 = vld [vmem:[#allocation3 + $0x58] sm:$0xff]
          %v7813 = vld [vmem:[#allocation3 + $0x60] sm:$0xff]
          %v7814 = vld [vmem:[#allocation3 + $0x68] sm:$0xff]
          %v7815 = vld [vmem:[#allocation3 + $0x70] sm:$0xff]
          %v7816 = vld [vmem:[#allocation3 + $0x78] sm:$0xff]
          %v7817 = vld [vmem:[#allocation3 + $0x80] sm:$0xff]
          %v7818 = vld [vmem:[#allocation3 + $0x88] sm:$0xff]
          %v7819 = vld [vmem:[#allocation3 + $0x90] sm:$0xff]
          %v7820 = vld [vmem:[#allocation3 + $0x98] sm:$0xff]
          %v7821 = vld [vmem:[#allocation3 + $0xa0] sm:$0xff]
          %v7822 = vld [vmem:[#allocation3 + $0xa8] sm:$0xff]
          %v7823 = vld [vmem:[#allocation3 + $0xb0] sm:$0xff]
          %v7824 = vld [vmem:[#allocation3 + $0xb8] sm:$0xff]
          %v7825 = vld [vmem:[#allocation3 + $0xc0] sm:$0xff]
          %v7826 = vld [vmem:[#allocation3 + $0xc8] sm:$0xff]
          %v7827 = vld [vmem:[#allocation3 + $0xd0] sm:$0xff]
          %v7828 = vld [vmem:[#allocation3 + $0xd8] sm:$0xff]
          %v7829 = vld [vmem:[#allocation3 + $0xe0] sm:$0xff]
          %v7830 = vld [vmem:[#allocation3 + $0xe8] sm:$0xff]
          %v7831 = vld [vmem:[#allocation3 + $0xf0] sm:$0xff]
          %v7832 = vld [vmem:[#allocation3 + $0xf8] sm:$0xff]
          %v7833 = vld [vmem:[#allocation3 + $0x100] sm:$0xff]
          %v7834 = vld [vmem:[#allocation3 + $0x108] sm:$0xff]
          %v7835 = vld [vmem:[#allocation3 + $0x110] sm:$0xff]
          %v7836 = vld [vmem:[#allocation3 + $0x118] sm:$0xff]
          %v7837 = vld [vmem:[#allocation3 + $0x120] sm:$0xff]
          %v7838 = vld [vmem:[#allocation3 + $0x128] sm:$0xff]
          %v7839 = vld [vmem:[#allocation3 + $0x130] sm:$0xff]
          %v7840 = vld [vmem:[#allocation3 + $0x138] sm:$0xff]
          %v7841 = vld [vmem:[#allocation3 + $0x140] sm:$0xff]
          %v7842 = vld [vmem:[#allocation3 + $0x148] sm:$0xff]
          %v7843 = vld [vmem:[#allocation3 + $0x150] sm:$0xff]
          %v7844 = vld [vmem:[#allocation3 + $0x158] sm:$0xff]
          %v7845 = vld [vmem:[#allocation3 + $0x160] sm:$0xff]
          %v7846 = vld [vmem:[#allocation3 + $0x168] sm:$0xff]
          %v7847 = vld [vmem:[#allocation3 + $0x170] sm:$0xff]
          %v7848 = vld [vmem:[#allocation3 + $0x178] sm:$0xff]
          %v7849 = vld [vmem:[#allocation3 + $0x180] sm:$0xff]
          %v7850 = vld [vmem:[#allocation3 + $0x188] sm:$0xff]
          %v7851 = vld [vmem:[#allocation3 + $0x190] sm:$0xff]
          %v7852 = vld [vmem:[#allocation3 + $0x198] sm:$0xff]
          %v7853 = vld [vmem:[#allocation3 + $0x1a0] sm:$0xff]
          %v7854 = vld [vmem:[#allocation3 + $0x1a8] sm:$0xff]
          %v7855 = vld [vmem:[#allocation3 + $0x1b0] sm:$0xff]
          %v7856 = vld [vmem:[#allocation3 + $0x1b8] sm:$0xff]
          %v7857 = vld [vmem:[#allocation3 + $0x1c0] sm:$0xff]
          %v7858 = vld [vmem:[#allocation3 + $0x1c8] sm:$0xff]
          %v7859 = vld [vmem:[#allocation3 + $0x1d0] sm:$0xff]
          %v7860 = vld [vmem:[#allocation3 + $0x1d8] sm:$0xff]
          %v7861 = vld [vmem:[#allocation3 + $0x1e0] sm:$0xff]
          %v7862 = vld [vmem:[#allocation3 + $0x1e8] sm:$0xff]
          %v7863 = vld [vmem:[#allocation3 + $0x1f0] sm:$0xff]
          %v7864 = vld [vmem:[#allocation3 + $0x1f8] sm:$0xff]
          %v7865 = vmul.f32 %v6714, %v7801
          %v7866 = vmul.f32 %v6716, %v7802
          %v7867 = vmul.f32 %v6718, %v7803
          %v7868 = vmul.f32 %v6720, %v7804
          %v7869 = vmul.f32 %v6722, %v7805
          %v7870 = vmul.f32 %v6724, %v7806
          %v7871 = vmul.f32 %v6726, %v7807
          %v7872 = vmul.f32 %v6728, %v7808
          %v7873 = vmul.f32 %v6730, %v7809
          %v7874 = vmul.f32 %v6732, %v7810
          %v7875 = vmul.f32 %v6734, %v7811
          %v7876 = vmul.f32 %v6736, %v7812
          %v7877 = vmul.f32 %v6738, %v7813
          %v7878 = vmul.f32 %v6740, %v7814
          %v7879 = vmul.f32 %v6742, %v7815
          %v7880 = vmul.f32 %v6744, %v7816
          %v7881 = vmul.f32 %v6746, %v7817
          %v7882 = vmul.f32 %v6748, %v7818
          %v7883 = vmul.f32 %v6750, %v7819
          %v7884 = vmul.f32 %v6752, %v7820
          %v7885 = vmul.f32 %v6754, %v7821
          %v7886 = vmul.f32 %v6756, %v7822
          %v7887 = vmul.f32 %v6758, %v7823
          %v7888 = vmul.f32 %v6760, %v7824
          %v7889 = vmul.f32 %v6762, %v7825
          %v7890 = vmul.f32 %v6764, %v7826
          %v7891 = vmul.f32 %v6766, %v7827
          %v7892 = vmul.f32 %v6768, %v7828
          %v7893 = vmul.f32 %v6770, %v7829
          %v7894 = vmul.f32 %v6772, %v7830
          %v7895 = vmul.f32 %v6774, %v7831
          %v7896 = vmul.f32 %v6776, %v7832
          %v7897 = vmul.f32 %v6778, %v7833
          %v7898 = vmul.f32 %v6780, %v7834
          %v7899 = vmul.f32 %v6782, %v7835
          %v7900 = vmul.f32 %v6784, %v7836
          %v7901 = vmul.f32 %v6786, %v7837
          %v7902 = vmul.f32 %v6788, %v7838
          %v7903 = vmul.f32 %v6790, %v7839
          %v7904 = vmul.f32 %v6792, %v7840
          %v7905 = vmul.f32 %v6794, %v7841
          %v7906 = vmul.f32 %v6796, %v7842
          %v7907 = vmul.f32 %v6798, %v7843
          %v7908 = vmul.f32 %v6800, %v7844
          %v7909 = vmul.f32 %v6802, %v7845
          %v7910 = vmul.f32 %v6804, %v7846
          %v7911 = vmul.f32 %v6806, %v7847
          %v7912 = vmul.f32 %v6808, %v7848
          %v7913 = vmul.f32 %v6810, %v7849
          %v7914 = vmul.f32 %v6812, %v7850
          %v7915 = vmul.f32 %v6814, %v7851
          %v7916 = vmul.f32 %v6816, %v7852
          %v7917 = vmul.f32 %v6818, %v7853
          %v7918 = vmul.f32 %v6820, %v7854
          %v7919 = vmul.f32 %v6822, %v7855
          %v7920 = vmul.f32 %v6824, %v7856
          %v7921 = vmul.f32 %v6826, %v7857
          %v7922 = vmul.f32 %v6828, %v7858
          %v7923 = vmul.f32 %v6830, %v7859
          %v7924 = vmul.f32 %v6832, %v7860
          %v7925 = vmul.f32 %v6834, %v7861
          %v7926 = vmul.f32 %v6836, %v7862
          %v7927 = vmul.f32 %v6838, %v7863
          %v7928 = vmul.f32 %v6840, %v7864
          %v7929 = vadd.f32 %v7865, %v7547
          %v7930 = vadd.f32 %v7866, %v7550
          %v7931 = vadd.f32 %v7867, %v7553
          %v7932 = vadd.f32 %v7868, %v7556
          %v7933 = vadd.f32 %v7869, %v7559
          %v7934 = vadd.f32 %v7870, %v7562
          %v7935 = vadd.f32 %v7871, %v7565
          %v7936 = vadd.f32 %v7872, %v7568
          %v7937 = vadd.f32 %v7873, %v7571
          %v7938 = vadd.f32 %v7874, %v7574
          %v7939 = vadd.f32 %v7875, %v7577
          %v7940 = vadd.f32 %v7876, %v7580
          %v7941 = vadd.f32 %v7877, %v7583
          %v7942 = vadd.f32 %v7878, %v7586
          %v7943 = vadd.f32 %v7879, %v7589
          %v7944 = vadd.f32 %v7880, %v7592
          %v7945 = vadd.f32 %v7881, %v7595
          %v7946 = vadd.f32 %v7882, %v7598
          %v7947 = vadd.f32 %v7883, %v7601
          %v7948 = vadd.f32 %v7884, %v7604
          %v7949 = vadd.f32 %v7885, %v7607
          %v7950 = vadd.f32 %v7886, %v7610
          %v7951 = vadd.f32 %v7887, %v7613
          %v7952 = vadd.f32 %v7888, %v7616
          %v7953 = vadd.f32 %v7889, %v7619
          %v7954 = vadd.f32 %v7890, %v7622
          %v7955 = vadd.f32 %v7891, %v7625
          %v7956 = vadd.f32 %v7892, %v7628
          %v7957 = vadd.f32 %v7893, %v7631
          %v7958 = vadd.f32 %v7894, %v7634
          %v7959 = vadd.f32 %v7895, %v7637
          %v7960 = vadd.f32 %v7896, %v7640
          %v7961 = vadd.f32 %v7897, %v7643
          %v7962 = vadd.f32 %v7898, %v7646
          %v7963 = vadd.f32 %v7899, %v7649
          %v7964 = vadd.f32 %v7900, %v7652
          %v7965 = vadd.f32 %v7901, %v7655
          %v7966 = vadd.f32 %v7902, %v7658
          %v7967 = vadd.f32 %v7903, %v7661
          %v7968 = vadd.f32 %v7904, %v7664
          %v7969 = vadd.f32 %v7905, %v7667
          %v7970 = vadd.f32 %v7906, %v7670
          %v7971 = vadd.f32 %v7907, %v7673
          %v7972 = vadd.f32 %v7908, %v7676
          %v7973 = vadd.f32 %v7909, %v7679
          %v7974 = vadd.f32 %v7910, %v7682
          %v7975 = vadd.f32 %v7911, %v7685
          %v7976 = vadd.f32 %v7912, %v7688
          %v7977 = vadd.f32 %v7913, %v7691
          %v7978 = vadd.f32 %v7914, %v7694
          %v7979 = vadd.f32 %v7915, %v7697
          %v7980 = vadd.f32 %v7916, %v7700
          %v7981 = vadd.f32 %v7917, %v7703
          %v7982 = vadd.f32 %v7918, %v7706
          %v7983 = vadd.f32 %v7919, %v7709
          %v7984 = vadd.f32 %v7920, %v7712
          %v7985 = vadd.f32 %v7921, %v7715
          %v7986 = vadd.f32 %v7922, %v7718
          %v7987 = vadd.f32 %v7923, %v7721
          %v7988 = vadd.f32 %v7924, %v7724
          %v7989 = vadd.f32 %v7925, %v7727
          %v7990 = vadd.f32 %v7926, %v7730
          %v7991 = vadd.f32 %v7927, %v7733
          %v7992 = vadd.f32 %v7928, %v7736
          %vm7993 = vcmask 7168
          %7994 = vst.msk [vmem:[#allocation3] sm:$0xff] %vm7993, %v7929
          %7995 = vst.msk [vmem:[#allocation3 + $0x8] sm:$0xff] %vm7993, %v7930
          %7996 = vst.msk [vmem:[#allocation3 + $0x10] sm:$0xff] %vm7993, %v7931
          %7997 = vst.msk [vmem:[#allocation3 + $0x18] sm:$0xff] %vm7993, %v7932
          %7998 = vst.msk [vmem:[#allocation3 + $0x20] sm:$0xff] %vm7993, %v7933
          %7999 = vst.msk [vmem:[#allocation3 + $0x28] sm:$0xff] %vm7993, %v7934
          %8000 = vst.msk [vmem:[#allocation3 + $0x30] sm:$0xff] %vm7993, %v7935
          %8001 = vst.msk [vmem:[#allocation3 + $0x38] sm:$0xff] %vm7993, %v7936
          %8002 = vst.msk [vmem:[#allocation3 + $0x40] sm:$0xff] %vm7993, %v7937
          %8003 = vst.msk [vmem:[#allocation3 + $0x48] sm:$0xff] %vm7993, %v7938
          %8004 = vst.msk [vmem:[#allocation3 + $0x50] sm:$0xff] %vm7993, %v7939
          %8005 = vst.msk [vmem:[#allocation3 + $0x58] sm:$0xff] %vm7993, %v7940
          %8006 = vst.msk [vmem:[#allocation3 + $0x60] sm:$0xff] %vm7993, %v7941
          %8007 = vst.msk [vmem:[#allocation3 + $0x68] sm:$0xff] %vm7993, %v7942
          %8008 = vst.msk [vmem:[#allocation3 + $0x70] sm:$0xff] %vm7993, %v7943
          %8009 = vst.msk [vmem:[#allocation3 + $0x78] sm:$0xff] %vm7993, %v7944
          %8010 = vst.msk [vmem:[#allocation3 + $0x80] sm:$0xff] %vm7993, %v7945
          %8011 = vst.msk [vmem:[#allocation3 + $0x88] sm:$0xff] %vm7993, %v7946
          %8012 = vst.msk [vmem:[#allocation3 + $0x90] sm:$0xff] %vm7993, %v7947
          %8013 = vst.msk [vmem:[#allocation3 + $0x98] sm:$0xff] %vm7993, %v7948
          %8014 = vst.msk [vmem:[#allocation3 + $0xa0] sm:$0xff] %vm7993, %v7949
          %8015 = vst.msk [vmem:[#allocation3 + $0xa8] sm:$0xff] %vm7993, %v7950
          %8016 = vst.msk [vmem:[#allocation3 + $0xb0] sm:$0xff] %vm7993, %v7951
          %8017 = vst.msk [vmem:[#allocation3 + $0xb8] sm:$0xff] %vm7993, %v7952
          %8018 = vst.msk [vmem:[#allocation3 + $0xc0] sm:$0xff] %vm7993, %v7953
          %8019 = vst.msk [vmem:[#allocation3 + $0xc8] sm:$0xff] %vm7993, %v7954
          %8020 = vst.msk [vmem:[#allocation3 + $0xd0] sm:$0xff] %vm7993, %v7955
          %8021 = vst.msk [vmem:[#allocation3 + $0xd8] sm:$0xff] %vm7993, %v7956
          %8022 = vst.msk [vmem:[#allocation3 + $0xe0] sm:$0xff] %vm7993, %v7957
          %8023 = vst.msk [vmem:[#allocation3 + $0xe8] sm:$0xff] %vm7993, %v7958
          %8024 = vst.msk [vmem:[#allocation3 + $0xf0] sm:$0xff] %vm7993, %v7959
          %8025 = vst.msk [vmem:[#allocation3 + $0xf8] sm:$0xff] %vm7993, %v7960
          %8026 = vst.msk [vmem:[#allocation3 + $0x100] sm:$0xff] %vm7993, %v7961
          %8027 = vst.msk [vmem:[#allocation3 + $0x108] sm:$0xff] %vm7993, %v7962
          %8028 = vst.msk [vmem:[#allocation3 + $0x110] sm:$0xff] %vm7993, %v7963
          %8029 = vst.msk [vmem:[#allocation3 + $0x118] sm:$0xff] %vm7993, %v7964
          %8030 = vst.msk [vmem:[#allocation3 + $0x120] sm:$0xff] %vm7993, %v7965
          %8031 = vst.msk [vmem:[#allocation3 + $0x128] sm:$0xff] %vm7993, %v7966
          %8032 = vst.msk [vmem:[#allocation3 + $0x130] sm:$0xff] %vm7993, %v7967
          %8033 = vst.msk [vmem:[#allocation3 + $0x138] sm:$0xff] %vm7993, %v7968
          %8034 = vst.msk [vmem:[#allocation3 + $0x140] sm:$0xff] %vm7993, %v7969
          %8035 = vst.msk [vmem:[#allocation3 + $0x148] sm:$0xff] %vm7993, %v7970
          %8036 = vst.msk [vmem:[#allocation3 + $0x150] sm:$0xff] %vm7993, %v7971
          %8037 = vst.msk [vmem:[#allocation3 + $0x158] sm:$0xff] %vm7993, %v7972
          %8038 = vst.msk [vmem:[#allocation3 + $0x160] sm:$0xff] %vm7993, %v7973
          %8039 = vst.msk [vmem:[#allocation3 + $0x168] sm:$0xff] %vm7993, %v7974
          %8040 = vst.msk [vmem:[#allocation3 + $0x170] sm:$0xff] %vm7993, %v7975
          %8041 = vst.msk [vmem:[#allocation3 + $0x178] sm:$0xff] %vm7993, %v7976
          %8042 = vst.msk [vmem:[#allocation3 + $0x180] sm:$0xff] %vm7993, %v7977
          %8043 = vst.msk [vmem:[#allocation3 + $0x188] sm:$0xff] %vm7993, %v7978
          %8044 = vst.msk [vmem:[#allocation3 + $0x190] sm:$0xff] %vm7993, %v7979
          %8045 = vst.msk [vmem:[#allocation3 + $0x198] sm:$0xff] %vm7993, %v7980
          %8046 = vst.msk [vmem:[#allocation3 + $0x1a0] sm:$0xff] %vm7993, %v7981
          %8047 = vst.msk [vmem:[#allocation3 + $0x1a8] sm:$0xff] %vm7993, %v7982
          %8048 = vst.msk [vmem:[#allocation3 + $0x1b0] sm:$0xff] %vm7993, %v7983
          %8049 = vst.msk [vmem:[#allocation3 + $0x1b8] sm:$0xff] %vm7993, %v7984
          %8050 = vst.msk [vmem:[#allocation3 + $0x1c0] sm:$0xff] %vm7993, %v7985
          %8051 = vst.msk [vmem:[#allocation3 + $0x1c8] sm:$0xff] %vm7993, %v7986
          %8052 = vst.msk [vmem:[#allocation3 + $0x1d0] sm:$0xff] %vm7993, %v7987
          %8053 = vst.msk [vmem:[#allocation3 + $0x1d8] sm:$0xff] %vm7993, %v7988
          %8054 = vst.msk [vmem:[#allocation3 + $0x1e0] sm:$0xff] %vm7993, %v7989
          %8055 = vst.msk [vmem:[#allocation3 + $0x1e8] sm:$0xff] %vm7993, %v7990
          %8056 = vst.msk [vmem:[#allocation3 + $0x1f0] sm:$0xff] %vm7993, %v7991
          %8057 = vst.msk [vmem:[#allocation3 + $0x1f8] sm:$0xff] %vm7993, %v7992
          %v8058 = vld [vmem:[#allocation4] sm:$0xff]
          %v8059 = vld [vmem:[#allocation4 + $0x8] sm:$0xff]
          %v8060 = vld [vmem:[#allocation4 + $0x10] sm:$0xff]
          %v8061 = vld [vmem:[#allocation4 + $0x18] sm:$0xff]
          %v8062 = vld [vmem:[#allocation4 + $0x20] sm:$0xff]
          %v8063 = vld [vmem:[#allocation4 + $0x28] sm:$0xff]
          %v8064 = vld [vmem:[#allocation4 + $0x30] sm:$0xff]
          %v8065 = vld [vmem:[#allocation4 + $0x38] sm:$0xff]
          %v8066 = vld [vmem:[#allocation4 + $0x40] sm:$0xff]
          %v8067 = vld [vmem:[#allocation4 + $0x48] sm:$0xff]
          %v8068 = vld [vmem:[#allocation4 + $0x50] sm:$0xff]
          %v8069 = vld [vmem:[#allocation4 + $0x58] sm:$0xff]
          %v8070 = vld [vmem:[#allocation4 + $0x60] sm:$0xff]
          %v8071 = vld [vmem:[#allocation4 + $0x68] sm:$0xff]
          %v8072 = vld [vmem:[#allocation4 + $0x70] sm:$0xff]
          %v8073 = vld [vmem:[#allocation4 + $0x78] sm:$0xff]
          %v8074 = vld [vmem:[#allocation4 + $0x80] sm:$0xff]
          %v8075 = vld [vmem:[#allocation4 + $0x88] sm:$0xff]
          %v8076 = vld [vmem:[#allocation4 + $0x90] sm:$0xff]
          %v8077 = vld [vmem:[#allocation4 + $0x98] sm:$0xff]
          %v8078 = vld [vmem:[#allocation4 + $0xa0] sm:$0xff]
          %v8079 = vld [vmem:[#allocation4 + $0xa8] sm:$0xff]
          %v8080 = vld [vmem:[#allocation4 + $0xb0] sm:$0xff]
          %v8081 = vld [vmem:[#allocation4 + $0xb8] sm:$0xff]
          %v8082 = vld [vmem:[#allocation4 + $0xc0] sm:$0xff]
          %v8083 = vld [vmem:[#allocation4 + $0xc8] sm:$0xff]
          %v8084 = vld [vmem:[#allocation4 + $0xd0] sm:$0xff]
          %v8085 = vld [vmem:[#allocation4 + $0xd8] sm:$0xff]
          %v8086 = vld [vmem:[#allocation4 + $0xe0] sm:$0xff]
          %v8087 = vld [vmem:[#allocation4 + $0xe8] sm:$0xff]
          %v8088 = vld [vmem:[#allocation4 + $0xf0] sm:$0xff]
          %v8089 = vld [vmem:[#allocation4 + $0xf8] sm:$0xff]
          %v8090 = vld [vmem:[#allocation4 + $0x100] sm:$0xff]
          %v8091 = vld [vmem:[#allocation4 + $0x108] sm:$0xff]
          %v8092 = vld [vmem:[#allocation4 + $0x110] sm:$0xff]
          %v8093 = vld [vmem:[#allocation4 + $0x118] sm:$0xff]
          %v8094 = vld [vmem:[#allocation4 + $0x120] sm:$0xff]
          %v8095 = vld [vmem:[#allocation4 + $0x128] sm:$0xff]
          %v8096 = vld [vmem:[#allocation4 + $0x130] sm:$0xff]
          %v8097 = vld [vmem:[#allocation4 + $0x138] sm:$0xff]
          %v8098 = vld [vmem:[#allocation4 + $0x140] sm:$0xff]
          %v8099 = vld [vmem:[#allocation4 + $0x148] sm:$0xff]
          %v8100 = vld [vmem:[#allocation4 + $0x150] sm:$0xff]
          %v8101 = vld [vmem:[#allocation4 + $0x158] sm:$0xff]
          %v8102 = vld [vmem:[#allocation4 + $0x160] sm:$0xff]
          %v8103 = vld [vmem:[#allocation4 + $0x168] sm:$0xff]
          %v8104 = vld [vmem:[#allocation4 + $0x170] sm:$0xff]
          %v8105 = vld [vmem:[#allocation4 + $0x178] sm:$0xff]
          %v8106 = vld [vmem:[#allocation4 + $0x180] sm:$0xff]
          %v8107 = vld [vmem:[#allocation4 + $0x188] sm:$0xff]
          %v8108 = vld [vmem:[#allocation4 + $0x190] sm:$0xff]
          %v8109 = vld [vmem:[#allocation4 + $0x198] sm:$0xff]
          %v8110 = vld [vmem:[#allocation4 + $0x1a0] sm:$0xff]
          %v8111 = vld [vmem:[#allocation4 + $0x1a8] sm:$0xff]
          %v8112 = vld [vmem:[#allocation4 + $0x1b0] sm:$0xff]
          %v8113 = vld [vmem:[#allocation4 + $0x1b8] sm:$0xff]
          %v8114 = vld [vmem:[#allocation4 + $0x1c0] sm:$0xff]
          %v8115 = vld [vmem:[#allocation4 + $0x1c8] sm:$0xff]
          %v8116 = vld [vmem:[#allocation4 + $0x1d0] sm:$0xff]
          %v8117 = vld [vmem:[#allocation4 + $0x1d8] sm:$0xff]
          %v8118 = vld [vmem:[#allocation4 + $0x1e0] sm:$0xff]
          %v8119 = vld [vmem:[#allocation4 + $0x1e8] sm:$0xff]
          %v8120 = vld [vmem:[#allocation4 + $0x1f0] sm:$0xff]
          %v8121 = vld [vmem:[#allocation4 + $0x1f8] sm:$0xff]
          %8123 = vset.pattern.permute.xlu0 0
          %8124 = vperm.xlu0 %8123, %v6714
          %v8125 = vpop.permute.xlu0 %8124
          %8128 = vset.pattern.permute.xlu0 0
          %8129 = vperm.xlu0 %8128, %v6716
          %v8130 = vpop.permute.xlu0 %8129
          %8133 = vset.pattern.permute.xlu0 0
          %8134 = vperm.xlu0 %8133, %v6718
          %v8135 = vpop.permute.xlu0 %8134
          %8138 = vset.pattern.permute.xlu0 0
          %8139 = vperm.xlu0 %8138, %v6720
          %v8140 = vpop.permute.xlu0 %8139
          %8143 = vset.pattern.permute.xlu0 0
          %8144 = vperm.xlu0 %8143, %v6722
          %v8145 = vpop.permute.xlu0 %8144
          %8148 = vset.pattern.permute.xlu0 0
          %8149 = vperm.xlu0 %8148, %v6724
          %v8150 = vpop.permute.xlu0 %8149
          %8153 = vset.pattern.permute.xlu0 0
          %8154 = vperm.xlu0 %8153, %v6726
          %v8155 = vpop.permute.xlu0 %8154
          %8158 = vset.pattern.permute.xlu0 0
          %8159 = vperm.xlu0 %8158, %v6728
          %v8160 = vpop.permute.xlu0 %8159
          %8163 = vset.pattern.permute.xlu0 0
          %8164 = vperm.xlu0 %8163, %v6730
          %v8165 = vpop.permute.xlu0 %8164
          %8168 = vset.pattern.permute.xlu0 0
          %8169 = vperm.xlu0 %8168, %v6732
          %v8170 = vpop.permute.xlu0 %8169
          %8173 = vset.pattern.permute.xlu0 0
          %8174 = vperm.xlu0 %8173, %v6734
          %v8175 = vpop.permute.xlu0 %8174
          %8178 = vset.pattern.permute.xlu0 0
          %8179 = vperm.xlu0 %8178, %v6736
          %v8180 = vpop.permute.xlu0 %8179
          %8183 = vset.pattern.permute.xlu0 0
          %8184 = vperm.xlu0 %8183, %v6738
          %v8185 = vpop.permute.xlu0 %8184
          %8188 = vset.pattern.permute.xlu0 0
          %8189 = vperm.xlu0 %8188, %v6740
          %v8190 = vpop.permute.xlu0 %8189
          %8193 = vset.pattern.permute.xlu0 0
          %8194 = vperm.xlu0 %8193, %v6742
          %v8195 = vpop.permute.xlu0 %8194
          %8198 = vset.pattern.permute.xlu0 0
          %8199 = vperm.xlu0 %8198, %v6744
          %v8200 = vpop.permute.xlu0 %8199
          %8203 = vset.pattern.permute.xlu0 0
          %8204 = vperm.xlu0 %8203, %v6746
          %v8205 = vpop.permute.xlu0 %8204
          %8208 = vset.pattern.permute.xlu0 0
          %8209 = vperm.xlu0 %8208, %v6748
          %v8210 = vpop.permute.xlu0 %8209
          %8213 = vset.pattern.permute.xlu0 0
          %8214 = vperm.xlu0 %8213, %v6750
          %v8215 = vpop.permute.xlu0 %8214
          %8218 = vset.pattern.permute.xlu0 0
          %8219 = vperm.xlu0 %8218, %v6752
          %v8220 = vpop.permute.xlu0 %8219
          %8223 = vset.pattern.permute.xlu0 0
          %8224 = vperm.xlu0 %8223, %v6754
          %v8225 = vpop.permute.xlu0 %8224
          %8228 = vset.pattern.permute.xlu0 0
          %8229 = vperm.xlu0 %8228, %v6756
          %v8230 = vpop.permute.xlu0 %8229
          %8233 = vset.pattern.permute.xlu0 0
          %8234 = vperm.xlu0 %8233, %v6758
          %v8235 = vpop.permute.xlu0 %8234
          %8238 = vset.pattern.permute.xlu0 0
          %8239 = vperm.xlu0 %8238, %v6760
          %v8240 = vpop.permute.xlu0 %8239
          %8243 = vset.pattern.permute.xlu0 0
          %8244 = vperm.xlu0 %8243, %v6762
          %v8245 = vpop.permute.xlu0 %8244
          %8248 = vset.pattern.permute.xlu0 0
          %8249 = vperm.xlu0 %8248, %v6764
          %v8250 = vpop.permute.xlu0 %8249
          %8253 = vset.pattern.permute.xlu0 0
          %8254 = vperm.xlu0 %8253, %v6766
          %v8255 = vpop.permute.xlu0 %8254
          %8258 = vset.pattern.permute.xlu0 0
          %8259 = vperm.xlu0 %8258, %v6768
          %v8260 = vpop.permute.xlu0 %8259
          %8263 = vset.pattern.permute.xlu0 0
          %8264 = vperm.xlu0 %8263, %v6770
          %v8265 = vpop.permute.xlu0 %8264
          %8268 = vset.pattern.permute.xlu0 0
          %8269 = vperm.xlu0 %8268, %v6772
          %v8270 = vpop.permute.xlu0 %8269
          %8273 = vset.pattern.permute.xlu0 0
          %8274 = vperm.xlu0 %8273, %v6774
          %v8275 = vpop.permute.xlu0 %8274
          %8278 = vset.pattern.permute.xlu0 0
          %8279 = vperm.xlu0 %8278, %v6776
          %v8280 = vpop.permute.xlu0 %8279
          %8283 = vset.pattern.permute.xlu0 0
          %8284 = vperm.xlu0 %8283, %v6778
          %v8285 = vpop.permute.xlu0 %8284
          %8288 = vset.pattern.permute.xlu0 0
          %8289 = vperm.xlu0 %8288, %v6780
          %v8290 = vpop.permute.xlu0 %8289
          %8293 = vset.pattern.permute.xlu0 0
          %8294 = vperm.xlu0 %8293, %v6782
          %v8295 = vpop.permute.xlu0 %8294
          %8298 = vset.pattern.permute.xlu0 0
          %8299 = vperm.xlu0 %8298, %v6784
          %v8300 = vpop.permute.xlu0 %8299
          %8303 = vset.pattern.permute.xlu0 0
          %8304 = vperm.xlu0 %8303, %v6786
          %v8305 = vpop.permute.xlu0 %8304
          %8308 = vset.pattern.permute.xlu0 0
          %8309 = vperm.xlu0 %8308, %v6788
          %v8310 = vpop.permute.xlu0 %8309
          %8313 = vset.pattern.permute.xlu0 0
          %8314 = vperm.xlu0 %8313, %v6790
          %v8315 = vpop.permute.xlu0 %8314
          %8318 = vset.pattern.permute.xlu0 0
          %8319 = vperm.xlu0 %8318, %v6792
          %v8320 = vpop.permute.xlu0 %8319
          %8323 = vset.pattern.permute.xlu0 0
          %8324 = vperm.xlu0 %8323, %v6794
          %v8325 = vpop.permute.xlu0 %8324
          %8328 = vset.pattern.permute.xlu0 0
          %8329 = vperm.xlu0 %8328, %v6796
          %v8330 = vpop.permute.xlu0 %8329
          %8333 = vset.pattern.permute.xlu0 0
          %8334 = vperm.xlu0 %8333, %v6798
          %v8335 = vpop.permute.xlu0 %8334
          %8338 = vset.pattern.permute.xlu0 0
          %8339 = vperm.xlu0 %8338, %v6800
          %v8340 = vpop.permute.xlu0 %8339
          %8343 = vset.pattern.permute.xlu0 0
          %8344 = vperm.xlu0 %8343, %v6802
          %v8345 = vpop.permute.xlu0 %8344
          %8348 = vset.pattern.permute.xlu0 0
          %8349 = vperm.xlu0 %8348, %v6804
          %v8350 = vpop.permute.xlu0 %8349
          %8353 = vset.pattern.permute.xlu0 0
          %8354 = vperm.xlu0 %8353, %v6806
          %v8355 = vpop.permute.xlu0 %8354
          %8358 = vset.pattern.permute.xlu0 0
          %8359 = vperm.xlu0 %8358, %v6808
          %v8360 = vpop.permute.xlu0 %8359
          %8363 = vset.pattern.permute.xlu0 0
          %8364 = vperm.xlu0 %8363, %v6810
          %v8365 = vpop.permute.xlu0 %8364
          %8368 = vset.pattern.permute.xlu0 0
          %8369 = vperm.xlu0 %8368, %v6812
          %v8370 = vpop.permute.xlu0 %8369
          %8373 = vset.pattern.permute.xlu0 0
          %8374 = vperm.xlu0 %8373, %v6814
          %v8375 = vpop.permute.xlu0 %8374
          %8378 = vset.pattern.permute.xlu0 0
          %8379 = vperm.xlu0 %8378, %v6816
          %v8380 = vpop.permute.xlu0 %8379
          %8383 = vset.pattern.permute.xlu0 0
          %8384 = vperm.xlu0 %8383, %v6818
          %v8385 = vpop.permute.xlu0 %8384
          %8388 = vset.pattern.permute.xlu0 0
          %8389 = vperm.xlu0 %8388, %v6820
          %v8390 = vpop.permute.xlu0 %8389
          %8393 = vset.pattern.permute.xlu0 0
          %8394 = vperm.xlu0 %8393, %v6822
          %v8395 = vpop.permute.xlu0 %8394
          %8398 = vset.pattern.permute.xlu0 0
          %8399 = vperm.xlu0 %8398, %v6824
          %v8400 = vpop.permute.xlu0 %8399
          %8403 = vset.pattern.permute.xlu0 0
          %8404 = vperm.xlu0 %8403, %v6826
          %v8405 = vpop.permute.xlu0 %8404
          %8408 = vset.pattern.permute.xlu0 0
          %8409 = vperm.xlu0 %8408, %v6828
          %v8410 = vpop.permute.xlu0 %8409
          %8413 = vset.pattern.permute.xlu0 0
          %8414 = vperm.xlu0 %8413, %v6830
          %v8415 = vpop.permute.xlu0 %8414
          %8418 = vset.pattern.permute.xlu0 0
          %8419 = vperm.xlu0 %8418, %v6832
          %v8420 = vpop.permute.xlu0 %8419
          %8423 = vset.pattern.permute.xlu0 0
          %8424 = vperm.xlu0 %8423, %v6834
          %v8425 = vpop.permute.xlu0 %8424
          %8428 = vset.pattern.permute.xlu0 0
          %8429 = vperm.xlu0 %8428, %v6836
          %v8430 = vpop.permute.xlu0 %8429
          %8433 = vset.pattern.permute.xlu0 0
          %8434 = vperm.xlu0 %8433, %v6838
          %v8435 = vpop.permute.xlu0 %8434
          %8438 = vset.pattern.permute.xlu0 0
          %8439 = vperm.xlu0 %8438, %v6840
          %v8440 = vpop.permute.xlu0 %8439
          %v8442 = vmul.f32 %v8125, %v8058
          %v8443 = vmul.f32 %v8130, %v8059
          %v8444 = vmul.f32 %v8135, %v8060
          %v8445 = vmul.f32 %v8140, %v8061
          %v8446 = vmul.f32 %v8145, %v8062
          %v8447 = vmul.f32 %v8150, %v8063
          %v8448 = vmul.f32 %v8155, %v8064
          %v8449 = vmul.f32 %v8160, %v8065
          %v8450 = vmul.f32 %v8165, %v8066
          %v8451 = vmul.f32 %v8170, %v8067
          %v8452 = vmul.f32 %v8175, %v8068
          %v8453 = vmul.f32 %v8180, %v8069
          %v8454 = vmul.f32 %v8185, %v8070
          %v8455 = vmul.f32 %v8190, %v8071
          %v8456 = vmul.f32 %v8195, %v8072
          %v8457 = vmul.f32 %v8200, %v8073
          %v8458 = vmul.f32 %v8205, %v8074
          %v8459 = vmul.f32 %v8210, %v8075
          %v8460 = vmul.f32 %v8215, %v8076
          %v8461 = vmul.f32 %v8220, %v8077
          %v8462 = vmul.f32 %v8225, %v8078
          %v8463 = vmul.f32 %v8230, %v8079
          %v8464 = vmul.f32 %v8235, %v8080
          %v8465 = vmul.f32 %v8240, %v8081
          %v8466 = vmul.f32 %v8245, %v8082
          %v8467 = vmul.f32 %v8250, %v8083
          %v8468 = vmul.f32 %v8255, %v8084
          %v8469 = vmul.f32 %v8260, %v8085
          %v8470 = vmul.f32 %v8265, %v8086
          %v8471 = vmul.f32 %v8270, %v8087
          %v8472 = vmul.f32 %v8275, %v8088
          %v8473 = vmul.f32 %v8280, %v8089
          %v8474 = vmul.f32 %v8285, %v8090
          %v8475 = vmul.f32 %v8290, %v8091
          %v8476 = vmul.f32 %v8295, %v8092
          %v8477 = vmul.f32 %v8300, %v8093
          %v8478 = vmul.f32 %v8305, %v8094
          %v8479 = vmul.f32 %v8310, %v8095
          %v8480 = vmul.f32 %v8315, %v8096
          %v8481 = vmul.f32 %v8320, %v8097
          %v8482 = vmul.f32 %v8325, %v8098
          %v8483 = vmul.f32 %v8330, %v8099
          %v8484 = vmul.f32 %v8335, %v8100
          %v8485 = vmul.f32 %v8340, %v8101
          %v8486 = vmul.f32 %v8345, %v8102
          %v8487 = vmul.f32 %v8350, %v8103
          %v8488 = vmul.f32 %v8355, %v8104
          %v8489 = vmul.f32 %v8360, %v8105
          %v8490 = vmul.f32 %v8365, %v8106
          %v8491 = vmul.f32 %v8370, %v8107
          %v8492 = vmul.f32 %v8375, %v8108
          %v8493 = vmul.f32 %v8380, %v8109
          %v8494 = vmul.f32 %v8385, %v8110
          %v8495 = vmul.f32 %v8390, %v8111
          %v8496 = vmul.f32 %v8395, %v8112
          %v8497 = vmul.f32 %v8400, %v8113
          %v8498 = vmul.f32 %v8405, %v8114
          %v8499 = vmul.f32 %v8410, %v8115
          %v8500 = vmul.f32 %v8415, %v8116
          %v8501 = vmul.f32 %v8420, %v8117
          %v8502 = vmul.f32 %v8425, %v8118
          %v8503 = vmul.f32 %v8430, %v8119
          %v8504 = vmul.f32 %v8435, %v8120
          %v8505 = vmul.f32 %v8440, %v8121
          %v8538 = vunpack.c.l.b16 %v4515
          %v8539 = vunpack.c.l.b16 %v4516
          %v8540 = vunpack.c.l.b16 %v4517
          %v8541 = vunpack.c.l.b16 %v4518
          %v8542 = vunpack.c.l.b16 %v4519
          %v8543 = vunpack.c.l.b16 %v4520
          %v8544 = vunpack.c.l.b16 %v4521
          %v8545 = vunpack.c.l.b16 %v4522
          %v8546 = vunpack.c.l.b16 %v4523
          %v8547 = vunpack.c.l.b16 %v4524
          %v8548 = vunpack.c.l.b16 %v4525
          %v8549 = vunpack.c.l.b16 %v4526
          %v8550 = vunpack.c.l.b16 %v4527
          %v8551 = vunpack.c.l.b16 %v4528
          %v8552 = vunpack.c.l.b16 %v4529
          %v8553 = vunpack.c.l.b16 %v4530
          %v8554 = vunpack.c.l.b16 %v4531
          %v8555 = vunpack.c.l.b16 %v4532
          %v8556 = vunpack.c.l.b16 %v4533
          %v8557 = vunpack.c.l.b16 %v4534
          %v8558 = vunpack.c.l.b16 %v4535
          %v8559 = vunpack.c.l.b16 %v4536
          %v8560 = vunpack.c.l.b16 %v4537
          %v8561 = vunpack.c.l.b16 %v4538
          %v8562 = vunpack.c.l.b16 %v4539
          %v8563 = vunpack.c.l.b16 %v4540
          %v8564 = vunpack.c.l.b16 %v4541
          %v8565 = vunpack.c.l.b16 %v4542
          %v8566 = vunpack.c.l.b16 %v4543
          %v8567 = vunpack.c.l.b16 %v4544
          %v8568 = vunpack.c.l.b16 %v4545
          %v8569 = vunpack.c.l.b16 %v4546
          %v8570 = vpack.c.b16 %v8539, %v8538
          %v8571 = vpack.c.b16 %v8541, %v8540
          %v8572 = vpack.c.b16 %v8543, %v8542
          %v8573 = vpack.c.b16 %v8545, %v8544
          %v8574 = vpack.c.b16 %v8547, %v8546
          %v8575 = vpack.c.b16 %v8549, %v8548
          %v8576 = vpack.c.b16 %v8551, %v8550
          %v8577 = vpack.c.b16 %v8553, %v8552
          %v8578 = vpack.c.b16 %v8555, %v8554
          %v8579 = vpack.c.b16 %v8557, %v8556
          %v8580 = vpack.c.b16 %v8559, %v8558
          %v8581 = vpack.c.b16 %v8561, %v8560
          %v8582 = vpack.c.b16 %v8563, %v8562
          %v8583 = vpack.c.b16 %v8565, %v8564
          %v8584 = vpack.c.b16 %v8567, %v8566
          %v8585 = vpack.c.b16 %v8569, %v8568
          %8602 = vmatpush.bf16.msra.mxu0 %v8577
          %8603 = vmatpush.bf16.msra.mxu0 %v8576
          %8604 = vmatpush.bf16.msra.mxu0 %v8575
          %8605 = vmatpush.bf16.msra.mxu0 %v8574
          %8606 = vmatpush.bf16.msra.mxu0 %v8573
          %8607 = vmatpush.bf16.msra.mxu0 %v8572
          %8608 = vmatpush.bf16.msra.mxu0 %v8571
          %8609 = vmatpush.bf16.msra.mxu0 %v8570
          %8610 = vmatmul.bf16.gmra.mxu0 %v7737
          %v8611 = vpop.f32.mrf.mxu0
          %v8612 = vadd.f32 0.0, %v8611
          %v8613 = vpop.f32.mrf.mxu0
          %v8614 = vadd.f32 0.0, %v8613
          %8615 = vmatmul.bf16.gmra.mxu0 %v7739
          %v8616 = vpop.f32.mrf.mxu0
          %v8617 = vadd.f32 0.0, %v8616
          %v8618 = vpop.f32.mrf.mxu0
          %v8619 = vadd.f32 0.0, %v8618
          %8620 = vmatmul.bf16.gmra.mxu0 %v7741
          %v8621 = vpop.f32.mrf.mxu0
          %v8622 = vadd.f32 0.0, %v8621
          %v8623 = vpop.f32.mrf.mxu0
          %v8624 = vadd.f32 0.0, %v8623
          %8625 = vmatmul.bf16.gmra.mxu0 %v7743
          %v8626 = vpop.f32.mrf.mxu0
          %v8627 = vadd.f32 0.0, %v8626
          %v8628 = vpop.f32.mrf.mxu0
          %v8629 = vadd.f32 0.0, %v8628
          %8630 = vmatmul.bf16.gmra.mxu0 %v7745
          %v8631 = vpop.f32.mrf.mxu0
          %v8632 = vadd.f32 0.0, %v8631
          %v8633 = vpop.f32.mrf.mxu0
          %v8634 = vadd.f32 0.0, %v8633
          %8635 = vmatmul.bf16.gmra.mxu0 %v7747
          %v8636 = vpop.f32.mrf.mxu0
          %v8637 = vadd.f32 0.0, %v8636
          %v8638 = vpop.f32.mrf.mxu0
          %v8639 = vadd.f32 0.0, %v8638
          %8640 = vmatmul.bf16.gmra.mxu0 %v7749
          %v8641 = vpop.f32.mrf.mxu0
          %v8642 = vadd.f32 0.0, %v8641
          %v8643 = vpop.f32.mrf.mxu0
          %v8644 = vadd.f32 0.0, %v8643
          %8645 = vmatmul.bf16.gmra.mxu0 %v7751
          %v8646 = vpop.f32.mrf.mxu0
          %v8647 = vadd.f32 0.0, %v8646
          %v8648 = vpop.f32.mrf.mxu0
          %v8649 = vadd.f32 0.0, %v8648
          %8650 = vmatmul.bf16.gmra.mxu0 %v7753
          %v8651 = vpop.f32.mrf.mxu0
          %v8652 = vadd.f32 0.0, %v8651
          %v8653 = vpop.f32.mrf.mxu0
          %v8654 = vadd.f32 0.0, %v8653
          %8655 = vmatmul.bf16.gmra.mxu0 %v7755
          %v8656 = vpop.f32.mrf.mxu0
          %v8657 = vadd.f32 0.0, %v8656
          %v8658 = vpop.f32.mrf.mxu0
          %v8659 = vadd.f32 0.0, %v8658
          %8660 = vmatmul.bf16.gmra.mxu0 %v7757
          %v8661 = vpop.f32.mrf.mxu0
          %v8662 = vadd.f32 0.0, %v8661
          %v8663 = vpop.f32.mrf.mxu0
          %v8664 = vadd.f32 0.0, %v8663
          %8665 = vmatmul.bf16.gmra.mxu0 %v7759
          %v8666 = vpop.f32.mrf.mxu0
          %v8667 = vadd.f32 0.0, %v8666
          %v8668 = vpop.f32.mrf.mxu0
          %v8669 = vadd.f32 0.0, %v8668
          %8670 = vmatmul.bf16.gmra.mxu0 %v7761
          %v8671 = vpop.f32.mrf.mxu0
          %v8672 = vadd.f32 0.0, %v8671
          %v8673 = vpop.f32.mrf.mxu0
          %v8674 = vadd.f32 0.0, %v8673
          %8675 = vmatmul.bf16.gmra.mxu0 %v7763
          %v8676 = vpop.f32.mrf.mxu0
          %v8677 = vadd.f32 0.0, %v8676
          %v8678 = vpop.f32.mrf.mxu0
          %v8679 = vadd.f32 0.0, %v8678
          %8680 = vmatmul.bf16.gmra.mxu0 %v7765
          %v8681 = vpop.f32.mrf.mxu0
          %v8682 = vadd.f32 0.0, %v8681
          %v8683 = vpop.f32.mrf.mxu0
          %v8684 = vadd.f32 0.0, %v8683
          %8685 = vmatmul.bf16.gmra.mxu0 %v7767
          %v8686 = vpop.f32.mrf.mxu0
          %v8687 = vadd.f32 0.0, %v8686
          %v8688 = vpop.f32.mrf.mxu0
          %v8689 = vadd.f32 0.0, %v8688
          %8690 = vmatmul.bf16.gmra.mxu0 %v7769
          %v8691 = vpop.f32.mrf.mxu0
          %v8692 = vadd.f32 0.0, %v8691
          %v8693 = vpop.f32.mrf.mxu0
          %v8694 = vadd.f32 0.0, %v8693
          %8695 = vmatmul.bf16.gmra.mxu0 %v7771
          %v8696 = vpop.f32.mrf.mxu0
          %v8697 = vadd.f32 0.0, %v8696
          %v8698 = vpop.f32.mrf.mxu0
          %v8699 = vadd.f32 0.0, %v8698
          %8700 = vmatmul.bf16.gmra.mxu0 %v7773
          %v8701 = vpop.f32.mrf.mxu0
          %v8702 = vadd.f32 0.0, %v8701
          %v8703 = vpop.f32.mrf.mxu0
          %v8704 = vadd.f32 0.0, %v8703
          %8705 = vmatmul.bf16.gmra.mxu0 %v7775
          %v8706 = vpop.f32.mrf.mxu0
          %v8707 = vadd.f32 0.0, %v8706
          %v8708 = vpop.f32.mrf.mxu0
          %v8709 = vadd.f32 0.0, %v8708
          %8710 = vmatmul.bf16.gmra.mxu0 %v7777
          %v8711 = vpop.f32.mrf.mxu0
          %v8712 = vadd.f32 0.0, %v8711
          %v8713 = vpop.f32.mrf.mxu0
          %v8714 = vadd.f32 0.0, %v8713
          %8715 = vmatmul.bf16.gmra.mxu0 %v7779
          %v8716 = vpop.f32.mrf.mxu0
          %v8717 = vadd.f32 0.0, %v8716
          %v8718 = vpop.f32.mrf.mxu0
          %v8719 = vadd.f32 0.0, %v8718
          %8720 = vmatmul.bf16.gmra.mxu0 %v7781
          %v8721 = vpop.f32.mrf.mxu0
          %v8722 = vadd.f32 0.0, %v8721
          %v8723 = vpop.f32.mrf.mxu0
          %v8724 = vadd.f32 0.0, %v8723
          %8725 = vmatmul.bf16.gmra.mxu0 %v7783
          %v8726 = vpop.f32.mrf.mxu0
          %v8727 = vadd.f32 0.0, %v8726
          %v8728 = vpop.f32.mrf.mxu0
          %v8729 = vadd.f32 0.0, %v8728
          %8730 = vmatmul.bf16.gmra.mxu0 %v7785
          %v8731 = vpop.f32.mrf.mxu0
          %v8732 = vadd.f32 0.0, %v8731
          %v8733 = vpop.f32.mrf.mxu0
          %v8734 = vadd.f32 0.0, %v8733
          %8735 = vmatmul.bf16.gmra.mxu0 %v7787
          %v8736 = vpop.f32.mrf.mxu0
          %v8737 = vadd.f32 0.0, %v8736
          %v8738 = vpop.f32.mrf.mxu0
          %v8739 = vadd.f32 0.0, %v8738
          %8740 = vmatmul.bf16.gmra.mxu0 %v7789
          %v8741 = vpop.f32.mrf.mxu0
          %v8742 = vadd.f32 0.0, %v8741
          %v8743 = vpop.f32.mrf.mxu0
          %v8744 = vadd.f32 0.0, %v8743
          %8745 = vmatmul.bf16.gmra.mxu0 %v7791
          %v8746 = vpop.f32.mrf.mxu0
          %v8747 = vadd.f32 0.0, %v8746
          %v8748 = vpop.f32.mrf.mxu0
          %v8749 = vadd.f32 0.0, %v8748
          %8750 = vmatmul.bf16.gmra.mxu0 %v7793
          %v8751 = vpop.f32.mrf.mxu0
          %v8752 = vadd.f32 0.0, %v8751
          %v8753 = vpop.f32.mrf.mxu0
          %v8754 = vadd.f32 0.0, %v8753
          %8755 = vmatmul.bf16.gmra.mxu0 %v7795
          %v8756 = vpop.f32.mrf.mxu0
          %v8757 = vadd.f32 0.0, %v8756
          %v8758 = vpop.f32.mrf.mxu0
          %v8759 = vadd.f32 0.0, %v8758
          %8760 = vmatmul.bf16.gmra.mxu0 %v7797
          %v8761 = vpop.f32.mrf.mxu0
          %v8762 = vadd.f32 0.0, %v8761
          %v8763 = vpop.f32.mrf.mxu0
          %v8764 = vadd.f32 0.0, %v8763
          %8765 = vmatmul.bf16.gmra.mxu0 %v7799
          %v8766 = vpop.f32.mrf.mxu0
          %v8767 = vadd.f32 0.0, %v8766
          %v8768 = vpop.f32.mrf.mxu0
          %v8769 = vadd.f32 0.0, %v8768
          %8770 = vdwg.mxu0
          %8771 = vmatpush.bf16.msra.mxu0 %v8585
          %8772 = vmatpush.bf16.msra.mxu0 %v8584
          %8773 = vmatpush.bf16.msra.mxu0 %v8583
          %8774 = vmatpush.bf16.msra.mxu0 %v8582
          %8775 = vmatpush.bf16.msra.mxu0 %v8581
          %8776 = vmatpush.bf16.msra.mxu0 %v8580
          %8777 = vmatpush.bf16.msra.mxu0 %v8579
          %8778 = vmatpush.bf16.msra.mxu0 %v8578
          %8779 = vmatmul.bf16.gmra.mxu0 %v7738
          %v8780 = vpop.f32.mrf.mxu0
          %v8781 = vadd.f32 %v8612, %v8780
          %v8782 = vpop.f32.mrf.mxu0
          %v8783 = vadd.f32 %v8614, %v8782
          %8784 = vmatmul.bf16.gmra.mxu0 %v7740
          %v8785 = vpop.f32.mrf.mxu0
          %v8786 = vadd.f32 %v8617, %v8785
          %v8787 = vpop.f32.mrf.mxu0
          %v8788 = vadd.f32 %v8619, %v8787
          %8789 = vmatmul.bf16.gmra.mxu0 %v7742
          %v8790 = vpop.f32.mrf.mxu0
          %v8791 = vadd.f32 %v8622, %v8790
          %v8792 = vpop.f32.mrf.mxu0
          %v8793 = vadd.f32 %v8624, %v8792
          %8794 = vmatmul.bf16.gmra.mxu0 %v7744
          %v8795 = vpop.f32.mrf.mxu0
          %v8796 = vadd.f32 %v8627, %v8795
          %v8797 = vpop.f32.mrf.mxu0
          %v8798 = vadd.f32 %v8629, %v8797
          %8799 = vmatmul.bf16.gmra.mxu0 %v7746
          %v8800 = vpop.f32.mrf.mxu0
          %v8801 = vadd.f32 %v8632, %v8800
          %v8802 = vpop.f32.mrf.mxu0
          %v8803 = vadd.f32 %v8634, %v8802
          %8804 = vmatmul.bf16.gmra.mxu0 %v7748
          %v8805 = vpop.f32.mrf.mxu0
          %v8806 = vadd.f32 %v8637, %v8805
          %v8807 = vpop.f32.mrf.mxu0
          %v8808 = vadd.f32 %v8639, %v8807
          %8809 = vmatmul.bf16.gmra.mxu0 %v7750
          %v8810 = vpop.f32.mrf.mxu0
          %v8811 = vadd.f32 %v8642, %v8810
          %v8812 = vpop.f32.mrf.mxu0
          %v8813 = vadd.f32 %v8644, %v8812
          %8814 = vmatmul.bf16.gmra.mxu0 %v7752
          %v8815 = vpop.f32.mrf.mxu0
          %v8816 = vadd.f32 %v8647, %v8815
          %v8817 = vpop.f32.mrf.mxu0
          %v8818 = vadd.f32 %v8649, %v8817
          %8819 = vmatmul.bf16.gmra.mxu0 %v7754
          %v8820 = vpop.f32.mrf.mxu0
          %v8821 = vadd.f32 %v8652, %v8820
          %v8822 = vpop.f32.mrf.mxu0
          %v8823 = vadd.f32 %v8654, %v8822
          %8824 = vmatmul.bf16.gmra.mxu0 %v7756
          %v8825 = vpop.f32.mrf.mxu0
          %v8826 = vadd.f32 %v8657, %v8825
          %v8827 = vpop.f32.mrf.mxu0
          %v8828 = vadd.f32 %v8659, %v8827
          %8829 = vmatmul.bf16.gmra.mxu0 %v7758
          %v8830 = vpop.f32.mrf.mxu0
          %v8831 = vadd.f32 %v8662, %v8830
          %v8832 = vpop.f32.mrf.mxu0
          %v8833 = vadd.f32 %v8664, %v8832
          %8834 = vmatmul.bf16.gmra.mxu0 %v7760
          %v8835 = vpop.f32.mrf.mxu0
          %v8836 = vadd.f32 %v8667, %v8835
          %v8837 = vpop.f32.mrf.mxu0
          %v8838 = vadd.f32 %v8669, %v8837
          %8839 = vmatmul.bf16.gmra.mxu0 %v7762
          %v8840 = vpop.f32.mrf.mxu0
          %v8841 = vadd.f32 %v8672, %v8840
          %v8842 = vpop.f32.mrf.mxu0
          %v8843 = vadd.f32 %v8674, %v8842
          %8844 = vmatmul.bf16.gmra.mxu0 %v7764
          %v8845 = vpop.f32.mrf.mxu0
          %v8846 = vadd.f32 %v8677, %v8845
          %v8847 = vpop.f32.mrf.mxu0
          %v8848 = vadd.f32 %v8679, %v8847
          %8849 = vmatmul.bf16.gmra.mxu0 %v7766
          %v8850 = vpop.f32.mrf.mxu0
          %v8851 = vadd.f32 %v8682, %v8850
          %v8852 = vpop.f32.mrf.mxu0
          %v8853 = vadd.f32 %v8684, %v8852
          %8854 = vmatmul.bf16.gmra.mxu0 %v7768
          %v8855 = vpop.f32.mrf.mxu0
          %v8856 = vadd.f32 %v8687, %v8855
          %v8857 = vpop.f32.mrf.mxu0
          %v8858 = vadd.f32 %v8689, %v8857
          %8859 = vmatmul.bf16.gmra.mxu0 %v7770
          %v8860 = vpop.f32.mrf.mxu0
          %v8861 = vadd.f32 %v8692, %v8860
          %v8862 = vpop.f32.mrf.mxu0
          %v8863 = vadd.f32 %v8694, %v8862
          %8864 = vmatmul.bf16.gmra.mxu0 %v7772
          %v8865 = vpop.f32.mrf.mxu0
          %v8866 = vadd.f32 %v8697, %v8865
          %v8867 = vpop.f32.mrf.mxu0
          %v8868 = vadd.f32 %v8699, %v8867
          %8869 = vmatmul.bf16.gmra.mxu0 %v7774
          %v8870 = vpop.f32.mrf.mxu0
          %v8871 = vadd.f32 %v8702, %v8870
          %v8872 = vpop.f32.mrf.mxu0
          %v8873 = vadd.f32 %v8704, %v8872
          %8874 = vmatmul.bf16.gmra.mxu0 %v7776
          %v8875 = vpop.f32.mrf.mxu0
          %v8876 = vadd.f32 %v8707, %v8875
          %v8877 = vpop.f32.mrf.mxu0
          %v8878 = vadd.f32 %v8709, %v8877
          %8879 = vmatmul.bf16.gmra.mxu0 %v7778
          %v8880 = vpop.f32.mrf.mxu0
          %v8881 = vadd.f32 %v8712, %v8880
          %v8882 = vpop.f32.mrf.mxu0
          %v8883 = vadd.f32 %v8714, %v8882
          %8884 = vmatmul.bf16.gmra.mxu0 %v7780
          %v8885 = vpop.f32.mrf.mxu0
          %v8886 = vadd.f32 %v8717, %v8885
          %v8887 = vpop.f32.mrf.mxu0
          %v8888 = vadd.f32 %v8719, %v8887
          %8889 = vmatmul.bf16.gmra.mxu0 %v7782
          %v8890 = vpop.f32.mrf.mxu0
          %v8891 = vadd.f32 %v8722, %v8890
          %v8892 = vpop.f32.mrf.mxu0
          %v8893 = vadd.f32 %v8724, %v8892
          %8894 = vmatmul.bf16.gmra.mxu0 %v7784
          %v8895 = vpop.f32.mrf.mxu0
          %v8896 = vadd.f32 %v8727, %v8895
          %v8897 = vpop.f32.mrf.mxu0
          %v8898 = vadd.f32 %v8729, %v8897
          %8899 = vmatmul.bf16.gmra.mxu0 %v7786
          %v8900 = vpop.f32.mrf.mxu0
          %v8901 = vadd.f32 %v8732, %v8900
          %v8902 = vpop.f32.mrf.mxu0
          %v8903 = vadd.f32 %v8734, %v8902
          %8904 = vmatmul.bf16.gmra.mxu0 %v7788
          %v8905 = vpop.f32.mrf.mxu0
          %v8906 = vadd.f32 %v8737, %v8905
          %v8907 = vpop.f32.mrf.mxu0
          %v8908 = vadd.f32 %v8739, %v8907
          %8909 = vmatmul.bf16.gmra.mxu0 %v7790
          %v8910 = vpop.f32.mrf.mxu0
          %v8911 = vadd.f32 %v8742, %v8910
          %v8912 = vpop.f32.mrf.mxu0
          %v8913 = vadd.f32 %v8744, %v8912
          %8914 = vmatmul.bf16.gmra.mxu0 %v7792
          %v8915 = vpop.f32.mrf.mxu0
          %v8916 = vadd.f32 %v8747, %v8915
          %v8917 = vpop.f32.mrf.mxu0
          %v8918 = vadd.f32 %v8749, %v8917
          %8919 = vmatmul.bf16.gmra.mxu0 %v7794
          %v8920 = vpop.f32.mrf.mxu0
          %v8921 = vadd.f32 %v8752, %v8920
          %v8922 = vpop.f32.mrf.mxu0
          %v8923 = vadd.f32 %v8754, %v8922
          %8924 = vmatmul.bf16.gmra.mxu0 %v7796
          %v8925 = vpop.f32.mrf.mxu0
          %v8926 = vadd.f32 %v8757, %v8925
          %v8927 = vpop.f32.mrf.mxu0
          %v8928 = vadd.f32 %v8759, %v8927
          %8929 = vmatmul.bf16.gmra.mxu0 %v7798
          %v8930 = vpop.f32.mrf.mxu0
          %v8931 = vadd.f32 %v8762, %v8930
          %v8932 = vpop.f32.mrf.mxu0
          %v8933 = vadd.f32 %v8764, %v8932
          %8934 = vmatmul.bf16.gmra.mxu0 %v7800
          %v8935 = vpop.f32.mrf.mxu0
          %v8936 = vadd.f32 %v8767, %v8935
          %v8937 = vpop.f32.mrf.mxu0
          %v8938 = vadd.f32 %v8769, %v8937
          %8939 = vdwg.mxu0
          %v8940 = vadd.f32 %v8442, %v8781
          %v8941 = vadd.f32 %v8443, %v8783
          %v8942 = vadd.f32 %v8444, %v8786
          %v8943 = vadd.f32 %v8445, %v8788
          %v8944 = vadd.f32 %v8446, %v8791
          %v8945 = vadd.f32 %v8447, %v8793
          %v8946 = vadd.f32 %v8448, %v8796
          %v8947 = vadd.f32 %v8449, %v8798
          %v8948 = vadd.f32 %v8450, %v8801
          %v8949 = vadd.f32 %v8451, %v8803
          %v8950 = vadd.f32 %v8452, %v8806
          %v8951 = vadd.f32 %v8453, %v8808
          %v8952 = vadd.f32 %v8454, %v8811
          %v8953 = vadd.f32 %v8455, %v8813
          %v8954 = vadd.f32 %v8456, %v8816
          %v8955 = vadd.f32 %v8457, %v8818
          %v8956 = vadd.f32 %v8458, %v8821
          %v8957 = vadd.f32 %v8459, %v8823
          %v8958 = vadd.f32 %v8460, %v8826
          %v8959 = vadd.f32 %v8461, %v8828
          %v8960 = vadd.f32 %v8462, %v8831
          %v8961 = vadd.f32 %v8463, %v8833
          %v8962 = vadd.f32 %v8464, %v8836
          %v8963 = vadd.f32 %v8465, %v8838
          %v8964 = vadd.f32 %v8466, %v8841
          %v8965 = vadd.f32 %v8467, %v8843
          %v8966 = vadd.f32 %v8468, %v8846
          %v8967 = vadd.f32 %v8469, %v8848
          %v8968 = vadd.f32 %v8470, %v8851
          %v8969 = vadd.f32 %v8471, %v8853
          %v8970 = vadd.f32 %v8472, %v8856
          %v8971 = vadd.f32 %v8473, %v8858
          %v8972 = vadd.f32 %v8474, %v8861
          %v8973 = vadd.f32 %v8475, %v8863
          %v8974 = vadd.f32 %v8476, %v8866
          %v8975 = vadd.f32 %v8477, %v8868
          %v8976 = vadd.f32 %v8478, %v8871
          %v8977 = vadd.f32 %v8479, %v8873
          %v8978 = vadd.f32 %v8480, %v8876
          %v8979 = vadd.f32 %v8481, %v8878
          %v8980 = vadd.f32 %v8482, %v8881
          %v8981 = vadd.f32 %v8483, %v8883
          %v8982 = vadd.f32 %v8484, %v8886
          %v8983 = vadd.f32 %v8485, %v8888
          %v8984 = vadd.f32 %v8486, %v8891
          %v8985 = vadd.f32 %v8487, %v8893
          %v8986 = vadd.f32 %v8488, %v8896
          %v8987 = vadd.f32 %v8489, %v8898
          %v8988 = vadd.f32 %v8490, %v8901
          %v8989 = vadd.f32 %v8491, %v8903
          %v8990 = vadd.f32 %v8492, %v8906
          %v8991 = vadd.f32 %v8493, %v8908
          %v8992 = vadd.f32 %v8494, %v8911
          %v8993 = vadd.f32 %v8495, %v8913
          %v8994 = vadd.f32 %v8496, %v8916
          %v8995 = vadd.f32 %v8497, %v8918
          %v8996 = vadd.f32 %v8498, %v8921
          %v8997 = vadd.f32 %v8499, %v8923
          %v8998 = vadd.f32 %v8500, %v8926
          %v8999 = vadd.f32 %v8501, %v8928
          %v9000 = vadd.f32 %v8502, %v8931
          %v9001 = vadd.f32 %v8503, %v8933
          %v9002 = vadd.f32 %v8504, %v8936
          %v9003 = vadd.f32 %v8505, %v8938
          %9004 = vst [vmem:[#allocation4] sm:$0xff] %v8940
          %9005 = vst [vmem:[#allocation4 + $0x8] sm:$0xff] %v8941
          %9006 = vst [vmem:[#allocation4 + $0x10] sm:$0xff] %v8942
          %9007 = vst [vmem:[#allocation4 + $0x18] sm:$0xff] %v8943
          %9008 = vst [vmem:[#allocation4 + $0x20] sm:$0xff] %v8944
          %9009 = vst [vmem:[#allocation4 + $0x28] sm:$0xff] %v8945
          %9010 = vst [vmem:[#allocation4 + $0x30] sm:$0xff] %v8946
          %9011 = vst [vmem:[#allocation4 + $0x38] sm:$0xff] %v8947
          %9012 = vst [vmem:[#allocation4 + $0x40] sm:$0xff] %v8948
          %9013 = vst [vmem:[#allocation4 + $0x48] sm:$0xff] %v8949
          %9014 = vst [vmem:[#allocation4 + $0x50] sm:$0xff] %v8950
          %9015 = vst [vmem:[#allocation4 + $0x58] sm:$0xff] %v8951
          %9016 = vst [vmem:[#allocation4 + $0x60] sm:$0xff] %v8952
          %9017 = vst [vmem:[#allocation4 + $0x68] sm:$0xff] %v8953
          %9018 = vst [vmem:[#allocation4 + $0x70] sm:$0xff] %v8954
          %9019 = vst [vmem:[#allocation4 + $0x78] sm:$0xff] %v8955
          %9020 = vst [vmem:[#allocation4 + $0x80] sm:$0xff] %v8956
          %9021 = vst [vmem:[#allocation4 + $0x88] sm:$0xff] %v8957
          %9022 = vst [vmem:[#allocation4 + $0x90] sm:$0xff] %v8958
          %9023 = vst [vmem:[#allocation4 + $0x98] sm:$0xff] %v8959
          %9024 = vst [vmem:[#allocation4 + $0xa0] sm:$0xff] %v8960
          %9025 = vst [vmem:[#allocation4 + $0xa8] sm:$0xff] %v8961
          %9026 = vst [vmem:[#allocation4 + $0xb0] sm:$0xff] %v8962
          %9027 = vst [vmem:[#allocation4 + $0xb8] sm:$0xff] %v8963
          %9028 = vst [vmem:[#allocation4 + $0xc0] sm:$0xff] %v8964
          %9029 = vst [vmem:[#allocation4 + $0xc8] sm:$0xff] %v8965
          %9030 = vst [vmem:[#allocation4 + $0xd0] sm:$0xff] %v8966
          %9031 = vst [vmem:[#allocation4 + $0xd8] sm:$0xff] %v8967
          %9032 = vst [vmem:[#allocation4 + $0xe0] sm:$0xff] %v8968
          %9033 = vst [vmem:[#allocation4 + $0xe8] sm:$0xff] %v8969
          %9034 = vst [vmem:[#allocation4 + $0xf0] sm:$0xff] %v8970
          %9035 = vst [vmem:[#allocation4 + $0xf8] sm:$0xff] %v8971
          %9036 = vst [vmem:[#allocation4 + $0x100] sm:$0xff] %v8972
          %9037 = vst [vmem:[#allocation4 + $0x108] sm:$0xff] %v8973
          %9038 = vst [vmem:[#allocation4 + $0x110] sm:$0xff] %v8974
          %9039 = vst [vmem:[#allocation4 + $0x118] sm:$0xff] %v8975
          %9040 = vst [vmem:[#allocation4 + $0x120] sm:$0xff] %v8976
          %9041 = vst [vmem:[#allocation4 + $0x128] sm:$0xff] %v8977
          %9042 = vst [vmem:[#allocation4 + $0x130] sm:$0xff] %v8978
          %9043 = vst [vmem:[#allocation4 + $0x138] sm:$0xff] %v8979
          %9044 = vst [vmem:[#allocation4 + $0x140] sm:$0xff] %v8980
          %9045 = vst [vmem:[#allocation4 + $0x148] sm:$0xff] %v8981
          %9046 = vst [vmem:[#allocation4 + $0x150] sm:$0xff] %v8982
          %9047 = vst [vmem:[#allocation4 + $0x158] sm:$0xff] %v8983
          %9048 = vst [vmem:[#allocation4 + $0x160] sm:$0xff] %v8984
          %9049 = vst [vmem:[#allocation4 + $0x168] sm:$0xff] %v8985
          %9050 = vst [vmem:[#allocation4 + $0x170] sm:$0xff] %v8986
          %9051 = vst [vmem:[#allocation4 + $0x178] sm:$0xff] %v8987
          %9052 = vst [vmem:[#allocation4 + $0x180] sm:$0xff] %v8988
          %9053 = vst [vmem:[#allocation4 + $0x188] sm:$0xff] %v8989
          %9054 = vst [vmem:[#allocation4 + $0x190] sm:$0xff] %v8990
          %9055 = vst [vmem:[#allocation4 + $0x198] sm:$0xff] %v8991
          %9056 = vst [vmem:[#allocation4 + $0x1a0] sm:$0xff] %v8992
          %9057 = vst [vmem:[#allocation4 + $0x1a8] sm:$0xff] %v8993
          %9058 = vst [vmem:[#allocation4 + $0x1b0] sm:$0xff] %v8994
          %9059 = vst [vmem:[#allocation4 + $0x1b8] sm:$0xff] %v8995
          %9060 = vst [vmem:[#allocation4 + $0x1c0] sm:$0xff] %v8996
          %9061 = vst [vmem:[#allocation4 + $0x1c8] sm:$0xff] %v8997
          %9062 = vst [vmem:[#allocation4 + $0x1d0] sm:$0xff] %v8998
          %9063 = vst [vmem:[#allocation4 + $0x1d8] sm:$0xff] %v8999
          %9064 = vst [vmem:[#allocation4 + $0x1e0] sm:$0xff] %v9000
          %9065 = vst [vmem:[#allocation4 + $0x1e8] sm:$0xff] %v9001
          %9066 = vst [vmem:[#allocation4 + $0x1f0] sm:$0xff] %v9002
          %9067 = vst [vmem:[#allocation4 + $0x1f8] sm:$0xff] %v9003
          %9068 = vst.msk [vmem:[#allocation2] sm:$0xff] %vm7993, %v6585
          %9069 = vst.msk [vmem:[#allocation2 + $0x8] sm:$0xff] %vm7993, %v6586
          %9070 = vst.msk [vmem:[#allocation2 + $0x10] sm:$0xff] %vm7993, %v6587
          %9071 = vst.msk [vmem:[#allocation2 + $0x18] sm:$0xff] %vm7993, %v6588
          %9072 = vst.msk [vmem:[#allocation2 + $0x20] sm:$0xff] %vm7993, %v6589
          %9073 = vst.msk [vmem:[#allocation2 + $0x28] sm:$0xff] %vm7993, %v6590
          %9074 = vst.msk [vmem:[#allocation2 + $0x30] sm:$0xff] %vm7993, %v6591
          %9075 = vst.msk [vmem:[#allocation2 + $0x38] sm:$0xff] %vm7993, %v6592
          %9076 = vst.msk [vmem:[#allocation2 + $0x40] sm:$0xff] %vm7993, %v6593
          %9077 = vst.msk [vmem:[#allocation2 + $0x48] sm:$0xff] %vm7993, %v6594
          %9078 = vst.msk [vmem:[#allocation2 + $0x50] sm:$0xff] %vm7993, %v6595
          %9079 = vst.msk [vmem:[#allocation2 + $0x58] sm:$0xff] %vm7993, %v6596
          %9080 = vst.msk [vmem:[#allocation2 + $0x60] sm:$0xff] %vm7993, %v6597
          %9081 = vst.msk [vmem:[#allocation2 + $0x68] sm:$0xff] %vm7993, %v6598
          %9082 = vst.msk [vmem:[#allocation2 + $0x70] sm:$0xff] %vm7993, %v6599
          %9083 = vst.msk [vmem:[#allocation2 + $0x78] sm:$0xff] %vm7993, %v6600
          %9084 = vst.msk [vmem:[#allocation2 + $0x80] sm:$0xff] %vm7993, %v6601
          %9085 = vst.msk [vmem:[#allocation2 + $0x88] sm:$0xff] %vm7993, %v6602
          %9086 = vst.msk [vmem:[#allocation2 + $0x90] sm:$0xff] %vm7993, %v6603
          %9087 = vst.msk [vmem:[#allocation2 + $0x98] sm:$0xff] %vm7993, %v6604
          %9088 = vst.msk [vmem:[#allocation2 + $0xa0] sm:$0xff] %vm7993, %v6605
          %9089 = vst.msk [vmem:[#allocation2 + $0xa8] sm:$0xff] %vm7993, %v6606
          %9090 = vst.msk [vmem:[#allocation2 + $0xb0] sm:$0xff] %vm7993, %v6607
          %9091 = vst.msk [vmem:[#allocation2 + $0xb8] sm:$0xff] %vm7993, %v6608
          %9092 = vst.msk [vmem:[#allocation2 + $0xc0] sm:$0xff] %vm7993, %v6609
          %9093 = vst.msk [vmem:[#allocation2 + $0xc8] sm:$0xff] %vm7993, %v6610
          %9094 = vst.msk [vmem:[#allocation2 + $0xd0] sm:$0xff] %vm7993, %v6611
          %9095 = vst.msk [vmem:[#allocation2 + $0xd8] sm:$0xff] %vm7993, %v6612
          %9096 = vst.msk [vmem:[#allocation2 + $0xe0] sm:$0xff] %vm7993, %v6613
          %9097 = vst.msk [vmem:[#allocation2 + $0xe8] sm:$0xff] %vm7993, %v6614
          %9098 = vst.msk [vmem:[#allocation2 + $0xf0] sm:$0xff] %vm7993, %v6615
          %9099 = vst.msk [vmem:[#allocation2 + $0xf8] sm:$0xff] %vm7993, %v6616
          %9100 = vst.msk [vmem:[#allocation2 + $0x100] sm:$0xff] %vm7993, %v6617
          %9101 = vst.msk [vmem:[#allocation2 + $0x108] sm:$0xff] %vm7993, %v6618
          %9102 = vst.msk [vmem:[#allocation2 + $0x110] sm:$0xff] %vm7993, %v6619
          %9103 = vst.msk [vmem:[#allocation2 + $0x118] sm:$0xff] %vm7993, %v6620
          %9104 = vst.msk [vmem:[#allocation2 + $0x120] sm:$0xff] %vm7993, %v6621
          %9105 = vst.msk [vmem:[#allocation2 + $0x128] sm:$0xff] %vm7993, %v6622
          %9106 = vst.msk [vmem:[#allocation2 + $0x130] sm:$0xff] %vm7993, %v6623
          %9107 = vst.msk [vmem:[#allocation2 + $0x138] sm:$0xff] %vm7993, %v6624
          %9108 = vst.msk [vmem:[#allocation2 + $0x140] sm:$0xff] %vm7993, %v6625
          %9109 = vst.msk [vmem:[#allocation2 + $0x148] sm:$0xff] %vm7993, %v6626
          %9110 = vst.msk [vmem:[#allocation2 + $0x150] sm:$0xff] %vm7993, %v6627
          %9111 = vst.msk [vmem:[#allocation2 + $0x158] sm:$0xff] %vm7993, %v6628
          %9112 = vst.msk [vmem:[#allocation2 + $0x160] sm:$0xff] %vm7993, %v6629
          %9113 = vst.msk [vmem:[#allocation2 + $0x168] sm:$0xff] %vm7993, %v6630
          %9114 = vst.msk [vmem:[#allocation2 + $0x170] sm:$0xff] %vm7993, %v6631
          %9115 = vst.msk [vmem:[#allocation2 + $0x178] sm:$0xff] %vm7993, %v6632
          %9116 = vst.msk [vmem:[#allocation2 + $0x180] sm:$0xff] %vm7993, %v6633
          %9117 = vst.msk [vmem:[#allocation2 + $0x188] sm:$0xff] %vm7993, %v6634
          %9118 = vst.msk [vmem:[#allocation2 + $0x190] sm:$0xff] %vm7993, %v6635
          %9119 = vst.msk [vmem:[#allocation2 + $0x198] sm:$0xff] %vm7993, %v6636
          %9120 = vst.msk [vmem:[#allocation2 + $0x1a0] sm:$0xff] %vm7993, %v6637
          %9121 = vst.msk [vmem:[#allocation2 + $0x1a8] sm:$0xff] %vm7993, %v6638
          %9122 = vst.msk [vmem:[#allocation2 + $0x1b0] sm:$0xff] %vm7993, %v6639
          %9123 = vst.msk [vmem:[#allocation2 + $0x1b8] sm:$0xff] %vm7993, %v6640
          %9124 = vst.msk [vmem:[#allocation2 + $0x1c0] sm:$0xff] %vm7993, %v6641
          %9125 = vst.msk [vmem:[#allocation2 + $0x1c8] sm:$0xff] %vm7993, %v6642
          %9126 = vst.msk [vmem:[#allocation2 + $0x1d0] sm:$0xff] %vm7993, %v6643
          %9127 = vst.msk [vmem:[#allocation2 + $0x1d8] sm:$0xff] %vm7993, %v6644
          %9128 = vst.msk [vmem:[#allocation2 + $0x1e0] sm:$0xff] %vm7993, %v6645
          %9129 = vst.msk [vmem:[#allocation2 + $0x1e8] sm:$0xff] %vm7993, %v6646
          %9130 = vst.msk [vmem:[#allocation2 + $0x1f0] sm:$0xff] %vm7993, %v6647
          %9131 = vst.msk [vmem:[#allocation2 + $0x1f8] sm:$0xff] %vm7993, %v6648
          %v9132 = vld [vmem:[#allocation3] sm:$0xff]
          %v9133 = vld [vmem:[#allocation3 + $0x8] sm:$0xff]
          %v9134 = vld [vmem:[#allocation3 + $0x10] sm:$0xff]
          %v9135 = vld [vmem:[#allocation3 + $0x18] sm:$0xff]
          %v9136 = vld [vmem:[#allocation3 + $0x20] sm:$0xff]
          %v9137 = vld [vmem:[#allocation3 + $0x28] sm:$0xff]
          %v9138 = vld [vmem:[#allocation3 + $0x30] sm:$0xff]
          %v9139 = vld [vmem:[#allocation3 + $0x38] sm:$0xff]
          %v9140 = vld [vmem:[#allocation3 + $0x40] sm:$0xff]
          %v9141 = vld [vmem:[#allocation3 + $0x48] sm:$0xff]
          %v9142 = vld [vmem:[#allocation3 + $0x50] sm:$0xff]
          %v9143 = vld [vmem:[#allocation3 + $0x58] sm:$0xff]
          %v9144 = vld [vmem:[#allocation3 + $0x60] sm:$0xff]
          %v9145 = vld [vmem:[#allocation3 + $0x68] sm:$0xff]
          %v9146 = vld [vmem:[#allocation3 + $0x70] sm:$0xff]
          %v9147 = vld [vmem:[#allocation3 + $0x78] sm:$0xff]
          %v9148 = vld [vmem:[#allocation3 + $0x80] sm:$0xff]
          %v9149 = vld [vmem:[#allocation3 + $0x88] sm:$0xff]
          %v9150 = vld [vmem:[#allocation3 + $0x90] sm:$0xff]
          %v9151 = vld [vmem:[#allocation3 + $0x98] sm:$0xff]
          %v9152 = vld [vmem:[#allocation3 + $0xa0] sm:$0xff]
          %v9153 = vld [vmem:[#allocation3 + $0xa8] sm:$0xff]
          %v9154 = vld [vmem:[#allocation3 + $0xb0] sm:$0xff]
          %v9155 = vld [vmem:[#allocation3 + $0xb8] sm:$0xff]
          %v9156 = vld [vmem:[#allocation3 + $0xc0] sm:$0xff]
          %v9157 = vld [vmem:[#allocation3 + $0xc8] sm:$0xff]
          %v9158 = vld [vmem:[#allocation3 + $0xd0] sm:$0xff]
          %v9159 = vld [vmem:[#allocation3 + $0xd8] sm:$0xff]
          %v9160 = vld [vmem:[#allocation3 + $0xe0] sm:$0xff]
          %v9161 = vld [vmem:[#allocation3 + $0xe8] sm:$0xff]
          %v9162 = vld [vmem:[#allocation3 + $0xf0] sm:$0xff]
          %v9163 = vld [vmem:[#allocation3 + $0xf8] sm:$0xff]
          %v9164 = vld [vmem:[#allocation3 + $0x100] sm:$0xff]
          %v9165 = vld [vmem:[#allocation3 + $0x108] sm:$0xff]
          %v9166 = vld [vmem:[#allocation3 + $0x110] sm:$0xff]
          %v9167 = vld [vmem:[#allocation3 + $0x118] sm:$0xff]
          %v9168 = vld [vmem:[#allocation3 + $0x120] sm:$0xff]
          %v9169 = vld [vmem:[#allocation3 + $0x128] sm:$0xff]
          %v9170 = vld [vmem:[#allocation3 + $0x130] sm:$0xff]
          %v9171 = vld [vmem:[#allocation3 + $0x138] sm:$0xff]
          %v9172 = vld [vmem:[#allocation3 + $0x140] sm:$0xff]
          %v9173 = vld [vmem:[#allocation3 + $0x148] sm:$0xff]
          %v9174 = vld [vmem:[#allocation3 + $0x150] sm:$0xff]
          %v9175 = vld [vmem:[#allocation3 + $0x158] sm:$0xff]
          %v9176 = vld [vmem:[#allocation3 + $0x160] sm:$0xff]
          %v9177 = vld [vmem:[#allocation3 + $0x168] sm:$0xff]
          %v9178 = vld [vmem:[#allocation3 + $0x170] sm:$0xff]
          %v9179 = vld [vmem:[#allocation3 + $0x178] sm:$0xff]
          %v9180 = vld [vmem:[#allocation3 + $0x180] sm:$0xff]
          %v9181 = vld [vmem:[#allocation3 + $0x188] sm:$0xff]
          %v9182 = vld [vmem:[#allocation3 + $0x190] sm:$0xff]
          %v9183 = vld [vmem:[#allocation3 + $0x198] sm:$0xff]
          %v9184 = vld [vmem:[#allocation3 + $0x1a0] sm:$0xff]
          %v9185 = vld [vmem:[#allocation3 + $0x1a8] sm:$0xff]
          %v9186 = vld [vmem:[#allocation3 + $0x1b0] sm:$0xff]
          %v9187 = vld [vmem:[#allocation3 + $0x1b8] sm:$0xff]
          %v9188 = vld [vmem:[#allocation3 + $0x1c0] sm:$0xff]
          %v9189 = vld [vmem:[#allocation3 + $0x1c8] sm:$0xff]
          %v9190 = vld [vmem:[#allocation3 + $0x1d0] sm:$0xff]
          %v9191 = vld [vmem:[#allocation3 + $0x1d8] sm:$0xff]
          %v9192 = vld [vmem:[#allocation3 + $0x1e0] sm:$0xff]
          %v9193 = vld [vmem:[#allocation3 + $0x1e8] sm:$0xff]
          %v9194 = vld [vmem:[#allocation3 + $0x1f0] sm:$0xff]
          %v9195 = vld [vmem:[#allocation3 + $0x1f8] sm:$0xff]
          %v9196 = vrcp.pop %v9132
          %v9197 = vrcp.pop %v9133
          %v9198 = vrcp.pop %v9134
          %v9199 = vrcp.pop %v9135
          %v9200 = vrcp.pop %v9136
          %v9201 = vrcp.pop %v9137
          %v9202 = vrcp.pop %v9138
          %v9203 = vrcp.pop %v9139
          %v9204 = vrcp.pop %v9140
          %v9205 = vrcp.pop %v9141
          %v9206 = vrcp.pop %v9142
          %v9207 = vrcp.pop %v9143
          %v9208 = vrcp.pop %v9144
          %v9209 = vrcp.pop %v9145
          %v9210 = vrcp.pop %v9146
          %v9211 = vrcp.pop %v9147
          %v9212 = vrcp.pop %v9148
          %v9213 = vrcp.pop %v9149
          %v9214 = vrcp.pop %v9150
          %v9215 = vrcp.pop %v9151
          %v9216 = vrcp.pop %v9152
          %v9217 = vrcp.pop %v9153
          %v9218 = vrcp.pop %v9154
          %v9219 = vrcp.pop %v9155
          %v9220 = vrcp.pop %v9156
          %v9221 = vrcp.pop %v9157
          %v9222 = vrcp.pop %v9158
          %v9223 = vrcp.pop %v9159
          %v9224 = vrcp.pop %v9160
          %v9225 = vrcp.pop %v9161
          %v9226 = vrcp.pop %v9162
          %v9227 = vrcp.pop %v9163
          %v9228 = vrcp.pop %v9164
          %v9229 = vrcp.pop %v9165
          %v9230 = vrcp.pop %v9166
          %v9231 = vrcp.pop %v9167
          %v9232 = vrcp.pop %v9168
          %v9233 = vrcp.pop %v9169
          %v9234 = vrcp.pop %v9170
          %v9235 = vrcp.pop %v9171
          %v9236 = vrcp.pop %v9172
          %v9237 = vrcp.pop %v9173
          %v9238 = vrcp.pop %v9174
          %v9239 = vrcp.pop %v9175
          %v9240 = vrcp.pop %v9176
          %v9241 = vrcp.pop %v9177
          %v9242 = vrcp.pop %v9178
          %v9243 = vrcp.pop %v9179
          %v9244 = vrcp.pop %v9180
          %v9245 = vrcp.pop %v9181
          %v9246 = vrcp.pop %v9182
          %v9247 = vrcp.pop %v9183
          %v9248 = vrcp.pop %v9184
          %v9249 = vrcp.pop %v9185
          %v9250 = vrcp.pop %v9186
          %v9251 = vrcp.pop %v9187
          %v9252 = vrcp.pop %v9188
          %v9253 = vrcp.pop %v9189
          %v9254 = vrcp.pop %v9190
          %v9255 = vrcp.pop %v9191
          %v9256 = vrcp.pop %v9192
          %v9257 = vrcp.pop %v9193
          %v9258 = vrcp.pop %v9194
          %v9259 = vrcp.pop %v9195
          %v9260 = vld [vmem:[#allocation4] sm:$0xff]
          %v9261 = vld [vmem:[#allocation4 + $0x8] sm:$0xff]
          %v9262 = vld [vmem:[#allocation4 + $0x10] sm:$0xff]
          %v9263 = vld [vmem:[#allocation4 + $0x18] sm:$0xff]
          %v9264 = vld [vmem:[#allocation4 + $0x20] sm:$0xff]
          %v9265 = vld [vmem:[#allocation4 + $0x28] sm:$0xff]
          %v9266 = vld [vmem:[#allocation4 + $0x30] sm:$0xff]
          %v9267 = vld [vmem:[#allocation4 + $0x38] sm:$0xff]
          %v9268 = vld [vmem:[#allocation4 + $0x40] sm:$0xff]
          %v9269 = vld [vmem:[#allocation4 + $0x48] sm:$0xff]
          %v9270 = vld [vmem:[#allocation4 + $0x50] sm:$0xff]
          %v9271 = vld [vmem:[#allocation4 + $0x58] sm:$0xff]
          %v9272 = vld [vmem:[#allocation4 + $0x60] sm:$0xff]
          %v9273 = vld [vmem:[#allocation4 + $0x68] sm:$0xff]
          %v9274 = vld [vmem:[#allocation4 + $0x70] sm:$0xff]
          %v9275 = vld [vmem:[#allocation4 + $0x78] sm:$0xff]
          %v9276 = vld [vmem:[#allocation4 + $0x80] sm:$0xff]
          %v9277 = vld [vmem:[#allocation4 + $0x88] sm:$0xff]
          %v9278 = vld [vmem:[#allocation4 + $0x90] sm:$0xff]
          %v9279 = vld [vmem:[#allocation4 + $0x98] sm:$0xff]
          %v9280 = vld [vmem:[#allocation4 + $0xa0] sm:$0xff]
          %v9281 = vld [vmem:[#allocation4 + $0xa8] sm:$0xff]
          %v9282 = vld [vmem:[#allocation4 + $0xb0] sm:$0xff]
          %v9283 = vld [vmem:[#allocation4 + $0xb8] sm:$0xff]
          %v9284 = vld [vmem:[#allocation4 + $0xc0] sm:$0xff]
          %v9285 = vld [vmem:[#allocation4 + $0xc8] sm:$0xff]
          %v9286 = vld [vmem:[#allocation4 + $0xd0] sm:$0xff]
          %v9287 = vld [vmem:[#allocation4 + $0xd8] sm:$0xff]
          %v9288 = vld [vmem:[#allocation4 + $0xe0] sm:$0xff]
          %v9289 = vld [vmem:[#allocation4 + $0xe8] sm:$0xff]
          %v9290 = vld [vmem:[#allocation4 + $0xf0] sm:$0xff]
          %v9291 = vld [vmem:[#allocation4 + $0xf8] sm:$0xff]
          %9293 = vset.pattern.permute.xlu0 0
          %9294 = vperm.xlu0 %9293, %v9196
          %v9295 = vpop.permute.xlu0 %9294
          %9298 = vset.pattern.permute.xlu0 0
          %9299 = vperm.xlu0 %9298, %v9197
          %v9300 = vpop.permute.xlu0 %9299
          %9303 = vset.pattern.permute.xlu0 0
          %9304 = vperm.xlu0 %9303, %v9198
          %v9305 = vpop.permute.xlu0 %9304
          %9308 = vset.pattern.permute.xlu0 0
          %9309 = vperm.xlu0 %9308, %v9199
          %v9310 = vpop.permute.xlu0 %9309
          %9313 = vset.pattern.permute.xlu0 0
          %9314 = vperm.xlu0 %9313, %v9200
          %v9315 = vpop.permute.xlu0 %9314
          %9318 = vset.pattern.permute.xlu0 0
          %9319 = vperm.xlu0 %9318, %v9201
          %v9320 = vpop.permute.xlu0 %9319
          %9323 = vset.pattern.permute.xlu0 0
          %9324 = vperm.xlu0 %9323, %v9202
          %v9325 = vpop.permute.xlu0 %9324
          %9328 = vset.pattern.permute.xlu0 0
          %9329 = vperm.xlu0 %9328, %v9203
          %v9330 = vpop.permute.xlu0 %9329
          %9333 = vset.pattern.permute.xlu0 0
          %9334 = vperm.xlu0 %9333, %v9204
          %v9335 = vpop.permute.xlu0 %9334
          %9338 = vset.pattern.permute.xlu0 0
          %9339 = vperm.xlu0 %9338, %v9205
          %v9340 = vpop.permute.xlu0 %9339
          %9343 = vset.pattern.permute.xlu0 0
          %9344 = vperm.xlu0 %9343, %v9206
          %v9345 = vpop.permute.xlu0 %9344
          %9348 = vset.pattern.permute.xlu0 0
          %9349 = vperm.xlu0 %9348, %v9207
          %v9350 = vpop.permute.xlu0 %9349
          %9353 = vset.pattern.permute.xlu0 0
          %9354 = vperm.xlu0 %9353, %v9208
          %v9355 = vpop.permute.xlu0 %9354
          %9358 = vset.pattern.permute.xlu0 0
          %9359 = vperm.xlu0 %9358, %v9209
          %v9360 = vpop.permute.xlu0 %9359
          %9363 = vset.pattern.permute.xlu0 0
          %9364 = vperm.xlu0 %9363, %v9210
          %v9365 = vpop.permute.xlu0 %9364
          %9368 = vset.pattern.permute.xlu0 0
          %9369 = vperm.xlu0 %9368, %v9211
          %v9370 = vpop.permute.xlu0 %9369
          %9373 = vset.pattern.permute.xlu0 0
          %9374 = vperm.xlu0 %9373, %v9212
          %v9375 = vpop.permute.xlu0 %9374
          %9378 = vset.pattern.permute.xlu0 0
          %9379 = vperm.xlu0 %9378, %v9213
          %v9380 = vpop.permute.xlu0 %9379
          %9383 = vset.pattern.permute.xlu0 0
          %9384 = vperm.xlu0 %9383, %v9214
          %v9385 = vpop.permute.xlu0 %9384
          %9388 = vset.pattern.permute.xlu0 0
          %9389 = vperm.xlu0 %9388, %v9215
          %v9390 = vpop.permute.xlu0 %9389
          %9393 = vset.pattern.permute.xlu0 0
          %9394 = vperm.xlu0 %9393, %v9216
          %v9395 = vpop.permute.xlu0 %9394
          %9398 = vset.pattern.permute.xlu0 0
          %9399 = vperm.xlu0 %9398, %v9217
          %v9400 = vpop.permute.xlu0 %9399
          %9403 = vset.pattern.permute.xlu0 0
          %9404 = vperm.xlu0 %9403, %v9218
          %v9405 = vpop.permute.xlu0 %9404
          %9408 = vset.pattern.permute.xlu0 0
          %9409 = vperm.xlu0 %9408, %v9219
          %v9410 = vpop.permute.xlu0 %9409
          %9413 = vset.pattern.permute.xlu0 0
          %9414 = vperm.xlu0 %9413, %v9220
          %v9415 = vpop.permute.xlu0 %9414
          %9418 = vset.pattern.permute.xlu0 0
          %9419 = vperm.xlu0 %9418, %v9221
          %v9420 = vpop.permute.xlu0 %9419
          %9423 = vset.pattern.permute.xlu0 0
          %9424 = vperm.xlu0 %9423, %v9222
          %v9425 = vpop.permute.xlu0 %9424
          %9428 = vset.pattern.permute.xlu0 0
          %9429 = vperm.xlu0 %9428, %v9223
          %v9430 = vpop.permute.xlu0 %9429
          %9433 = vset.pattern.permute.xlu0 0
          %9434 = vperm.xlu0 %9433, %v9224
          %v9435 = vpop.permute.xlu0 %9434
          %9438 = vset.pattern.permute.xlu0 0
          %9439 = vperm.xlu0 %9438, %v9225
          %v9440 = vpop.permute.xlu0 %9439
          %9443 = vset.pattern.permute.xlu0 0
          %9444 = vperm.xlu0 %9443, %v9226
          %v9445 = vpop.permute.xlu0 %9444
          %9448 = vset.pattern.permute.xlu0 0
          %9449 = vperm.xlu0 %9448, %v9227
          %v9450 = vpop.permute.xlu0 %9449
          %v9452 = vmul.f32 %v9260, %v9295
          %v9453 = vmul.f32 %v9261, %v9300
          %v9454 = vmul.f32 %v9262, %v9305
          %v9455 = vmul.f32 %v9263, %v9310
          %v9456 = vmul.f32 %v9264, %v9315
          %v9457 = vmul.f32 %v9265, %v9320
          %v9458 = vmul.f32 %v9266, %v9325
          %v9459 = vmul.f32 %v9267, %v9330
          %v9460 = vmul.f32 %v9268, %v9335
          %v9461 = vmul.f32 %v9269, %v9340
          %v9462 = vmul.f32 %v9270, %v9345
          %v9463 = vmul.f32 %v9271, %v9350
          %v9464 = vmul.f32 %v9272, %v9355
          %v9465 = vmul.f32 %v9273, %v9360
          %v9466 = vmul.f32 %v9274, %v9365
          %v9467 = vmul.f32 %v9275, %v9370
          %v9468 = vmul.f32 %v9276, %v9375
          %v9469 = vmul.f32 %v9277, %v9380
          %v9470 = vmul.f32 %v9278, %v9385
          %v9471 = vmul.f32 %v9279, %v9390
          %v9472 = vmul.f32 %v9280, %v9395
          %v9473 = vmul.f32 %v9281, %v9400
          %v9474 = vmul.f32 %v9282, %v9405
          %v9475 = vmul.f32 %v9283, %v9410
          %v9476 = vmul.f32 %v9284, %v9415
          %v9477 = vmul.f32 %v9285, %v9420
          %v9478 = vmul.f32 %v9286, %v9425
          %v9479 = vmul.f32 %v9287, %v9430
          %v9480 = vmul.f32 %v9288, %v9435
          %v9481 = vmul.f32 %v9289, %v9440
          %v9482 = vmul.f32 %v9290, %v9445
          %v9483 = vmul.f32 %v9291, %v9450
          %9484 = vst [vmem:[%s324] sm:$0xff] %v9452
          %9485 = vst [vmem:[%s324 + $0x10] sm:$0xff] %v9453
          %9486 = vst [vmem:[%s324 + $0x20] sm:$0xff] %v9454
          %9487 = vst [vmem:[%s324 + $0x30] sm:$0xff] %v9455
          %9488 = vst [vmem:[%s324 + $0x40] sm:$0xff] %v9456
          %9489 = vst [vmem:[%s324 + $0x50] sm:$0xff] %v9457
          %9490 = vst [vmem:[%s324 + $0x60] sm:$0xff] %v9458
          %9491 = vst [vmem:[%s324 + $0x70] sm:$0xff] %v9459
          %9492 = vst [vmem:[%s324 + $0x80] sm:$0xff] %v9460
          %9493 = vst [vmem:[%s324 + $0x90] sm:$0xff] %v9461
          %9494 = vst [vmem:[%s324 + $0xa0] sm:$0xff] %v9462
          %9495 = vst [vmem:[%s324 + $0xb0] sm:$0xff] %v9463
          %9496 = vst [vmem:[%s324 + $0xc0] sm:$0xff] %v9464
          %9497 = vst [vmem:[%s324 + $0xd0] sm:$0xff] %v9465
          %9498 = vst [vmem:[%s324 + $0xe0] sm:$0xff] %v9466
          %9499 = vst [vmem:[%s324 + $0xf0] sm:$0xff] %v9467
          %9500 = vst [vmem:[%s324 + $0x100] sm:$0xff] %v9468
          %9501 = vst [vmem:[%s324 + $0x110] sm:$0xff] %v9469
          %9502 = vst [vmem:[%s324 + $0x120] sm:$0xff] %v9470
          %9503 = vst [vmem:[%s324 + $0x130] sm:$0xff] %v9471
          %9504 = vst [vmem:[%s324 + $0x140] sm:$0xff] %v9472
          %9505 = vst [vmem:[%s324 + $0x150] sm:$0xff] %v9473
          %9506 = vst [vmem:[%s324 + $0x160] sm:$0xff] %v9474
          %9507 = vst [vmem:[%s324 + $0x170] sm:$0xff] %v9475
          %9508 = vst [vmem:[%s324 + $0x180] sm:$0xff] %v9476
          %9509 = vst [vmem:[%s324 + $0x190] sm:$0xff] %v9477
          %9510 = vst [vmem:[%s324 + $0x1a0] sm:$0xff] %v9478
          %9511 = vst [vmem:[%s324 + $0x1b0] sm:$0xff] %v9479
          %9512 = vst [vmem:[%s324 + $0x1c0] sm:$0xff] %v9480
          %9513 = vst [vmem:[%s324 + $0x1d0] sm:$0xff] %v9481
          %9514 = vst [vmem:[%s324 + $0x1e0] sm:$0xff] %v9482
          %9515 = vst [vmem:[%s324 + $0x1f0] sm:$0xff] %v9483
          %v9516 = vld [vmem:[#allocation4 + $0x100] sm:$0xff]
          %v9517 = vld [vmem:[#allocation4 + $0x108] sm:$0xff]
          %v9518 = vld [vmem:[#allocation4 + $0x110] sm:$0xff]
          %v9519 = vld [vmem:[#allocation4 + $0x118] sm:$0xff]
          %v9520 = vld [vmem:[#allocation4 + $0x120] sm:$0xff]
          %v9521 = vld [vmem:[#allocation4 + $0x128] sm:$0xff]
          %v9522 = vld [vmem:[#allocation4 + $0x130] sm:$0xff]
          %v9523 = vld [vmem:[#allocation4 + $0x138] sm:$0xff]
          %v9524 = vld [vmem:[#allocation4 + $0x140] sm:$0xff]
          %v9525 = vld [vmem:[#allocation4 + $0x148] sm:$0xff]
          %v9526 = vld [vmem:[#allocation4 + $0x150] sm:$0xff]
          %v9527 = vld [vmem:[#allocation4 + $0x158] sm:$0xff]
          %v9528 = vld [vmem:[#allocation4 + $0x160] sm:$0xff]
          %v9529 = vld [vmem:[#allocation4 + $0x168] sm:$0xff]
          %v9530 = vld [vmem:[#allocation4 + $0x170] sm:$0xff]
          %v9531 = vld [vmem:[#allocation4 + $0x178] sm:$0xff]
          %v9532 = vld [vmem:[#allocation4 + $0x180] sm:$0xff]
          %v9533 = vld [vmem:[#allocation4 + $0x188] sm:$0xff]
          %v9534 = vld [vmem:[#allocation4 + $0x190] sm:$0xff]
          %v9535 = vld [vmem:[#allocation4 + $0x198] sm:$0xff]
          %v9536 = vld [vmem:[#allocation4 + $0x1a0] sm:$0xff]
          %v9537 = vld [vmem:[#allocation4 + $0x1a8] sm:$0xff]
          %v9538 = vld [vmem:[#allocation4 + $0x1b0] sm:$0xff]
          %v9539 = vld [vmem:[#allocation4 + $0x1b8] sm:$0xff]
          %v9540 = vld [vmem:[#allocation4 + $0x1c0] sm:$0xff]
          %v9541 = vld [vmem:[#allocation4 + $0x1c8] sm:$0xff]
          %v9542 = vld [vmem:[#allocation4 + $0x1d0] sm:$0xff]
          %v9543 = vld [vmem:[#allocation4 + $0x1d8] sm:$0xff]
          %v9544 = vld [vmem:[#allocation4 + $0x1e0] sm:$0xff]
          %v9545 = vld [vmem:[#allocation4 + $0x1e8] sm:$0xff]
          %v9546 = vld [vmem:[#allocation4 + $0x1f0] sm:$0xff]
          %v9547 = vld [vmem:[#allocation4 + $0x1f8] sm:$0xff]
          %9549 = vset.pattern.permute.xlu0 0
          %9550 = vperm.xlu0 %9549, %v9228
          %v9551 = vpop.permute.xlu0 %9550
          %9554 = vset.pattern.permute.xlu0 0
          %9555 = vperm.xlu0 %9554, %v9229
          %v9556 = vpop.permute.xlu0 %9555
          %9559 = vset.pattern.permute.xlu0 0
          %9560 = vperm.xlu0 %9559, %v9230
          %v9561 = vpop.permute.xlu0 %9560
          %9564 = vset.pattern.permute.xlu0 0
          %9565 = vperm.xlu0 %9564, %v9231
          %v9566 = vpop.permute.xlu0 %9565
          %9569 = vset.pattern.permute.xlu0 0
          %9570 = vperm.xlu0 %9569, %v9232
          %v9571 = vpop.permute.xlu0 %9570
          %9574 = vset.pattern.permute.xlu0 0
          %9575 = vperm.xlu0 %9574, %v9233
          %v9576 = vpop.permute.xlu0 %9575
          %9579 = vset.pattern.permute.xlu0 0
          %9580 = vperm.xlu0 %9579, %v9234
          %v9581 = vpop.permute.xlu0 %9580
          %9584 = vset.pattern.permute.xlu0 0
          %9585 = vperm.xlu0 %9584, %v9235
          %v9586 = vpop.permute.xlu0 %9585
          %9589 = vset.pattern.permute.xlu0 0
          %9590 = vperm.xlu0 %9589, %v9236
          %v9591 = vpop.permute.xlu0 %9590
          %9594 = vset.pattern.permute.xlu0 0
          %9595 = vperm.xlu0 %9594, %v9237
          %v9596 = vpop.permute.xlu0 %9595
          %9599 = vset.pattern.permute.xlu0 0
          %9600 = vperm.xlu0 %9599, %v9238
          %v9601 = vpop.permute.xlu0 %9600
          %9604 = vset.pattern.permute.xlu0 0
          %9605 = vperm.xlu0 %9604, %v9239
          %v9606 = vpop.permute.xlu0 %9605
          %9609 = vset.pattern.permute.xlu0 0
          %9610 = vperm.xlu0 %9609, %v9240
          %v9611 = vpop.permute.xlu0 %9610
          %9614 = vset.pattern.permute.xlu0 0
          %9615 = vperm.xlu0 %9614, %v9241
          %v9616 = vpop.permute.xlu0 %9615
          %9619 = vset.pattern.permute.xlu0 0
          %9620 = vperm.xlu0 %9619, %v9242
          %v9621 = vpop.permute.xlu0 %9620
          %9624 = vset.pattern.permute.xlu0 0
          %9625 = vperm.xlu0 %9624, %v9243
          %v9626 = vpop.permute.xlu0 %9625
          %9629 = vset.pattern.permute.xlu0 0
          %9630 = vperm.xlu0 %9629, %v9244
          %v9631 = vpop.permute.xlu0 %9630
          %9634 = vset.pattern.permute.xlu0 0
          %9635 = vperm.xlu0 %9634, %v9245
          %v9636 = vpop.permute.xlu0 %9635
          %9639 = vset.pattern.permute.xlu0 0
          %9640 = vperm.xlu0 %9639, %v9246
          %v9641 = vpop.permute.xlu0 %9640
          %9644 = vset.pattern.permute.xlu0 0
          %9645 = vperm.xlu0 %9644, %v9247
          %v9646 = vpop.permute.xlu0 %9645
          %9649 = vset.pattern.permute.xlu0 0
          %9650 = vperm.xlu0 %9649, %v9248
          %v9651 = vpop.permute.xlu0 %9650
          %9654 = vset.pattern.permute.xlu0 0
          %9655 = vperm.xlu0 %9654, %v9249
          %v9656 = vpop.permute.xlu0 %9655
          %9659 = vset.pattern.permute.xlu0 0
          %9660 = vperm.xlu0 %9659, %v9250
          %v9661 = vpop.permute.xlu0 %9660
          %9664 = vset.pattern.permute.xlu0 0
          %9665 = vperm.xlu0 %9664, %v9251
          %v9666 = vpop.permute.xlu0 %9665
          %9669 = vset.pattern.permute.xlu0 0
          %9670 = vperm.xlu0 %9669, %v9252
          %v9671 = vpop.permute.xlu0 %9670
          %9674 = vset.pattern.permute.xlu0 0
          %9675 = vperm.xlu0 %9674, %v9253
          %v9676 = vpop.permute.xlu0 %9675
          %9679 = vset.pattern.permute.xlu0 0
          %9680 = vperm.xlu0 %9679, %v9254
          %v9681 = vpop.permute.xlu0 %9680
          %9684 = vset.pattern.permute.xlu0 0
          %9685 = vperm.xlu0 %9684, %v9255
          %v9686 = vpop.permute.xlu0 %9685
          %9689 = vset.pattern.permute.xlu0 0
          %9690 = vperm.xlu0 %9689, %v9256
          %v9691 = vpop.permute.xlu0 %9690
          %9694 = vset.pattern.permute.xlu0 0
          %9695 = vperm.xlu0 %9694, %v9257
          %v9696 = vpop.permute.xlu0 %9695
          %9699 = vset.pattern.permute.xlu0 0
          %9700 = vperm.xlu0 %9699, %v9258
          %v9701 = vpop.permute.xlu0 %9700
          %9704 = vset.pattern.permute.xlu0 0
          %9705 = vperm.xlu0 %9704, %v9259
          %v9706 = vpop.permute.xlu0 %9705
          %v9708 = vmul.f32 %v9516, %v9551
          %v9709 = vmul.f32 %v9517, %v9556
          %v9710 = vmul.f32 %v9518, %v9561
          %v9711 = vmul.f32 %v9519, %v9566
          %v9712 = vmul.f32 %v9520, %v9571
          %v9713 = vmul.f32 %v9521, %v9576
          %v9714 = vmul.f32 %v9522, %v9581
          %v9715 = vmul.f32 %v9523, %v9586
          %v9716 = vmul.f32 %v9524, %v9591
          %v9717 = vmul.f32 %v9525, %v9596
          %v9718 = vmul.f32 %v9526, %v9601
          %v9719 = vmul.f32 %v9527, %v9606
          %v9720 = vmul.f32 %v9528, %v9611
          %v9721 = vmul.f32 %v9529, %v9616
          %v9722 = vmul.f32 %v9530, %v9621
          %v9723 = vmul.f32 %v9531, %v9626
          %v9724 = vmul.f32 %v9532, %v9631
          %v9725 = vmul.f32 %v9533, %v9636
          %v9726 = vmul.f32 %v9534, %v9641
          %v9727 = vmul.f32 %v9535, %v9646
          %v9728 = vmul.f32 %v9536, %v9651
          %v9729 = vmul.f32 %v9537, %v9656
          %v9730 = vmul.f32 %v9538, %v9661
          %v9731 = vmul.f32 %v9539, %v9666
          %v9732 = vmul.f32 %v9540, %v9671
          %v9733 = vmul.f32 %v9541, %v9676
          %v9734 = vmul.f32 %v9542, %v9681
          %v9735 = vmul.f32 %v9543, %v9686
          %v9736 = vmul.f32 %v9544, %v9691
          %v9737 = vmul.f32 %v9545, %v9696
          %v9738 = vmul.f32 %v9546, %v9701
          %v9739 = vmul.f32 %v9547, %v9706
          %9740 = vst [vmem:[%s324 + $0x8] sm:$0xff] %v9708
          %9741 = vst [vmem:[%s324 + $0x18] sm:$0xff] %v9709
          %9742 = vst [vmem:[%s324 + $0x28] sm:$0xff] %v9710
          %9743 = vst [vmem:[%s324 + $0x38] sm:$0xff] %v9711
          %9744 = vst [vmem:[%s324 + $0x48] sm:$0xff] %v9712
          %9745 = vst [vmem:[%s324 + $0x58] sm:$0xff] %v9713
          %9746 = vst [vmem:[%s324 + $0x68] sm:$0xff] %v9714
          %9747 = vst [vmem:[%s324 + $0x78] sm:$0xff] %v9715
          %9748 = vst [vmem:[%s324 + $0x88] sm:$0xff] %v9716
          %9749 = vst [vmem:[%s324 + $0x98] sm:$0xff] %v9717
          %9750 = vst [vmem:[%s324 + $0xa8] sm:$0xff] %v9718
          %9751 = vst [vmem:[%s324 + $0xb8] sm:$0xff] %v9719
          %9752 = vst [vmem:[%s324 + $0xc8] sm:$0xff] %v9720
          %9753 = vst [vmem:[%s324 + $0xd8] sm:$0xff] %v9721
          %9754 = vst [vmem:[%s324 + $0xe8] sm:$0xff] %v9722
          %9755 = vst [vmem:[%s324 + $0xf8] sm:$0xff] %v9723
          %9756 = vst [vmem:[%s324 + $0x108] sm:$0xff] %v9724
          %9757 = vst [vmem:[%s324 + $0x118] sm:$0xff] %v9725
          %9758 = vst [vmem:[%s324 + $0x128] sm:$0xff] %v9726
          %9759 = vst [vmem:[%s324 + $0x138] sm:$0xff] %v9727
          %9760 = vst [vmem:[%s324 + $0x148] sm:$0xff] %v9728
          %9761 = vst [vmem:[%s324 + $0x158] sm:$0xff] %v9729
          %9762 = vst [vmem:[%s324 + $0x168] sm:$0xff] %v9730
          %9763 = vst [vmem:[%s324 + $0x178] sm:$0xff] %v9731
          %9764 = vst [vmem:[%s324 + $0x188] sm:$0xff] %v9732
          %9765 = vst [vmem:[%s324 + $0x198] sm:$0xff] %v9733
          %9766 = vst [vmem:[%s324 + $0x1a8] sm:$0xff] %v9734
          %9767 = vst [vmem:[%s324 + $0x1b8] sm:$0xff] %v9735
          %9768 = vst [vmem:[%s324 + $0x1c8] sm:$0xff] %v9736
          %9769 = vst [vmem:[%s324 + $0x1d8] sm:$0xff] %v9737
          %9770 = vst [vmem:[%s324 + $0x1e8] sm:$0xff] %v9738
          %9771 = vst [vmem:[%s324 + $0x1f8] sm:$0xff] %v9739
        $region56: #{tpu_custom_call.1} parent=31 // pred_fallthru
          _
        %s9772 = sand.u32 %s152, 1
        %s9773 = scalar_lea.sflag [#allocation11], %s9772
        %s9774 = sand.u32 %s152, 1
        %s9775 = smul.addr %s9774, 512
        %s9776 = scalar_lea.vmem [#allocation15], %s9775
        // Predicated region
        $region57: #{tpu_custom_call.1} parent=31 // pred_check
          %p9777 = pneg %p162
        $region58: #{tpu_custom_call.1} parent=31 // pred_check_branch
          %9779 = sbr.rel (%p9777) target = $region60
        $region59: #{tpu_custom_call.1} parent=31 // pred_region
          %s9780 = sld [smem:[#allocation7 + %s43]]
          %s9781 = smul.u32 32, %s9780
          %s9782 = smul.u32 2, %s42
          %9784 = vsyncadd %s9773, 0
          %s9785 = smul.addr %s9781, 4
          %s9786 = sadd.s32 %s9782, %s9785
          %s9787 = smul.addr %s9786, 8
          %s9788 = scalar_lea.hbm %s5, %s9787
          %s9789 = sshll.u32 %s9776, 4
          %s9790 = int_to_ptr.vmem [resolvable:$true] %s9789
          %s9791 = sshll.u32 %s9788, 4
          %s9792 = int_to_ptr.hbm [resolvable:$true] %s9791
          %9797 = dma.vmem_to_hbm [thread:$0]  %s9790, 8192, %s9792, %s9773, 256, 512, 16
        $region60: #{tpu_custom_call.1} parent=31 // pred_fallthru
          _
      $region32: #{tpu_custom_call.1} parent=5 // pred_fallthru
        _
      %p9798 = scmp.le.s32.totalorder 2, %s33
      // Predicated region
      $region61: #{tpu_custom_call.1} parent=5 // pred_check
        %p9799 = pneg %p9798
      $region62: #{tpu_custom_call.1} parent=5 // pred_check_branch
        %9801 = sbr.rel (%p9799) target = $region64
      $region63: #{tpu_custom_call.1} parent=5 // pred_region
        %s9802 = ssub.s32 %s33, 2
        // Predicated region
        $region65: #{tpu_custom_call.1} parent=63 // pred_check
          %p9803 = pneg %p168
        $region66: #{tpu_custom_call.1} parent=63 // pred_check_branch
          %9805 = sbr.rel (%p9803) target = $region68
        $region67: #{tpu_custom_call.1} parent=63 // pred_region
          %s9806 = sand.u32 %s153, 1
          %s9807 = scalar_lea.sflag [#allocation11], %s9806
          %s9808 = sand.u32 %s153, 1
          %s9809 = smul.addr %s9808, 512
          %s9810 = scalar_lea.vmem [#allocation15], %s9809
          %9812 = dma.done %s9807, 8192
        $region68: #{tpu_custom_call.1} parent=63 // pred_fallthru
          _
      $region64: #{tpu_custom_call.1} parent=5 // pred_fallthru
        _
    $region6: #{tpu_custom_call.1} parent=1 // loop_footer
      %s37 = sadd.s32 1, %s33
    $region7: #{tpu_custom_call.1} parent=1 // loop_footer_branch
      %32 = sbr.rel target = $region3
    $region8: #{tpu_custom_call.1} parent=1 // loop_exit
      _
    %9813 = vsyncpa [#allocation10], 1
    %s9814 = scalar_lea.sflag [#allocation10], 1
    %9815 = vsyncpa %s9814, 1
    %9816 = vsyncpa [#allocation13], 1
    %s9817 = scalar_lea.sflag [#allocation13], 1
    %9818 = vsyncpa %s9817, 1
    %9819 = vsyncpa [#allocation11], 1
    %s9820 = scalar_lea.sflag [#allocation11], 1
    %9821 = vsyncpa %s9820, 1

</llo_original>
